<compile_context>
chip_gen: v7x
topology: tpu7x:2x2x1
jax: 0.10.0
libtpu: 0.0.40
codegen_flags: <defaults>
</compile_context>

<pallas_src>
import functools

import jax
import jax.numpy as jnp
from jax import lax
from jax.experimental import pallas as pl
from jax.experimental.pallas import tpu as pltpu


# ----------------------------------------------------------------------------
# helpers
# ----------------------------------------------------------------------------
def _round_up(x, m):
    return ((x + m - 1) // m) * m


def _pick_tile(n, preferred, align):
    """Largest divisor of n that is <= preferred and a multiple of `align`,
    else n itself (single full-extent block)."""
    if n <= preferred:
        return n
    for t in range(preferred, align - 1, -1):
        if n % t == 0 and t % align == 0:
            return t
    return n


# ----------------------------------------------------------------------------
# Kernel 1: tiled pairwise squared distances (matmul part of knn_search)
# ----------------------------------------------------------------------------
def _sqdist_kernel(xi_ref, xjt_ref, nj_ref, d2_ref):
    xi = xi_ref[0]                                            # (TM, 3)  f32
    xjt = xjt_ref[0]                                          # (3, TN)  f32 lane-dense
    nj = nj_ref[0]                                            # (1, TN)  precomputed |x_j|^2
    sqi = jnp.sum(xi * xi, axis=-1, keepdims=True)            # (TM, 1)
    g = jnp.dot(xi, xjt, preferred_element_type=jnp.float32)  # (TM, TN) plain contraction
    d2 = jnp.maximum(sqi + nj - 2.0 * g, 0.0)                 # clamp cancellation negatives
    d2_ref[0] = d2.astype(d2_ref.dtype)                       # bf16 store (half HBM bytes)


def pairwise_sqdist(pts):
    B, N, _ = pts.shape
    TM = _pick_tile(N, 512, 16)   # 16-aligned sublane tile for the bf16 output
    TN = _pick_tile(N, 512, 128)
    pts_t = jnp.transpose(pts, (0, 2, 1))                     # (B, 3, N) tiny XLA transpose
    norms = jnp.sum(pts * pts, axis=-1)[:, None, :]           # (B, 1, N)
    return pl.pallas_call(
        _sqdist_kernel,
        out_shape=jax.ShapeDtypeStruct((B, N, N), jnp.bfloat16),
        grid=(B, N // TM, N // TN),
        in_specs=[
            pl.BlockSpec((1, TM, 3), lambda b, i, j: (b, i, 0)),
            pl.BlockSpec((1, 3, TN), lambda b, i, j: (b, 0, j)),
            pl.BlockSpec((1, 1, TN), lambda b, i, j: (b, 0, j)),
        ],
        out_specs=pl.BlockSpec((1, TM, TN), lambda b, i, j: (b, i, j)),
        compiler_params=pltpu.CompilerParams(
            dimension_semantics=("parallel", "parallel", "parallel"),
            vmem_limit_bytes=48 * 1024 * 1024),
    )(pts, pts_t, norms)


# ----------------------------------------------------------------------------
# Kernel 2: neighbor features + SMLP stack + K-batched layer 2 + max pool + fuse
# ----------------------------------------------------------------------------
def _nbr_agg_kernel(knn_ref,
                    wb1a_ref, w1b_ref, wsm_ref, w3l_ref, w3p_ref,
                    out_ref, hstack_ref, h2stack_ref, *, num_neighbors):
    K = num_neighbors
    f32, bf16 = jnp.float32, jnp.bfloat16

    knn = knn_ref[0]                               # (TN, 3*(K+1)) f32, neighbor-major
    TN = knn.shape[0]
    anchor = knn[:, 0:3]                           # (TN, 3); knn[..., 0] is the self point
    anchor_b = anchor.astype(bf16)

    # packed weights (loaded once per tile, hoisted out of the K loop)
    wb1a = wb1a_ref[...]                           # (8, 16) f32
    w1a_abs = wb1a[0:3].astype(bf16)               # (3, 16)
    w1a_rel = wb1a[3:6].astype(bf16)               # (3, 16)
    w1a_d = wb1a[6:7]                              # (1, 16) f32 (d term stays f32)
    b1a = wb1a[7:8]                                # (1, 16) f32
    w1b = w1b_ref[...]                             # (16, C) bf16
    wsm = wsm_ref[...]                             # (6, C)  f32
    w2_b = wsm[0:3].astype(bf16)                   # (3, C)
    b1b, b2, b3 = wsm[3:4], wsm[4:5], wsm[5:6]     # (1, C) each

    # anchor contribution to SMLP-1a is shared by all K neighbors
    abs_term = jnp.dot(anchor_b, w1a_abs, preferred_element_type=f32)    # (TN, 16)

    # --- SMLP-1a per neighbor; results stacked along sublanes in VMEM scratch ---
    for k in range(K):                             # small static K -> unrolled, no
        nb = knn[:, 3 * (k + 1):3 * (k + 2)]       # live state carried across iters
        rel = nb - anchor                          # (TN, 3) f32
        d = jnp.sqrt(jnp.sum(rel * rel, axis=-1, keepdims=True) + 1e-8)  # (TN, 1) f32
        h = abs_term
        h = h + jnp.dot(rel.astype(bf16), w1a_rel, preferred_element_type=f32)
        h = h + d * w1a_d + b1a
        h = jnp.maximum(h, 0.0)                    # (TN, 16) f32
        hstack_ref[pl.ds(k * TN, TN), :] = h

    # --- SMLP-1b for all K neighbors in ONE matmul (single RHS push) ---
    h2stack_ref[...] = jnp.dot(hstack_ref[...].astype(bf16), w1b,
                               preferred_element_type=f32)               # (K*TN, C)

    # streaming max over the K sublane blocks; shared bias + ReLU once after the
    # max (exact: relu(x+b) is monotone and b is identical across K)
    pooled = h2stack_ref[pl.ds(0, TN), :]
    for k in range(1, K):
        pooled = jnp.maximum(pooled, h2stack_ref[pl.ds(k * TN, TN), :])
    pooled = jnp.maximum(pooled + b1b, 0.0)        # (TN, C)

    # --- SMLP-2 on the anchor point (== the query point itself) ---
    lifted = jnp.dot(anchor_b, w2_b, preferred_element_type=f32) + b2
    lifted = jnp.maximum(lifted, 0.0)              # (TN, C)

    # --- SMLP-3: concat([lifted, pooled]) @ W3 == lifted@W3l + pooled@W3p ---
    out = jnp.dot(lifted.astype(bf16), w3l_ref[...], preferred_element_type=f32)
    out = out + jnp.dot(pooled.astype(bf16), w3p_ref[...],
                        preferred_element_type=f32)
    out_ref[0] = jnp.maximum(out + b3, 0.0).astype(out_ref.dtype)


def _prepare_params(params):
    """Pack the 11 parameter tensors into 5 arrays; matmul weights in bf16."""
    f32, bf16 = jnp.float32, jnp.bfloat16
    C = params["w3"].shape[1]
    wb1a = jnp.concatenate([params["w1a"], params["b1a"]], axis=0).astype(f32)   # (8, 16)
    w1b = params["w1b"].astype(bf16)                                             # (16, C)
    wsm = jnp.concatenate([params["w2"], params["b1b"],
                           params["b2"], params["b3"]], axis=0).astype(f32)      # (6, C)
    w3l = params["w3"][:C].astype(bf16)                                          # (C, C)
    w3p = params["w3"][C:].astype(bf16)                                          # (C, C)
    return [wb1a, w1b, wsm, w3l, w3p]


def nbr_agg_embed(knn_pts, params):
    B, Np, Kp1, _ = knn_pts.shape
    K = Kp1 - 1
    C = params["w3"].shape[1]
    weights = _prepare_params(params)

    # pack neighbors onto the lane axis: (B, Np, K+1, 3) -> (B, Np, 3*(K+1))
    knn_packed = knn_pts.reshape(B, Np, Kp1 * 3)
    TN = _pick_tile(Np, 256, 8)

    def const_spec(arr):
        nd = arr.ndim
        return pl.BlockSpec(arr.shape, lambda b, i, _nd=nd: (0,) * _nd)

    return pl.pallas_call(
        functools.partial(_nbr_agg_kernel, num_neighbors=K),
        out_shape=jax.ShapeDtypeStruct((B, Np, C), jnp.float32),
        grid=(B, Np // TN),
        in_specs=[pl.BlockSpec((1, TN, Kp1 * 3), lambda b, i: (b, i, 0))]
                 + [const_spec(w) for w in weights],
        out_specs=pl.BlockSpec((1, TN, C), lambda b, i: (b, i, 0)),
        scratch_shapes=[pltpu.VMEM((K * TN, 16), jnp.float32),
                        pltpu.VMEM((K * TN, C), jnp.float32)],
        compiler_params=pltpu.CompilerParams(
            dimension_semantics=("parallel", "parallel"),
            vmem_limit_bytes=48 * 1024 * 1024),
    )(knn_packed, *weights)


# ----------------------------------------------------------------------------
# Full forward (knn_search glue + Pallas kernels)
# ----------------------------------------------------------------------------
def nbr_agg_forward(pts, params, num_neighbors):
    B, N, _ = pts.shape
    K = num_neighbors

    # Pad the point dim to a multiple of 128 with far-away sentinel points so
    # both kernels always get lane/sublane-aligned tiles (no full-extent
    # fallback blocks). Sentinel rows never win the neighbor race for real
    # points and are sliced off at the end.
    N_pad = _round_up(N, 128)
    if N_pad != N:
        sentinel = jnp.full((B, N_pad - N, 3), 1e4, pts.dtype)
        pts_p = jnp.concatenate([pts, sentinel], axis=1)
    else:
        pts_p = pts

    d2 = pairwise_sqdist(pts_p)                              # Pallas kernel 1 (bf16)
    _, knn_idx = lax.top_k(-d2, K + 1)                       # ascending distances
    knn_pts = jax.vmap(lambda p, i: p[i])(pts_p, knn_idx)    # index_points gather
    out = nbr_agg_embed(knn_pts, params)                     # Pallas kernel 2
    return out[:, :N], knn_pts[:, :N]


# ----------------------------------------------------------------------------
# Deterministic parameter init (shapes from NbrAgg.__init__) and JAX reference
# ----------------------------------------------------------------------------
def init_params(key, out_channels):
    C = out_channels
    ks = jax.random.split(key, 8)

    def w(k, fi, fo):
        return jax.random.normal(k, (fi, fo), jnp.float32) * jnp.sqrt(2.0 / fi)

    def b(k, fo):
        return jax.random.normal(k, (1, fo), jnp.float32) * 0.05

    return dict(
        w1a=w(ks[0], 7, 16), b1a=b(ks[1], 16),               # SMLP(7, 16)
        w1b=w(ks[2], 16, C), b1b=b(ks[3], C),                # SMLP(16, C)
        w2=w(ks[4], 3, C), b2=b(ks[5], C),                   # SMLP(3, C)
        w3=w(ks[6], 2 * C, C), b3=b(ks[7], C),               # SMLP(2C, C)
    )


def reference_embed(knn_pts, params):
    # Mirrors the kernel's numerics: bf16 matmul operands with f32 accumulation,
    # distance / bias / ReLU / max math in f32, anchor reused for the lifted path.
    bf16, f32 = jnp.bfloat16, jnp.float32

    def mm(a, w):
        return jnp.matmul(a.astype(bf16), w.astype(bf16),
                          preferred_element_type=f32)

    relu = lambda x: jnp.maximum(x, 0.0)
    C = params["w3"].shape[1]
    w1a, w3 = params["w1a"], params["w3"]

    anchor = knn_pts[:, :, :1, :]                            # (B, N, 1, 3)
    rel = knn_pts[:, :, 1:, :] - anchor                      # (B, N, K, 3)
    dists = jnp.sqrt(jnp.sum(rel ** 2, axis=-1, keepdims=True) + 1e-8)

    h = mm(jnp.broadcast_to(anchor, rel.shape), w1a[0:3]) \
        + mm(rel, w1a[3:6]) + dists * w1a[6:7] + params["b1a"]
    h = relu(h)
    h = relu(mm(h, params["w1b"]) + params["b1b"])           # (B, N, K, C)
    pooled = jnp.max(h, axis=2)                              # (B, N, C)

    lifted = relu(mm(anchor[:, :, 0, :], params["w2"]) + params["b2"])
    out = relu(mm(lifted, w3[:C]) + mm(pooled, w3[C:]) + params["b3"])
    return out


if __name__ == "__main__":
    B, N, K, C = 2, 64, 8, 32   # batch, points, num_neighbors, out_channels
    key = jax.random.PRNGKey(0)
    k_pts, k_par = jax.random.split(key)
    pts = jax.random.normal(k_pts, (B, N, 3), dtype=jnp.float32)
    params = init_params(k_par, C)

    fwd = jax.jit(functools.partial(nbr_agg_forward, num_neighbors=K))
    out, knn_pts = fwd(pts, params)
    out = jax.block_until_ready(out)

    ref = reference_embed(knn_pts, params)
    assert out.shape == (B, N, C)
    err = float(jnp.max(jnp.abs(out - ref)))
    assert bool(jnp.allclose(out, ref, atol=5e-3, rtol=5e-3)), err
    print("KERNEL_OK")
</pallas_src>

<mosaic_0001>
module attributes {stable_mosaic.version = 11 : i64} {
  func.func @_sqdist_kernel(%arg0: i32, %arg1: i32, %arg2: i32, %arg3: memref<1x128x3xf32, #tpu.memory_space<vmem>>, %arg4: memref<1x3x128xf32, #tpu.memory_space<vmem>>, %arg5: memref<1x1x128xf32, #tpu.memory_space<vmem>>, %arg6: memref<1x128x128xbf16, #tpu.memory_space<vmem>>) attributes {dimension_semantics = [#tpu.dimension_semantics<parallel>, #tpu.dimension_semantics<parallel>, #tpu.dimension_semantics<parallel>], iteration_bounds = array<i64: 2, 1, 1>, scalar_prefetch = 0 : i64, scratch_operands = 0 : i64, tpu.core_type = #tpu.core_type<tc>, window_params = [{transform_indices = @transform_0, window_bounds = array<i64: 1, 128, 3>}, {transform_indices = @transform_1, window_bounds = array<i64: 1, 3, 128>}, {transform_indices = @transform_2, window_bounds = array<i64: 1, 1, 128>}, {transform_indices = @transform_3, window_bounds = array<i64: 1, 128, 128>}]} {
    %c0 = arith.constant 0 : index
    %c0_0 = arith.constant 0 : index
    %c0_1 = arith.constant 0 : index
    %0 = vector.load %arg3[%c0, %c0_0, %c0_1] : memref<1x128x3xf32, #tpu.memory_space<vmem>>, vector<1x128x3xf32>
    %1 = vector.shape_cast %0 : vector<1x128x3xf32> to vector<128x3xf32>
    %c0_2 = arith.constant 0 : index
    %c0_3 = arith.constant 0 : index
    %c0_4 = arith.constant 0 : index
    %2 = vector.load %arg4[%c0_2, %c0_3, %c0_4] : memref<1x3x128xf32, #tpu.memory_space<vmem>>, vector<1x3x128xf32>
    %3 = vector.shape_cast %2 : vector<1x3x128xf32> to vector<3x128xf32>
    %c0_5 = arith.constant 0 : index
    %c0_6 = arith.constant 0 : index
    %c0_7 = arith.constant 0 : index
    %4 = vector.load %arg5[%c0_5, %c0_6, %c0_7] : memref<1x1x128xf32, #tpu.memory_space<vmem>>, vector<1x1x128xf32>
    %5 = vector.shape_cast %4 : vector<1x1x128xf32> to vector<1x128xf32>
    %6 = arith.mulf %1, %1 : vector<128x3xf32>
    %cst = arith.constant dense<0.000000e+00> : vector<128xf32>
    %7 = vector.multi_reduction <add>, %6, %cst [1] : vector<128x3xf32> to vector<128xf32>
    %8 = vector.shape_cast %7 : vector<128xf32> to vector<128x1xf32>
    %cst_8 = arith.constant dense<0.000000e+00> : vector<128x128xf32>
    %9 = tpu.matmul %1, %3, %cst_8 {dimension_numbers = #tpu.dot_dimension_numbers<[1], [0], [0], [1], [0, 0, 1, 1], [], []>} : vector<128x3xf32>, vector<3x128xf32>, vector<128x128xf32> -> vector<128x128xf32>
    %10 = vector.broadcast %8 : vector<128x1xf32> to vector<128x128xf32>
    %11 = vector.broadcast %5 : vector<1x128xf32> to vector<128x128xf32>
    %12 = arith.addf %10, %11 : vector<128x128xf32>
    %cst_9 = arith.constant 2.000000e+00 : f32
    %13 = vector.broadcast %cst_9 : f32 to vector<128x128xf32>
    %14 = arith.mulf %13, %9 : vector<128x128xf32>
    %15 = arith.subf %12, %14 : vector<128x128xf32>
    %cst_10 = arith.constant 0.000000e+00 : f32
    %16 = vector.broadcast %cst_10 : f32 to vector<128x128xf32>
    %17 = arith.maximumf %15, %16 : vector<128x128xf32>
    %18 = arith.truncf %17 : vector<128x128xf32> to vector<128x128xbf16>
    %c0_11 = arith.constant 0 : index
    %c0_12 = arith.constant 0 : index
    %c0_13 = arith.constant 0 : index
    %19 = vector.load %arg6[%c0_11, %c0_12, %c0_13] : memref<1x128x128xbf16, #tpu.memory_space<vmem>>, vector<1x128x128xbf16>
    %20 = vector.shape_cast %19 : vector<1x128x128xbf16> to vector<128x128xbf16>
    %21 = vector.shape_cast %18 : vector<128x128xbf16> to vector<1x128x128xbf16>
    tpu.vector_store %arg6[%c0_11, %c0_12, %c0_13], %21 {strides = array<i32>} : memref<1x128x128xbf16, #tpu.memory_space<vmem>>, vector<1x128x128xbf16>,
    return
  }
  func.func @transform_0(%arg0: i32, %arg1: i32, %arg2: i32) -> (i32, i32, i32) {
    %c0_i32 = arith.constant 0 : i32
    %c0_i32_0 = arith.constant 0 : i32
    return %arg0, %arg1, %c0_i32 : i32, i32, i32
  }
  func.func @transform_1(%arg0: i32, %arg1: i32, %arg2: i32) -> (i32, i32, i32) {
    %c0_i32 = arith.constant 0 : i32
    %c0_i32_0 = arith.constant 0 : i32
    return %arg0, %c0_i32, %arg2 : i32, i32, i32
  }
  func.func @transform_2(%arg0: i32, %arg1: i32, %arg2: i32) -> (i32, i32, i32) {
    %c0_i32 = arith.constant 0 : i32
    %c0_i32_0 = arith.constant 0 : i32
    return %arg0, %c0_i32, %arg2 : i32, i32, i32
  }
  func.func @transform_3(%arg0: i32, %arg1: i32, %arg2: i32) -> (i32, i32, i32) {
    %c0_i32 = arith.constant 0 : i32
    return %arg0, %arg1, %arg2 : i32, i32, i32
  }
}

module attributes {stable_mosaic.version = 11 : i64} {
  func.func @_nbr_agg_kernel(%arg0: i32, %arg1: i32, %arg2: memref<1x128x27xf32, #tpu.memory_space<vmem>>, %arg3: memref<8x16xf32, #tpu.memory_space<vmem>>, %arg4: memref<16x32xbf16, #tpu.memory_space<vmem>>, %arg5: memref<6x32xf32, #tpu.memory_space<vmem>>, %arg6: memref<32x32xbf16, #tpu.memory_space<vmem>>, %arg7: memref<32x32xbf16, #tpu.memory_space<vmem>>, %arg8: memref<1x128x32xf32, #tpu.memory_space<vmem>>, %arg9: memref<1024x16xf32, #tpu.memory_space<vmem>>, %arg10: memref<1024x32xf32, #tpu.memory_space<vmem>>) attributes {dimension_semantics = [#tpu.dimension_semantics<parallel>, #tpu.dimension_semantics<parallel>], iteration_bounds = array<i64: 2, 1>, scalar_prefetch = 0 : i64, scratch_operands = 2 : i64, tpu.core_type = #tpu.core_type<tc>, window_params = [{transform_indices = @transform_0, window_bounds = array<i64: 1, 128, 27>}, {pipeline_mode = #tpu.pipeline_mode<synchronous>, transform_indices = @transform_1, window_bounds = array<i64: 8, 16>}, {pipeline_mode = #tpu.pipeline_mode<synchronous>, transform_indices = @transform_2, window_bounds = array<i64: 16, 32>}, {pipeline_mode = #tpu.pipeline_mode<synchronous>, transform_indices = @transform_3, window_bounds = array<i64: 6, 32>}, {pipeline_mode = #tpu.pipeline_mode<synchronous>, transform_indices = @transform_4, window_bounds = array<i64: 32, 32>}, {pipeline_mode = #tpu.pipeline_mode<synchronous>, transform_indices = @transform_5, window_bounds = array<i64: 32, 32>}, {transform_indices = @transform_6, window_bounds = array<i64: 1, 128, 32>}]} {
    %c0 = arith.constant 0 : index
    %c0_0 = arith.constant 0 : index
    %c0_1 = arith.constant 0 : index
    %0 = vector.load %arg2[%c0, %c0_0, %c0_1] : memref<1x128x27xf32, #tpu.memory_space<vmem>>, vector<1x128x27xf32>
    %1 = vector.shape_cast %0 : vector<1x128x27xf32> to vector<128x27xf32>
    %2 = vector.extract_strided_slice %1 {offsets = [0, 0], sizes = [128, 3], strides = [1, 1]} : vector<128x27xf32> to vector<128x3xf32>
    %3 = arith.truncf %2 : vector<128x3xf32> to vector<128x3xbf16>
    %c0_2 = arith.constant 0 : index
    %c0_3 = arith.constant 0 : index
    %4 = vector.load %arg3[%c0_2, %c0_3] : memref<8x16xf32, #tpu.memory_space<vmem>>, vector<8x16xf32>
    %5 = vector.extract_strided_slice %4 {offsets = [0, 0], sizes = [3, 16], strides = [1, 1]} : vector<8x16xf32> to vector<3x16xf32>
    %6 = arith.truncf %5 : vector<3x16xf32> to vector<3x16xbf16>
    %7 = vector.extract_strided_slice %4 {offsets = [3, 0], sizes = [3, 16], strides = [1, 1]} : vector<8x16xf32> to vector<3x16xf32>
    %8 = arith.truncf %7 : vector<3x16xf32> to vector<3x16xbf16>
    %9 = vector.extract_strided_slice %4 {offsets = [6, 0], sizes = [1, 16], strides = [1, 1]} : vector<8x16xf32> to vector<1x16xf32>
    %10 = vector.extract_strided_slice %4 {offsets = [7, 0], sizes = [1, 16], strides = [1, 1]} : vector<8x16xf32> to vector<1x16xf32>
    %c0_4 = arith.constant 0 : index
    %c0_5 = arith.constant 0 : index
    %11 = vector.load %arg4[%c0_4, %c0_5] : memref<16x32xbf16, #tpu.memory_space<vmem>>, vector<16x32xbf16>
    %c0_6 = arith.constant 0 : index
    %c0_7 = arith.constant 0 : index
    %12 = vector.load %arg5[%c0_6, %c0_7] : memref<6x32xf32, #tpu.memory_space<vmem>>, vector<6x32xf32>
    %13 = vector.extract_strided_slice %12 {offsets = [0, 0], sizes = [3, 32], strides = [1, 1]} : vector<6x32xf32> to vector<3x32xf32>
    %14 = arith.truncf %13 : vector<3x32xf32> to vector<3x32xbf16>
    %15 = vector.extract_strided_slice %12 {offsets = [3, 0], sizes = [1, 32], strides = [1, 1]} : vector<6x32xf32> to vector<1x32xf32>
    %16 = vector.extract_strided_slice %12 {offsets = [4, 0], sizes = [1, 32], strides = [1, 1]} : vector<6x32xf32> to vector<1x32xf32>
    %17 = vector.extract_strided_slice %12 {offsets = [5, 0], sizes = [1, 32], strides = [1, 1]} : vector<6x32xf32> to vector<1x32xf32>
    %cst = arith.constant dense<0.000000e+00> : vector<128x16xf32>
    %18 = tpu.matmul %3, %6, %cst {dimension_numbers = #tpu.dot_dimension_numbers<[1], [0], [0], [1], [0, 0, 1, 1], [], []>} : vector<128x3xbf16>, vector<3x16xbf16>, vector<128x16xf32> -> vector<128x16xf32>
    %19 = vector.extract_strided_slice %1 {offsets = [0, 3], sizes = [128, 3], strides = [1, 1]} : vector<128x27xf32> to vector<128x3xf32>
    %20 = arith.subf %19, %2 : vector<128x3xf32>
    %21 = arith.mulf %20, %20 : vector<128x3xf32>
    %cst_8 = arith.constant dense<0.000000e+00> : vector<128xf32>
    %22 = vector.multi_reduction <add>, %21, %cst_8 [1] : vector<128x3xf32> to vector<128xf32>
    %23 = vector.shape_cast %22 : vector<128xf32> to vector<128x1xf32>
    %cst_9 = arith.constant 9.99999993E-9 : f32
    %24 = vector.broadcast %cst_9 : f32 to vector<128x1xf32>
    %25 = arith.addf %23, %24 : vector<128x1xf32>
    %26 = math.sqrt %25 : vector<128x1xf32>
    %27 = arith.truncf %20 : vector<128x3xf32> to vector<128x3xbf16>
    %cst_10 = arith.constant dense<0.000000e+00> : vector<128x16xf32>
    %28 = tpu.matmul %27, %8, %cst_10 {dimension_numbers = #tpu.dot_dimension_numbers<[1], [0], [0], [1], [0, 0, 1, 1], [], []>} : vector<128x3xbf16>, vector<3x16xbf16>, vector<128x16xf32> -> vector<128x16xf32>
    %29 = arith.addf %18, %28 : vector<128x16xf32>
    %30 = vector.broadcast %26 : vector<128x1xf32> to vector<128x16xf32>
    %31 = vector.broadcast %9 : vector<1x16xf32> to vector<128x16xf32>
    %32 = arith.mulf %30, %31 : vector<128x16xf32>
    %33 = arith.addf %29, %32 : vector<128x16xf32>
    %34 = vector.broadcast %10 : vector<1x16xf32> to vector<128x16xf32>
    %35 = arith.addf %33, %34 : vector<128x16xf32>
    %cst_11 = arith.constant 0.000000e+00 : f32
    %36 = vector.broadcast %cst_11 : f32 to vector<128x16xf32>
    %37 = arith.maximumf %35, %36 : vector<128x16xf32>
    %c0_12 = arith.constant 0 : index
    %c0_13 = arith.constant 0 : index
    %38 = vector.load %arg9[%c0_12, %c0_13] : memref<1024x16xf32, #tpu.memory_space<vmem>>, vector<128x16xf32>
    tpu.vector_store %arg9[%c0_12, %c0_13], %37 {strides = array<i32>} : memref<1024x16xf32, #tpu.memory_space<vmem>>, vector<128x16xf32>,
    %39 = vector.extract_strided_slice %1 {offsets = [0, 6], sizes = [128, 3], strides = [1, 1]} : vector<128x27xf32> to vector<128x3xf32>
    %40 = arith.subf %39, %2 : vector<128x3xf32>
    %41 = arith.mulf %40, %40 : vector<128x3xf32>
    %cst_14 = arith.constant dense<0.000000e+00> : vector<128xf32>
    %42 = vector.multi_reduction <add>, %41, %cst_14 [1] : vector<128x3xf32> to vector<128xf32>
    %43 = vector.shape_cast %42 : vector<128xf32> to vector<128x1xf32>
    %cst_15 = arith.constant 9.99999993E-9 : f32
    %44 = vector.broadcast %cst_15 : f32 to vector<128x1xf32>
    %45 = arith.addf %43, %44 : vector<128x1xf32>
    %46 = math.sqrt %45 : vector<128x1xf32>
    %47 = arith.truncf %40 : vector<128x3xf32> to vector<128x3xbf16>
    %cst_16 = arith.constant dense<0.000000e+00> : vector<128x16xf32>
    %48 = tpu.matmul %47, %8, %cst_16 {dimension_numbers = #tpu.dot_dimension_numbers<[1], [0], [0], [1], [0, 0, 1, 1], [], []>} : vector<128x3xbf16>, vector<3x16xbf16>, vector<128x16xf32> -> vector<128x16xf32>
    %49 = arith.addf %18, %48 : vector<128x16xf32>
    %50 = vector.broadcast %46 : vector<128x1xf32> to vector<128x16xf32>
    %51 = vector.broadcast %9 : vector<1x16xf32> to vector<128x16xf32>
    %52 = arith.mulf %50, %51 : vector<128x16xf32>
    %53 = arith.addf %49, %52 : vector<128x16xf32>
    %54 = vector.broadcast %10 : vector<1x16xf32> to vector<128x16xf32>
    %55 = arith.addf %53, %54 : vector<128x16xf32>
    %cst_17 = arith.constant 0.000000e+00 : f32
    %56 = vector.broadcast %cst_17 : f32 to vector<128x16xf32>
    %57 = arith.maximumf %55, %56 : vector<128x16xf32>
    %c128 = arith.constant 128 : index
    %c0_18 = arith.constant 0 : index
    %58 = vector.load %arg9[%c128, %c0_18] : memref<1024x16xf32, #tpu.memory_space<vmem>>, vector<128x16xf32>
    tpu.vector_store %arg9[%c128, %c0_18], %57 {strides = array<i32>} : memref<1024x16xf32, #tpu.memory_space<vmem>>, vector<128x16xf32>,
    %59 = vector.extract_strided_slice %1 {offsets = [0, 9], sizes = [128, 3], strides = [1, 1]} : vector<128x27xf32> to vector<128x3xf32>
    %60 = arith.subf %59, %2 : vector<128x3xf32>
    %61 = arith.mulf %60, %60 : vector<128x3xf32>
    %cst_19 = arith.constant dense<0.000000e+00> : vector<128xf32>
    %62 = vector.multi_reduction <add>, %61, %cst_19 [1] : vector<128x3xf32> to vector<128xf32>
    %63 = vector.shape_cast %62 : vector<128xf32> to vector<128x1xf32>
    %cst_20 = arith.constant 9.99999993E-9 : f32
    %64 = vector.broadcast %cst_20 : f32 to vector<128x1xf32>
    %65 = arith.addf %63, %64 : vector<128x1xf32>
    %66 = math.sqrt %65 : vector<128x1xf32>
    %67 = arith.truncf %60 : vector<128x3xf32> to vector<128x3xbf16>
    %cst_21 = arith.constant dense<0.000000e+00> : vector<128x16xf32>
    %68 = tpu.matmul %67, %8, %cst_21 {dimension_numbers = #tpu.dot_dimension_numbers<[1], [0], [0], [1], [0, 0, 1, 1], [], []>} : vector<128x3xbf16>, vector<3x16xbf16>, vector<128x16xf32> -> vector<128x16xf32>
    %69 = arith.addf %18, %68 : vector<128x16xf32>
    %70 = vector.broadcast %66 : vector<128x1xf32> to vector<128x16xf32>
    %71 = vector.broadcast %9 : vector<1x16xf32> to vector<128x16xf32>
    %72 = arith.mulf %70, %71 : vector<128x16xf32>
    %73 = arith.addf %69, %72 : vector<128x16xf32>
    %74 = vector.broadcast %10 : vector<1x16xf32> to vector<128x16xf32>
    %75 = arith.addf %73, %74 : vector<128x16xf32>
    %cst_22 = arith.constant 0.000000e+00 : f32
    %76 = vector.broadcast %cst_22 : f32 to vector<128x16xf32>
    %77 = arith.maximumf %75, %76 : vector<128x16xf32>
    %c256 = arith.constant 256 : index
    %c0_23 = arith.constant 0 : index
    %78 = vector.load %arg9[%c256, %c0_23] : memref<1024x16xf32, #tpu.memory_space<vmem>>, vector<128x16xf32>
    tpu.vector_store %arg9[%c256, %c0_23], %77 {strides = array<i32>} : memref<1024x16xf32, #tpu.memory_space<vmem>>, vector<128x16xf32>,
    %79 = vector.extract_strided_slice %1 {offsets = [0, 12], sizes = [128, 3], strides = [1, 1]} : vector<128x27xf32> to vector<128x3xf32>
    %80 = arith.subf %79, %2 : vector<128x3xf32>
    %81 = arith.mulf %80, %80 : vector<128x3xf32>
    %cst_24 = arith.constant dense<0.000000e+00> : vector<128xf32>
    %82 = vector.multi_reduction <add>, %81, %cst_24 [1] : vector<128x3xf32> to vector<128xf32>
    %83 = vector.shape_cast %82 : vector<128xf32> to vector<128x1xf32>
    %cst_25 = arith.constant 9.99999993E-9 : f32
    %84 = vector.broadcast %cst_25 : f32 to vector<128x1xf32>
    %85 = arith.addf %83, %84 : vector<128x1xf32>
    %86 = math.sqrt %85 : vector<128x1xf32>
    %87 = arith.truncf %80 : vector<128x3xf32> to vector<128x3xbf16>
    %cst_26 = arith.constant dense<0.000000e+00> : vector<128x16xf32>
    %88 = tpu.matmul %87, %8, %cst_26 {dimension_numbers = #tpu.dot_dimension_numbers<[1], [0], [0], [1], [0, 0, 1, 1], [], []>} : vector<128x3xbf16>, vector<3x16xbf16>, vector<128x16xf32> -> vector<128x16xf32>
    %89 = arith.addf %18, %88 : vector<128x16xf32>
    %90 = vector.broadcast %86 : vector<128x1xf32> to vector<128x16xf32>
    %91 = vector.broadcast %9 : vector<1x16xf32> to vector<128x16xf32>
    %92 = arith.mulf %90, %91 : vector<128x16xf32>
    %93 = arith.addf %89, %92 : vector<128x16xf32>
    %94 = vector.broadcast %10 : vector<1x16xf32> to vector<128x16xf32>
    %95 = arith.addf %93, %94 : vector<128x16xf32>
    %cst_27 = arith.constant 0.000000e+00 : f32
    %96 = vector.broadcast %cst_27 : f32 to vector<128x16xf32>
    %97 = arith.maximumf %95, %96 : vector<128x16xf32>
    %c384 = arith.constant 384 : index
    %c0_28 = arith.constant 0 : index
    %98 = vector.load %arg9[%c384, %c0_28] : memref<1024x16xf32, #tpu.memory_space<vmem>>, vector<128x16xf32>
    tpu.vector_store %arg9[%c384, %c0_28], %97 {strides = array<i32>} : memref<1024x16xf32, #tpu.memory_space<vmem>>, vector<128x16xf32>,
    %99 = vector.extract_strided_slice %1 {offsets = [0, 15], sizes = [128, 3], strides = [1, 1]} : vector<128x27xf32> to vector<128x3xf32>
    %100 = arith.subf %99, %2 : vector<128x3xf32>
    %101 = arith.mulf %100, %100 : vector<128x3xf32>
    %cst_29 = arith.constant dense<0.000000e+00> : vector<128xf32>
    %102 = vector.multi_reduction <add>, %101, %cst_29 [1] : vector<128x3xf32> to vector<128xf32>
    %103 = vector.shape_cast %102 : vector<128xf32> to vector<128x1xf32>
    %cst_30 = arith.constant 9.99999993E-9 : f32
    %104 = vector.broadcast %cst_30 : f32 to vector<128x1xf32>
    %105 = arith.addf %103, %104 : vector<128x1xf32>
    %106 = math.sqrt %105 : vector<128x1xf32>
    %107 = arith.truncf %100 : vector<128x3xf32> to vector<128x3xbf16>
    %cst_31 = arith.constant dense<0.000000e+00> : vector<128x16xf32>
    %108 = tpu.matmul %107, %8, %cst_31 {dimension_numbers = #tpu.dot_dimension_numbers<[1], [0], [0], [1], [0, 0, 1, 1], [], []>} : vector<128x3xbf16>, vector<3x16xbf16>, vector<128x16xf32> -> vector<128x16xf32>
    %109 = arith.addf %18, %108 : vector<128x16xf32>
    %110 = vector.broadcast %106 : vector<128x1xf32> to vector<128x16xf32>
    %111 = vector.broadcast %9 : vector<1x16xf32> to vector<128x16xf32>
    %112 = arith.mulf %110, %111 : vector<128x16xf32>
    %113 = arith.addf %109, %112 : vector<128x16xf32>
    %114 = vector.broadcast %10 : vector<1x16xf32> to vector<128x16xf32>
    %115 = arith.addf %113, %114 : vector<128x16xf32>
    %cst_32 = arith.constant 0.000000e+00 : f32
    %116 = vector.broadcast %cst_32 : f32 to vector<128x16xf32>
    %117 = arith.maximumf %115, %116 : vector<128x16xf32>
    %c512 = arith.constant 512 : index
    %c0_33 = arith.constant 0 : index
    %118 = vector.load %arg9[%c512, %c0_33] : memref<1024x16xf32, #tpu.memory_space<vmem>>, vector<128x16xf32>
    tpu.vector_store %arg9[%c512, %c0_33], %117 {strides = array<i32>} : memref<1024x16xf32, #tpu.memory_space<vmem>>, vector<128x16xf32>,
    %119 = vector.extract_strided_slice %1 {offsets = [0, 18], sizes = [128, 3], strides = [1, 1]} : vector<128x27xf32> to vector<128x3xf32>
    %120 = arith.subf %119, %2 : vector<128x3xf32>
    %121 = arith.mulf %120, %120 : vector<128x3xf32>
    %cst_34 = arith.constant dense<0.000000e+00> : vector<128xf32>
    %122 = vector.multi_reduction <add>, %121, %cst_34 [1] : vector<128x3xf32> to vector<128xf32>
    %123 = vector.shape_cast %122 : vector<128xf32> to vector<128x1xf32>
    %cst_35 = arith.constant 9.99999993E-9 : f32
    %124 = vector.broadcast %cst_35 : f32 to vector<128x1xf32>
    %125 = arith.addf %123, %124 : vector<128x1xf32>
    %126 = math.sqrt %125 : vector<128x1xf32>
    %127 = arith.truncf %120 : vector<128x3xf32> to vector<128x3xbf16>
    %cst_36 = arith.constant dense<0.000000e+00> : vector<128x16xf32>
    %128 = tpu.matmul %127, %8, %cst_36 {dimension_numbers = #tpu.dot_dimension_numbers<[1], [0], [0], [1], [0, 0, 1, 1], [], []>} : vector<128x3xbf16>, vector<3x16xbf16>, vector<128x16xf32> -> vector<128x16xf32>
    %129 = arith.addf %18, %128 : vector<128x16xf32>
    %130 = vector.broadcast %126 : vector<128x1xf32> to vector<128x16xf32>
    %131 = vector.broadcast %9 : vector<1x16xf32> to vector<128x16xf32>
    %132 = arith.mulf %130, %131 : vector<128x16xf32>
    %133 = arith.addf %129, %132 : vector<128x16xf32>
    %134 = vector.broadcast %10 : vector<1x16xf32> to vector<128x16xf32>
    %135 = arith.addf %133, %134 : vector<128x16xf32>
    %cst_37 = arith.constant 0.000000e+00 : f32
    %136 = vector.broadcast %cst_37 : f32 to vector<128x16xf32>
    %137 = arith.maximumf %135, %136 : vector<128x16xf32>
    %c640 = arith.constant 640 : index
    %c0_38 = arith.constant 0 : index
    %138 = vector.load %arg9[%c640, %c0_38] : memref<1024x16xf32, #tpu.memory_space<vmem>>, vector<128x16xf32>
    tpu.vector_store %arg9[%c640, %c0_38], %137 {strides = array<i32>} : memref<1024x16xf32, #tpu.memory_space<vmem>>, vector<128x16xf32>,
    %139 = vector.extract_strided_slice %1 {offsets = [0, 21], sizes = [128, 3], strides = [1, 1]} : vector<128x27xf32> to vector<128x3xf32>
    %140 = arith.subf %139, %2 : vector<128x3xf32>
    %141 = arith.mulf %140, %140 : vector<128x3xf32>
    %cst_39 = arith.constant dense<0.000000e+00> : vector<128xf32>
    %142 = vector.multi_reduction <add>, %141, %cst_39 [1] : vector<128x3xf32> to vector<128xf32>
    %143 = vector.shape_cast %142 : vector<128xf32> to vector<128x1xf32>
    %cst_40 = arith.constant 9.99999993E-9 : f32
    %144 = vector.broadcast %cst_40 : f32 to vector<128x1xf32>
    %145 = arith.addf %143, %144 : vector<128x1xf32>
    %146 = math.sqrt %145 : vector<128x1xf32>
    %147 = arith.truncf %140 : vector<128x3xf32> to vector<128x3xbf16>
    %cst_41 = arith.constant dense<0.000000e+00> : vector<128x16xf32>
    %148 = tpu.matmul %147, %8, %cst_41 {dimension_numbers = #tpu.dot_dimension_numbers<[1], [0], [0], [1], [0, 0, 1, 1], [], []>} : vector<128x3xbf16>, vector<3x16xbf16>, vector<128x16xf32> -> vector<128x16xf32>
    %149 = arith.addf %18, %148 : vector<128x16xf32>
    %150 = vector.broadcast %146 : vector<128x1xf32> to vector<128x16xf32>
    %151 = vector.broadcast %9 : vector<1x16xf32> to vector<128x16xf32>
    %152 = arith.mulf %150, %151 : vector<128x16xf32>
    %153 = arith.addf %149, %152 : vector<128x16xf32>
    %154 = vector.broadcast %10 : vector<1x16xf32> to vector<128x16xf32>
    %155 = arith.addf %153, %154 : vector<128x16xf32>
    %cst_42 = arith.constant 0.000000e+00 : f32
    %156 = vector.broadcast %cst_42 : f32 to vector<128x16xf32>
    %157 = arith.maximumf %155, %156 : vector<128x16xf32>
    %c768 = arith.constant 768 : index
    %c0_43 = arith.constant 0 : index
    %158 = vector.load %arg9[%c768, %c0_43] : memref<1024x16xf32, #tpu.memory_space<vmem>>, vector<128x16xf32>
    tpu.vector_store %arg9[%c768, %c0_43], %157 {strides = array<i32>} : memref<1024x16xf32, #tpu.memory_space<vmem>>, vector<128x16xf32>,
    %159 = vector.extract_strided_slice %1 {offsets = [0, 24], sizes = [128, 3], strides = [1, 1]} : vector<128x27xf32> to vector<128x3xf32>
    %160 = arith.subf %159, %2 : vector<128x3xf32>
    %161 = arith.mulf %160, %160 : vector<128x3xf32>
    %cst_44 = arith.constant dense<0.000000e+00> : vector<128xf32>
    %162 = vector.multi_reduction <add>, %161, %cst_44 [1] : vector<128x3xf32> to vector<128xf32>
    %163 = vector.shape_cast %162 : vector<128xf32> to vector<128x1xf32>
    %cst_45 = arith.constant 9.99999993E-9 : f32
    %164 = vector.broadcast %cst_45 : f32 to vector<128x1xf32>
    %165 = arith.addf %163, %164 : vector<128x1xf32>
    %166 = math.sqrt %165 : vector<128x1xf32>
    %167 = arith.truncf %160 : vector<128x3xf32> to vector<128x3xbf16>
    %cst_46 = arith.constant dense<0.000000e+00> : vector<128x16xf32>
    %168 = tpu.matmul %167, %8, %cst_46 {dimension_numbers = #tpu.dot_dimension_numbers<[1], [0], [0], [1], [0, 0, 1, 1], [], []>} : vector<128x3xbf16>, vector<3x16xbf16>, vector<128x16xf32> -> vector<128x16xf32>
    %169 = arith.addf %18, %168 : vector<128x16xf32>
    %170 = vector.broadcast %166 : vector<128x1xf32> to vector<128x16xf32>
    %171 = vector.broadcast %9 : vector<1x16xf32> to vector<128x16xf32>
    %172 = arith.mulf %170, %171 : vector<128x16xf32>
    %173 = arith.addf %169, %172 : vector<128x16xf32>
    %174 = vector.broadcast %10 : vector<1x16xf32> to vector<128x16xf32>
    %175 = arith.addf %173, %174 : vector<128x16xf32>
    %cst_47 = arith.constant 0.000000e+00 : f32
    %176 = vector.broadcast %cst_47 : f32 to vector<128x16xf32>
    %177 = arith.maximumf %175, %176 : vector<128x16xf32>
    %c896 = arith.constant 896 : index
    %c0_48 = arith.constant 0 : index
    %178 = vector.load %arg9[%c896, %c0_48] : memref<1024x16xf32, #tpu.memory_space<vmem>>, vector<128x16xf32>
    tpu.vector_store %arg9[%c896, %c0_48], %177 {strides = array<i32>} : memref<1024x16xf32, #tpu.memory_space<vmem>>, vector<128x16xf32>,
    %c0_49 = arith.constant 0 : index
    %c0_50 = arith.constant 0 : index
    %179 = vector.load %arg9[%c0_49, %c0_50] : memref<1024x16xf32, #tpu.memory_space<vmem>>, vector<1024x16xf32>
    %180 = arith.truncf %179 : vector<1024x16xf32> to vector<1024x16xbf16>
    %cst_51 = arith.constant dense<0.000000e+00> : vector<1024x32xf32>
    %181 = tpu.matmul %180, %11, %cst_51 {dimension_numbers = #tpu.dot_dimension_numbers<[1], [0], [0], [1], [0, 0, 1, 1], [], []>} : vector<1024x16xbf16>, vector<16x32xbf16>, vector<1024x32xf32> -> vector<1024x32xf32>
    %c0_52 = arith.constant 0 : index
    %c0_53 = arith.constant 0 : index
    %182 = vector.load %arg10[%c0_52, %c0_53] : memref<1024x32xf32, #tpu.memory_space<vmem>>, vector<1024x32xf32>
    tpu.vector_store %arg10[%c0_52, %c0_53], %181 {strides = array<i32>} : memref<1024x32xf32, #tpu.memory_space<vmem>>, vector<1024x32xf32>,
    %c0_54 = arith.constant 0 : index
    %c0_55 = arith.constant 0 : index
    %183 = vector.load %arg10[%c0_54, %c0_55] : memref<1024x32xf32, #tpu.memory_space<vmem>>, vector<128x32xf32>
    %c128_56 = arith.constant 128 : index
    %c0_57 = arith.constant 0 : index
    %184 = vector.load %arg10[%c128_56, %c0_57] : memref<1024x32xf32, #tpu.memory_space<vmem>>, vector<128x32xf32>
    %185 = arith.maximumf %183, %184 : vector<128x32xf32>
    %c256_58 = arith.constant 256 : index
    %c0_59 = arith.constant 0 : index
    %186 = vector.load %arg10[%c256_58, %c0_59] : memref<1024x32xf32, #tpu.memory_space<vmem>>, vector<128x32xf32>
    %187 = arith.maximumf %185, %186 : vector<128x32xf32>
    %c384_60 = arith.constant 384 : index
    %c0_61 = arith.constant 0 : index
    %188 = vector.load %arg10[%c384_60, %c0_61] : memref<1024x32xf32, #tpu.memory_space<vmem>>, vector<128x32xf32>
    %189 = arith.maximumf %187, %188 : vector<128x32xf32>
    %c512_62 = arith.constant 512 : index
    %c0_63 = arith.constant 0 : index
    %190 = vector.load %arg10[%c512_62, %c0_63] : memref<1024x32xf32, #tpu.memory_space<vmem>>, vector<128x32xf32>
    %191 = arith.maximumf %189, %190 : vector<128x32xf32>
    %c640_64 = arith.constant 640 : index
    %c0_65 = arith.constant 0 : index
    %192 = vector.load %arg10[%c640_64, %c0_65] : memref<1024x32xf32, #tpu.memory_space<vmem>>, vector<128x32xf32>
    %193 = arith.maximumf %191, %192 : vector<128x32xf32>
    %c768_66 = arith.constant 768 : index
    %c0_67 = arith.constant 0 : index
    %194 = vector.load %arg10[%c768_66, %c0_67] : memref<1024x32xf32, #tpu.memory_space<vmem>>, vector<128x32xf32>
    %195 = arith.maximumf %193, %194 : vector<128x32xf32>
    %c896_68 = arith.constant 896 : index
    %c0_69 = arith.constant 0 : index
    %196 = vector.load %arg10[%c896_68, %c0_69] : memref<1024x32xf32, #tpu.memory_space<vmem>>, vector<128x32xf32>
    %197 = arith.maximumf %195, %196 : vector<128x32xf32>
    %198 = vector.broadcast %15 : vector<1x32xf32> to vector<128x32xf32>
    %199 = arith.addf %197, %198 : vector<128x32xf32>
    %cst_70 = arith.constant 0.000000e+00 : f32
    %200 = vector.broadcast %cst_70 : f32 to vector<128x32xf32>
    %201 = arith.maximumf %199, %200 : vector<128x32xf32>
    %cst_71 = arith.constant dense<0.000000e+00> : vector<128x32xf32>
    %202 = tpu.matmul %3, %14, %cst_71 {dimension_numbers = #tpu.dot_dimension_numbers<[1], [0], [0], [1], [0, 0, 1, 1], [], []>} : vector<128x3xbf16>, vector<3x32xbf16>, vector<128x32xf32> -> vector<128x32xf32>
    %203 = vector.broadcast %16 : vector<1x32xf32> to vector<128x32xf32>
    %204 = arith.addf %202, %203 : vector<128x32xf32>
    %cst_72 = arith.constant 0.000000e+00 : f32
    %205 = vector.broadcast %cst_72 : f32 to vector<128x32xf32>
    %206 = arith.maximumf %204, %205 : vector<128x32xf32>
    %207 = arith.truncf %206 : vector<128x32xf32> to vector<128x32xbf16>
    %c0_73 = arith.constant 0 : index
    %c0_74 = arith.constant 0 : index
    %208 = vector.load %arg6[%c0_73, %c0_74] : memref<32x32xbf16, #tpu.memory_space<vmem>>, vector<32x32xbf16>
    %cst_75 = arith.constant dense<0.000000e+00> : vector<128x32xf32>
    %209 = tpu.matmul %207, %208, %cst_75 {dimension_numbers = #tpu.dot_dimension_numbers<[1], [0], [0], [1], [0, 0, 1, 1], [], []>} : vector<128x32xbf16>, vector<32x32xbf16>, vector<128x32xf32> -> vector<128x32xf32>
    %210 = arith.truncf %201 : vector<128x32xf32> to vector<128x32xbf16>
    %c0_76 = arith.constant 0 : index
    %c0_77 = arith.constant 0 : index
    %211 = vector.load %arg7[%c0_76, %c0_77] : memref<32x32xbf16, #tpu.memory_space<vmem>>, vector<32x32xbf16>
    %cst_78 = arith.constant dense<0.000000e+00> : vector<128x32xf32>
    %212 = tpu.matmul %210, %211, %cst_78 {dimension_numbers = #tpu.dot_dimension_numbers<[1], [0], [0], [1], [0, 0, 1, 1], [], []>} : vector<128x32xbf16>, vector<32x32xbf16>, vector<128x32xf32> -> vector<128x32xf32>
    %213 = arith.addf %209, %212 : vector<128x32xf32>
    %214 = vector.broadcast %17 : vector<1x32xf32> to vector<128x32xf32>
    %215 = arith.addf %213, %214 : vector<128x32xf32>
    %cst_79 = arith.constant 0.000000e+00 : f32
    %216 = vector.broadcast %cst_79 : f32 to vector<128x32xf32>
    %217 = arith.maximumf %215, %216 : vector<128x32xf32>
    %c0_80 = arith.constant 0 : index
    %c0_81 = arith.constant 0 : index
    %c0_82 = arith.constant 0 : index
    %218 = vector.load %arg8[%c0_80, %c0_81, %c0_82] : memref<1x128x32xf32, #tpu.memory_space<vmem>>, vector<1x128x32xf32>
    %219 = vector.shape_cast %218 : vector<1x128x32xf32> to vector<128x32xf32>
    %220 = vector.shape_cast %217 : vector<128x32xf32> to vector<1x128x32xf32>
    tpu.vector_store %arg8[%c0_80, %c0_81, %c0_82], %220 {strides = array<i32>} : memref<1x128x32xf32, #tpu.memory_space<vmem>>, vector<1x128x32xf32>,
    return
  }
  func.func @transform_0(%arg0: i32, %arg1: i32) -> (i32, i32, i32) {
    %c0_i32 = arith.constant 0 : i32
    %c0_i32_0 = arith.constant 0 : i32
    return %arg0, %arg1, %c0_i32 : i32, i32, i32
  }
  func.func @transform_1(%arg0: i32, %arg1: i32) -> (i32, i32) {
    %c0_i32 = arith.constant 0 : i32
    %c0_i32_0 = arith.constant 0 : i32
    %c0_i32_1 = arith.constant 0 : i32
    return %c0_i32, %c0_i32_0 : i32, i32
  }
  func.func @transform_2(%arg0: i32, %arg1: i32) -> (i32, i32) {
    %c0_i32 = arith.constant 0 : i32
    %c0_i32_0 = arith.constant 0 : i32
    %c0_i32_1 = arith.constant 0 : i32
    return %c0_i32, %c0_i32_0 : i32, i32
  }
  func.func @transform_3(%arg0: i32, %arg1: i32) -> (i32, i32) {
    %c0_i32 = arith.constant 0 : i32
    %c0_i32_0 = arith.constant 0 : i32
    %c0_i32_1 = arith.constant 0 : i32
    return %c0_i32, %c0_i32_0 : i32, i32
  }
  func.func @transform_4(%arg0: i32, %arg1: i32) -> (i32, i32) {
    %c0_i32 = arith.constant 0 : i32
    %c0_i32_0 = arith.constant 0 : i32
    %c0_i32_1 = arith.constant 0 : i32
    return %c0_i32, %c0_i32_0 : i32, i32
  }
  func.func @transform_5(%arg0: i32, %arg1: i32) -> (i32, i32) {
    %c0_i32 = arith.constant 0 : i32
    %c0_i32_0 = arith.constant 0 : i32
    %c0_i32_1 = arith.constant 0 : i32
    return %c0_i32, %c0_i32_0 : i32, i32
  }
  func.func @transform_6(%arg0: i32, %arg1: i32) -> (i32, i32, i32) {
    %c0_i32 = arith.constant 0 : i32
    %c0_i32_0 = arith.constant 0 : i32
    return %arg0, %arg1, %c0_i32 : i32, i32, i32
  }
}

</mosaic_0001>

<llo_original>
// kernel: neg.1
$region0: #{neg.1}
  #allocation0 [shape = 's32[1]{0}', space=sflag, size = 0x4, scoped, tag = 'scoped memory for neg.1']
  %s0 = inlined_call_operand.vmem [shape: bf16[2,128,128], index: 0, kind: input, shape index: {}]
  %s1 = inlined_call_operand.vmem [shape: bf16[2,128,128], index: 1, kind: output, shape index: {}]
  %v2 = vld [vmem:[%s0] sm:$0xf]
  %v3 = vunpack.c.l.bf16 %v2
  %v4 = vunpack.c.h.bf16 %v2
  %5 = xla_tuple %v3
  %6 = xla_tuple %5
  %v7 = vxor.u32 %v3, 2147483648
  %8 = xla_tuple %v7
  %v9 = vpack.c.bf16 0.0, %v7
  %10 = vst [vmem:[%s1] sm:$0xf] %v9
  %s11 = scalar_lea.vmem %s0, 64
  %v12 = vld [vmem:[%s11] sm:$0xf]
  %v13 = vunpack.c.l.bf16 %v12
  %v14 = vunpack.c.h.bf16 %v12
  %15 = xla_tuple %v13
  %16 = xla_tuple %15
  %v17 = vxor.u32 %v13, 2147483648
  %18 = xla_tuple %v17
  %s19 = scalar_lea.vmem %s1, 64
  %v20 = vpack.c.bf16 0.0, %v17
  %21 = vst [vmem:[%s19] sm:$0xf] %v20
  %s22 = scalar_lea.vmem %s0, 4
  %v23 = vld [vmem:[%s22] sm:$0xf]
  %v24 = vunpack.c.l.bf16 %v23
  %v25 = vunpack.c.h.bf16 %v23
  %26 = xla_tuple %v24
  %27 = xla_tuple %26
  %v28 = vxor.u32 %v24, 2147483648
  %29 = xla_tuple %v28
  %s30 = scalar_lea.vmem %s1, 4
  %v31 = vpack.c.bf16 0.0, %v28
  %32 = vst [vmem:[%s30] sm:$0xf] %v31
  %s33 = scalar_lea.vmem %s0, 68
  %v34 = vld [vmem:[%s33] sm:$0xf]
  %v35 = vunpack.c.l.bf16 %v34
  %v36 = vunpack.c.h.bf16 %v34
  %37 = xla_tuple %v35
  %38 = xla_tuple %37
  %v39 = vxor.u32 %v35, 2147483648
  %40 = xla_tuple %v39
  %s41 = scalar_lea.vmem %s1, 68
  %v42 = vpack.c.bf16 0.0, %v39
  %43 = vst [vmem:[%s41] sm:$0xf] %v42
  %s44 = scalar_lea.vmem %s0, 8
  %v45 = vld [vmem:[%s44] sm:$0xf]
  %v46 = vunpack.c.l.bf16 %v45
  %v47 = vunpack.c.h.bf16 %v45
  %48 = xla_tuple %v46
  %49 = xla_tuple %48
  %v50 = vxor.u32 %v46, 2147483648
  %51 = xla_tuple %v50
  %s52 = scalar_lea.vmem %s1, 8
  %v53 = vpack.c.bf16 0.0, %v50
  %54 = vst [vmem:[%s52] sm:$0xf] %v53
  %s55 = scalar_lea.vmem %s0, 72
  %v56 = vld [vmem:[%s55] sm:$0xf]
  %v57 = vunpack.c.l.bf16 %v56
  %v58 = vunpack.c.h.bf16 %v56
  %59 = xla_tuple %v57
  %60 = xla_tuple %59
  %v61 = vxor.u32 %v57, 2147483648
  %62 = xla_tuple %v61
  %s63 = scalar_lea.vmem %s1, 72
  %v64 = vpack.c.bf16 0.0, %v61
  %65 = vst [vmem:[%s63] sm:$0xf] %v64
  %s66 = scalar_lea.vmem %s0, 12
  %v67 = vld [vmem:[%s66] sm:$0xf]
  %v68 = vunpack.c.l.bf16 %v67
  %v69 = vunpack.c.h.bf16 %v67
  %70 = xla_tuple %v68
  %71 = xla_tuple %70
  %v72 = vxor.u32 %v68, 2147483648
  %73 = xla_tuple %v72
  %s74 = scalar_lea.vmem %s1, 12
  %v75 = vpack.c.bf16 0.0, %v72
  %76 = vst [vmem:[%s74] sm:$0xf] %v75
  %s77 = scalar_lea.vmem %s0, 76
  %v78 = vld [vmem:[%s77] sm:$0xf]
  %v79 = vunpack.c.l.bf16 %v78
  %v80 = vunpack.c.h.bf16 %v78
  %81 = xla_tuple %v79
  %82 = xla_tuple %81
  %v83 = vxor.u32 %v79, 2147483648
  %84 = xla_tuple %v83
  %s85 = scalar_lea.vmem %s1, 76
  %v86 = vpack.c.bf16 0.0, %v83
  %87 = vst [vmem:[%s85] sm:$0xf] %v86
  %s88 = scalar_lea.vmem %s0, 16
  %v89 = vld [vmem:[%s88] sm:$0xf]
  %v90 = vunpack.c.l.bf16 %v89
  %v91 = vunpack.c.h.bf16 %v89
  %92 = xla_tuple %v90
  %93 = xla_tuple %92
  %v94 = vxor.u32 %v90, 2147483648
  %95 = xla_tuple %v94
  %s96 = scalar_lea.vmem %s1, 16
  %v97 = vpack.c.bf16 0.0, %v94
  %98 = vst [vmem:[%s96] sm:$0xf] %v97
  %s99 = scalar_lea.vmem %s0, 80
  %v100 = vld [vmem:[%s99] sm:$0xf]
  %v101 = vunpack.c.l.bf16 %v100
  %v102 = vunpack.c.h.bf16 %v100
  %103 = xla_tuple %v101
  %104 = xla_tuple %103
  %v105 = vxor.u32 %v101, 2147483648
  %106 = xla_tuple %v105
  %s107 = scalar_lea.vmem %s1, 80
  %v108 = vpack.c.bf16 0.0, %v105
  %109 = vst [vmem:[%s107] sm:$0xf] %v108
  %s110 = scalar_lea.vmem %s0, 20
  %v111 = vld [vmem:[%s110] sm:$0xf]
  %v112 = vunpack.c.l.bf16 %v111
  %v113 = vunpack.c.h.bf16 %v111
  %114 = xla_tuple %v112
  %115 = xla_tuple %114
  %v116 = vxor.u32 %v112, 2147483648
  %117 = xla_tuple %v116
  %s118 = scalar_lea.vmem %s1, 20
  %v119 = vpack.c.bf16 0.0, %v116
  %120 = vst [vmem:[%s118] sm:$0xf] %v119
  %s121 = scalar_lea.vmem %s0, 84
  %v122 = vld [vmem:[%s121] sm:$0xf]
  %v123 = vunpack.c.l.bf16 %v122
  %v124 = vunpack.c.h.bf16 %v122
  %125 = xla_tuple %v123
  %126 = xla_tuple %125
  %v127 = vxor.u32 %v123, 2147483648
  %128 = xla_tuple %v127
  %s129 = scalar_lea.vmem %s1, 84
  %v130 = vpack.c.bf16 0.0, %v127
  %131 = vst [vmem:[%s129] sm:$0xf] %v130
  %s132 = scalar_lea.vmem %s0, 24
  %v133 = vld [vmem:[%s132] sm:$0xf]
  %v134 = vunpack.c.l.bf16 %v133
  %v135 = vunpack.c.h.bf16 %v133
  %136 = xla_tuple %v134
  %137 = xla_tuple %136
  %v138 = vxor.u32 %v134, 2147483648
  %139 = xla_tuple %v138
  %s140 = scalar_lea.vmem %s1, 24
  %v141 = vpack.c.bf16 0.0, %v138
  %142 = vst [vmem:[%s140] sm:$0xf] %v141
  %s143 = scalar_lea.vmem %s0, 88
  %v144 = vld [vmem:[%s143] sm:$0xf]
  %v145 = vunpack.c.l.bf16 %v144
  %v146 = vunpack.c.h.bf16 %v144
  %147 = xla_tuple %v145
  %148 = xla_tuple %147
  %v149 = vxor.u32 %v145, 2147483648
  %150 = xla_tuple %v149
  %s151 = scalar_lea.vmem %s1, 88
  %v152 = vpack.c.bf16 0.0, %v149
  %153 = vst [vmem:[%s151] sm:$0xf] %v152
  %s154 = scalar_lea.vmem %s0, 28
  %v155 = vld [vmem:[%s154] sm:$0xf]
  %v156 = vunpack.c.l.bf16 %v155
  %v157 = vunpack.c.h.bf16 %v155
  %158 = xla_tuple %v156
  %159 = xla_tuple %158
  %v160 = vxor.u32 %v156, 2147483648
  %161 = xla_tuple %v160
  %s162 = scalar_lea.vmem %s1, 28
  %v163 = vpack.c.bf16 0.0, %v160
  %164 = vst [vmem:[%s162] sm:$0xf] %v163
  %s165 = scalar_lea.vmem %s0, 92
  %v166 = vld [vmem:[%s165] sm:$0xf]
  %v167 = vunpack.c.l.bf16 %v166
  %v168 = vunpack.c.h.bf16 %v166
  %169 = xla_tuple %v167
  %170 = xla_tuple %169
  %v171 = vxor.u32 %v167, 2147483648
  %172 = xla_tuple %v171
  %s173 = scalar_lea.vmem %s1, 92
  %v174 = vpack.c.bf16 0.0, %v171
  %175 = vst [vmem:[%s173] sm:$0xf] %v174
  %s176 = scalar_lea.vmem %s0, 32
  %v177 = vld [vmem:[%s176] sm:$0xf]
  %v178 = vunpack.c.l.bf16 %v177
  %v179 = vunpack.c.h.bf16 %v177
  %180 = xla_tuple %v178
  %181 = xla_tuple %180
  %v182 = vxor.u32 %v178, 2147483648
  %183 = xla_tuple %v182
  %s184 = scalar_lea.vmem %s1, 32
  %v185 = vpack.c.bf16 0.0, %v182
  %186 = vst [vmem:[%s184] sm:$0xf] %v185
  %s187 = scalar_lea.vmem %s0, 96
  %v188 = vld [vmem:[%s187] sm:$0xf]
  %v189 = vunpack.c.l.bf16 %v188
  %v190 = vunpack.c.h.bf16 %v188
  %191 = xla_tuple %v189
  %192 = xla_tuple %191
  %v193 = vxor.u32 %v189, 2147483648
  %194 = xla_tuple %v193
  %s195 = scalar_lea.vmem %s1, 96
  %v196 = vpack.c.bf16 0.0, %v193
  %197 = vst [vmem:[%s195] sm:$0xf] %v196
  %s198 = scalar_lea.vmem %s0, 36
  %v199 = vld [vmem:[%s198] sm:$0xf]
  %v200 = vunpack.c.l.bf16 %v199
  %v201 = vunpack.c.h.bf16 %v199
  %202 = xla_tuple %v200
  %203 = xla_tuple %202
  %v204 = vxor.u32 %v200, 2147483648
  %205 = xla_tuple %v204
  %s206 = scalar_lea.vmem %s1, 36
  %v207 = vpack.c.bf16 0.0, %v204
  %208 = vst [vmem:[%s206] sm:$0xf] %v207
  %s209 = scalar_lea.vmem %s0, 100
  %v210 = vld [vmem:[%s209] sm:$0xf]
  %v211 = vunpack.c.l.bf16 %v210
  %v212 = vunpack.c.h.bf16 %v210
  %213 = xla_tuple %v211
  %214 = xla_tuple %213
  %v215 = vxor.u32 %v211, 2147483648
  %216 = xla_tuple %v215
  %s217 = scalar_lea.vmem %s1, 100
  %v218 = vpack.c.bf16 0.0, %v215
  %219 = vst [vmem:[%s217] sm:$0xf] %v218
  %s220 = scalar_lea.vmem %s0, 40
  %v221 = vld [vmem:[%s220] sm:$0xf]
  %v222 = vunpack.c.l.bf16 %v221
  %v223 = vunpack.c.h.bf16 %v221
  %224 = xla_tuple %v222
  %225 = xla_tuple %224
  %v226 = vxor.u32 %v222, 2147483648
  %227 = xla_tuple %v226
  %s228 = scalar_lea.vmem %s1, 40
  %v229 = vpack.c.bf16 0.0, %v226
  %230 = vst [vmem:[%s228] sm:$0xf] %v229
  %s231 = scalar_lea.vmem %s0, 104
  %v232 = vld [vmem:[%s231] sm:$0xf]
  %v233 = vunpack.c.l.bf16 %v232
  %v234 = vunpack.c.h.bf16 %v232
  %235 = xla_tuple %v233
  %236 = xla_tuple %235
  %v237 = vxor.u32 %v233, 2147483648
  %238 = xla_tuple %v237
  %s239 = scalar_lea.vmem %s1, 104
  %v240 = vpack.c.bf16 0.0, %v237
  %241 = vst [vmem:[%s239] sm:$0xf] %v240
  %s242 = scalar_lea.vmem %s0, 44
  %v243 = vld [vmem:[%s242] sm:$0xf]
  %v244 = vunpack.c.l.bf16 %v243
  %v245 = vunpack.c.h.bf16 %v243
  %246 = xla_tuple %v244
  %247 = xla_tuple %246
  %v248 = vxor.u32 %v244, 2147483648
  %249 = xla_tuple %v248
  %s250 = scalar_lea.vmem %s1, 44
  %v251 = vpack.c.bf16 0.0, %v248
  %252 = vst [vmem:[%s250] sm:$0xf] %v251
  %s253 = scalar_lea.vmem %s0, 108
  %v254 = vld [vmem:[%s253] sm:$0xf]
  %v255 = vunpack.c.l.bf16 %v254
  %v256 = vunpack.c.h.bf16 %v254
  %257 = xla_tuple %v255
  %258 = xla_tuple %257
  %v259 = vxor.u32 %v255, 2147483648
  %260 = xla_tuple %v259
  %s261 = scalar_lea.vmem %s1, 108
  %v262 = vpack.c.bf16 0.0, %v259
  %263 = vst [vmem:[%s261] sm:$0xf] %v262
  %s264 = scalar_lea.vmem %s0, 48
  %v265 = vld [vmem:[%s264] sm:$0xf]
  %v266 = vunpack.c.l.bf16 %v265
  %v267 = vunpack.c.h.bf16 %v265
  %268 = xla_tuple %v266
  %269 = xla_tuple %268
  %v270 = vxor.u32 %v266, 2147483648
  %271 = xla_tuple %v270
  %s272 = scalar_lea.vmem %s1, 48
  %v273 = vpack.c.bf16 0.0, %v270
  %274 = vst [vmem:[%s272] sm:$0xf] %v273
  %s275 = scalar_lea.vmem %s0, 112
  %v276 = vld [vmem:[%s275] sm:$0xf]
  %v277 = vunpack.c.l.bf16 %v276
  %v278 = vunpack.c.h.bf16 %v276
  %279 = xla_tuple %v277
  %280 = xla_tuple %279
  %v281 = vxor.u32 %v277, 2147483648
  %282 = xla_tuple %v281
  %s283 = scalar_lea.vmem %s1, 112
  %v284 = vpack.c.bf16 0.0, %v281
  %285 = vst [vmem:[%s283] sm:$0xf] %v284
  %s286 = scalar_lea.vmem %s0, 52
  %v287 = vld [vmem:[%s286] sm:$0xf]
  %v288 = vunpack.c.l.bf16 %v287
  %v289 = vunpack.c.h.bf16 %v287
  %290 = xla_tuple %v288
  %291 = xla_tuple %290
  %v292 = vxor.u32 %v288, 2147483648
  %293 = xla_tuple %v292
  %s294 = scalar_lea.vmem %s1, 52
  %v295 = vpack.c.bf16 0.0, %v292
  %296 = vst [vmem:[%s294] sm:$0xf] %v295
  %s297 = scalar_lea.vmem %s0, 116
  %v298 = vld [vmem:[%s297] sm:$0xf]
  %v299 = vunpack.c.l.bf16 %v298
  %v300 = vunpack.c.h.bf16 %v298
  %301 = xla_tuple %v299
  %302 = xla_tuple %301
  %v303 = vxor.u32 %v299, 2147483648
  %304 = xla_tuple %v303
  %s305 = scalar_lea.vmem %s1, 116
  %v306 = vpack.c.bf16 0.0, %v303
  %307 = vst [vmem:[%s305] sm:$0xf] %v306
  %s308 = scalar_lea.vmem %s0, 56
  %v309 = vld [vmem:[%s308] sm:$0xf]
  %v310 = vunpack.c.l.bf16 %v309
  %v311 = vunpack.c.h.bf16 %v309
  %312 = xla_tuple %v310
  %313 = xla_tuple %312
  %v314 = vxor.u32 %v310, 2147483648
  %315 = xla_tuple %v314
  %s316 = scalar_lea.vmem %s1, 56
  %v317 = vpack.c.bf16 0.0, %v314
  %318 = vst [vmem:[%s316] sm:$0xf] %v317
  %s319 = scalar_lea.vmem %s0, 120
  %v320 = vld [vmem:[%s319] sm:$0xf]
  %v321 = vunpack.c.l.bf16 %v320
  %v322 = vunpack.c.h.bf16 %v320
  %323 = xla_tuple %v321
  %324 = xla_tuple %323
  %v325 = vxor.u32 %v321, 2147483648
  %326 = xla_tuple %v325
  %s327 = scalar_lea.vmem %s1, 120
  %v328 = vpack.c.bf16 0.0, %v325
  %329 = vst [vmem:[%s327] sm:$0xf] %v328
  %s330 = scalar_lea.vmem %s0, 60
  %v331 = vld [vmem:[%s330] sm:$0xf]
  %v332 = vunpack.c.l.bf16 %v331
  %v333 = vunpack.c.h.bf16 %v331
  %334 = xla_tuple %v332
  %335 = xla_tuple %334
  %v336 = vxor.u32 %v332, 2147483648
  %337 = xla_tuple %v336
  %s338 = scalar_lea.vmem %s1, 60
  %v339 = vpack.c.bf16 0.0, %v336
  %340 = vst [vmem:[%s338] sm:$0xf] %v339
  %s341 = scalar_lea.vmem %s0, 124
  %v342 = vld [vmem:[%s341] sm:$0xf]
  %v343 = vunpack.c.l.bf16 %v342
  %v344 = vunpack.c.h.bf16 %v342
  %345 = xla_tuple %v343
  %346 = xla_tuple %345
  %v347 = vxor.u32 %v343, 2147483648
  %348 = xla_tuple %v347
  %s349 = scalar_lea.vmem %s1, 124
  %v350 = vpack.c.bf16 0.0, %v347
  %351 = vst [vmem:[%s349] sm:$0xf] %v350

// kernel: nbr_agg_forward.2
$region0: #{nbr_agg_forward.2}
  #allocation0 [shape = 'u32[]', space=smem, size = 0x4, offset = 0x4, fixed_abs, tag = 'smem constant byte address 0x4 - core index']
  #allocation1 [shape = 'u32[144,128]{1,0:T(1,128)}', space=vmem, size = 0x12000, scoped, tag = 'internal scratch']
  %s0 = inlined_call_operand.vmem [shape: f32[2,128,3], index: 0, kind: input, shape index: {}]
  %s1 = inlined_call_operand.vmem [shape: f32[2,3,128], index: 1, kind: input, shape index: {}]
  %s2 = inlined_call_operand.vmem [shape: f32[2,1,128], index: 2, kind: input, shape index: {}]
  %s3 = inlined_call_operand.vmem [shape: bf16[2,128,128], index: 3, kind: output, shape index: {}]
  %s4 = sld [smem:[#allocation0]]
  $region45: #{nbr_agg_forward.2} parent=0
    _
  %s6 = ssub.s32 1, %s4
  %s7 = scalar_select 0, %s6, %s4
  loop: start=0, step=1, limit=4
  $region2: #{nbr_agg_forward.2} parent=0 // loop_pre_header
    _
  $region3: #{nbr_agg_forward.2} parent=0 // loop_header
    %s9 = sphi 0, %s13
    %p10 = scmp.ge.s32.totalorder %s9, 4
    %s16 = sphi 0, %s35
    %s17 = sphi 0, %s31
    %s18 = sphi 0, %s27
    %s19 = sphi 0, %s16
    %s20 = sphi 0, %s17
    %s21 = sphi 0, %s18
    %s22 = sphi 0, %s19
    %s23 = sphi 0, %s20
    %s24 = sphi 0, %s21
    %s40 = sphi 0, %s42
    %s43 = sphi 0, %s40
    %s44 = sphi 0, %s43
    %s60 = sphi 0, %s44
    %s68 = sphi 0, %s70
    %s71 = sphi 0, %s68
    %s72 = sphi 0, %s71
    %s88 = sphi 0, %s72
    %s96 = sphi 0, %s98
    %s99 = sphi 0, %s96
    %s100 = sphi 0, %s99
    %s116 = sphi 0, %s100
    %s126 = sphi 0, %s128
    %s129 = sphi 0, %s126
    %s130 = sphi 0, %s129
    %s146 = sphi 0, %s130
  $region4: #{nbr_agg_forward.2} parent=0 // loop_header_branch
    %12 = sbr.rel (%p10) target = $region8
  $region5: #{nbr_agg_forward.2} parent=0 // loop_body
    %s14 = ssub.s32 %s9, 1
    %s15 = ssub.s32 %s9, 2
    %s25 = sadd.s32 1, %s18
    %p26 = scmp.ge.s32.totalorder %s25, 1
    %s27 = scalar_select %p26, 0, %s25
    %s28 = sadd.s32 1, %s17
    %s29 = scalar_select %p26, %s28, %s17
    %p30 = scmp.ge.s32.totalorder %s29, 1
    %s31 = scalar_select %p30, 0, %s29
    %s32 = sadd.s32 1, %s16
    %s33 = scalar_select %p30, %s32, %s16
    %p34 = scmp.ge.s32.totalorder %s33, 2
    %s35 = scalar_select %p34, 0, %s33
    %s36 = ssub.s32 %s16, %s35
    %s37 = ssub.s32 %s17, %s31
    %s38 = sor.u32 %s36, %s37
    %p39 = scmp.eq.s32.totalorder %s38, 0
    %s41 = sadd.s32 %s40, 1
    %s42 = scalar_select %p39, %s40, %s41
    %p45 = pneg %p39
    %p46 = scmp.eq.s32.totalorder %s9, 1
    %p47 = por %p45, %p46
    %p48 = scmp.ne.s32.totalorder %s40, %s43
    %p49 = scmp.eq.s32.totalorder %s9, 0
    %p50 = por %p48, %p49
    %p51 = scmp.ne.s32.totalorder %s40, %s43
    %p52 = scmp.eq.s32.totalorder %s14, 1
    %p53 = por %p51, %p52
    %p54 = scmp.ne.s32.totalorder %s43, %s44
    %p55 = scmp.eq.s32.totalorder %s14, 0
    %p56 = por %p54, %p55
    %p57 = scmp.ne.s32.totalorder %s43, %s44
    %p58 = scmp.eq.s32.totalorder %s15, 1
    %p59 = por %p57, %p58
    %p61 = scmp.ne.s32.totalorder %s44, %s60
    %p62 = scmp.eq.s32.totalorder %s15, 0
    %p63 = por %p61, %p62
    %s64 = ssub.s32 %s16, %s35
    %s65 = ssub.s32 %s18, %s27
    %s66 = sor.u32 %s64, %s65
    %p67 = scmp.eq.s32.totalorder %s66, 0
    %s69 = sadd.s32 %s68, 1
    %s70 = scalar_select %p67, %s68, %s69
    %p73 = pneg %p67
    %p74 = scmp.eq.s32.totalorder %s9, 1
    %p75 = por %p73, %p74
    %p76 = scmp.ne.s32.totalorder %s68, %s71
    %p77 = scmp.eq.s32.totalorder %s9, 0
    %p78 = por %p76, %p77
    %p79 = scmp.ne.s32.totalorder %s68, %s71
    %p80 = scmp.eq.s32.totalorder %s14, 1
    %p81 = por %p79, %p80
    %p82 = scmp.ne.s32.totalorder %s71, %s72
    %p83 = scmp.eq.s32.totalorder %s14, 0
    %p84 = por %p82, %p83
    %p85 = scmp.ne.s32.totalorder %s71, %s72
    %p86 = scmp.eq.s32.totalorder %s15, 1
    %p87 = por %p85, %p86
    %p89 = scmp.ne.s32.totalorder %s72, %s88
    %p90 = scmp.eq.s32.totalorder %s15, 0
    %p91 = por %p89, %p90
    %s92 = ssub.s32 %s16, %s35
    %s93 = ssub.s32 %s18, %s27
    %s94 = sor.u32 %s92, %s93
    %p95 = scmp.eq.s32.totalorder %s94, 0
    %s97 = sadd.s32 %s96, 1
    %s98 = scalar_select %p95, %s96, %s97
    %p101 = pneg %p95
    %p102 = scmp.eq.s32.totalorder %s9, 1
    %p103 = por %p101, %p102
    %p104 = scmp.ne.s32.totalorder %s96, %s99
    %p105 = scmp.eq.s32.totalorder %s9, 0
    %p106 = por %p104, %p105
    %p107 = scmp.ne.s32.totalorder %s96, %s99
    %p108 = scmp.eq.s32.totalorder %s14, 1
    %p109 = por %p107, %p108
    %p110 = scmp.ne.s32.totalorder %s99, %s100
    %p111 = scmp.eq.s32.totalorder %s14, 0
    %p112 = por %p110, %p111
    %p113 = scmp.ne.s32.totalorder %s99, %s100
    %p114 = scmp.eq.s32.totalorder %s15, 1
    %p115 = por %p113, %p114
    %p117 = scmp.ne.s32.totalorder %s100, %s116
    %p118 = scmp.eq.s32.totalorder %s15, 0
    %p119 = por %p117, %p118
    %s120 = ssub.s32 %s16, %s35
    %s121 = ssub.s32 %s17, %s31
    %s122 = sor.u32 %s120, %s121
    %s123 = ssub.s32 %s18, %s27
    %s124 = sor.u32 %s122, %s123
    %p125 = scmp.eq.s32.totalorder %s124, 0
    %s127 = sadd.s32 %s126, 1
    %s128 = scalar_select %p125, %s126, %s127
    %p131 = pneg %p125
    %p132 = scmp.eq.s32.totalorder %s9, 1
    %p133 = por %p131, %p132
    %p134 = scmp.ne.s32.totalorder %s126, %s129
    %p135 = scmp.eq.s32.totalorder %s9, 0
    %p136 = por %p134, %p135
    %p137 = scmp.ne.s32.totalorder %s126, %s129
    %p138 = scmp.eq.s32.totalorder %s14, 1
    %p139 = por %p137, %p138
    %p140 = scmp.ne.s32.totalorder %s129, %s130
    %p141 = scmp.eq.s32.totalorder %s14, 0
    %p142 = por %p140, %p141
    %p143 = scmp.ne.s32.totalorder %s129, %s130
    %p144 = scmp.eq.s32.totalorder %s15, 1
    %p145 = por %p143, %p144
    %p147 = scmp.ne.s32.totalorder %s130, %s146
    %p148 = scmp.eq.s32.totalorder %s15, 0
    %p149 = por %p147, %p148
    %p150 = scmp.le.s32.totalorder 1, %s9
    %p151 = scmp.lt.s32.totalorder %s9, 3
    %p152 = pnand %p150, %p151
    %p153 = pneg %p152
    // Predicated region
    $region9: #{nbr_agg_forward.2} parent=5 // pred_check
      _
    $region10: #{nbr_agg_forward.2} parent=5 // pred_check_branch
      %155 = sbr.rel (%p152) target = $region12
    $region11: #{nbr_agg_forward.2} parent=5 // pred_region
      %s156 = ssub.s32 %s9, 1
    $region12: #{nbr_agg_forward.2} parent=5 // pred_fallthru
      _
    %p157 = scmp.lt.s32.totalorder %s9, 2
    // Predicated region
    $region13: #{nbr_agg_forward.2} parent=5 // pred_check
      %p158 = pneg %p157
    $region14: #{nbr_agg_forward.2} parent=5 // pred_check_branch
      %160 = sbr.rel (%p158) target = $region16
    $region15: #{nbr_agg_forward.2} parent=5 // pred_region
      // Predicated region
      $region17: #{nbr_agg_forward.2} parent=15 // pred_check
        %p161 = pneg %p50
      $region18: #{nbr_agg_forward.2} parent=15 // pred_check_branch
        %163 = sbr.rel (%p161) target = $region20
      $region19: #{nbr_agg_forward.2} parent=15 // pred_region
        %s164 = smul.u32 16, %s17
        %p165 = scmp.lt.s32.totalorder %s16, 1
        %s166 = scalar_select %p165, %s16, 1
        %p167 = scmp.lt.s32.totalorder %s164, 15
        %s168 = scalar_select %p167, %s164, 15
        %s169 = smul.addr %s166, 16
        %s170 = sadd.s32 %s168, %s169
        %s171 = smul.addr %s170, 8
        %s172 = scalar_lea.vmem %s0, %s171
        %s173 = smul.u32 16, %s17
      $region20: #{nbr_agg_forward.2} parent=15 // pred_fallthru
        _
      // Predicated region
      $region21: #{nbr_agg_forward.2} parent=15 // pred_check
        %p174 = pneg %p78
      $region22: #{nbr_agg_forward.2} parent=15 // pred_check_branch
        %176 = sbr.rel (%p174) target = $region24
      $region23: #{nbr_agg_forward.2} parent=15 // pred_region
        %p177 = scmp.lt.s32.totalorder %s16, 1
        %s178 = scalar_select %p177, %s16, 1
        %p179 = scmp.lt.s32.totalorder %s18, 0
        %s180 = scalar_select %p179, %s18, 0
        %s181 = sadd.s32 %s180, %s178
        %s182 = smul.addr %s181, 4
        %s183 = scalar_lea.vmem %s1, %s182
      $region24: #{nbr_agg_forward.2} parent=15 // pred_fallthru
        _
      // Predicated region
      $region25: #{nbr_agg_forward.2} parent=15 // pred_check
        %p184 = pneg %p106
      $region26: #{nbr_agg_forward.2} parent=15 // pred_check_branch
        %186 = sbr.rel (%p184) target = $region28
      $region27: #{nbr_agg_forward.2} parent=15 // pred_region
        %p187 = scmp.lt.s32.totalorder %s16, 1
        %s188 = scalar_select %p187, %s16, 1
        %p189 = scmp.lt.s32.totalorder %s18, 0
        %s190 = scalar_select %p189, %s18, 0
        %s191 = sadd.s32 %s190, %s188
        %s192 = scalar_lea.vmem %s2, %s191
      $region28: #{nbr_agg_forward.2} parent=15 // pred_fallthru
        _
    $region16: #{nbr_agg_forward.2} parent=5 // pred_fallthru
      _
    %p193 = scmp.le.s32.totalorder 1, %s9
    %p194 = scmp.lt.s32.totalorder %s9, 3
    %p195 = pnand %p193, %p194
    %p196 = pneg %p195
    // Predicated region
    $region29: #{nbr_agg_forward.2} parent=5 // pred_check
      _
    $region30: #{nbr_agg_forward.2} parent=5 // pred_check_branch
      %198 = sbr.rel (%p195) target = $region32
    $region31: #{nbr_agg_forward.2} parent=5 // pred_region
      %s199 = ssub.s32 %s9, 1
      %s200 = smul.u32 16, %s20
      %p201 = scmp.lt.s32.totalorder %s19, 1
      %s202 = scalar_select %p201, %s19, 1
      %p203 = scmp.lt.s32.totalorder %s200, 15
      %s204 = scalar_select %p203, %s200, 15
      %s205 = smul.addr %s202, 16
      %s206 = sadd.s32 %s204, %s205
      %s207 = smul.addr %s206, 8
      %s208 = scalar_lea.vmem %s0, %s207
      %p209 = pneg %p56
      %p210 = pneg %p53
      %p211 = scmp.lt.s32.totalorder %s19, 1
      %s212 = scalar_select %p211, %s19, 1
      %p213 = scmp.lt.s32.totalorder %s21, 0
      %s214 = scalar_select %p213, %s21, 0
      %s215 = sadd.s32 %s214, %s212
      %s216 = smul.addr %s215, 4
      %s217 = scalar_lea.vmem %s1, %s216
      %p218 = pneg %p84
      %p219 = pneg %p81
      %p220 = scmp.lt.s32.totalorder %s19, 1
      %s221 = scalar_select %p220, %s19, 1
      %p222 = scmp.lt.s32.totalorder %s21, 0
      %s223 = scalar_select %p222, %s21, 0
      %s224 = sadd.s32 %s223, %s221
      %s225 = scalar_lea.vmem %s2, %s224
      %p226 = pneg %p112
      %p227 = pneg %p109
      %p228 = pneg %p142
      %p229 = pneg %p139
      %s230 = smul.u32 16, %s20
      %p231 = scmp.lt.s32.totalorder %s19, 1
      %s232 = scalar_select %p231, %s19, 1
      %p233 = scmp.lt.s32.totalorder %s230, 15
      %s234 = scalar_select %p233, %s230, 15
      %p235 = scmp.lt.s32.totalorder %s21, 0
      %s236 = scalar_select %p235, %s21, 0
      %s237 = sadd.s32 %s236, %s234
      %s238 = smul.addr %s232, 16
      %s239 = sadd.s32 %s237, %s238
      %s240 = smul.addr %s239, 4
      %s241 = scalar_lea.vmem %s3, %s240
      %s242 = smul.u32 16, %s20
      %p243 = scmp.lt.s32.totalorder %s19, 1
      %s244 = scalar_select %p243, %s19, 1
      %p245 = scmp.lt.s32.totalorder %s242, 15
      %s246 = scalar_select %p245, %s242, 15
      %s247 = smul.addr %s244, 16
      %s248 = sadd.s32 %s246, %s247
      %s249 = smul.addr %s248, 8
      %s250 = scalar_lea.vmem %s0, %s249
      %s251 = smul.u32 16, %s20
      %p252 = scmp.lt.s32.totalorder %s19, 1
      %s253 = scalar_select %p252, %s19, 1
      %p254 = scmp.lt.s32.totalorder %s21, 0
      %s255 = scalar_select %p254, %s21, 0
      %s256 = sadd.s32 %s255, %s253
      %s257 = smul.addr %s256, 4
      %s258 = scalar_lea.vmem %s1, %s257
      %p259 = scmp.lt.s32.totalorder %s19, 1
      %s260 = scalar_select %p259, %s19, 1
      %p261 = scmp.lt.s32.totalorder %s21, 0
      %s262 = scalar_select %p261, %s21, 0
      %s263 = sadd.s32 %s262, %s260
      %s264 = scalar_lea.vmem %s2, %s263
      %s265 = smul.u32 16, %s20
      %p266 = scmp.lt.s32.totalorder %s19, 1
      %s267 = scalar_select %p266, %s19, 1
      %p268 = scmp.lt.s32.totalorder %s265, 15
      %s269 = scalar_select %p268, %s265, 15
      %p270 = scmp.lt.s32.totalorder %s21, 0
      %s271 = scalar_select %p270, %s21, 0
      %s272 = sadd.s32 %s271, %s269
      %s273 = smul.addr %s267, 16
      %s274 = sadd.s32 %s272, %s273
      %s275 = smul.addr %s274, 4
      %s276 = scalar_lea.vmem %s3, %s275
      %s277 = smul.u32 16, %s20
      %v278 = vld [vmem:[%s250] sm:$0xff]
      %v279 = vld [vmem:[%s250 + $0x8] sm:$0xff]
      %v280 = vld [vmem:[%s250 + $0x10] sm:$0xff]
      %v281 = vld [vmem:[%s250 + $0x18] sm:$0xff]
      %v282 = vld [vmem:[%s250 + $0x20] sm:$0xff]
      %v283 = vld [vmem:[%s250 + $0x28] sm:$0xff]
      %v284 = vld [vmem:[%s250 + $0x30] sm:$0xff]
      %v285 = vld [vmem:[%s250 + $0x38] sm:$0xff]
      %v286 = vld [vmem:[%s250 + $0x40] sm:$0xff]
      %v287 = vld [vmem:[%s250 + $0x48] sm:$0xff]
      %v288 = vld [vmem:[%s250 + $0x50] sm:$0xff]
      %v289 = vld [vmem:[%s250 + $0x58] sm:$0xff]
      %v290 = vld [vmem:[%s250 + $0x60] sm:$0xff]
      %v291 = vld [vmem:[%s250 + $0x68] sm:$0xff]
      %v292 = vld [vmem:[%s250 + $0x70] sm:$0xff]
      %v293 = vld [vmem:[%s250 + $0x78] sm:$0xff]
      %v294 = vld [vmem:[%s258] sm:$0x7]
      %v295 = vld [vmem:[%s264] sm:$0x1]
      %v296 = vmul.f32 %v278, %v278
      %v297 = vmul.f32 %v279, %v279
      %v298 = vmul.f32 %v280, %v280
      %v299 = vmul.f32 %v281, %v281
      %v300 = vmul.f32 %v282, %v282
      %v301 = vmul.f32 %v283, %v283
      %v302 = vmul.f32 %v284, %v284
      %v303 = vmul.f32 %v285, %v285
      %v304 = vmul.f32 %v286, %v286
      %v305 = vmul.f32 %v287, %v287
      %v306 = vmul.f32 %v288, %v288
      %v307 = vmul.f32 %v289, %v289
      %v308 = vmul.f32 %v290, %v290
      %v309 = vmul.f32 %v291, %v291
      %v310 = vmul.f32 %v292, %v292
      %v311 = vmul.f32 %v293, %v293
      %vm312 = vcmask 23552
      %v313 = vsel %vm312, %v296, 0.0
      %314 = vadd.xlane.f32.xlu0 %v313
      %v315 = vpop.xlane.xlu0 %314
      %v316 = vsel %vm312, %v297, 0.0
      %317 = vadd.xlane.f32.xlu0 %v316
      %v318 = vpop.xlane.xlu0 %317
      %v319 = vsel %vm312, %v298, 0.0
      %320 = vadd.xlane.f32.xlu0 %v319
      %v321 = vpop.xlane.xlu0 %320
      %v322 = vsel %vm312, %v299, 0.0
      %323 = vadd.xlane.f32.xlu0 %v322
      %v324 = vpop.xlane.xlu0 %323
      %v325 = vsel %vm312, %v300, 0.0
      %326 = vadd.xlane.f32.xlu0 %v325
      %v327 = vpop.xlane.xlu0 %326
      %v328 = vsel %vm312, %v301, 0.0
      %329 = vadd.xlane.f32.xlu0 %v328
      %v330 = vpop.xlane.xlu0 %329
      %v331 = vsel %vm312, %v302, 0.0
      %332 = vadd.xlane.f32.xlu0 %v331
      %v333 = vpop.xlane.xlu0 %332
      %v334 = vsel %vm312, %v303, 0.0
      %335 = vadd.xlane.f32.xlu0 %v334
      %v336 = vpop.xlane.xlu0 %335
      %v337 = vsel %vm312, %v304, 0.0
      %338 = vadd.xlane.f32.xlu0 %v337
      %v339 = vpop.xlane.xlu0 %338
      %v340 = vsel %vm312, %v305, 0.0
      %341 = vadd.xlane.f32.xlu0 %v340
      %v342 = vpop.xlane.xlu0 %341
      %v343 = vsel %vm312, %v306, 0.0
      %344 = vadd.xlane.f32.xlu0 %v343
      %v345 = vpop.xlane.xlu0 %344
      %v346 = vsel %vm312, %v307, 0.0
      %347 = vadd.xlane.f32.xlu0 %v346
      %v348 = vpop.xlane.xlu0 %347
      %v349 = vsel %vm312, %v308, 0.0
      %350 = vadd.xlane.f32.xlu0 %v349
      %v351 = vpop.xlane.xlu0 %350
      %v352 = vsel %vm312, %v309, 0.0
      %353 = vadd.xlane.f32.xlu0 %v352
      %v354 = vpop.xlane.xlu0 %353
      %v355 = vsel %vm312, %v310, 0.0
      %356 = vadd.xlane.f32.xlu0 %v355
      %v357 = vpop.xlane.xlu0 %356
      %v358 = vsel %vm312, %v311, 0.0
      %359 = vadd.xlane.f32.xlu0 %v358
      %v360 = vpop.xlane.xlu0 %359
      %v362 = vsel %vm312, %v278, 0
      %v365 = vsel %vm312, %v279, 0
      %v368 = vsel %vm312, %v280, 0
      %v371 = vsel %vm312, %v281, 0
      %v374 = vsel %vm312, %v282, 0
      %v377 = vsel %vm312, %v283, 0
      %v380 = vsel %vm312, %v284, 0
      %v383 = vsel %vm312, %v285, 0
      %v386 = vsel %vm312, %v286, 0
      %v389 = vsel %vm312, %v287, 0
      %v392 = vsel %vm312, %v288, 0
      %v395 = vsel %vm312, %v289, 0
      %v398 = vsel %vm312, %v290, 0
      %v401 = vsel %vm312, %v291, 0
      %v404 = vsel %vm312, %v292, 0
      %v407 = vsel %vm312, %v293, 0
      %vm409 = vcmask 1042432
      %v411 = vsel %vm409, %v294, 0
      %413 = vmatprep.subr.mxu0 0.0
      %414 = vmatpush1.msra.mxu0 %v411
      %415 = vmatprep.subr.mxu0 0.0
      %416 = vmatpush1.msra.mxu0 0.0
      %417 = vmatprep.subr.mxu0 0.0
      %418 = vmatpush1.msra.mxu0 0.0
      %419 = vmatprep.subr.mxu0 0.0
      %420 = vmatpush1.msra.mxu0 0.0
      %421 = vmatprep.subr.mxu0 0.0
      %422 = vmatpush1.msra.mxu0 0.0
      %423 = vmatprep.subr.mxu0 0.0
      %424 = vmatpush1.msra.mxu0 0.0
      %425 = vmatprep.subr.mxu0 0.0
      %426 = vmatpush1.msra.mxu0 0.0
      %427 = vmatprep.subr.mxu0 0.0
      %428 = vmatpush1.msra.mxu0 0.0
      %429 = vmatprep.subr.mxu0 0.0
      %430 = vmatpush1.msra.mxu0 0.0
      %431 = vmatprep.subr.mxu0 0.0
      %432 = vmatpush1.msra.mxu0 0.0
      %433 = vmatprep.subr.mxu0 0.0
      %434 = vmatpush1.msra.mxu0 0.0
      %435 = vmatprep.subr.mxu0 0.0
      %436 = vmatpush1.msra.mxu0 0.0
      %437 = vmatprep.subr.mxu0 0.0
      %438 = vmatpush1.msra.mxu0 0.0
      %439 = vmatprep.subr.mxu0 0.0
      %440 = vmatpush1.msra.mxu0 0.0
      %441 = vmatprep.subr.mxu0 0.0
      %442 = vmatpush1.msra.mxu0 0.0
      %443 = vmatprep.subr.mxu0 0.0
      %444 = vmatpush1.msra.mxu0 0.0
      %445 = vmatprep.subr.mxu0 0.0
      %446 = vmatpush1.msra.mxu0 0.0
      %447 = vmatprep.subr.mxu0 0.0
      %448 = vmatpush1.msra.mxu0 0.0
      %449 = vmatprep.subr.mxu0 0.0
      %450 = vmatpush1.msra.mxu0 0.0
      %451 = vmatprep.subr.mxu0 0.0
      %452 = vmatpush1.msra.mxu0 0.0
      %453 = vmatprep.subr.mxu0 0.0
      %454 = vmatpush1.msra.mxu0 0.0
      %455 = vmatprep.subr.mxu0 0.0
      %456 = vmatpush1.msra.mxu0 0.0
      %457 = vmatprep.subr.mxu0 0.0
      %458 = vmatpush1.msra.mxu0 0.0
      %459 = vmatprep.subr.mxu0 0.0
      %460 = vmatpush1.msra.mxu0 0.0
      %461 = vmatprep.subr.mxu0 0.0
      %462 = vmatpush1.msra.mxu0 0.0
      %463 = vmatprep.subr.mxu0 0.0
      %464 = vmatpush1.msra.mxu0 0.0
      %465 = vmatprep.subr.mxu0 0.0
      %466 = vmatpush1.msra.mxu0 0.0
      %467 = vmatprep.subr.mxu0 0.0
      %468 = vmatpush1.msra.mxu0 0.0
      %469 = vmatprep.subr.mxu0 0.0
      %470 = vmatpush1.msra.mxu0 0.0
      %471 = vmatprep.subr.mxu0 0.0
      %472 = vmatpush1.msra.mxu0 0.0
      %473 = vmatprep.subr.mxu0 0.0
      %474 = vmatpush1.msra.mxu0 0.0
      %475 = vmatprep.subr.mxu0 0.0
      %476 = vmatpush1.msra.mxu0 0.0
      %477 = vmatprep.mubr.f32.mxu0 0.0
      %478 = vmatmul.mubr.f32.gmra.mrb[0].mxu0 %v362
      %v479 = vpop.f32.mrb[0].mxu0
      %v480 = vadd.f32 0.0, %v479
      %v481 = vpop.f32.mrb[0].mxu0
      %482 = vmatprep.mubr.f32.mxu0 0.0
      %483 = vmatmul.mubr.f32.gmra.mrb[0].mxu0 %v365
      %v484 = vpop.f32.mrb[0].mxu0
      %v485 = vadd.f32 0.0, %v484
      %v486 = vpop.f32.mrb[0].mxu0
      %487 = vmatprep.mubr.f32.mxu0 0.0
      %488 = vmatmul.mubr.f32.gmra.mrb[0].mxu0 %v368
      %v489 = vpop.f32.mrb[0].mxu0
      %v490 = vadd.f32 0.0, %v489
      %v491 = vpop.f32.mrb[0].mxu0
      %492 = vmatprep.mubr.f32.mxu0 0.0
      %493 = vmatmul.mubr.f32.gmra.mrb[0].mxu0 %v371
      %v494 = vpop.f32.mrb[0].mxu0
      %v495 = vadd.f32 0.0, %v494
      %v496 = vpop.f32.mrb[0].mxu0
      %497 = vmatprep.mubr.f32.mxu0 0.0
      %498 = vmatmul.mubr.f32.gmra.mrb[0].mxu0 %v374
      %v499 = vpop.f32.mrb[0].mxu0
      %v500 = vadd.f32 0.0, %v499
      %v501 = vpop.f32.mrb[0].mxu0
      %502 = vmatprep.mubr.f32.mxu0 0.0
      %503 = vmatmul.mubr.f32.gmra.mrb[0].mxu0 %v377
      %v504 = vpop.f32.mrb[0].mxu0
      %v505 = vadd.f32 0.0, %v504
      %v506 = vpop.f32.mrb[0].mxu0
      %507 = vmatprep.mubr.f32.mxu0 0.0
      %508 = vmatmul.mubr.f32.gmra.mrb[0].mxu0 %v380
      %v509 = vpop.f32.mrb[0].mxu0
      %v510 = vadd.f32 0.0, %v509
      %v511 = vpop.f32.mrb[0].mxu0
      %512 = vmatprep.mubr.f32.mxu0 0.0
      %513 = vmatmul.mubr.f32.gmra.mrb[0].mxu0 %v383
      %v514 = vpop.f32.mrb[0].mxu0
      %v515 = vadd.f32 0.0, %v514
      %v516 = vpop.f32.mrb[0].mxu0
      %517 = vmatprep.mubr.f32.mxu0 0.0
      %518 = vmatmul.mubr.f32.gmra.mrb[0].mxu0 %v386
      %v519 = vpop.f32.mrb[0].mxu0
      %v520 = vadd.f32 0.0, %v519
      %v521 = vpop.f32.mrb[0].mxu0
      %522 = vmatprep.mubr.f32.mxu0 0.0
      %523 = vmatmul.mubr.f32.gmra.mrb[0].mxu0 %v389
      %v524 = vpop.f32.mrb[0].mxu0
      %v525 = vadd.f32 0.0, %v524
      %v526 = vpop.f32.mrb[0].mxu0
      %527 = vmatprep.mubr.f32.mxu0 0.0
      %528 = vmatmul.mubr.f32.gmra.mrb[0].mxu0 %v392
      %v529 = vpop.f32.mrb[0].mxu0
      %v530 = vadd.f32 0.0, %v529
      %v531 = vpop.f32.mrb[0].mxu0
      %532 = vmatprep.mubr.f32.mxu0 0.0
      %533 = vmatmul.mubr.f32.gmra.mrb[0].mxu0 %v395
      %v534 = vpop.f32.mrb[0].mxu0
      %v535 = vadd.f32 0.0, %v534
      %v536 = vpop.f32.mrb[0].mxu0
      %537 = vmatprep.mubr.f32.mxu0 0.0
      %538 = vmatmul.mubr.f32.gmra.mrb[0].mxu0 %v398
      %v539 = vpop.f32.mrb[0].mxu0
      %v540 = vadd.f32 0.0, %v539
      %v541 = vpop.f32.mrb[0].mxu0
      %542 = vmatprep.mubr.f32.mxu0 0.0
      %543 = vmatmul.mubr.f32.gmra.mrb[0].mxu0 %v401
      %v544 = vpop.f32.mrb[0].mxu0
      %v545 = vadd.f32 0.0, %v544
      %v546 = vpop.f32.mrb[0].mxu0
      %547 = vmatprep.mubr.f32.mxu0 0.0
      %548 = vmatmul.mubr.f32.gmra.mrb[0].mxu0 %v404
      %v549 = vpop.f32.mrb[0].mxu0
      %v550 = vadd.f32 0.0, %v549
      %v551 = vpop.f32.mrb[0].mxu0
      %552 = vmatprep.mubr.f32.mxu0 0.0
      %553 = vmatmul.mubr.f32.gmra.mrb[0].mxu0 %v407
      %v554 = vpop.f32.mrb[0].mxu0
      %v555 = vadd.f32 0.0, %v554
      %v556 = vpop.f32.mrb[0].mxu0
      %557 = vdwg.mxu0
      %v559 = vlaneseq
      %v560 = vshrl.u32 %v559, 7
      %v561 = vsub.s32 0, %v560
      %v562 = vrot.slane %v295, %v561
      %v564 = vadd.f32 %v315, %v562
      %v565 = vadd.f32 %v318, %v562
      %v566 = vadd.f32 %v321, %v562
      %v567 = vadd.f32 %v324, %v562
      %v568 = vadd.f32 %v327, %v562
      %v569 = vadd.f32 %v330, %v562
      %v570 = vadd.f32 %v333, %v562
      %v571 = vadd.f32 %v336, %v562
      %v572 = vadd.f32 %v339, %v562
      %v573 = vadd.f32 %v342, %v562
      %v574 = vadd.f32 %v345, %v562
      %v575 = vadd.f32 %v348, %v562
      %v576 = vadd.f32 %v351, %v562
      %v577 = vadd.f32 %v354, %v562
      %v578 = vadd.f32 %v357, %v562
      %v579 = vadd.f32 %v360, %v562
      %v580 = vmul.f32 %v480, 2.0
      %v581 = vmul.f32 %v485, 2.0
      %v582 = vmul.f32 %v490, 2.0
      %v583 = vmul.f32 %v495, 2.0
      %v584 = vmul.f32 %v500, 2.0
      %v585 = vmul.f32 %v505, 2.0
      %v586 = vmul.f32 %v510, 2.0
      %v587 = vmul.f32 %v515, 2.0
      %v588 = vmul.f32 %v520, 2.0
      %v589 = vmul.f32 %v525, 2.0
      %v590 = vmul.f32 %v530, 2.0
      %v591 = vmul.f32 %v535, 2.0
      %v592 = vmul.f32 %v540, 2.0
      %v593 = vmul.f32 %v545, 2.0
      %v594 = vmul.f32 %v550, 2.0
      %v595 = vmul.f32 %v555, 2.0
      %v596 = vsub.f32 %v564, %v580
      %v597 = vsub.f32 %v565, %v581
      %v598 = vsub.f32 %v566, %v582
      %v599 = vsub.f32 %v567, %v583
      %v600 = vsub.f32 %v568, %v584
      %v601 = vsub.f32 %v569, %v585
      %v602 = vsub.f32 %v570, %v586
      %v603 = vsub.f32 %v571, %v587
      %v604 = vsub.f32 %v572, %v588
      %v605 = vsub.f32 %v573, %v589
      %v606 = vsub.f32 %v574, %v590
      %v607 = vsub.f32 %v575, %v591
      %v608 = vsub.f32 %v576, %v592
      %v609 = vsub.f32 %v577, %v593
      %v610 = vsub.f32 %v578, %v594
      %v611 = vsub.f32 %v579, %v595
      %v612 = vmax.f32 %v596, 0.0
      %v613 = vmax.f32 %v597, 0.0
      %v614 = vmax.f32 %v598, 0.0
      %v615 = vmax.f32 %v599, 0.0
      %v616 = vmax.f32 %v600, 0.0
      %v617 = vmax.f32 %v601, 0.0
      %v618 = vmax.f32 %v602, 0.0
      %v619 = vmax.f32 %v603, 0.0
      %v620 = vmax.f32 %v604, 0.0
      %v621 = vmax.f32 %v605, 0.0
      %v622 = vmax.f32 %v606, 0.0
      %v623 = vmax.f32 %v607, 0.0
      %v624 = vmax.f32 %v608, 0.0
      %v625 = vmax.f32 %v609, 0.0
      %v626 = vmax.f32 %v610, 0.0
      %v627 = vmax.f32 %v611, 0.0
      %v628 = vpack.c.bf16 %v613, %v612
      %v629 = vpack.c.bf16 %v615, %v614
      %v630 = vpack.c.bf16 %v617, %v616
      %v631 = vpack.c.bf16 %v619, %v618
      %v632 = vpack.c.bf16 %v621, %v620
      %v633 = vpack.c.bf16 %v623, %v622
      %v634 = vpack.c.bf16 %v625, %v624
      %v635 = vpack.c.bf16 %v627, %v626
      %v644 = vunpack.c.l.b16 %v628
      %v645 = vunpack.c.h.b16 %v628
      %v646 = vunpack.c.l.b16 %v629
      %v647 = vunpack.c.h.b16 %v629
      %v648 = vunpack.c.l.b16 %v630
      %v649 = vunpack.c.h.b16 %v630
      %v650 = vunpack.c.l.b16 %v631
      %v651 = vunpack.c.h.b16 %v631
      %v652 = vunpack.c.l.b16 %v632
      %v653 = vunpack.c.h.b16 %v632
      %v654 = vunpack.c.l.b16 %v633
      %v655 = vunpack.c.h.b16 %v633
      %v656 = vunpack.c.l.b16 %v634
      %v657 = vunpack.c.h.b16 %v634
      %v658 = vunpack.c.l.b16 %v635
      %v659 = vunpack.c.h.b16 %v635
      %v660 = vpack.c.b16 %v644, %v644
      %v661 = vpack.c.b16 %v645, %v645
      %v662 = vpack.c.b16 %v646, %v646
      %v663 = vpack.c.b16 %v647, %v647
      %v664 = vpack.c.b16 %v648, %v648
      %v665 = vpack.c.b16 %v649, %v649
      %v666 = vpack.c.b16 %v650, %v650
      %v667 = vpack.c.b16 %v651, %v651
      %v668 = vpack.c.b16 %v652, %v652
      %v669 = vpack.c.b16 %v653, %v653
      %v670 = vpack.c.b16 %v654, %v654
      %v671 = vpack.c.b16 %v655, %v655
      %v672 = vpack.c.b16 %v656, %v656
      %v673 = vpack.c.b16 %v657, %v657
      %v674 = vpack.c.b16 %v658, %v658
      %v675 = vpack.c.b16 %v659, %v659
      %692 = vst [vmem:[%s276] sm:$0xf] %v660
      %693 = vst [vmem:[%s276 + $0x4] sm:$0xf] %v661
      %694 = vst [vmem:[%s276 + $0x8] sm:$0xf] %v662
      %695 = vst [vmem:[%s276 + $0xc] sm:$0xf] %v663
      %696 = vst [vmem:[%s276 + $0x10] sm:$0xf] %v664
      %697 = vst [vmem:[%s276 + $0x14] sm:$0xf] %v665
      %698 = vst [vmem:[%s276 + $0x18] sm:$0xf] %v666
      %699 = vst [vmem:[%s276 + $0x1c] sm:$0xf] %v667
      %700 = vst [vmem:[%s276 + $0x20] sm:$0xf] %v668
      %701 = vst [vmem:[%s276 + $0x24] sm:$0xf] %v669
      %702 = vst [vmem:[%s276 + $0x28] sm:$0xf] %v670
      %703 = vst [vmem:[%s276 + $0x2c] sm:$0xf] %v671
      %704 = vst [vmem:[%s276 + $0x30] sm:$0xf] %v672
      %705 = vst [vmem:[%s276 + $0x34] sm:$0xf] %v673
      %706 = vst [vmem:[%s276 + $0x38] sm:$0xf] %v674
      %707 = vst [vmem:[%s276 + $0x3c] sm:$0xf] %v675
      %s708 = smul.u32 16, %s20
      %p709 = scmp.lt.s32.totalorder %s19, 1
      %s710 = scalar_select %p709, %s19, 1
      %p711 = scmp.lt.s32.totalorder %s708, 15
      %s712 = scalar_select %p711, %s708, 15
      %p713 = scmp.lt.s32.totalorder %s21, 0
      %s714 = scalar_select %p713, %s21, 0
      %s715 = sadd.s32 %s714, %s712
      %s716 = smul.addr %s710, 16
      %s717 = sadd.s32 %s715, %s716
      %s718 = smul.addr %s717, 4
      %s719 = scalar_lea.vmem %s3, %s718
      // Predicated region
      $region33: #{nbr_agg_forward.2} parent=31 // pred_check
        %p720 = pneg %p139
      $region34: #{nbr_agg_forward.2} parent=31 // pred_check_branch
        %722 = sbr.rel (%p720) target = $region36
      $region35: #{nbr_agg_forward.2} parent=31 // pred_region
        %s723 = smul.u32 16, %s20
      $region36: #{nbr_agg_forward.2} parent=31 // pred_fallthru
        _
    $region32: #{nbr_agg_forward.2} parent=5 // pred_fallthru
      _
    %p724 = scmp.le.s32.totalorder 2, %s9
    // Predicated region
    $region37: #{nbr_agg_forward.2} parent=5 // pred_check
      %p725 = pneg %p724
    $region38: #{nbr_agg_forward.2} parent=5 // pred_check_branch
      %727 = sbr.rel (%p725) target = $region40
    $region39: #{nbr_agg_forward.2} parent=5 // pred_region
      %s728 = ssub.s32 %s9, 2
      // Predicated region
      $region41: #{nbr_agg_forward.2} parent=39 // pred_check
        %p729 = pneg %p145
      $region42: #{nbr_agg_forward.2} parent=39 // pred_check_branch
        %731 = sbr.rel (%p729) target = $region44
      $region43: #{nbr_agg_forward.2} parent=39 // pred_region
        %s732 = smul.u32 16, %s23
        %p733 = scmp.lt.s32.totalorder %s22, 1
        %s734 = scalar_select %p733, %s22, 1
        %p735 = scmp.lt.s32.totalorder %s732, 15
        %s736 = scalar_select %p735, %s732, 15
        %p737 = scmp.lt.s32.totalorder %s24, 0
        %s738 = scalar_select %p737, %s24, 0
        %s739 = sadd.s32 %s738, %s736
        %s740 = smul.addr %s734, 16
        %s741 = sadd.s32 %s739, %s740
        %s742 = smul.addr %s741, 4
        %s743 = scalar_lea.vmem %s3, %s742
      $region44: #{nbr_agg_forward.2} parent=39 // pred_fallthru
        _
    $region40: #{nbr_agg_forward.2} parent=5 // pred_fallthru
      _
  $region6: #{nbr_agg_forward.2} parent=0 // loop_footer
    %s13 = sadd.s32 1, %s9
  $region7: #{nbr_agg_forward.2} parent=0 // loop_footer_branch
    %8 = sbr.rel target = $region3
  $region8: #{nbr_agg_forward.2} parent=0 // loop_exit
    _

// kernel: nbr_agg_forward.3
$region0: #{nbr_agg_forward.3}
  #allocation0 [shape = 'u32[]', space=smem, size = 0x4, offset = 0x4, fixed_abs, tag = 'smem constant byte address 0x4 - core index']
  #allocation1 [shape = 'u32[144,128]{1,0:T(1,128)}', space=vmem, size = 0x12000, scoped, tag = 'internal scratch']
  #allocation2 [shape = 'f32[1024,16]{1,0:T(8,128)}', space=vmem, size = 0x80000, scoped, tag = 'scratch operand']
  #allocation3 [shape = 'f32[1024,32]{1,0:T(8,128)}', space=vmem, size = 0x80000, scoped, tag = 'scratch operand']
  %s0 = inlined_call_operand.vmem [shape: f32[2,128,27], index: 0, kind: input, shape index: {}]
  %s1 = inlined_call_operand.vmem [shape: f32[8,16], index: 1, kind: input, shape index: {}]
  %s2 = inlined_call_operand.vmem [shape: bf16[16,32], index: 2, kind: input, shape index: {}]
  %s3 = inlined_call_operand.vmem [shape: f32[6,32], index: 3, kind: input, shape index: {}]
  %s4 = inlined_call_operand.vmem [shape: bf16[32,32], index: 4, kind: input, shape index: {}]
  %s5 = inlined_call_operand.vmem [shape: bf16[32,32], index: 5, kind: input, shape index: {}]
  %s6 = inlined_call_operand.vmem [shape: f32[2,128,32], index: 6, kind: output, shape index: {}]
  %s7 = sld [smem:[#allocation0]]
  $region57: #{nbr_agg_forward.3} parent=0
    _
  %s9 = ssub.s32 1, %s7
  %s10 = scalar_select 0, %s9, %s7
  loop: start=0, step=1, limit=4
  $region2: #{nbr_agg_forward.3} parent=0 // loop_pre_header
    _
  $region3: #{nbr_agg_forward.3} parent=0 // loop_header
    %s12 = sphi 0, %s16
    %p13 = scmp.ge.s32.totalorder %s12, 4
    %s19 = sphi 0, %s31
    %s20 = sphi 0, %s27
    %s21 = sphi 0, %s19
    %s22 = sphi 0, %s20
    %s23 = sphi 0, %s21
    %s24 = sphi 0, %s22
    %s36 = sphi 0, %s38
    %s39 = sphi 0, %s36
    %s40 = sphi 0, %s39
    %s56 = sphi 0, %s40
    %s60 = sphi 0, %s60
    %s62 = sphi 0, %s60
    %s63 = sphi 0, %s62
    %s77 = sphi 0, %s63
    %s81 = sphi 0, %s81
    %s83 = sphi 0, %s81
    %s84 = sphi 0, %s83
    %s98 = sphi 0, %s84
    %s102 = sphi 0, %s102
    %s104 = sphi 0, %s102
    %s105 = sphi 0, %s104
    %s119 = sphi 0, %s105
    %s123 = sphi 0, %s123
    %s125 = sphi 0, %s123
    %s126 = sphi 0, %s125
    %s140 = sphi 0, %s126
    %s144 = sphi 0, %s144
    %s146 = sphi 0, %s144
    %s147 = sphi 0, %s146
    %s161 = sphi 0, %s147
    %s169 = sphi 0, %s171
    %s172 = sphi 0, %s169
    %s173 = sphi 0, %s172
    %s189 = sphi 0, %s173
  $region4: #{nbr_agg_forward.3} parent=0 // loop_header_branch
    %15 = sbr.rel (%p13) target = $region8
  $region5: #{nbr_agg_forward.3} parent=0 // loop_body
    %s17 = ssub.s32 %s12, 1
    %s18 = ssub.s32 %s12, 2
    %s25 = sadd.s32 1, %s20
    %p26 = scmp.ge.s32.totalorder %s25, 1
    %s27 = scalar_select %p26, 0, %s25
    %s28 = sadd.s32 1, %s19
    %s29 = scalar_select %p26, %s28, %s19
    %p30 = scmp.ge.s32.totalorder %s29, 2
    %s31 = scalar_select %p30, 0, %s29
    %s32 = ssub.s32 %s19, %s31
    %s33 = ssub.s32 %s20, %s27
    %s34 = sor.u32 %s32, %s33
    %p35 = scmp.eq.s32.totalorder %s34, 0
    %s37 = sadd.s32 %s36, 1
    %s38 = scalar_select %p35, %s36, %s37
    %p41 = pneg %p35
    %p42 = scmp.eq.s32.totalorder %s12, 1
    %p43 = por %p41, %p42
    %p44 = scmp.ne.s32.totalorder %s36, %s39
    %p45 = scmp.eq.s32.totalorder %s12, 0
    %p46 = por %p44, %p45
    %p47 = scmp.ne.s32.totalorder %s36, %s39
    %p48 = scmp.eq.s32.totalorder %s17, 1
    %p49 = por %p47, %p48
    %p50 = scmp.ne.s32.totalorder %s39, %s40
    %p51 = scmp.eq.s32.totalorder %s17, 0
    %p52 = por %p50, %p51
    %p53 = scmp.ne.s32.totalorder %s39, %s40
    %p54 = scmp.eq.s32.totalorder %s18, 1
    %p55 = por %p53, %p54
    %p57 = scmp.ne.s32.totalorder %s40, %s56
    %p58 = scmp.eq.s32.totalorder %s18, 0
    %p59 = por %p57, %p58
    %s61 = sadd.s32 %s60, 1
    %p64 = scmp.eq.s32.totalorder %s12, 1
    %p65 = scmp.ne.s32.totalorder %s60, %s62
    %p66 = scmp.eq.s32.totalorder %s12, 0
    %p67 = por %p65, %p66
    %p68 = scmp.ne.s32.totalorder %s60, %s62
    %p69 = scmp.eq.s32.totalorder %s17, 1
    %p70 = por %p68, %p69
    %p71 = scmp.ne.s32.totalorder %s62, %s63
    %p72 = scmp.eq.s32.totalorder %s17, 0
    %p73 = por %p71, %p72
    %p74 = scmp.ne.s32.totalorder %s62, %s63
    %p75 = scmp.eq.s32.totalorder %s18, 1
    %p76 = por %p74, %p75
    %p78 = scmp.ne.s32.totalorder %s63, %s77
    %p79 = scmp.eq.s32.totalorder %s18, 0
    %p80 = por %p78, %p79
    %s82 = sadd.s32 %s81, 1
    %p85 = scmp.eq.s32.totalorder %s12, 1
    %p86 = scmp.ne.s32.totalorder %s81, %s83
    %p87 = scmp.eq.s32.totalorder %s12, 0
    %p88 = por %p86, %p87
    %p89 = scmp.ne.s32.totalorder %s81, %s83
    %p90 = scmp.eq.s32.totalorder %s17, 1
    %p91 = por %p89, %p90
    %p92 = scmp.ne.s32.totalorder %s83, %s84
    %p93 = scmp.eq.s32.totalorder %s17, 0
    %p94 = por %p92, %p93
    %p95 = scmp.ne.s32.totalorder %s83, %s84
    %p96 = scmp.eq.s32.totalorder %s18, 1
    %p97 = por %p95, %p96
    %p99 = scmp.ne.s32.totalorder %s84, %s98
    %p100 = scmp.eq.s32.totalorder %s18, 0
    %p101 = por %p99, %p100
    %s103 = sadd.s32 %s102, 1
    %p106 = scmp.eq.s32.totalorder %s12, 1
    %p107 = scmp.ne.s32.totalorder %s102, %s104
    %p108 = scmp.eq.s32.totalorder %s12, 0
    %p109 = por %p107, %p108
    %p110 = scmp.ne.s32.totalorder %s102, %s104
    %p111 = scmp.eq.s32.totalorder %s17, 1
    %p112 = por %p110, %p111
    %p113 = scmp.ne.s32.totalorder %s104, %s105
    %p114 = scmp.eq.s32.totalorder %s17, 0
    %p115 = por %p113, %p114
    %p116 = scmp.ne.s32.totalorder %s104, %s105
    %p117 = scmp.eq.s32.totalorder %s18, 1
    %p118 = por %p116, %p117
    %p120 = scmp.ne.s32.totalorder %s105, %s119
    %p121 = scmp.eq.s32.totalorder %s18, 0
    %p122 = por %p120, %p121
    %s124 = sadd.s32 %s123, 1
    %p127 = scmp.eq.s32.totalorder %s12, 1
    %p128 = scmp.ne.s32.totalorder %s123, %s125
    %p129 = scmp.eq.s32.totalorder %s12, 0
    %p130 = por %p128, %p129
    %p131 = scmp.ne.s32.totalorder %s123, %s125
    %p132 = scmp.eq.s32.totalorder %s17, 1
    %p133 = por %p131, %p132
    %p134 = scmp.ne.s32.totalorder %s125, %s126
    %p135 = scmp.eq.s32.totalorder %s17, 0
    %p136 = por %p134, %p135
    %p137 = scmp.ne.s32.totalorder %s125, %s126
    %p138 = scmp.eq.s32.totalorder %s18, 1
    %p139 = por %p137, %p138
    %p141 = scmp.ne.s32.totalorder %s126, %s140
    %p142 = scmp.eq.s32.totalorder %s18, 0
    %p143 = por %p141, %p142
    %s145 = sadd.s32 %s144, 1
    %p148 = scmp.eq.s32.totalorder %s12, 1
    %p149 = scmp.ne.s32.totalorder %s144, %s146
    %p150 = scmp.eq.s32.totalorder %s12, 0
    %p151 = por %p149, %p150
    %p152 = scmp.ne.s32.totalorder %s144, %s146
    %p153 = scmp.eq.s32.totalorder %s17, 1
    %p154 = por %p152, %p153
    %p155 = scmp.ne.s32.totalorder %s146, %s147
    %p156 = scmp.eq.s32.totalorder %s17, 0
    %p157 = por %p155, %p156
    %p158 = scmp.ne.s32.totalorder %s146, %s147
    %p159 = scmp.eq.s32.totalorder %s18, 1
    %p160 = por %p158, %p159
    %p162 = scmp.ne.s32.totalorder %s147, %s161
    %p163 = scmp.eq.s32.totalorder %s18, 0
    %p164 = por %p162, %p163
    %s165 = ssub.s32 %s19, %s31
    %s166 = ssub.s32 %s20, %s27
    %s167 = sor.u32 %s165, %s166
    %p168 = scmp.eq.s32.totalorder %s167, 0
    %s170 = sadd.s32 %s169, 1
    %s171 = scalar_select %p168, %s169, %s170
    %p174 = pneg %p168
    %p175 = scmp.eq.s32.totalorder %s12, 1
    %p176 = por %p174, %p175
    %p177 = scmp.ne.s32.totalorder %s169, %s172
    %p178 = scmp.eq.s32.totalorder %s12, 0
    %p179 = por %p177, %p178
    %p180 = scmp.ne.s32.totalorder %s169, %s172
    %p181 = scmp.eq.s32.totalorder %s17, 1
    %p182 = por %p180, %p181
    %p183 = scmp.ne.s32.totalorder %s172, %s173
    %p184 = scmp.eq.s32.totalorder %s17, 0
    %p185 = por %p183, %p184
    %p186 = scmp.ne.s32.totalorder %s172, %s173
    %p187 = scmp.eq.s32.totalorder %s18, 1
    %p188 = por %p186, %p187
    %p190 = scmp.ne.s32.totalorder %s173, %s189
    %p191 = scmp.eq.s32.totalorder %s18, 0
    %p192 = por %p190, %p191
    %p193 = scmp.le.s32.totalorder 1, %s12
    %p194 = scmp.lt.s32.totalorder %s12, 3
    %p195 = pnand %p193, %p194
    %p196 = pneg %p195
    // Predicated region
    $region9: #{nbr_agg_forward.3} parent=5 // pred_check
      _
    $region10: #{nbr_agg_forward.3} parent=5 // pred_check_branch
      %198 = sbr.rel (%p195) target = $region12
    $region11: #{nbr_agg_forward.3} parent=5 // pred_region
      %s199 = ssub.s32 %s12, 1
      // Predicated region
      $region13: #{nbr_agg_forward.3} parent=11 // pred_check
        %p200 = pneg %p73
      $region14: #{nbr_agg_forward.3} parent=11 // pred_check_branch
        %202 = sbr.rel (%p200) target = $region16
      $region15: #{nbr_agg_forward.3} parent=11 // pred_region
        _
      $region16: #{nbr_agg_forward.3} parent=11 // pred_fallthru
        _
      // Predicated region
      $region17: #{nbr_agg_forward.3} parent=11 // pred_check
        %p203 = pneg %p94
      $region18: #{nbr_agg_forward.3} parent=11 // pred_check_branch
        %205 = sbr.rel (%p203) target = $region20
      $region19: #{nbr_agg_forward.3} parent=11 // pred_region
        _
      $region20: #{nbr_agg_forward.3} parent=11 // pred_fallthru
        _
      // Predicated region
      $region21: #{nbr_agg_forward.3} parent=11 // pred_check
        %p206 = pneg %p115
      $region22: #{nbr_agg_forward.3} parent=11 // pred_check_branch
        %208 = sbr.rel (%p206) target = $region24
      $region23: #{nbr_agg_forward.3} parent=11 // pred_region
        _
      $region24: #{nbr_agg_forward.3} parent=11 // pred_fallthru
        _
      // Predicated region
      $region25: #{nbr_agg_forward.3} parent=11 // pred_check
        %p209 = pneg %p136
      $region26: #{nbr_agg_forward.3} parent=11 // pred_check_branch
        %211 = sbr.rel (%p209) target = $region28
      $region27: #{nbr_agg_forward.3} parent=11 // pred_region
        _
      $region28: #{nbr_agg_forward.3} parent=11 // pred_fallthru
        _
      // Predicated region
      $region29: #{nbr_agg_forward.3} parent=11 // pred_check
        %p212 = pneg %p157
      $region30: #{nbr_agg_forward.3} parent=11 // pred_check_branch
        %214 = sbr.rel (%p212) target = $region32
      $region31: #{nbr_agg_forward.3} parent=11 // pred_region
        _
      $region32: #{nbr_agg_forward.3} parent=11 // pred_fallthru
        _
    $region12: #{nbr_agg_forward.3} parent=5 // pred_fallthru
      _
    %p215 = scmp.lt.s32.totalorder %s12, 2
    // Predicated region
    $region33: #{nbr_agg_forward.3} parent=5 // pred_check
      %p216 = pneg %p215
    $region34: #{nbr_agg_forward.3} parent=5 // pred_check_branch
      %218 = sbr.rel (%p216) target = $region36
    $region35: #{nbr_agg_forward.3} parent=5 // pred_region
      // Predicated region
      $region37: #{nbr_agg_forward.3} parent=35 // pred_check
        %p219 = pneg %p46
      $region38: #{nbr_agg_forward.3} parent=35 // pred_check_branch
        %221 = sbr.rel (%p219) target = $region40
      $region39: #{nbr_agg_forward.3} parent=35 // pred_region
        %s222 = smul.u32 16, %s20
        %p223 = scmp.lt.s32.totalorder %s19, 1
        %s224 = scalar_select %p223, %s19, 1
        %p225 = scmp.lt.s32.totalorder %s222, 15
        %s226 = scalar_select %p225, %s222, 15
        %s227 = smul.addr %s224, 16
        %s228 = sadd.s32 %s226, %s227
        %s229 = smul.addr %s228, 8
        %s230 = scalar_lea.vmem %s0, %s229
        %s231 = smul.u32 16, %s20
      $region40: #{nbr_agg_forward.3} parent=35 // pred_fallthru
        _
    $region36: #{nbr_agg_forward.3} parent=5 // pred_fallthru
      _
    %p232 = scmp.le.s32.totalorder 1, %s12
    %p233 = scmp.lt.s32.totalorder %s12, 3
    %p234 = pnand %p232, %p233
    %p235 = pneg %p234
    // Predicated region
    $region41: #{nbr_agg_forward.3} parent=5 // pred_check
      _
    $region42: #{nbr_agg_forward.3} parent=5 // pred_check_branch
      %237 = sbr.rel (%p234) target = $region44
    $region43: #{nbr_agg_forward.3} parent=5 // pred_region
      %s238 = ssub.s32 %s12, 1
      %s239 = smul.u32 16, %s22
      %p240 = scmp.lt.s32.totalorder %s21, 1
      %s241 = scalar_select %p240, %s21, 1
      %p242 = scmp.lt.s32.totalorder %s239, 15
      %s243 = scalar_select %p242, %s239, 15
      %s244 = smul.addr %s241, 16
      %s245 = sadd.s32 %s243, %s244
      %s246 = smul.addr %s245, 8
      %s247 = scalar_lea.vmem %s0, %s246
      %p248 = pneg %p52
      %p249 = pneg %p49
      %p250 = pneg %p73
      %p251 = pneg %p70
      %p252 = pneg %p94
      %p253 = pneg %p91
      %p254 = pneg %p115
      %p255 = pneg %p112
      %p256 = pneg %p136
      %p257 = pneg %p133
      %p258 = pneg %p157
      %p259 = pneg %p154
      %p260 = pneg %p185
      %p261 = pneg %p182
      %s262 = smul.u32 16, %s22
      %p263 = scmp.lt.s32.totalorder %s21, 1
      %s264 = scalar_select %p263, %s21, 1
      %p265 = scmp.lt.s32.totalorder %s262, 15
      %s266 = scalar_select %p265, %s262, 15
      %s267 = smul.addr %s264, 16
      %s268 = sadd.s32 %s266, %s267
      %s269 = smul.addr %s268, 8
      %s270 = scalar_lea.vmem %s6, %s269
      %s271 = smul.u32 16, %s22
      %p272 = scmp.lt.s32.totalorder %s21, 1
      %s273 = scalar_select %p272, %s21, 1
      %p274 = scmp.lt.s32.totalorder %s271, 15
      %s275 = scalar_select %p274, %s271, 15
      %s276 = smul.addr %s273, 16
      %s277 = sadd.s32 %s275, %s276
      %s278 = smul.addr %s277, 8
      %s279 = scalar_lea.vmem %s0, %s278
      %s280 = smul.u32 16, %s22
      %s281 = smul.u32 16, %s22
      %p282 = scmp.lt.s32.totalorder %s21, 1
      %s283 = scalar_select %p282, %s21, 1
      %p284 = scmp.lt.s32.totalorder %s281, 15
      %s285 = scalar_select %p284, %s281, 15
      %s286 = smul.addr %s283, 16
      %s287 = sadd.s32 %s285, %s286
      %s288 = smul.addr %s287, 8
      %s289 = scalar_lea.vmem %s6, %s288
      %s290 = smul.u32 16, %s22
      %v292 = vld [vmem:[%s279] sm:$0xff]
      %v293 = vld [vmem:[%s279 + $0x8] sm:$0xff]
      %v294 = vld [vmem:[%s279 + $0x10] sm:$0xff]
      %v295 = vld [vmem:[%s279 + $0x18] sm:$0xff]
      %v296 = vld [vmem:[%s279 + $0x20] sm:$0xff]
      %v297 = vld [vmem:[%s279 + $0x28] sm:$0xff]
      %v298 = vld [vmem:[%s279 + $0x30] sm:$0xff]
      %v299 = vld [vmem:[%s279 + $0x38] sm:$0xff]
      %v300 = vld [vmem:[%s279 + $0x40] sm:$0xff]
      %v301 = vld [vmem:[%s279 + $0x48] sm:$0xff]
      %v302 = vld [vmem:[%s279 + $0x50] sm:$0xff]
      %v303 = vld [vmem:[%s279 + $0x58] sm:$0xff]
      %v304 = vld [vmem:[%s279 + $0x60] sm:$0xff]
      %v305 = vld [vmem:[%s279 + $0x68] sm:$0xff]
      %v306 = vld [vmem:[%s279 + $0x70] sm:$0xff]
      %v307 = vld [vmem:[%s279 + $0x78] sm:$0xff]
      %v308 = vpack.c.bf16 %v293, %v292
      %v309 = vpack.c.bf16 %v295, %v294
      %v310 = vpack.c.bf16 %v297, %v296
      %v311 = vpack.c.bf16 %v299, %v298
      %v312 = vpack.c.bf16 %v301, %v300
      %v313 = vpack.c.bf16 %v303, %v302
      %v314 = vpack.c.bf16 %v305, %v304
      %v315 = vpack.c.bf16 %v307, %v306
      %v316 = vld [vmem:[%s1] sm:$0xff]
      %v317 = vpack.c.bf16 %v316, %v316
      %v318 = vld [vmem:[%s2] sm:$0xf]
      %v319 = vld [vmem:[%s2 + $0x4] sm:$0xf]
      %v320 = vld [vmem:[%s3] sm:$0x3f]
      %v321 = vpack.c.bf16 %v320, %v320
      %vm322 = vcmask 23552
      %v324 = vsel %vm322, %v308, 0
      %v327 = vsel %vm322, %v309, 0
      %v330 = vsel %vm322, %v310, 0
      %v333 = vsel %vm322, %v311, 0
      %v336 = vsel %vm322, %v312, 0
      %v339 = vsel %vm322, %v313, 0
      %v342 = vsel %vm322, %v314, 0
      %v345 = vsel %vm322, %v315, 0
      %vm347 = vcmask 1040384
      %vm348 = vcmask 1041408
      %v349 = vsel %vm347, 4294967295, 65535
      %v350 = vsel %vm348, %v349, 0
      %v352 = vand.u32 %v317, %v350
      %354 = vmatprep.subr.bf16.mxu0 0
      %355 = vmatpush1.bf16.msra.mxu0 %v352
      %356 = vmatprep.subr.bf16.mxu0 0
      %357 = vmatpush1.bf16.msra.mxu0 0
      %358 = vmatprep.subr.bf16.mxu0 0
      %359 = vmatpush1.bf16.msra.mxu0 0
      %360 = vmatprep.subr.bf16.mxu0 0
      %361 = vmatpush1.bf16.msra.mxu0 0
      %362 = vmatprep.subr.bf16.mxu0 0
      %363 = vmatpush1.bf16.msra.mxu0 0
      %364 = vmatprep.subr.bf16.mxu0 0
      %365 = vmatpush1.bf16.msra.mxu0 0
      %366 = vmatprep.subr.bf16.mxu0 0
      %367 = vmatpush1.bf16.msra.mxu0 0
      %368 = vmatprep.subr.bf16.mxu0 0
      %369 = vmatpush1.bf16.msra.mxu0 0
      %370 = vmatprep.subr.bf16.mxu0 0
      %371 = vmatpush1.bf16.msra.mxu0 0
      %372 = vmatprep.subr.bf16.mxu0 0
      %373 = vmatpush1.bf16.msra.mxu0 0
      %374 = vmatprep.subr.bf16.mxu0 0
      %375 = vmatpush1.bf16.msra.mxu0 0
      %376 = vmatprep.subr.bf16.mxu0 0
      %377 = vmatpush1.bf16.msra.mxu0 0
      %378 = vmatprep.subr.bf16.mxu0 0
      %379 = vmatpush1.bf16.msra.mxu0 0
      %380 = vmatprep.subr.bf16.mxu0 0
      %381 = vmatpush1.bf16.msra.mxu0 0
      %382 = vmatprep.subr.bf16.mxu0 0
      %383 = vmatpush1.bf16.msra.mxu0 0
      %384 = vmatprep.subr.bf16.mxu0 0
      %385 = vmatpush1.bf16.msra.mxu0 0
      %386 = vmatprep.mubr.bf16.mxu0 0
      %387 = vmatmul.mubr.bf16.gmra.mrb[0].mxu0 %v324
      %v388 = vpop.f32.mrb[0].mxu0
      %v389 = vadd.f32 0.0, %v388
      %v390 = vpop.f32.mrb[0].mxu0
      %v391 = vpop.f32.mrb[0].mxu0
      %v392 = vadd.f32 0.0, %v391
      %v393 = vpop.f32.mrb[0].mxu0
      %394 = vmatprep.mubr.bf16.mxu0 0
      %395 = vmatmul.mubr.bf16.gmra.mrb[0].mxu0 %v327
      %v396 = vpop.f32.mrb[0].mxu0
      %v397 = vadd.f32 0.0, %v396
      %v398 = vpop.f32.mrb[0].mxu0
      %v399 = vpop.f32.mrb[0].mxu0
      %v400 = vadd.f32 0.0, %v399
      %v401 = vpop.f32.mrb[0].mxu0
      %402 = vmatprep.mubr.bf16.mxu0 0
      %403 = vmatmul.mubr.bf16.gmra.mrb[0].mxu0 %v330
      %v404 = vpop.f32.mrb[0].mxu0
      %v405 = vadd.f32 0.0, %v404
      %v406 = vpop.f32.mrb[0].mxu0
      %v407 = vpop.f32.mrb[0].mxu0
      %v408 = vadd.f32 0.0, %v407
      %v409 = vpop.f32.mrb[0].mxu0
      %410 = vmatprep.mubr.bf16.mxu0 0
      %411 = vmatmul.mubr.bf16.gmra.mrb[0].mxu0 %v333
      %v412 = vpop.f32.mrb[0].mxu0
      %v413 = vadd.f32 0.0, %v412
      %v414 = vpop.f32.mrb[0].mxu0
      %v415 = vpop.f32.mrb[0].mxu0
      %v416 = vadd.f32 0.0, %v415
      %v417 = vpop.f32.mrb[0].mxu0
      %418 = vmatprep.mubr.bf16.mxu0 0
      %419 = vmatmul.mubr.bf16.gmra.mrb[0].mxu0 %v336
      %v420 = vpop.f32.mrb[0].mxu0
      %v421 = vadd.f32 0.0, %v420
      %v422 = vpop.f32.mrb[0].mxu0
      %v423 = vpop.f32.mrb[0].mxu0
      %v424 = vadd.f32 0.0, %v423
      %v425 = vpop.f32.mrb[0].mxu0
      %426 = vmatprep.mubr.bf16.mxu0 0
      %427 = vmatmul.mubr.bf16.gmra.mrb[0].mxu0 %v339
      %v428 = vpop.f32.mrb[0].mxu0
      %v429 = vadd.f32 0.0, %v428
      %v430 = vpop.f32.mrb[0].mxu0
      %v431 = vpop.f32.mrb[0].mxu0
      %v432 = vadd.f32 0.0, %v431
      %v433 = vpop.f32.mrb[0].mxu0
      %434 = vmatprep.mubr.bf16.mxu0 0
      %435 = vmatmul.mubr.bf16.gmra.mrb[0].mxu0 %v342
      %v436 = vpop.f32.mrb[0].mxu0
      %v437 = vadd.f32 0.0, %v436
      %v438 = vpop.f32.mrb[0].mxu0
      %v439 = vpop.f32.mrb[0].mxu0
      %v440 = vadd.f32 0.0, %v439
      %v441 = vpop.f32.mrb[0].mxu0
      %442 = vmatprep.mubr.bf16.mxu0 0
      %443 = vmatmul.mubr.bf16.gmra.mrb[0].mxu0 %v345
      %v444 = vpop.f32.mrb[0].mxu0
      %v445 = vadd.f32 0.0, %v444
      %v446 = vpop.f32.mrb[0].mxu0
      %v447 = vpop.f32.mrb[0].mxu0
      %v448 = vadd.f32 0.0, %v447
      %v449 = vpop.f32.mrb[0].mxu0
      %450 = vdwg.mxu0
      %467 = vrot.lane.b32.xlu0 %v292, 3
      %v468 = vpop.permute.xlu0 %467
      %469 = vrot.lane.b32.xlu0 %v293, 3
      %v470 = vpop.permute.xlu0 %469
      %471 = vrot.lane.b32.xlu0 %v294, 3
      %v472 = vpop.permute.xlu0 %471
      %473 = vrot.lane.b32.xlu0 %v295, 3
      %v474 = vpop.permute.xlu0 %473
      %475 = vrot.lane.b32.xlu0 %v296, 3
      %v476 = vpop.permute.xlu0 %475
      %477 = vrot.lane.b32.xlu0 %v297, 3
      %v478 = vpop.permute.xlu0 %477
      %479 = vrot.lane.b32.xlu0 %v298, 3
      %v480 = vpop.permute.xlu0 %479
      %481 = vrot.lane.b32.xlu0 %v299, 3
      %v482 = vpop.permute.xlu0 %481
      %483 = vrot.lane.b32.xlu0 %v300, 3
      %v484 = vpop.permute.xlu0 %483
      %485 = vrot.lane.b32.xlu0 %v301, 3
      %v486 = vpop.permute.xlu0 %485
      %487 = vrot.lane.b32.xlu0 %v302, 3
      %v488 = vpop.permute.xlu0 %487
      %489 = vrot.lane.b32.xlu0 %v303, 3
      %v490 = vpop.permute.xlu0 %489
      %491 = vrot.lane.b32.xlu0 %v304, 3
      %v492 = vpop.permute.xlu0 %491
      %493 = vrot.lane.b32.xlu0 %v305, 3
      %v494 = vpop.permute.xlu0 %493
      %495 = vrot.lane.b32.xlu0 %v306, 3
      %v496 = vpop.permute.xlu0 %495
      %497 = vrot.lane.b32.xlu0 %v307, 3
      %v498 = vpop.permute.xlu0 %497
      %v515 = vsub.f32 %v292, %v468
      %v516 = vsub.f32 %v293, %v470
      %v517 = vsub.f32 %v294, %v472
      %v518 = vsub.f32 %v295, %v474
      %v519 = vsub.f32 %v296, %v476
      %v520 = vsub.f32 %v297, %v478
      %v521 = vsub.f32 %v298, %v480
      %v522 = vsub.f32 %v299, %v482
      %v523 = vsub.f32 %v300, %v484
      %v524 = vsub.f32 %v301, %v486
      %v525 = vsub.f32 %v302, %v488
      %v526 = vsub.f32 %v303, %v490
      %v527 = vsub.f32 %v304, %v492
      %v528 = vsub.f32 %v305, %v494
      %v529 = vsub.f32 %v306, %v496
      %v530 = vsub.f32 %v307, %v498
      %v531 = vmul.f32 %v515, %v515
      %v532 = vmul.f32 %v516, %v516
      %v533 = vmul.f32 %v517, %v517
      %v534 = vmul.f32 %v518, %v518
      %v535 = vmul.f32 %v519, %v519
      %v536 = vmul.f32 %v520, %v520
      %v537 = vmul.f32 %v521, %v521
      %v538 = vmul.f32 %v522, %v522
      %v539 = vmul.f32 %v523, %v523
      %v540 = vmul.f32 %v524, %v524
      %v541 = vmul.f32 %v525, %v525
      %v542 = vmul.f32 %v526, %v526
      %v543 = vmul.f32 %v527, %v527
      %v544 = vmul.f32 %v528, %v528
      %v545 = vmul.f32 %v529, %v529
      %v546 = vmul.f32 %v530, %v530
      %563 = vrot.lane.b32.xlu0 %v531, 125
      %v564 = vpop.permute.xlu0 %563
      %565 = vrot.lane.b32.xlu0 %v532, 125
      %v566 = vpop.permute.xlu0 %565
      %567 = vrot.lane.b32.xlu0 %v533, 125
      %v568 = vpop.permute.xlu0 %567
      %569 = vrot.lane.b32.xlu0 %v534, 125
      %v570 = vpop.permute.xlu0 %569
      %571 = vrot.lane.b32.xlu0 %v535, 125
      %v572 = vpop.permute.xlu0 %571
      %573 = vrot.lane.b32.xlu0 %v536, 125
      %v574 = vpop.permute.xlu0 %573
      %575 = vrot.lane.b32.xlu0 %v537, 125
      %v576 = vpop.permute.xlu0 %575
      %577 = vrot.lane.b32.xlu0 %v538, 125
      %v578 = vpop.permute.xlu0 %577
      %579 = vrot.lane.b32.xlu0 %v539, 125
      %v580 = vpop.permute.xlu0 %579
      %581 = vrot.lane.b32.xlu0 %v540, 125
      %v582 = vpop.permute.xlu0 %581
      %583 = vrot.lane.b32.xlu0 %v541, 125
      %v584 = vpop.permute.xlu0 %583
      %585 = vrot.lane.b32.xlu0 %v542, 125
      %v586 = vpop.permute.xlu0 %585
      %587 = vrot.lane.b32.xlu0 %v543, 125
      %v588 = vpop.permute.xlu0 %587
      %589 = vrot.lane.b32.xlu0 %v544, 125
      %v590 = vpop.permute.xlu0 %589
      %591 = vrot.lane.b32.xlu0 %v545, 125
      %v592 = vpop.permute.xlu0 %591
      %593 = vrot.lane.b32.xlu0 %v546, 125
      %v594 = vpop.permute.xlu0 %593
      %v611 = vsel %vm322, %v564, 0.0
      %612 = vadd.xlane.f32.xlu0 %v611
      %v613 = vpop.xlane.xlu0 %612
      %v614 = vsel %vm322, %v566, 0.0
      %615 = vadd.xlane.f32.xlu0 %v614
      %v616 = vpop.xlane.xlu0 %615
      %v617 = vsel %vm322, %v568, 0.0
      %618 = vadd.xlane.f32.xlu0 %v617
      %v619 = vpop.xlane.xlu0 %618
      %v620 = vsel %vm322, %v570, 0.0
      %621 = vadd.xlane.f32.xlu0 %v620
      %v622 = vpop.xlane.xlu0 %621
      %v623 = vsel %vm322, %v572, 0.0
      %624 = vadd.xlane.f32.xlu0 %v623
      %v625 = vpop.xlane.xlu0 %624
      %v626 = vsel %vm322, %v574, 0.0
      %627 = vadd.xlane.f32.xlu0 %v626
      %v628 = vpop.xlane.xlu0 %627
      %v629 = vsel %vm322, %v576, 0.0
      %630 = vadd.xlane.f32.xlu0 %v629
      %v631 = vpop.xlane.xlu0 %630
      %v632 = vsel %vm322, %v578, 0.0
      %633 = vadd.xlane.f32.xlu0 %v632
      %v634 = vpop.xlane.xlu0 %633
      %v635 = vsel %vm322, %v580, 0.0
      %636 = vadd.xlane.f32.xlu0 %v635
      %v637 = vpop.xlane.xlu0 %636
      %v638 = vsel %vm322, %v582, 0.0
      %639 = vadd.xlane.f32.xlu0 %v638
      %v640 = vpop.xlane.xlu0 %639
      %v641 = vsel %vm322, %v584, 0.0
      %642 = vadd.xlane.f32.xlu0 %v641
      %v643 = vpop.xlane.xlu0 %642
      %v644 = vsel %vm322, %v586, 0.0
      %645 = vadd.xlane.f32.xlu0 %v644
      %v646 = vpop.xlane.xlu0 %645
      %v647 = vsel %vm322, %v588, 0.0
      %648 = vadd.xlane.f32.xlu0 %v647
      %v649 = vpop.xlane.xlu0 %648
      %v650 = vsel %vm322, %v590, 0.0
      %651 = vadd.xlane.f32.xlu0 %v650
      %v652 = vpop.xlane.xlu0 %651
      %v653 = vsel %vm322, %v592, 0.0
      %654 = vadd.xlane.f32.xlu0 %v653
      %v655 = vpop.xlane.xlu0 %654
      %v656 = vsel %vm322, %v594, 0.0
      %657 = vadd.xlane.f32.xlu0 %v656
      %v658 = vpop.xlane.xlu0 %657
      %v659 = vadd.f32 %v613, 1e-08
      %v660 = vadd.f32 %v616, 1e-08
      %v661 = vadd.f32 %v619, 1e-08
      %v662 = vadd.f32 %v622, 1e-08
      %v663 = vadd.f32 %v625, 1e-08
      %v664 = vadd.f32 %v628, 1e-08
      %v665 = vadd.f32 %v631, 1e-08
      %v666 = vadd.f32 %v634, 1e-08
      %v667 = vadd.f32 %v637, 1e-08
      %v668 = vadd.f32 %v640, 1e-08
      %v669 = vadd.f32 %v643, 1e-08
      %v670 = vadd.f32 %v646, 1e-08
      %v671 = vadd.f32 %v649, 1e-08
      %v672 = vadd.f32 %v652, 1e-08
      %v673 = vadd.f32 %v655, 1e-08
      %v674 = vadd.f32 %v658, 1e-08
      %v675 = vrsqrt.pop %v659
      %v676 = vmul.f32 %v659, %v675
      %vm677 = vcmp.eq.f32.partialorder %v659, inf
      %v678 = vsel %vm677, %v659, %v676
      %vm679 = vcmp.eq.f32.partialorder %v659, 0.0
      %v680 = vand.u32 %v659, 2147483648
      %v681 = vsel %vm679, %v680, %v678
      %v682 = vrsqrt.pop %v660
      %v683 = vmul.f32 %v660, %v682
      %vm684 = vcmp.eq.f32.partialorder %v660, inf
      %v685 = vsel %vm684, %v660, %v683
      %vm686 = vcmp.eq.f32.partialorder %v660, 0.0
      %v687 = vand.u32 %v660, 2147483648
      %v688 = vsel %vm686, %v687, %v685
      %v689 = vrsqrt.pop %v661
      %v690 = vmul.f32 %v661, %v689
      %vm691 = vcmp.eq.f32.partialorder %v661, inf
      %v692 = vsel %vm691, %v661, %v690
      %vm693 = vcmp.eq.f32.partialorder %v661, 0.0
      %v694 = vand.u32 %v661, 2147483648
      %v695 = vsel %vm693, %v694, %v692
      %v696 = vrsqrt.pop %v662
      %v697 = vmul.f32 %v662, %v696
      %vm698 = vcmp.eq.f32.partialorder %v662, inf
      %v699 = vsel %vm698, %v662, %v697
      %vm700 = vcmp.eq.f32.partialorder %v662, 0.0
      %v701 = vand.u32 %v662, 2147483648
      %v702 = vsel %vm700, %v701, %v699
      %v703 = vrsqrt.pop %v663
      %v704 = vmul.f32 %v663, %v703
      %vm705 = vcmp.eq.f32.partialorder %v663, inf
      %v706 = vsel %vm705, %v663, %v704
      %vm707 = vcmp.eq.f32.partialorder %v663, 0.0
      %v708 = vand.u32 %v663, 2147483648
      %v709 = vsel %vm707, %v708, %v706
      %v710 = vrsqrt.pop %v664
      %v711 = vmul.f32 %v664, %v710
      %vm712 = vcmp.eq.f32.partialorder %v664, inf
      %v713 = vsel %vm712, %v664, %v711
      %vm714 = vcmp.eq.f32.partialorder %v664, 0.0
      %v715 = vand.u32 %v664, 2147483648
      %v716 = vsel %vm714, %v715, %v713
      %v717 = vrsqrt.pop %v665
      %v718 = vmul.f32 %v665, %v717
      %vm719 = vcmp.eq.f32.partialorder %v665, inf
      %v720 = vsel %vm719, %v665, %v718
      %vm721 = vcmp.eq.f32.partialorder %v665, 0.0
      %v722 = vand.u32 %v665, 2147483648
      %v723 = vsel %vm721, %v722, %v720
      %v724 = vrsqrt.pop %v666
      %v725 = vmul.f32 %v666, %v724
      %vm726 = vcmp.eq.f32.partialorder %v666, inf
      %v727 = vsel %vm726, %v666, %v725
      %vm728 = vcmp.eq.f32.partialorder %v666, 0.0
      %v729 = vand.u32 %v666, 2147483648
      %v730 = vsel %vm728, %v729, %v727
      %v731 = vrsqrt.pop %v667
      %v732 = vmul.f32 %v667, %v731
      %vm733 = vcmp.eq.f32.partialorder %v667, inf
      %v734 = vsel %vm733, %v667, %v732
      %vm735 = vcmp.eq.f32.partialorder %v667, 0.0
      %v736 = vand.u32 %v667, 2147483648
      %v737 = vsel %vm735, %v736, %v734
      %v738 = vrsqrt.pop %v668
      %v739 = vmul.f32 %v668, %v738
      %vm740 = vcmp.eq.f32.partialorder %v668, inf
      %v741 = vsel %vm740, %v668, %v739
      %vm742 = vcmp.eq.f32.partialorder %v668, 0.0
      %v743 = vand.u32 %v668, 2147483648
      %v744 = vsel %vm742, %v743, %v741
      %v745 = vrsqrt.pop %v669
      %v746 = vmul.f32 %v669, %v745
      %vm747 = vcmp.eq.f32.partialorder %v669, inf
      %v748 = vsel %vm747, %v669, %v746
      %vm749 = vcmp.eq.f32.partialorder %v669, 0.0
      %v750 = vand.u32 %v669, 2147483648
      %v751 = vsel %vm749, %v750, %v748
      %v752 = vrsqrt.pop %v670
      %v753 = vmul.f32 %v670, %v752
      %vm754 = vcmp.eq.f32.partialorder %v670, inf
      %v755 = vsel %vm754, %v670, %v753
      %vm756 = vcmp.eq.f32.partialorder %v670, 0.0
      %v757 = vand.u32 %v670, 2147483648
      %v758 = vsel %vm756, %v757, %v755
      %v759 = vrsqrt.pop %v671
      %v760 = vmul.f32 %v671, %v759
      %vm761 = vcmp.eq.f32.partialorder %v671, inf
      %v762 = vsel %vm761, %v671, %v760
      %vm763 = vcmp.eq.f32.partialorder %v671, 0.0
      %v764 = vand.u32 %v671, 2147483648
      %v765 = vsel %vm763, %v764, %v762
      %v766 = vrsqrt.pop %v672
      %v767 = vmul.f32 %v672, %v766
      %vm768 = vcmp.eq.f32.partialorder %v672, inf
      %v769 = vsel %vm768, %v672, %v767
      %vm770 = vcmp.eq.f32.partialorder %v672, 0.0
      %v771 = vand.u32 %v672, 2147483648
      %v772 = vsel %vm770, %v771, %v769
      %v773 = vrsqrt.pop %v673
      %v774 = vmul.f32 %v673, %v773
      %vm775 = vcmp.eq.f32.partialorder %v673, inf
      %v776 = vsel %vm775, %v673, %v774
      %vm777 = vcmp.eq.f32.partialorder %v673, 0.0
      %v778 = vand.u32 %v673, 2147483648
      %v779 = vsel %vm777, %v778, %v776
      %v780 = vrsqrt.pop %v674
      %v781 = vmul.f32 %v674, %v780
      %vm782 = vcmp.eq.f32.partialorder %v674, inf
      %v783 = vsel %vm782, %v674, %v781
      %vm784 = vcmp.eq.f32.partialorder %v674, 0.0
      %v785 = vand.u32 %v674, 2147483648
      %v786 = vsel %vm784, %v785, %v783
      %v787 = vpack.c.bf16 %v516, %v515
      %v788 = vpack.c.bf16 %v518, %v517
      %v789 = vpack.c.bf16 %v520, %v519
      %v790 = vpack.c.bf16 %v522, %v521
      %v791 = vpack.c.bf16 %v524, %v523
      %v792 = vpack.c.bf16 %v526, %v525
      %v793 = vpack.c.bf16 %v528, %v527
      %v794 = vpack.c.bf16 %v530, %v529
      %803 = vrot.lane.b32.xlu0 %v787, 125
      %v804 = vpop.permute.xlu0 %803
      %805 = vrot.lane.b32.xlu0 %v788, 125
      %v806 = vpop.permute.xlu0 %805
      %807 = vrot.lane.b32.xlu0 %v789, 125
      %v808 = vpop.permute.xlu0 %807
      %809 = vrot.lane.b32.xlu0 %v790, 125
      %v810 = vpop.permute.xlu0 %809
      %811 = vrot.lane.b32.xlu0 %v791, 125
      %v812 = vpop.permute.xlu0 %811
      %813 = vrot.lane.b32.xlu0 %v792, 125
      %v814 = vpop.permute.xlu0 %813
      %815 = vrot.lane.b32.xlu0 %v793, 125
      %v816 = vpop.permute.xlu0 %815
      %817 = vrot.lane.b32.xlu0 %v794, 125
      %v818 = vpop.permute.xlu0 %817
      %v819 = vshrl.u32 %v317, 16
      %v821 = vrot.slane %v819, 1
      %v822 = vshll.u32 %v317, 16
      %v824 = vrot.slane %v822, 2
      %v825 = vor.u32 %v821, %v824
      %v827 = vsel %vm322, %v804, 0
      %v830 = vsel %vm322, %v806, 0
      %v833 = vsel %vm322, %v808, 0
      %v836 = vsel %vm322, %v810, 0
      %v839 = vsel %vm322, %v812, 0
      %v842 = vsel %vm322, %v814, 0
      %v845 = vsel %vm322, %v816, 0
      %v848 = vsel %vm322, %v818, 0
      %v851 = vand.u32 %v825, %v350
      %853 = vmatprep.subr.bf16.mxu0 0
      %854 = vmatpush1.bf16.msra.mxu0 %v851
      %855 = vmatprep.subr.bf16.mxu0 0
      %856 = vmatpush1.bf16.msra.mxu0 0
      %857 = vmatprep.subr.bf16.mxu0 0
      %858 = vmatpush1.bf16.msra.mxu0 0
      %859 = vmatprep.subr.bf16.mxu0 0
      %860 = vmatpush1.bf16.msra.mxu0 0
      %861 = vmatprep.subr.bf16.mxu0 0
      %862 = vmatpush1.bf16.msra.mxu0 0
      %863 = vmatprep.subr.bf16.mxu0 0
      %864 = vmatpush1.bf16.msra.mxu0 0
      %865 = vmatprep.subr.bf16.mxu0 0
      %866 = vmatpush1.bf16.msra.mxu0 0
      %867 = vmatprep.subr.bf16.mxu0 0
      %868 = vmatpush1.bf16.msra.mxu0 0
      %869 = vmatprep.subr.bf16.mxu0 0
      %870 = vmatpush1.bf16.msra.mxu0 0
      %871 = vmatprep.subr.bf16.mxu0 0
      %872 = vmatpush1.bf16.msra.mxu0 0
      %873 = vmatprep.subr.bf16.mxu0 0
      %874 = vmatpush1.bf16.msra.mxu0 0
      %875 = vmatprep.subr.bf16.mxu0 0
      %876 = vmatpush1.bf16.msra.mxu0 0
      %877 = vmatprep.subr.bf16.mxu0 0
      %878 = vmatpush1.bf16.msra.mxu0 0
      %879 = vmatprep.subr.bf16.mxu0 0
      %880 = vmatpush1.bf16.msra.mxu0 0
      %881 = vmatprep.subr.bf16.mxu0 0
      %882 = vmatpush1.bf16.msra.mxu0 0
      %883 = vmatprep.subr.bf16.mxu0 0
      %884 = vmatpush1.bf16.msra.mxu0 0
      %885 = vmatprep.mubr.bf16.mxu0 0
      %886 = vmatmul.mubr.bf16.gmra.mrb[0].mxu0 %v827
      %v887 = vpop.f32.mrb[0].mxu0
      %v888 = vadd.f32 0.0, %v887
      %v889 = vpop.f32.mrb[0].mxu0
      %v890 = vpop.f32.mrb[0].mxu0
      %v891 = vadd.f32 0.0, %v890
      %v892 = vpop.f32.mrb[0].mxu0
      %893 = vmatprep.mubr.bf16.mxu0 0
      %894 = vmatmul.mubr.bf16.gmra.mrb[0].mxu0 %v830
      %v895 = vpop.f32.mrb[0].mxu0
      %v896 = vadd.f32 0.0, %v895
      %v897 = vpop.f32.mrb[0].mxu0
      %v898 = vpop.f32.mrb[0].mxu0
      %v899 = vadd.f32 0.0, %v898
      %v900 = vpop.f32.mrb[0].mxu0
      %901 = vmatprep.mubr.bf16.mxu0 0
      %902 = vmatmul.mubr.bf16.gmra.mrb[0].mxu0 %v833
      %v903 = vpop.f32.mrb[0].mxu0
      %v904 = vadd.f32 0.0, %v903
      %v905 = vpop.f32.mrb[0].mxu0
      %v906 = vpop.f32.mrb[0].mxu0
      %v907 = vadd.f32 0.0, %v906
      %v908 = vpop.f32.mrb[0].mxu0
      %909 = vmatprep.mubr.bf16.mxu0 0
      %910 = vmatmul.mubr.bf16.gmra.mrb[0].mxu0 %v836
      %v911 = vpop.f32.mrb[0].mxu0
      %v912 = vadd.f32 0.0, %v911
      %v913 = vpop.f32.mrb[0].mxu0
      %v914 = vpop.f32.mrb[0].mxu0
      %v915 = vadd.f32 0.0, %v914
      %v916 = vpop.f32.mrb[0].mxu0
      %917 = vmatprep.mubr.bf16.mxu0 0
      %918 = vmatmul.mubr.bf16.gmra.mrb[0].mxu0 %v839
      %v919 = vpop.f32.mrb[0].mxu0
      %v920 = vadd.f32 0.0, %v919
      %v921 = vpop.f32.mrb[0].mxu0
      %v922 = vpop.f32.mrb[0].mxu0
      %v923 = vadd.f32 0.0, %v922
      %v924 = vpop.f32.mrb[0].mxu0
      %925 = vmatprep.mubr.bf16.mxu0 0
      %926 = vmatmul.mubr.bf16.gmra.mrb[0].mxu0 %v842
      %v927 = vpop.f32.mrb[0].mxu0
      %v928 = vadd.f32 0.0, %v927
      %v929 = vpop.f32.mrb[0].mxu0
      %v930 = vpop.f32.mrb[0].mxu0
      %v931 = vadd.f32 0.0, %v930
      %v932 = vpop.f32.mrb[0].mxu0
      %933 = vmatprep.mubr.bf16.mxu0 0
      %934 = vmatmul.mubr.bf16.gmra.mrb[0].mxu0 %v845
      %v935 = vpop.f32.mrb[0].mxu0
      %v936 = vadd.f32 0.0, %v935
      %v937 = vpop.f32.mrb[0].mxu0
      %v938 = vpop.f32.mrb[0].mxu0
      %v939 = vadd.f32 0.0, %v938
      %v940 = vpop.f32.mrb[0].mxu0
      %941 = vmatprep.mubr.bf16.mxu0 0
      %942 = vmatmul.mubr.bf16.gmra.mrb[0].mxu0 %v848
      %v943 = vpop.f32.mrb[0].mxu0
      %v944 = vadd.f32 0.0, %v943
      %v945 = vpop.f32.mrb[0].mxu0
      %v946 = vpop.f32.mrb[0].mxu0
      %v947 = vadd.f32 0.0, %v946
      %v948 = vpop.f32.mrb[0].mxu0
      %949 = vdwg.mxu0
      %v950 = vadd.f32 %v389, %v888
      %v951 = vadd.f32 %v392, %v891
      %v952 = vadd.f32 %v397, %v896
      %v953 = vadd.f32 %v400, %v899
      %v954 = vadd.f32 %v405, %v904
      %v955 = vadd.f32 %v408, %v907
      %v956 = vadd.f32 %v413, %v912
      %v957 = vadd.f32 %v416, %v915
      %v958 = vadd.f32 %v421, %v920
      %v959 = vadd.f32 %v424, %v923
      %v960 = vadd.f32 %v429, %v928
      %v961 = vadd.f32 %v432, %v931
      %v962 = vadd.f32 %v437, %v936
      %v963 = vadd.f32 %v440, %v939
      %v964 = vadd.f32 %v445, %v944
      %v965 = vadd.f32 %v448, %v947
      %v966 = vlaneseq
      %v967 = vshrl.u32 %v966, 7
      %v968 = vsub.s32 6, %v967
      %v969 = vrot.slane %v316, %v968
      %v970 = vmul.f32 %v681, %v969
      %v971 = vmul.f32 %v688, %v969
      %v972 = vmul.f32 %v695, %v969
      %v973 = vmul.f32 %v702, %v969
      %v974 = vmul.f32 %v709, %v969
      %v975 = vmul.f32 %v716, %v969
      %v976 = vmul.f32 %v723, %v969
      %v977 = vmul.f32 %v730, %v969
      %v978 = vmul.f32 %v737, %v969
      %v979 = vmul.f32 %v744, %v969
      %v980 = vmul.f32 %v751, %v969
      %v981 = vmul.f32 %v758, %v969
      %v982 = vmul.f32 %v765, %v969
      %v983 = vmul.f32 %v772, %v969
      %v984 = vmul.f32 %v779, %v969
      %v985 = vmul.f32 %v786, %v969
      %v986 = vadd.f32 %v950, %v970
      %v987 = vadd.f32 %v951, %v971
      %v988 = vadd.f32 %v952, %v972
      %v989 = vadd.f32 %v953, %v973
      %v990 = vadd.f32 %v954, %v974
      %v991 = vadd.f32 %v955, %v975
      %v992 = vadd.f32 %v956, %v976
      %v993 = vadd.f32 %v957, %v977
      %v994 = vadd.f32 %v958, %v978
      %v995 = vadd.f32 %v959, %v979
      %v996 = vadd.f32 %v960, %v980
      %v997 = vadd.f32 %v961, %v981
      %v998 = vadd.f32 %v962, %v982
      %v999 = vadd.f32 %v963, %v983
      %v1000 = vadd.f32 %v964, %v984
      %v1001 = vadd.f32 %v965, %v985
      %v1002 = vlaneseq
      %v1003 = vshrl.u32 %v1002, 7
      %v1004 = vsub.s32 7, %v1003
      %v1005 = vrot.slane %v316, %v1004
      %v1006 = vadd.f32 %v986, %v1005
      %v1007 = vadd.f32 %v987, %v1005
      %v1008 = vadd.f32 %v988, %v1005
      %v1009 = vadd.f32 %v989, %v1005
      %v1010 = vadd.f32 %v990, %v1005
      %v1011 = vadd.f32 %v991, %v1005
      %v1012 = vadd.f32 %v992, %v1005
      %v1013 = vadd.f32 %v993, %v1005
      %v1014 = vadd.f32 %v994, %v1005
      %v1015 = vadd.f32 %v995, %v1005
      %v1016 = vadd.f32 %v996, %v1005
      %v1017 = vadd.f32 %v997, %v1005
      %v1018 = vadd.f32 %v998, %v1005
      %v1019 = vadd.f32 %v999, %v1005
      %v1020 = vadd.f32 %v1000, %v1005
      %v1021 = vadd.f32 %v1001, %v1005
      %v1022 = vmax.f32 %v1006, 0.0
      %v1023 = vmax.f32 %v1007, 0.0
      %v1024 = vmax.f32 %v1008, 0.0
      %v1025 = vmax.f32 %v1009, 0.0
      %v1026 = vmax.f32 %v1010, 0.0
      %v1027 = vmax.f32 %v1011, 0.0
      %v1028 = vmax.f32 %v1012, 0.0
      %v1029 = vmax.f32 %v1013, 0.0
      %v1030 = vmax.f32 %v1014, 0.0
      %v1031 = vmax.f32 %v1015, 0.0
      %v1032 = vmax.f32 %v1016, 0.0
      %v1033 = vmax.f32 %v1017, 0.0
      %v1034 = vmax.f32 %v1018, 0.0
      %v1035 = vmax.f32 %v1019, 0.0
      %v1036 = vmax.f32 %v1020, 0.0
      %v1037 = vmax.f32 %v1021, 0.0
      %vm1038 = vcmask 130048
      %1039 = vst.msk [vmem:[#allocation2] sm:$0xff] %vm1038, %v1022
      %1040 = vst.msk [vmem:[#allocation2 + $0x8] sm:$0xff] %vm1038, %v1023
      %1041 = vst.msk [vmem:[#allocation2 + $0x10] sm:$0xff] %vm1038, %v1024
      %1042 = vst.msk [vmem:[#allocation2 + $0x18] sm:$0xff] %vm1038, %v1025
      %1043 = vst.msk [vmem:[#allocation2 + $0x20] sm:$0xff] %vm1038, %v1026
      %1044 = vst.msk [vmem:[#allocation2 + $0x28] sm:$0xff] %vm1038, %v1027
      %1045 = vst.msk [vmem:[#allocation2 + $0x30] sm:$0xff] %vm1038, %v1028
      %1046 = vst.msk [vmem:[#allocation2 + $0x38] sm:$0xff] %vm1038, %v1029
      %1047 = vst.msk [vmem:[#allocation2 + $0x40] sm:$0xff] %vm1038, %v1030
      %1048 = vst.msk [vmem:[#allocation2 + $0x48] sm:$0xff] %vm1038, %v1031
      %1049 = vst.msk [vmem:[#allocation2 + $0x50] sm:$0xff] %vm1038, %v1032
      %1050 = vst.msk [vmem:[#allocation2 + $0x58] sm:$0xff] %vm1038, %v1033
      %1051 = vst.msk [vmem:[#allocation2 + $0x60] sm:$0xff] %vm1038, %v1034
      %1052 = vst.msk [vmem:[#allocation2 + $0x68] sm:$0xff] %vm1038, %v1035
      %1053 = vst.msk [vmem:[#allocation2 + $0x70] sm:$0xff] %vm1038, %v1036
      %1054 = vst.msk [vmem:[#allocation2 + $0x78] sm:$0xff] %vm1038, %v1037
      %1055 = vrot.lane.b32.xlu0 %v292, 6
      %v1056 = vpop.permute.xlu0 %1055
      %1057 = vrot.lane.b32.xlu0 %v293, 6
      %v1058 = vpop.permute.xlu0 %1057
      %1059 = vrot.lane.b32.xlu0 %v294, 6
      %v1060 = vpop.permute.xlu0 %1059
      %1061 = vrot.lane.b32.xlu0 %v295, 6
      %v1062 = vpop.permute.xlu0 %1061
      %1063 = vrot.lane.b32.xlu0 %v296, 6
      %v1064 = vpop.permute.xlu0 %1063
      %1065 = vrot.lane.b32.xlu0 %v297, 6
      %v1066 = vpop.permute.xlu0 %1065
      %1067 = vrot.lane.b32.xlu0 %v298, 6
      %v1068 = vpop.permute.xlu0 %1067
      %1069 = vrot.lane.b32.xlu0 %v299, 6
      %v1070 = vpop.permute.xlu0 %1069
      %1071 = vrot.lane.b32.xlu0 %v300, 6
      %v1072 = vpop.permute.xlu0 %1071
      %1073 = vrot.lane.b32.xlu0 %v301, 6
      %v1074 = vpop.permute.xlu0 %1073
      %1075 = vrot.lane.b32.xlu0 %v302, 6
      %v1076 = vpop.permute.xlu0 %1075
      %1077 = vrot.lane.b32.xlu0 %v303, 6
      %v1078 = vpop.permute.xlu0 %1077
      %1079 = vrot.lane.b32.xlu0 %v304, 6
      %v1080 = vpop.permute.xlu0 %1079
      %1081 = vrot.lane.b32.xlu0 %v305, 6
      %v1082 = vpop.permute.xlu0 %1081
      %1083 = vrot.lane.b32.xlu0 %v306, 6
      %v1084 = vpop.permute.xlu0 %1083
      %1085 = vrot.lane.b32.xlu0 %v307, 6
      %v1086 = vpop.permute.xlu0 %1085
      %v1103 = vsub.f32 %v292, %v1056
      %v1104 = vsub.f32 %v293, %v1058
      %v1105 = vsub.f32 %v294, %v1060
      %v1106 = vsub.f32 %v295, %v1062
      %v1107 = vsub.f32 %v296, %v1064
      %v1108 = vsub.f32 %v297, %v1066
      %v1109 = vsub.f32 %v298, %v1068
      %v1110 = vsub.f32 %v299, %v1070
      %v1111 = vsub.f32 %v300, %v1072
      %v1112 = vsub.f32 %v301, %v1074
      %v1113 = vsub.f32 %v302, %v1076
      %v1114 = vsub.f32 %v303, %v1078
      %v1115 = vsub.f32 %v304, %v1080
      %v1116 = vsub.f32 %v305, %v1082
      %v1117 = vsub.f32 %v306, %v1084
      %v1118 = vsub.f32 %v307, %v1086
      %v1119 = vmul.f32 %v1103, %v1103
      %v1120 = vmul.f32 %v1104, %v1104
      %v1121 = vmul.f32 %v1105, %v1105
      %v1122 = vmul.f32 %v1106, %v1106
      %v1123 = vmul.f32 %v1107, %v1107
      %v1124 = vmul.f32 %v1108, %v1108
      %v1125 = vmul.f32 %v1109, %v1109
      %v1126 = vmul.f32 %v1110, %v1110
      %v1127 = vmul.f32 %v1111, %v1111
      %v1128 = vmul.f32 %v1112, %v1112
      %v1129 = vmul.f32 %v1113, %v1113
      %v1130 = vmul.f32 %v1114, %v1114
      %v1131 = vmul.f32 %v1115, %v1115
      %v1132 = vmul.f32 %v1116, %v1116
      %v1133 = vmul.f32 %v1117, %v1117
      %v1134 = vmul.f32 %v1118, %v1118
      %1151 = vrot.lane.b32.xlu0 %v1119, 122
      %v1152 = vpop.permute.xlu0 %1151
      %1153 = vrot.lane.b32.xlu0 %v1120, 122
      %v1154 = vpop.permute.xlu0 %1153
      %1155 = vrot.lane.b32.xlu0 %v1121, 122
      %v1156 = vpop.permute.xlu0 %1155
      %1157 = vrot.lane.b32.xlu0 %v1122, 122
      %v1158 = vpop.permute.xlu0 %1157
      %1159 = vrot.lane.b32.xlu0 %v1123, 122
      %v1160 = vpop.permute.xlu0 %1159
      %1161 = vrot.lane.b32.xlu0 %v1124, 122
      %v1162 = vpop.permute.xlu0 %1161
      %1163 = vrot.lane.b32.xlu0 %v1125, 122
      %v1164 = vpop.permute.xlu0 %1163
      %1165 = vrot.lane.b32.xlu0 %v1126, 122
      %v1166 = vpop.permute.xlu0 %1165
      %1167 = vrot.lane.b32.xlu0 %v1127, 122
      %v1168 = vpop.permute.xlu0 %1167
      %1169 = vrot.lane.b32.xlu0 %v1128, 122
      %v1170 = vpop.permute.xlu0 %1169
      %1171 = vrot.lane.b32.xlu0 %v1129, 122
      %v1172 = vpop.permute.xlu0 %1171
      %1173 = vrot.lane.b32.xlu0 %v1130, 122
      %v1174 = vpop.permute.xlu0 %1173
      %1175 = vrot.lane.b32.xlu0 %v1131, 122
      %v1176 = vpop.permute.xlu0 %1175
      %1177 = vrot.lane.b32.xlu0 %v1132, 122
      %v1178 = vpop.permute.xlu0 %1177
      %1179 = vrot.lane.b32.xlu0 %v1133, 122
      %v1180 = vpop.permute.xlu0 %1179
      %1181 = vrot.lane.b32.xlu0 %v1134, 122
      %v1182 = vpop.permute.xlu0 %1181
      %v1199 = vsel %vm322, %v1152, 0.0
      %1200 = vadd.xlane.f32.xlu0 %v1199
      %v1201 = vpop.xlane.xlu0 %1200
      %v1202 = vsel %vm322, %v1154, 0.0
      %1203 = vadd.xlane.f32.xlu0 %v1202
      %v1204 = vpop.xlane.xlu0 %1203
      %v1205 = vsel %vm322, %v1156, 0.0
      %1206 = vadd.xlane.f32.xlu0 %v1205
      %v1207 = vpop.xlane.xlu0 %1206
      %v1208 = vsel %vm322, %v1158, 0.0
      %1209 = vadd.xlane.f32.xlu0 %v1208
      %v1210 = vpop.xlane.xlu0 %1209
      %v1211 = vsel %vm322, %v1160, 0.0
      %1212 = vadd.xlane.f32.xlu0 %v1211
      %v1213 = vpop.xlane.xlu0 %1212
      %v1214 = vsel %vm322, %v1162, 0.0
      %1215 = vadd.xlane.f32.xlu0 %v1214
      %v1216 = vpop.xlane.xlu0 %1215
      %v1217 = vsel %vm322, %v1164, 0.0
      %1218 = vadd.xlane.f32.xlu0 %v1217
      %v1219 = vpop.xlane.xlu0 %1218
      %v1220 = vsel %vm322, %v1166, 0.0
      %1221 = vadd.xlane.f32.xlu0 %v1220
      %v1222 = vpop.xlane.xlu0 %1221
      %v1223 = vsel %vm322, %v1168, 0.0
      %1224 = vadd.xlane.f32.xlu0 %v1223
      %v1225 = vpop.xlane.xlu0 %1224
      %v1226 = vsel %vm322, %v1170, 0.0
      %1227 = vadd.xlane.f32.xlu0 %v1226
      %v1228 = vpop.xlane.xlu0 %1227
      %v1229 = vsel %vm322, %v1172, 0.0
      %1230 = vadd.xlane.f32.xlu0 %v1229
      %v1231 = vpop.xlane.xlu0 %1230
      %v1232 = vsel %vm322, %v1174, 0.0
      %1233 = vadd.xlane.f32.xlu0 %v1232
      %v1234 = vpop.xlane.xlu0 %1233
      %v1235 = vsel %vm322, %v1176, 0.0
      %1236 = vadd.xlane.f32.xlu0 %v1235
      %v1237 = vpop.xlane.xlu0 %1236
      %v1238 = vsel %vm322, %v1178, 0.0
      %1239 = vadd.xlane.f32.xlu0 %v1238
      %v1240 = vpop.xlane.xlu0 %1239
      %v1241 = vsel %vm322, %v1180, 0.0
      %1242 = vadd.xlane.f32.xlu0 %v1241
      %v1243 = vpop.xlane.xlu0 %1242
      %v1244 = vsel %vm322, %v1182, 0.0
      %1245 = vadd.xlane.f32.xlu0 %v1244
      %v1246 = vpop.xlane.xlu0 %1245
      %v1247 = vadd.f32 %v1201, 1e-08
      %v1248 = vadd.f32 %v1204, 1e-08
      %v1249 = vadd.f32 %v1207, 1e-08
      %v1250 = vadd.f32 %v1210, 1e-08
      %v1251 = vadd.f32 %v1213, 1e-08
      %v1252 = vadd.f32 %v1216, 1e-08
      %v1253 = vadd.f32 %v1219, 1e-08
      %v1254 = vadd.f32 %v1222, 1e-08
      %v1255 = vadd.f32 %v1225, 1e-08
      %v1256 = vadd.f32 %v1228, 1e-08
      %v1257 = vadd.f32 %v1231, 1e-08
      %v1258 = vadd.f32 %v1234, 1e-08
      %v1259 = vadd.f32 %v1237, 1e-08
      %v1260 = vadd.f32 %v1240, 1e-08
      %v1261 = vadd.f32 %v1243, 1e-08
      %v1262 = vadd.f32 %v1246, 1e-08
      %v1263 = vrsqrt.pop %v1247
      %v1264 = vmul.f32 %v1247, %v1263
      %vm1265 = vcmp.eq.f32.partialorder %v1247, inf
      %v1266 = vsel %vm1265, %v1247, %v1264
      %vm1267 = vcmp.eq.f32.partialorder %v1247, 0.0
      %v1268 = vand.u32 %v1247, 2147483648
      %v1269 = vsel %vm1267, %v1268, %v1266
      %v1270 = vrsqrt.pop %v1248
      %v1271 = vmul.f32 %v1248, %v1270
      %vm1272 = vcmp.eq.f32.partialorder %v1248, inf
      %v1273 = vsel %vm1272, %v1248, %v1271
      %vm1274 = vcmp.eq.f32.partialorder %v1248, 0.0
      %v1275 = vand.u32 %v1248, 2147483648
      %v1276 = vsel %vm1274, %v1275, %v1273
      %v1277 = vrsqrt.pop %v1249
      %v1278 = vmul.f32 %v1249, %v1277
      %vm1279 = vcmp.eq.f32.partialorder %v1249, inf
      %v1280 = vsel %vm1279, %v1249, %v1278
      %vm1281 = vcmp.eq.f32.partialorder %v1249, 0.0
      %v1282 = vand.u32 %v1249, 2147483648
      %v1283 = vsel %vm1281, %v1282, %v1280
      %v1284 = vrsqrt.pop %v1250
      %v1285 = vmul.f32 %v1250, %v1284
      %vm1286 = vcmp.eq.f32.partialorder %v1250, inf
      %v1287 = vsel %vm1286, %v1250, %v1285
      %vm1288 = vcmp.eq.f32.partialorder %v1250, 0.0
      %v1289 = vand.u32 %v1250, 2147483648
      %v1290 = vsel %vm1288, %v1289, %v1287
      %v1291 = vrsqrt.pop %v1251
      %v1292 = vmul.f32 %v1251, %v1291
      %vm1293 = vcmp.eq.f32.partialorder %v1251, inf
      %v1294 = vsel %vm1293, %v1251, %v1292
      %vm1295 = vcmp.eq.f32.partialorder %v1251, 0.0
      %v1296 = vand.u32 %v1251, 2147483648
      %v1297 = vsel %vm1295, %v1296, %v1294
      %v1298 = vrsqrt.pop %v1252
      %v1299 = vmul.f32 %v1252, %v1298
      %vm1300 = vcmp.eq.f32.partialorder %v1252, inf
      %v1301 = vsel %vm1300, %v1252, %v1299
      %vm1302 = vcmp.eq.f32.partialorder %v1252, 0.0
      %v1303 = vand.u32 %v1252, 2147483648
      %v1304 = vsel %vm1302, %v1303, %v1301
      %v1305 = vrsqrt.pop %v1253
      %v1306 = vmul.f32 %v1253, %v1305
      %vm1307 = vcmp.eq.f32.partialorder %v1253, inf
      %v1308 = vsel %vm1307, %v1253, %v1306
      %vm1309 = vcmp.eq.f32.partialorder %v1253, 0.0
      %v1310 = vand.u32 %v1253, 2147483648
      %v1311 = vsel %vm1309, %v1310, %v1308
      %v1312 = vrsqrt.pop %v1254
      %v1313 = vmul.f32 %v1254, %v1312
      %vm1314 = vcmp.eq.f32.partialorder %v1254, inf
      %v1315 = vsel %vm1314, %v1254, %v1313
      %vm1316 = vcmp.eq.f32.partialorder %v1254, 0.0
      %v1317 = vand.u32 %v1254, 2147483648
      %v1318 = vsel %vm1316, %v1317, %v1315
      %v1319 = vrsqrt.pop %v1255
      %v1320 = vmul.f32 %v1255, %v1319
      %vm1321 = vcmp.eq.f32.partialorder %v1255, inf
      %v1322 = vsel %vm1321, %v1255, %v1320
      %vm1323 = vcmp.eq.f32.partialorder %v1255, 0.0
      %v1324 = vand.u32 %v1255, 2147483648
      %v1325 = vsel %vm1323, %v1324, %v1322
      %v1326 = vrsqrt.pop %v1256
      %v1327 = vmul.f32 %v1256, %v1326
      %vm1328 = vcmp.eq.f32.partialorder %v1256, inf
      %v1329 = vsel %vm1328, %v1256, %v1327
      %vm1330 = vcmp.eq.f32.partialorder %v1256, 0.0
      %v1331 = vand.u32 %v1256, 2147483648
      %v1332 = vsel %vm1330, %v1331, %v1329
      %v1333 = vrsqrt.pop %v1257
      %v1334 = vmul.f32 %v1257, %v1333
      %vm1335 = vcmp.eq.f32.partialorder %v1257, inf
      %v1336 = vsel %vm1335, %v1257, %v1334
      %vm1337 = vcmp.eq.f32.partialorder %v1257, 0.0
      %v1338 = vand.u32 %v1257, 2147483648
      %v1339 = vsel %vm1337, %v1338, %v1336
      %v1340 = vrsqrt.pop %v1258
      %v1341 = vmul.f32 %v1258, %v1340
      %vm1342 = vcmp.eq.f32.partialorder %v1258, inf
      %v1343 = vsel %vm1342, %v1258, %v1341
      %vm1344 = vcmp.eq.f32.partialorder %v1258, 0.0
      %v1345 = vand.u32 %v1258, 2147483648
      %v1346 = vsel %vm1344, %v1345, %v1343
      %v1347 = vrsqrt.pop %v1259
      %v1348 = vmul.f32 %v1259, %v1347
      %vm1349 = vcmp.eq.f32.partialorder %v1259, inf
      %v1350 = vsel %vm1349, %v1259, %v1348
      %vm1351 = vcmp.eq.f32.partialorder %v1259, 0.0
      %v1352 = vand.u32 %v1259, 2147483648
      %v1353 = vsel %vm1351, %v1352, %v1350
      %v1354 = vrsqrt.pop %v1260
      %v1355 = vmul.f32 %v1260, %v1354
      %vm1356 = vcmp.eq.f32.partialorder %v1260, inf
      %v1357 = vsel %vm1356, %v1260, %v1355
      %vm1358 = vcmp.eq.f32.partialorder %v1260, 0.0
      %v1359 = vand.u32 %v1260, 2147483648
      %v1360 = vsel %vm1358, %v1359, %v1357
      %v1361 = vrsqrt.pop %v1261
      %v1362 = vmul.f32 %v1261, %v1361
      %vm1363 = vcmp.eq.f32.partialorder %v1261, inf
      %v1364 = vsel %vm1363, %v1261, %v1362
      %vm1365 = vcmp.eq.f32.partialorder %v1261, 0.0
      %v1366 = vand.u32 %v1261, 2147483648
      %v1367 = vsel %vm1365, %v1366, %v1364
      %v1368 = vrsqrt.pop %v1262
      %v1369 = vmul.f32 %v1262, %v1368
      %vm1370 = vcmp.eq.f32.partialorder %v1262, inf
      %v1371 = vsel %vm1370, %v1262, %v1369
      %vm1372 = vcmp.eq.f32.partialorder %v1262, 0.0
      %v1373 = vand.u32 %v1262, 2147483648
      %v1374 = vsel %vm1372, %v1373, %v1371
      %v1375 = vpack.c.bf16 %v1104, %v1103
      %v1376 = vpack.c.bf16 %v1106, %v1105
      %v1377 = vpack.c.bf16 %v1108, %v1107
      %v1378 = vpack.c.bf16 %v1110, %v1109
      %v1379 = vpack.c.bf16 %v1112, %v1111
      %v1380 = vpack.c.bf16 %v1114, %v1113
      %v1381 = vpack.c.bf16 %v1116, %v1115
      %v1382 = vpack.c.bf16 %v1118, %v1117
      %1391 = vrot.lane.b32.xlu0 %v1375, 122
      %v1392 = vpop.permute.xlu0 %1391
      %1393 = vrot.lane.b32.xlu0 %v1376, 122
      %v1394 = vpop.permute.xlu0 %1393
      %1395 = vrot.lane.b32.xlu0 %v1377, 122
      %v1396 = vpop.permute.xlu0 %1395
      %1397 = vrot.lane.b32.xlu0 %v1378, 122
      %v1398 = vpop.permute.xlu0 %1397
      %1399 = vrot.lane.b32.xlu0 %v1379, 122
      %v1400 = vpop.permute.xlu0 %1399
      %1401 = vrot.lane.b32.xlu0 %v1380, 122
      %v1402 = vpop.permute.xlu0 %1401
      %1403 = vrot.lane.b32.xlu0 %v1381, 122
      %v1404 = vpop.permute.xlu0 %1403
      %1405 = vrot.lane.b32.xlu0 %v1382, 122
      %v1406 = vpop.permute.xlu0 %1405
      %v1408 = vsel %vm322, %v1392, 0
      %v1411 = vsel %vm322, %v1394, 0
      %v1414 = vsel %vm322, %v1396, 0
      %v1417 = vsel %vm322, %v1398, 0
      %v1420 = vsel %vm322, %v1400, 0
      %v1423 = vsel %vm322, %v1402, 0
      %v1426 = vsel %vm322, %v1404, 0
      %v1429 = vsel %vm322, %v1406, 0
      %1431 = vmatprep.subr.bf16.mxu0 0
      %1432 = vmatpush1.bf16.msra.mxu0 %v851
      %1433 = vmatprep.subr.bf16.mxu0 0
      %1434 = vmatpush1.bf16.msra.mxu0 0
      %1435 = vmatprep.subr.bf16.mxu0 0
      %1436 = vmatpush1.bf16.msra.mxu0 0
      %1437 = vmatprep.subr.bf16.mxu0 0
      %1438 = vmatpush1.bf16.msra.mxu0 0
      %1439 = vmatprep.subr.bf16.mxu0 0
      %1440 = vmatpush1.bf16.msra.mxu0 0
      %1441 = vmatprep.subr.bf16.mxu0 0
      %1442 = vmatpush1.bf16.msra.mxu0 0
      %1443 = vmatprep.subr.bf16.mxu0 0
      %1444 = vmatpush1.bf16.msra.mxu0 0
      %1445 = vmatprep.subr.bf16.mxu0 0
      %1446 = vmatpush1.bf16.msra.mxu0 0
      %1447 = vmatprep.subr.bf16.mxu0 0
      %1448 = vmatpush1.bf16.msra.mxu0 0
      %1449 = vmatprep.subr.bf16.mxu0 0
      %1450 = vmatpush1.bf16.msra.mxu0 0
      %1451 = vmatprep.subr.bf16.mxu0 0
      %1452 = vmatpush1.bf16.msra.mxu0 0
      %1453 = vmatprep.subr.bf16.mxu0 0
      %1454 = vmatpush1.bf16.msra.mxu0 0
      %1455 = vmatprep.subr.bf16.mxu0 0
      %1456 = vmatpush1.bf16.msra.mxu0 0
      %1457 = vmatprep.subr.bf16.mxu0 0
      %1458 = vmatpush1.bf16.msra.mxu0 0
      %1459 = vmatprep.subr.bf16.mxu0 0
      %1460 = vmatpush1.bf16.msra.mxu0 0
      %1461 = vmatprep.subr.bf16.mxu0 0
      %1462 = vmatpush1.bf16.msra.mxu0 0
      %1463 = vmatprep.mubr.bf16.mxu0 0
      %1464 = vmatmul.mubr.bf16.gmra.mrb[0].mxu0 %v1408
      %v1465 = vpop.f32.mrb[0].mxu0
      %v1466 = vadd.f32 0.0, %v1465
      %v1467 = vpop.f32.mrb[0].mxu0
      %v1468 = vpop.f32.mrb[0].mxu0
      %v1469 = vadd.f32 0.0, %v1468
      %v1470 = vpop.f32.mrb[0].mxu0
      %1471 = vmatprep.mubr.bf16.mxu0 0
      %1472 = vmatmul.mubr.bf16.gmra.mrb[0].mxu0 %v1411
      %v1473 = vpop.f32.mrb[0].mxu0
      %v1474 = vadd.f32 0.0, %v1473
      %v1475 = vpop.f32.mrb[0].mxu0
      %v1476 = vpop.f32.mrb[0].mxu0
      %v1477 = vadd.f32 0.0, %v1476
      %v1478 = vpop.f32.mrb[0].mxu0
      %1479 = vmatprep.mubr.bf16.mxu0 0
      %1480 = vmatmul.mubr.bf16.gmra.mrb[0].mxu0 %v1414
      %v1481 = vpop.f32.mrb[0].mxu0
      %v1482 = vadd.f32 0.0, %v1481
      %v1483 = vpop.f32.mrb[0].mxu0
      %v1484 = vpop.f32.mrb[0].mxu0
      %v1485 = vadd.f32 0.0, %v1484
      %v1486 = vpop.f32.mrb[0].mxu0
      %1487 = vmatprep.mubr.bf16.mxu0 0
      %1488 = vmatmul.mubr.bf16.gmra.mrb[0].mxu0 %v1417
      %v1489 = vpop.f32.mrb[0].mxu0
      %v1490 = vadd.f32 0.0, %v1489
      %v1491 = vpop.f32.mrb[0].mxu0
      %v1492 = vpop.f32.mrb[0].mxu0
      %v1493 = vadd.f32 0.0, %v1492
      %v1494 = vpop.f32.mrb[0].mxu0
      %1495 = vmatprep.mubr.bf16.mxu0 0
      %1496 = vmatmul.mubr.bf16.gmra.mrb[0].mxu0 %v1420
      %v1497 = vpop.f32.mrb[0].mxu0
      %v1498 = vadd.f32 0.0, %v1497
      %v1499 = vpop.f32.mrb[0].mxu0
      %v1500 = vpop.f32.mrb[0].mxu0
      %v1501 = vadd.f32 0.0, %v1500
      %v1502 = vpop.f32.mrb[0].mxu0
      %1503 = vmatprep.mubr.bf16.mxu0 0
      %1504 = vmatmul.mubr.bf16.gmra.mrb[0].mxu0 %v1423
      %v1505 = vpop.f32.mrb[0].mxu0
      %v1506 = vadd.f32 0.0, %v1505
      %v1507 = vpop.f32.mrb[0].mxu0
      %v1508 = vpop.f32.mrb[0].mxu0
      %v1509 = vadd.f32 0.0, %v1508
      %v1510 = vpop.f32.mrb[0].mxu0
      %1511 = vmatprep.mubr.bf16.mxu0 0
      %1512 = vmatmul.mubr.bf16.gmra.mrb[0].mxu0 %v1426
      %v1513 = vpop.f32.mrb[0].mxu0
      %v1514 = vadd.f32 0.0, %v1513
      %v1515 = vpop.f32.mrb[0].mxu0
      %v1516 = vpop.f32.mrb[0].mxu0
      %v1517 = vadd.f32 0.0, %v1516
      %v1518 = vpop.f32.mrb[0].mxu0
      %1519 = vmatprep.mubr.bf16.mxu0 0
      %1520 = vmatmul.mubr.bf16.gmra.mrb[0].mxu0 %v1429
      %v1521 = vpop.f32.mrb[0].mxu0
      %v1522 = vadd.f32 0.0, %v1521
      %v1523 = vpop.f32.mrb[0].mxu0
      %v1524 = vpop.f32.mrb[0].mxu0
      %v1525 = vadd.f32 0.0, %v1524
      %v1526 = vpop.f32.mrb[0].mxu0
      %1527 = vdwg.mxu0
      %v1528 = vadd.f32 %v389, %v1466
      %v1529 = vadd.f32 %v392, %v1469
      %v1530 = vadd.f32 %v397, %v1474
      %v1531 = vadd.f32 %v400, %v1477
      %v1532 = vadd.f32 %v405, %v1482
      %v1533 = vadd.f32 %v408, %v1485
      %v1534 = vadd.f32 %v413, %v1490
      %v1535 = vadd.f32 %v416, %v1493
      %v1536 = vadd.f32 %v421, %v1498
      %v1537 = vadd.f32 %v424, %v1501
      %v1538 = vadd.f32 %v429, %v1506
      %v1539 = vadd.f32 %v432, %v1509
      %v1540 = vadd.f32 %v437, %v1514
      %v1541 = vadd.f32 %v440, %v1517
      %v1542 = vadd.f32 %v445, %v1522
      %v1543 = vadd.f32 %v448, %v1525
      %v1544 = vmul.f32 %v1269, %v969
      %v1545 = vmul.f32 %v1276, %v969
      %v1546 = vmul.f32 %v1283, %v969
      %v1547 = vmul.f32 %v1290, %v969
      %v1548 = vmul.f32 %v1297, %v969
      %v1549 = vmul.f32 %v1304, %v969
      %v1550 = vmul.f32 %v1311, %v969
      %v1551 = vmul.f32 %v1318, %v969
      %v1552 = vmul.f32 %v1325, %v969
      %v1553 = vmul.f32 %v1332, %v969
      %v1554 = vmul.f32 %v1339, %v969
      %v1555 = vmul.f32 %v1346, %v969
      %v1556 = vmul.f32 %v1353, %v969
      %v1557 = vmul.f32 %v1360, %v969
      %v1558 = vmul.f32 %v1367, %v969
      %v1559 = vmul.f32 %v1374, %v969
      %v1560 = vadd.f32 %v1528, %v1544
      %v1561 = vadd.f32 %v1529, %v1545
      %v1562 = vadd.f32 %v1530, %v1546
      %v1563 = vadd.f32 %v1531, %v1547
      %v1564 = vadd.f32 %v1532, %v1548
      %v1565 = vadd.f32 %v1533, %v1549
      %v1566 = vadd.f32 %v1534, %v1550
      %v1567 = vadd.f32 %v1535, %v1551
      %v1568 = vadd.f32 %v1536, %v1552
      %v1569 = vadd.f32 %v1537, %v1553
      %v1570 = vadd.f32 %v1538, %v1554
      %v1571 = vadd.f32 %v1539, %v1555
      %v1572 = vadd.f32 %v1540, %v1556
      %v1573 = vadd.f32 %v1541, %v1557
      %v1574 = vadd.f32 %v1542, %v1558
      %v1575 = vadd.f32 %v1543, %v1559
      %v1576 = vadd.f32 %v1560, %v1005
      %v1577 = vadd.f32 %v1561, %v1005
      %v1578 = vadd.f32 %v1562, %v1005
      %v1579 = vadd.f32 %v1563, %v1005
      %v1580 = vadd.f32 %v1564, %v1005
      %v1581 = vadd.f32 %v1565, %v1005
      %v1582 = vadd.f32 %v1566, %v1005
      %v1583 = vadd.f32 %v1567, %v1005
      %v1584 = vadd.f32 %v1568, %v1005
      %v1585 = vadd.f32 %v1569, %v1005
      %v1586 = vadd.f32 %v1570, %v1005
      %v1587 = vadd.f32 %v1571, %v1005
      %v1588 = vadd.f32 %v1572, %v1005
      %v1589 = vadd.f32 %v1573, %v1005
      %v1590 = vadd.f32 %v1574, %v1005
      %v1591 = vadd.f32 %v1575, %v1005
      %v1592 = vmax.f32 %v1576, 0.0
      %v1593 = vmax.f32 %v1577, 0.0
      %v1594 = vmax.f32 %v1578, 0.0
      %v1595 = vmax.f32 %v1579, 0.0
      %v1596 = vmax.f32 %v1580, 0.0
      %v1597 = vmax.f32 %v1581, 0.0
      %v1598 = vmax.f32 %v1582, 0.0
      %v1599 = vmax.f32 %v1583, 0.0
      %v1600 = vmax.f32 %v1584, 0.0
      %v1601 = vmax.f32 %v1585, 0.0
      %v1602 = vmax.f32 %v1586, 0.0
      %v1603 = vmax.f32 %v1587, 0.0
      %v1604 = vmax.f32 %v1588, 0.0
      %v1605 = vmax.f32 %v1589, 0.0
      %v1606 = vmax.f32 %v1590, 0.0
      %v1607 = vmax.f32 %v1591, 0.0
      %1608 = vst.msk [vmem:[#allocation2 + $0x80] sm:$0xff] %vm1038, %v1592
      %1609 = vst.msk [vmem:[#allocation2 + $0x88] sm:$0xff] %vm1038, %v1593
      %1610 = vst.msk [vmem:[#allocation2 + $0x90] sm:$0xff] %vm1038, %v1594
      %1611 = vst.msk [vmem:[#allocation2 + $0x98] sm:$0xff] %vm1038, %v1595
      %1612 = vst.msk [vmem:[#allocation2 + $0xa0] sm:$0xff] %vm1038, %v1596
      %1613 = vst.msk [vmem:[#allocation2 + $0xa8] sm:$0xff] %vm1038, %v1597
      %1614 = vst.msk [vmem:[#allocation2 + $0xb0] sm:$0xff] %vm1038, %v1598
      %1615 = vst.msk [vmem:[#allocation2 + $0xb8] sm:$0xff] %vm1038, %v1599
      %1616 = vst.msk [vmem:[#allocation2 + $0xc0] sm:$0xff] %vm1038, %v1600
      %1617 = vst.msk [vmem:[#allocation2 + $0xc8] sm:$0xff] %vm1038, %v1601
      %1618 = vst.msk [vmem:[#allocation2 + $0xd0] sm:$0xff] %vm1038, %v1602
      %1619 = vst.msk [vmem:[#allocation2 + $0xd8] sm:$0xff] %vm1038, %v1603
      %1620 = vst.msk [vmem:[#allocation2 + $0xe0] sm:$0xff] %vm1038, %v1604
      %1621 = vst.msk [vmem:[#allocation2 + $0xe8] sm:$0xff] %vm1038, %v1605
      %1622 = vst.msk [vmem:[#allocation2 + $0xf0] sm:$0xff] %vm1038, %v1606
      %1623 = vst.msk [vmem:[#allocation2 + $0xf8] sm:$0xff] %vm1038, %v1607
      %1624 = vrot.lane.b32.xlu0 %v292, 9
      %v1625 = vpop.permute.xlu0 %1624
      %1626 = vrot.lane.b32.xlu0 %v293, 9
      %v1627 = vpop.permute.xlu0 %1626
      %1628 = vrot.lane.b32.xlu0 %v294, 9
      %v1629 = vpop.permute.xlu0 %1628
      %1630 = vrot.lane.b32.xlu0 %v295, 9
      %v1631 = vpop.permute.xlu0 %1630
      %1632 = vrot.lane.b32.xlu0 %v296, 9
      %v1633 = vpop.permute.xlu0 %1632
      %1634 = vrot.lane.b32.xlu0 %v297, 9
      %v1635 = vpop.permute.xlu0 %1634
      %1636 = vrot.lane.b32.xlu0 %v298, 9
      %v1637 = vpop.permute.xlu0 %1636
      %1638 = vrot.lane.b32.xlu0 %v299, 9
      %v1639 = vpop.permute.xlu0 %1638
      %1640 = vrot.lane.b32.xlu0 %v300, 9
      %v1641 = vpop.permute.xlu0 %1640
      %1642 = vrot.lane.b32.xlu0 %v301, 9
      %v1643 = vpop.permute.xlu0 %1642
      %1644 = vrot.lane.b32.xlu0 %v302, 9
      %v1645 = vpop.permute.xlu0 %1644
      %1646 = vrot.lane.b32.xlu0 %v303, 9
      %v1647 = vpop.permute.xlu0 %1646
      %1648 = vrot.lane.b32.xlu0 %v304, 9
      %v1649 = vpop.permute.xlu0 %1648
      %1650 = vrot.lane.b32.xlu0 %v305, 9
      %v1651 = vpop.permute.xlu0 %1650
      %1652 = vrot.lane.b32.xlu0 %v306, 9
      %v1653 = vpop.permute.xlu0 %1652
      %1654 = vrot.lane.b32.xlu0 %v307, 9
      %v1655 = vpop.permute.xlu0 %1654
      %v1672 = vsub.f32 %v292, %v1625
      %v1673 = vsub.f32 %v293, %v1627
      %v1674 = vsub.f32 %v294, %v1629
      %v1675 = vsub.f32 %v295, %v1631
      %v1676 = vsub.f32 %v296, %v1633
      %v1677 = vsub.f32 %v297, %v1635
      %v1678 = vsub.f32 %v298, %v1637
      %v1679 = vsub.f32 %v299, %v1639
      %v1680 = vsub.f32 %v300, %v1641
      %v1681 = vsub.f32 %v301, %v1643
      %v1682 = vsub.f32 %v302, %v1645
      %v1683 = vsub.f32 %v303, %v1647
      %v1684 = vsub.f32 %v304, %v1649
      %v1685 = vsub.f32 %v305, %v1651
      %v1686 = vsub.f32 %v306, %v1653
      %v1687 = vsub.f32 %v307, %v1655
      %v1688 = vmul.f32 %v1672, %v1672
      %v1689 = vmul.f32 %v1673, %v1673
      %v1690 = vmul.f32 %v1674, %v1674
      %v1691 = vmul.f32 %v1675, %v1675
      %v1692 = vmul.f32 %v1676, %v1676
      %v1693 = vmul.f32 %v1677, %v1677
      %v1694 = vmul.f32 %v1678, %v1678
      %v1695 = vmul.f32 %v1679, %v1679
      %v1696 = vmul.f32 %v1680, %v1680
      %v1697 = vmul.f32 %v1681, %v1681
      %v1698 = vmul.f32 %v1682, %v1682
      %v1699 = vmul.f32 %v1683, %v1683
      %v1700 = vmul.f32 %v1684, %v1684
      %v1701 = vmul.f32 %v1685, %v1685
      %v1702 = vmul.f32 %v1686, %v1686
      %v1703 = vmul.f32 %v1687, %v1687
      %1720 = vrot.lane.b32.xlu0 %v1688, 119
      %v1721 = vpop.permute.xlu0 %1720
      %1722 = vrot.lane.b32.xlu0 %v1689, 119
      %v1723 = vpop.permute.xlu0 %1722
      %1724 = vrot.lane.b32.xlu0 %v1690, 119
      %v1725 = vpop.permute.xlu0 %1724
      %1726 = vrot.lane.b32.xlu0 %v1691, 119
      %v1727 = vpop.permute.xlu0 %1726
      %1728 = vrot.lane.b32.xlu0 %v1692, 119
      %v1729 = vpop.permute.xlu0 %1728
      %1730 = vrot.lane.b32.xlu0 %v1693, 119
      %v1731 = vpop.permute.xlu0 %1730
      %1732 = vrot.lane.b32.xlu0 %v1694, 119
      %v1733 = vpop.permute.xlu0 %1732
      %1734 = vrot.lane.b32.xlu0 %v1695, 119
      %v1735 = vpop.permute.xlu0 %1734
      %1736 = vrot.lane.b32.xlu0 %v1696, 119
      %v1737 = vpop.permute.xlu0 %1736
      %1738 = vrot.lane.b32.xlu0 %v1697, 119
      %v1739 = vpop.permute.xlu0 %1738
      %1740 = vrot.lane.b32.xlu0 %v1698, 119
      %v1741 = vpop.permute.xlu0 %1740
      %1742 = vrot.lane.b32.xlu0 %v1699, 119
      %v1743 = vpop.permute.xlu0 %1742
      %1744 = vrot.lane.b32.xlu0 %v1700, 119
      %v1745 = vpop.permute.xlu0 %1744
      %1746 = vrot.lane.b32.xlu0 %v1701, 119
      %v1747 = vpop.permute.xlu0 %1746
      %1748 = vrot.lane.b32.xlu0 %v1702, 119
      %v1749 = vpop.permute.xlu0 %1748
      %1750 = vrot.lane.b32.xlu0 %v1703, 119
      %v1751 = vpop.permute.xlu0 %1750
      %v1768 = vsel %vm322, %v1721, 0.0
      %1769 = vadd.xlane.f32.xlu0 %v1768
      %v1770 = vpop.xlane.xlu0 %1769
      %v1771 = vsel %vm322, %v1723, 0.0
      %1772 = vadd.xlane.f32.xlu0 %v1771
      %v1773 = vpop.xlane.xlu0 %1772
      %v1774 = vsel %vm322, %v1725, 0.0
      %1775 = vadd.xlane.f32.xlu0 %v1774
      %v1776 = vpop.xlane.xlu0 %1775
      %v1777 = vsel %vm322, %v1727, 0.0
      %1778 = vadd.xlane.f32.xlu0 %v1777
      %v1779 = vpop.xlane.xlu0 %1778
      %v1780 = vsel %vm322, %v1729, 0.0
      %1781 = vadd.xlane.f32.xlu0 %v1780
      %v1782 = vpop.xlane.xlu0 %1781
      %v1783 = vsel %vm322, %v1731, 0.0
      %1784 = vadd.xlane.f32.xlu0 %v1783
      %v1785 = vpop.xlane.xlu0 %1784
      %v1786 = vsel %vm322, %v1733, 0.0
      %1787 = vadd.xlane.f32.xlu0 %v1786
      %v1788 = vpop.xlane.xlu0 %1787
      %v1789 = vsel %vm322, %v1735, 0.0
      %1790 = vadd.xlane.f32.xlu0 %v1789
      %v1791 = vpop.xlane.xlu0 %1790
      %v1792 = vsel %vm322, %v1737, 0.0
      %1793 = vadd.xlane.f32.xlu0 %v1792
      %v1794 = vpop.xlane.xlu0 %1793
      %v1795 = vsel %vm322, %v1739, 0.0
      %1796 = vadd.xlane.f32.xlu0 %v1795
      %v1797 = vpop.xlane.xlu0 %1796
      %v1798 = vsel %vm322, %v1741, 0.0
      %1799 = vadd.xlane.f32.xlu0 %v1798
      %v1800 = vpop.xlane.xlu0 %1799
      %v1801 = vsel %vm322, %v1743, 0.0
      %1802 = vadd.xlane.f32.xlu0 %v1801
      %v1803 = vpop.xlane.xlu0 %1802
      %v1804 = vsel %vm322, %v1745, 0.0
      %1805 = vadd.xlane.f32.xlu0 %v1804
      %v1806 = vpop.xlane.xlu0 %1805
      %v1807 = vsel %vm322, %v1747, 0.0
      %1808 = vadd.xlane.f32.xlu0 %v1807
      %v1809 = vpop.xlane.xlu0 %1808
      %v1810 = vsel %vm322, %v1749, 0.0
      %1811 = vadd.xlane.f32.xlu0 %v1810
      %v1812 = vpop.xlane.xlu0 %1811
      %v1813 = vsel %vm322, %v1751, 0.0
      %1814 = vadd.xlane.f32.xlu0 %v1813
      %v1815 = vpop.xlane.xlu0 %1814
      %v1816 = vadd.f32 %v1770, 1e-08
      %v1817 = vadd.f32 %v1773, 1e-08
      %v1818 = vadd.f32 %v1776, 1e-08
      %v1819 = vadd.f32 %v1779, 1e-08
      %v1820 = vadd.f32 %v1782, 1e-08
      %v1821 = vadd.f32 %v1785, 1e-08
      %v1822 = vadd.f32 %v1788, 1e-08
      %v1823 = vadd.f32 %v1791, 1e-08
      %v1824 = vadd.f32 %v1794, 1e-08
      %v1825 = vadd.f32 %v1797, 1e-08
      %v1826 = vadd.f32 %v1800, 1e-08
      %v1827 = vadd.f32 %v1803, 1e-08
      %v1828 = vadd.f32 %v1806, 1e-08
      %v1829 = vadd.f32 %v1809, 1e-08
      %v1830 = vadd.f32 %v1812, 1e-08
      %v1831 = vadd.f32 %v1815, 1e-08
      %v1832 = vrsqrt.pop %v1816
      %v1833 = vmul.f32 %v1816, %v1832
      %vm1834 = vcmp.eq.f32.partialorder %v1816, inf
      %v1835 = vsel %vm1834, %v1816, %v1833
      %vm1836 = vcmp.eq.f32.partialorder %v1816, 0.0
      %v1837 = vand.u32 %v1816, 2147483648
      %v1838 = vsel %vm1836, %v1837, %v1835
      %v1839 = vrsqrt.pop %v1817
      %v1840 = vmul.f32 %v1817, %v1839
      %vm1841 = vcmp.eq.f32.partialorder %v1817, inf
      %v1842 = vsel %vm1841, %v1817, %v1840
      %vm1843 = vcmp.eq.f32.partialorder %v1817, 0.0
      %v1844 = vand.u32 %v1817, 2147483648
      %v1845 = vsel %vm1843, %v1844, %v1842
      %v1846 = vrsqrt.pop %v1818
      %v1847 = vmul.f32 %v1818, %v1846
      %vm1848 = vcmp.eq.f32.partialorder %v1818, inf
      %v1849 = vsel %vm1848, %v1818, %v1847
      %vm1850 = vcmp.eq.f32.partialorder %v1818, 0.0
      %v1851 = vand.u32 %v1818, 2147483648
      %v1852 = vsel %vm1850, %v1851, %v1849
      %v1853 = vrsqrt.pop %v1819
      %v1854 = vmul.f32 %v1819, %v1853
      %vm1855 = vcmp.eq.f32.partialorder %v1819, inf
      %v1856 = vsel %vm1855, %v1819, %v1854
      %vm1857 = vcmp.eq.f32.partialorder %v1819, 0.0
      %v1858 = vand.u32 %v1819, 2147483648
      %v1859 = vsel %vm1857, %v1858, %v1856
      %v1860 = vrsqrt.pop %v1820
      %v1861 = vmul.f32 %v1820, %v1860
      %vm1862 = vcmp.eq.f32.partialorder %v1820, inf
      %v1863 = vsel %vm1862, %v1820, %v1861
      %vm1864 = vcmp.eq.f32.partialorder %v1820, 0.0
      %v1865 = vand.u32 %v1820, 2147483648
      %v1866 = vsel %vm1864, %v1865, %v1863
      %v1867 = vrsqrt.pop %v1821
      %v1868 = vmul.f32 %v1821, %v1867
      %vm1869 = vcmp.eq.f32.partialorder %v1821, inf
      %v1870 = vsel %vm1869, %v1821, %v1868
      %vm1871 = vcmp.eq.f32.partialorder %v1821, 0.0
      %v1872 = vand.u32 %v1821, 2147483648
      %v1873 = vsel %vm1871, %v1872, %v1870
      %v1874 = vrsqrt.pop %v1822
      %v1875 = vmul.f32 %v1822, %v1874
      %vm1876 = vcmp.eq.f32.partialorder %v1822, inf
      %v1877 = vsel %vm1876, %v1822, %v1875
      %vm1878 = vcmp.eq.f32.partialorder %v1822, 0.0
      %v1879 = vand.u32 %v1822, 2147483648
      %v1880 = vsel %vm1878, %v1879, %v1877
      %v1881 = vrsqrt.pop %v1823
      %v1882 = vmul.f32 %v1823, %v1881
      %vm1883 = vcmp.eq.f32.partialorder %v1823, inf
      %v1884 = vsel %vm1883, %v1823, %v1882
      %vm1885 = vcmp.eq.f32.partialorder %v1823, 0.0
      %v1886 = vand.u32 %v1823, 2147483648
      %v1887 = vsel %vm1885, %v1886, %v1884
      %v1888 = vrsqrt.pop %v1824
      %v1889 = vmul.f32 %v1824, %v1888
      %vm1890 = vcmp.eq.f32.partialorder %v1824, inf
      %v1891 = vsel %vm1890, %v1824, %v1889
      %vm1892 = vcmp.eq.f32.partialorder %v1824, 0.0
      %v1893 = vand.u32 %v1824, 2147483648
      %v1894 = vsel %vm1892, %v1893, %v1891
      %v1895 = vrsqrt.pop %v1825
      %v1896 = vmul.f32 %v1825, %v1895
      %vm1897 = vcmp.eq.f32.partialorder %v1825, inf
      %v1898 = vsel %vm1897, %v1825, %v1896
      %vm1899 = vcmp.eq.f32.partialorder %v1825, 0.0
      %v1900 = vand.u32 %v1825, 2147483648
      %v1901 = vsel %vm1899, %v1900, %v1898
      %v1902 = vrsqrt.pop %v1826
      %v1903 = vmul.f32 %v1826, %v1902
      %vm1904 = vcmp.eq.f32.partialorder %v1826, inf
      %v1905 = vsel %vm1904, %v1826, %v1903
      %vm1906 = vcmp.eq.f32.partialorder %v1826, 0.0
      %v1907 = vand.u32 %v1826, 2147483648
      %v1908 = vsel %vm1906, %v1907, %v1905
      %v1909 = vrsqrt.pop %v1827
      %v1910 = vmul.f32 %v1827, %v1909
      %vm1911 = vcmp.eq.f32.partialorder %v1827, inf
      %v1912 = vsel %vm1911, %v1827, %v1910
      %vm1913 = vcmp.eq.f32.partialorder %v1827, 0.0
      %v1914 = vand.u32 %v1827, 2147483648
      %v1915 = vsel %vm1913, %v1914, %v1912
      %v1916 = vrsqrt.pop %v1828
      %v1917 = vmul.f32 %v1828, %v1916
      %vm1918 = vcmp.eq.f32.partialorder %v1828, inf
      %v1919 = vsel %vm1918, %v1828, %v1917
      %vm1920 = vcmp.eq.f32.partialorder %v1828, 0.0
      %v1921 = vand.u32 %v1828, 2147483648
      %v1922 = vsel %vm1920, %v1921, %v1919
      %v1923 = vrsqrt.pop %v1829
      %v1924 = vmul.f32 %v1829, %v1923
      %vm1925 = vcmp.eq.f32.partialorder %v1829, inf
      %v1926 = vsel %vm1925, %v1829, %v1924
      %vm1927 = vcmp.eq.f32.partialorder %v1829, 0.0
      %v1928 = vand.u32 %v1829, 2147483648
      %v1929 = vsel %vm1927, %v1928, %v1926
      %v1930 = vrsqrt.pop %v1830
      %v1931 = vmul.f32 %v1830, %v1930
      %vm1932 = vcmp.eq.f32.partialorder %v1830, inf
      %v1933 = vsel %vm1932, %v1830, %v1931
      %vm1934 = vcmp.eq.f32.partialorder %v1830, 0.0
      %v1935 = vand.u32 %v1830, 2147483648
      %v1936 = vsel %vm1934, %v1935, %v1933
      %v1937 = vrsqrt.pop %v1831
      %v1938 = vmul.f32 %v1831, %v1937
      %vm1939 = vcmp.eq.f32.partialorder %v1831, inf
      %v1940 = vsel %vm1939, %v1831, %v1938
      %vm1941 = vcmp.eq.f32.partialorder %v1831, 0.0
      %v1942 = vand.u32 %v1831, 2147483648
      %v1943 = vsel %vm1941, %v1942, %v1940
      %v1944 = vpack.c.bf16 %v1673, %v1672
      %v1945 = vpack.c.bf16 %v1675, %v1674
      %v1946 = vpack.c.bf16 %v1677, %v1676
      %v1947 = vpack.c.bf16 %v1679, %v1678
      %v1948 = vpack.c.bf16 %v1681, %v1680
      %v1949 = vpack.c.bf16 %v1683, %v1682
      %v1950 = vpack.c.bf16 %v1685, %v1684
      %v1951 = vpack.c.bf16 %v1687, %v1686
      %1960 = vrot.lane.b32.xlu0 %v1944, 119
      %v1961 = vpop.permute.xlu0 %1960
      %1962 = vrot.lane.b32.xlu0 %v1945, 119
      %v1963 = vpop.permute.xlu0 %1962
      %1964 = vrot.lane.b32.xlu0 %v1946, 119
      %v1965 = vpop.permute.xlu0 %1964
      %1966 = vrot.lane.b32.xlu0 %v1947, 119
      %v1967 = vpop.permute.xlu0 %1966
      %1968 = vrot.lane.b32.xlu0 %v1948, 119
      %v1969 = vpop.permute.xlu0 %1968
      %1970 = vrot.lane.b32.xlu0 %v1949, 119
      %v1971 = vpop.permute.xlu0 %1970
      %1972 = vrot.lane.b32.xlu0 %v1950, 119
      %v1973 = vpop.permute.xlu0 %1972
      %1974 = vrot.lane.b32.xlu0 %v1951, 119
      %v1975 = vpop.permute.xlu0 %1974
      %v1977 = vsel %vm322, %v1961, 0
      %v1980 = vsel %vm322, %v1963, 0
      %v1983 = vsel %vm322, %v1965, 0
      %v1986 = vsel %vm322, %v1967, 0
      %v1989 = vsel %vm322, %v1969, 0
      %v1992 = vsel %vm322, %v1971, 0
      %v1995 = vsel %vm322, %v1973, 0
      %v1998 = vsel %vm322, %v1975, 0
      %2000 = vmatprep.subr.bf16.mxu0 0
      %2001 = vmatpush1.bf16.msra.mxu0 %v851
      %2002 = vmatprep.subr.bf16.mxu0 0
      %2003 = vmatpush1.bf16.msra.mxu0 0
      %2004 = vmatprep.subr.bf16.mxu0 0
      %2005 = vmatpush1.bf16.msra.mxu0 0
      %2006 = vmatprep.subr.bf16.mxu0 0
      %2007 = vmatpush1.bf16.msra.mxu0 0
      %2008 = vmatprep.subr.bf16.mxu0 0
      %2009 = vmatpush1.bf16.msra.mxu0 0
      %2010 = vmatprep.subr.bf16.mxu0 0
      %2011 = vmatpush1.bf16.msra.mxu0 0
      %2012 = vmatprep.subr.bf16.mxu0 0
      %2013 = vmatpush1.bf16.msra.mxu0 0
      %2014 = vmatprep.subr.bf16.mxu0 0
      %2015 = vmatpush1.bf16.msra.mxu0 0
      %2016 = vmatprep.subr.bf16.mxu0 0
      %2017 = vmatpush1.bf16.msra.mxu0 0
      %2018 = vmatprep.subr.bf16.mxu0 0
      %2019 = vmatpush1.bf16.msra.mxu0 0
      %2020 = vmatprep.subr.bf16.mxu0 0
      %2021 = vmatpush1.bf16.msra.mxu0 0
      %2022 = vmatprep.subr.bf16.mxu0 0
      %2023 = vmatpush1.bf16.msra.mxu0 0
      %2024 = vmatprep.subr.bf16.mxu0 0
      %2025 = vmatpush1.bf16.msra.mxu0 0
      %2026 = vmatprep.subr.bf16.mxu0 0
      %2027 = vmatpush1.bf16.msra.mxu0 0
      %2028 = vmatprep.subr.bf16.mxu0 0
      %2029 = vmatpush1.bf16.msra.mxu0 0
      %2030 = vmatprep.subr.bf16.mxu0 0
      %2031 = vmatpush1.bf16.msra.mxu0 0
      %2032 = vmatprep.mubr.bf16.mxu0 0
      %2033 = vmatmul.mubr.bf16.gmra.mrb[0].mxu0 %v1977
      %v2034 = vpop.f32.mrb[0].mxu0
      %v2035 = vadd.f32 0.0, %v2034
      %v2036 = vpop.f32.mrb[0].mxu0
      %v2037 = vpop.f32.mrb[0].mxu0
      %v2038 = vadd.f32 0.0, %v2037
      %v2039 = vpop.f32.mrb[0].mxu0
      %2040 = vmatprep.mubr.bf16.mxu0 0
      %2041 = vmatmul.mubr.bf16.gmra.mrb[0].mxu0 %v1980
      %v2042 = vpop.f32.mrb[0].mxu0
      %v2043 = vadd.f32 0.0, %v2042
      %v2044 = vpop.f32.mrb[0].mxu0
      %v2045 = vpop.f32.mrb[0].mxu0
      %v2046 = vadd.f32 0.0, %v2045
      %v2047 = vpop.f32.mrb[0].mxu0
      %2048 = vmatprep.mubr.bf16.mxu0 0
      %2049 = vmatmul.mubr.bf16.gmra.mrb[0].mxu0 %v1983
      %v2050 = vpop.f32.mrb[0].mxu0
      %v2051 = vadd.f32 0.0, %v2050
      %v2052 = vpop.f32.mrb[0].mxu0
      %v2053 = vpop.f32.mrb[0].mxu0
      %v2054 = vadd.f32 0.0, %v2053
      %v2055 = vpop.f32.mrb[0].mxu0
      %2056 = vmatprep.mubr.bf16.mxu0 0
      %2057 = vmatmul.mubr.bf16.gmra.mrb[0].mxu0 %v1986
      %v2058 = vpop.f32.mrb[0].mxu0
      %v2059 = vadd.f32 0.0, %v2058
      %v2060 = vpop.f32.mrb[0].mxu0
      %v2061 = vpop.f32.mrb[0].mxu0
      %v2062 = vadd.f32 0.0, %v2061
      %v2063 = vpop.f32.mrb[0].mxu0
      %2064 = vmatprep.mubr.bf16.mxu0 0
      %2065 = vmatmul.mubr.bf16.gmra.mrb[0].mxu0 %v1989
      %v2066 = vpop.f32.mrb[0].mxu0
      %v2067 = vadd.f32 0.0, %v2066
      %v2068 = vpop.f32.mrb[0].mxu0
      %v2069 = vpop.f32.mrb[0].mxu0
      %v2070 = vadd.f32 0.0, %v2069
      %v2071 = vpop.f32.mrb[0].mxu0
      %2072 = vmatprep.mubr.bf16.mxu0 0
      %2073 = vmatmul.mubr.bf16.gmra.mrb[0].mxu0 %v1992
      %v2074 = vpop.f32.mrb[0].mxu0
      %v2075 = vadd.f32 0.0, %v2074
      %v2076 = vpop.f32.mrb[0].mxu0
      %v2077 = vpop.f32.mrb[0].mxu0
      %v2078 = vadd.f32 0.0, %v2077
      %v2079 = vpop.f32.mrb[0].mxu0
      %2080 = vmatprep.mubr.bf16.mxu0 0
      %2081 = vmatmul.mubr.bf16.gmra.mrb[0].mxu0 %v1995
      %v2082 = vpop.f32.mrb[0].mxu0
      %v2083 = vadd.f32 0.0, %v2082
      %v2084 = vpop.f32.mrb[0].mxu0
      %v2085 = vpop.f32.mrb[0].mxu0
      %v2086 = vadd.f32 0.0, %v2085
      %v2087 = vpop.f32.mrb[0].mxu0
      %2088 = vmatprep.mubr.bf16.mxu0 0
      %2089 = vmatmul.mubr.bf16.gmra.mrb[0].mxu0 %v1998
      %v2090 = vpop.f32.mrb[0].mxu0
      %v2091 = vadd.f32 0.0, %v2090
      %v2092 = vpop.f32.mrb[0].mxu0
      %v2093 = vpop.f32.mrb[0].mxu0
      %v2094 = vadd.f32 0.0, %v2093
      %v2095 = vpop.f32.mrb[0].mxu0
      %2096 = vdwg.mxu0
      %v2097 = vadd.f32 %v389, %v2035
      %v2098 = vadd.f32 %v392, %v2038
      %v2099 = vadd.f32 %v397, %v2043
      %v2100 = vadd.f32 %v400, %v2046
      %v2101 = vadd.f32 %v405, %v2051
      %v2102 = vadd.f32 %v408, %v2054
      %v2103 = vadd.f32 %v413, %v2059
      %v2104 = vadd.f32 %v416, %v2062
      %v2105 = vadd.f32 %v421, %v2067
      %v2106 = vadd.f32 %v424, %v2070
      %v2107 = vadd.f32 %v429, %v2075
      %v2108 = vadd.f32 %v432, %v2078
      %v2109 = vadd.f32 %v437, %v2083
      %v2110 = vadd.f32 %v440, %v2086
      %v2111 = vadd.f32 %v445, %v2091
      %v2112 = vadd.f32 %v448, %v2094
      %v2113 = vmul.f32 %v1838, %v969
      %v2114 = vmul.f32 %v1845, %v969
      %v2115 = vmul.f32 %v1852, %v969
      %v2116 = vmul.f32 %v1859, %v969
      %v2117 = vmul.f32 %v1866, %v969
      %v2118 = vmul.f32 %v1873, %v969
      %v2119 = vmul.f32 %v1880, %v969
      %v2120 = vmul.f32 %v1887, %v969
      %v2121 = vmul.f32 %v1894, %v969
      %v2122 = vmul.f32 %v1901, %v969
      %v2123 = vmul.f32 %v1908, %v969
      %v2124 = vmul.f32 %v1915, %v969
      %v2125 = vmul.f32 %v1922, %v969
      %v2126 = vmul.f32 %v1929, %v969
      %v2127 = vmul.f32 %v1936, %v969
      %v2128 = vmul.f32 %v1943, %v969
      %v2129 = vadd.f32 %v2097, %v2113
      %v2130 = vadd.f32 %v2098, %v2114
      %v2131 = vadd.f32 %v2099, %v2115
      %v2132 = vadd.f32 %v2100, %v2116
      %v2133 = vadd.f32 %v2101, %v2117
      %v2134 = vadd.f32 %v2102, %v2118
      %v2135 = vadd.f32 %v2103, %v2119
      %v2136 = vadd.f32 %v2104, %v2120
      %v2137 = vadd.f32 %v2105, %v2121
      %v2138 = vadd.f32 %v2106, %v2122
      %v2139 = vadd.f32 %v2107, %v2123
      %v2140 = vadd.f32 %v2108, %v2124
      %v2141 = vadd.f32 %v2109, %v2125
      %v2142 = vadd.f32 %v2110, %v2126
      %v2143 = vadd.f32 %v2111, %v2127
      %v2144 = vadd.f32 %v2112, %v2128
      %v2145 = vadd.f32 %v2129, %v1005
      %v2146 = vadd.f32 %v2130, %v1005
      %v2147 = vadd.f32 %v2131, %v1005
      %v2148 = vadd.f32 %v2132, %v1005
      %v2149 = vadd.f32 %v2133, %v1005
      %v2150 = vadd.f32 %v2134, %v1005
      %v2151 = vadd.f32 %v2135, %v1005
      %v2152 = vadd.f32 %v2136, %v1005
      %v2153 = vadd.f32 %v2137, %v1005
      %v2154 = vadd.f32 %v2138, %v1005
      %v2155 = vadd.f32 %v2139, %v1005
      %v2156 = vadd.f32 %v2140, %v1005
      %v2157 = vadd.f32 %v2141, %v1005
      %v2158 = vadd.f32 %v2142, %v1005
      %v2159 = vadd.f32 %v2143, %v1005
      %v2160 = vadd.f32 %v2144, %v1005
      %v2161 = vmax.f32 %v2145, 0.0
      %v2162 = vmax.f32 %v2146, 0.0
      %v2163 = vmax.f32 %v2147, 0.0
      %v2164 = vmax.f32 %v2148, 0.0
      %v2165 = vmax.f32 %v2149, 0.0
      %v2166 = vmax.f32 %v2150, 0.0
      %v2167 = vmax.f32 %v2151, 0.0
      %v2168 = vmax.f32 %v2152, 0.0
      %v2169 = vmax.f32 %v2153, 0.0
      %v2170 = vmax.f32 %v2154, 0.0
      %v2171 = vmax.f32 %v2155, 0.0
      %v2172 = vmax.f32 %v2156, 0.0
      %v2173 = vmax.f32 %v2157, 0.0
      %v2174 = vmax.f32 %v2158, 0.0
      %v2175 = vmax.f32 %v2159, 0.0
      %v2176 = vmax.f32 %v2160, 0.0
      %2177 = vst.msk [vmem:[#allocation2 + $0x100] sm:$0xff] %vm1038, %v2161
      %2178 = vst.msk [vmem:[#allocation2 + $0x108] sm:$0xff] %vm1038, %v2162
      %2179 = vst.msk [vmem:[#allocation2 + $0x110] sm:$0xff] %vm1038, %v2163
      %2180 = vst.msk [vmem:[#allocation2 + $0x118] sm:$0xff] %vm1038, %v2164
      %2181 = vst.msk [vmem:[#allocation2 + $0x120] sm:$0xff] %vm1038, %v2165
      %2182 = vst.msk [vmem:[#allocation2 + $0x128] sm:$0xff] %vm1038, %v2166
      %2183 = vst.msk [vmem:[#allocation2 + $0x130] sm:$0xff] %vm1038, %v2167
      %2184 = vst.msk [vmem:[#allocation2 + $0x138] sm:$0xff] %vm1038, %v2168
      %2185 = vst.msk [vmem:[#allocation2 + $0x140] sm:$0xff] %vm1038, %v2169
      %2186 = vst.msk [vmem:[#allocation2 + $0x148] sm:$0xff] %vm1038, %v2170
      %2187 = vst.msk [vmem:[#allocation2 + $0x150] sm:$0xff] %vm1038, %v2171
      %2188 = vst.msk [vmem:[#allocation2 + $0x158] sm:$0xff] %vm1038, %v2172
      %2189 = vst.msk [vmem:[#allocation2 + $0x160] sm:$0xff] %vm1038, %v2173
      %2190 = vst.msk [vmem:[#allocation2 + $0x168] sm:$0xff] %vm1038, %v2174
      %2191 = vst.msk [vmem:[#allocation2 + $0x170] sm:$0xff] %vm1038, %v2175
      %2192 = vst.msk [vmem:[#allocation2 + $0x178] sm:$0xff] %vm1038, %v2176
      %2193 = vrot.lane.b32.xlu0 %v292, 12
      %v2194 = vpop.permute.xlu0 %2193
      %2195 = vrot.lane.b32.xlu0 %v293, 12
      %v2196 = vpop.permute.xlu0 %2195
      %2197 = vrot.lane.b32.xlu0 %v294, 12
      %v2198 = vpop.permute.xlu0 %2197
      %2199 = vrot.lane.b32.xlu0 %v295, 12
      %v2200 = vpop.permute.xlu0 %2199
      %2201 = vrot.lane.b32.xlu0 %v296, 12
      %v2202 = vpop.permute.xlu0 %2201
      %2203 = vrot.lane.b32.xlu0 %v297, 12
      %v2204 = vpop.permute.xlu0 %2203
      %2205 = vrot.lane.b32.xlu0 %v298, 12
      %v2206 = vpop.permute.xlu0 %2205
      %2207 = vrot.lane.b32.xlu0 %v299, 12
      %v2208 = vpop.permute.xlu0 %2207
      %2209 = vrot.lane.b32.xlu0 %v300, 12
      %v2210 = vpop.permute.xlu0 %2209
      %2211 = vrot.lane.b32.xlu0 %v301, 12
      %v2212 = vpop.permute.xlu0 %2211
      %2213 = vrot.lane.b32.xlu0 %v302, 12
      %v2214 = vpop.permute.xlu0 %2213
      %2215 = vrot.lane.b32.xlu0 %v303, 12
      %v2216 = vpop.permute.xlu0 %2215
      %2217 = vrot.lane.b32.xlu0 %v304, 12
      %v2218 = vpop.permute.xlu0 %2217
      %2219 = vrot.lane.b32.xlu0 %v305, 12
      %v2220 = vpop.permute.xlu0 %2219
      %2221 = vrot.lane.b32.xlu0 %v306, 12
      %v2222 = vpop.permute.xlu0 %2221
      %2223 = vrot.lane.b32.xlu0 %v307, 12
      %v2224 = vpop.permute.xlu0 %2223
      %v2241 = vsub.f32 %v292, %v2194
      %v2242 = vsub.f32 %v293, %v2196
      %v2243 = vsub.f32 %v294, %v2198
      %v2244 = vsub.f32 %v295, %v2200
      %v2245 = vsub.f32 %v296, %v2202
      %v2246 = vsub.f32 %v297, %v2204
      %v2247 = vsub.f32 %v298, %v2206
      %v2248 = vsub.f32 %v299, %v2208
      %v2249 = vsub.f32 %v300, %v2210
      %v2250 = vsub.f32 %v301, %v2212
      %v2251 = vsub.f32 %v302, %v2214
      %v2252 = vsub.f32 %v303, %v2216
      %v2253 = vsub.f32 %v304, %v2218
      %v2254 = vsub.f32 %v305, %v2220
      %v2255 = vsub.f32 %v306, %v2222
      %v2256 = vsub.f32 %v307, %v2224
      %v2257 = vmul.f32 %v2241, %v2241
      %v2258 = vmul.f32 %v2242, %v2242
      %v2259 = vmul.f32 %v2243, %v2243
      %v2260 = vmul.f32 %v2244, %v2244
      %v2261 = vmul.f32 %v2245, %v2245
      %v2262 = vmul.f32 %v2246, %v2246
      %v2263 = vmul.f32 %v2247, %v2247
      %v2264 = vmul.f32 %v2248, %v2248
      %v2265 = vmul.f32 %v2249, %v2249
      %v2266 = vmul.f32 %v2250, %v2250
      %v2267 = vmul.f32 %v2251, %v2251
      %v2268 = vmul.f32 %v2252, %v2252
      %v2269 = vmul.f32 %v2253, %v2253
      %v2270 = vmul.f32 %v2254, %v2254
      %v2271 = vmul.f32 %v2255, %v2255
      %v2272 = vmul.f32 %v2256, %v2256
      %2289 = vrot.lane.b32.xlu0 %v2257, 116
      %v2290 = vpop.permute.xlu0 %2289
      %2291 = vrot.lane.b32.xlu0 %v2258, 116
      %v2292 = vpop.permute.xlu0 %2291
      %2293 = vrot.lane.b32.xlu0 %v2259, 116
      %v2294 = vpop.permute.xlu0 %2293
      %2295 = vrot.lane.b32.xlu0 %v2260, 116
      %v2296 = vpop.permute.xlu0 %2295
      %2297 = vrot.lane.b32.xlu0 %v2261, 116
      %v2298 = vpop.permute.xlu0 %2297
      %2299 = vrot.lane.b32.xlu0 %v2262, 116
      %v2300 = vpop.permute.xlu0 %2299
      %2301 = vrot.lane.b32.xlu0 %v2263, 116
      %v2302 = vpop.permute.xlu0 %2301
      %2303 = vrot.lane.b32.xlu0 %v2264, 116
      %v2304 = vpop.permute.xlu0 %2303
      %2305 = vrot.lane.b32.xlu0 %v2265, 116
      %v2306 = vpop.permute.xlu0 %2305
      %2307 = vrot.lane.b32.xlu0 %v2266, 116
      %v2308 = vpop.permute.xlu0 %2307
      %2309 = vrot.lane.b32.xlu0 %v2267, 116
      %v2310 = vpop.permute.xlu0 %2309
      %2311 = vrot.lane.b32.xlu0 %v2268, 116
      %v2312 = vpop.permute.xlu0 %2311
      %2313 = vrot.lane.b32.xlu0 %v2269, 116
      %v2314 = vpop.permute.xlu0 %2313
      %2315 = vrot.lane.b32.xlu0 %v2270, 116
      %v2316 = vpop.permute.xlu0 %2315
      %2317 = vrot.lane.b32.xlu0 %v2271, 116
      %v2318 = vpop.permute.xlu0 %2317
      %2319 = vrot.lane.b32.xlu0 %v2272, 116
      %v2320 = vpop.permute.xlu0 %2319
      %v2337 = vsel %vm322, %v2290, 0.0
      %2338 = vadd.xlane.f32.xlu0 %v2337
      %v2339 = vpop.xlane.xlu0 %2338
      %v2340 = vsel %vm322, %v2292, 0.0
      %2341 = vadd.xlane.f32.xlu0 %v2340
      %v2342 = vpop.xlane.xlu0 %2341
      %v2343 = vsel %vm322, %v2294, 0.0
      %2344 = vadd.xlane.f32.xlu0 %v2343
      %v2345 = vpop.xlane.xlu0 %2344
      %v2346 = vsel %vm322, %v2296, 0.0
      %2347 = vadd.xlane.f32.xlu0 %v2346
      %v2348 = vpop.xlane.xlu0 %2347
      %v2349 = vsel %vm322, %v2298, 0.0
      %2350 = vadd.xlane.f32.xlu0 %v2349
      %v2351 = vpop.xlane.xlu0 %2350
      %v2352 = vsel %vm322, %v2300, 0.0
      %2353 = vadd.xlane.f32.xlu0 %v2352
      %v2354 = vpop.xlane.xlu0 %2353
      %v2355 = vsel %vm322, %v2302, 0.0
      %2356 = vadd.xlane.f32.xlu0 %v2355
      %v2357 = vpop.xlane.xlu0 %2356
      %v2358 = vsel %vm322, %v2304, 0.0
      %2359 = vadd.xlane.f32.xlu0 %v2358
      %v2360 = vpop.xlane.xlu0 %2359
      %v2361 = vsel %vm322, %v2306, 0.0
      %2362 = vadd.xlane.f32.xlu0 %v2361
      %v2363 = vpop.xlane.xlu0 %2362
      %v2364 = vsel %vm322, %v2308, 0.0
      %2365 = vadd.xlane.f32.xlu0 %v2364
      %v2366 = vpop.xlane.xlu0 %2365
      %v2367 = vsel %vm322, %v2310, 0.0
      %2368 = vadd.xlane.f32.xlu0 %v2367
      %v2369 = vpop.xlane.xlu0 %2368
      %v2370 = vsel %vm322, %v2312, 0.0
      %2371 = vadd.xlane.f32.xlu0 %v2370
      %v2372 = vpop.xlane.xlu0 %2371
      %v2373 = vsel %vm322, %v2314, 0.0
      %2374 = vadd.xlane.f32.xlu0 %v2373
      %v2375 = vpop.xlane.xlu0 %2374
      %v2376 = vsel %vm322, %v2316, 0.0
      %2377 = vadd.xlane.f32.xlu0 %v2376
      %v2378 = vpop.xlane.xlu0 %2377
      %v2379 = vsel %vm322, %v2318, 0.0
      %2380 = vadd.xlane.f32.xlu0 %v2379
      %v2381 = vpop.xlane.xlu0 %2380
      %v2382 = vsel %vm322, %v2320, 0.0
      %2383 = vadd.xlane.f32.xlu0 %v2382
      %v2384 = vpop.xlane.xlu0 %2383
      %v2385 = vadd.f32 %v2339, 1e-08
      %v2386 = vadd.f32 %v2342, 1e-08
      %v2387 = vadd.f32 %v2345, 1e-08
      %v2388 = vadd.f32 %v2348, 1e-08
      %v2389 = vadd.f32 %v2351, 1e-08
      %v2390 = vadd.f32 %v2354, 1e-08
      %v2391 = vadd.f32 %v2357, 1e-08
      %v2392 = vadd.f32 %v2360, 1e-08
      %v2393 = vadd.f32 %v2363, 1e-08
      %v2394 = vadd.f32 %v2366, 1e-08
      %v2395 = vadd.f32 %v2369, 1e-08
      %v2396 = vadd.f32 %v2372, 1e-08
      %v2397 = vadd.f32 %v2375, 1e-08
      %v2398 = vadd.f32 %v2378, 1e-08
      %v2399 = vadd.f32 %v2381, 1e-08
      %v2400 = vadd.f32 %v2384, 1e-08
      %v2401 = vrsqrt.pop %v2385
      %v2402 = vmul.f32 %v2385, %v2401
      %vm2403 = vcmp.eq.f32.partialorder %v2385, inf
      %v2404 = vsel %vm2403, %v2385, %v2402
      %vm2405 = vcmp.eq.f32.partialorder %v2385, 0.0
      %v2406 = vand.u32 %v2385, 2147483648
      %v2407 = vsel %vm2405, %v2406, %v2404
      %v2408 = vrsqrt.pop %v2386
      %v2409 = vmul.f32 %v2386, %v2408
      %vm2410 = vcmp.eq.f32.partialorder %v2386, inf
      %v2411 = vsel %vm2410, %v2386, %v2409
      %vm2412 = vcmp.eq.f32.partialorder %v2386, 0.0
      %v2413 = vand.u32 %v2386, 2147483648
      %v2414 = vsel %vm2412, %v2413, %v2411
      %v2415 = vrsqrt.pop %v2387
      %v2416 = vmul.f32 %v2387, %v2415
      %vm2417 = vcmp.eq.f32.partialorder %v2387, inf
      %v2418 = vsel %vm2417, %v2387, %v2416
      %vm2419 = vcmp.eq.f32.partialorder %v2387, 0.0
      %v2420 = vand.u32 %v2387, 2147483648
      %v2421 = vsel %vm2419, %v2420, %v2418
      %v2422 = vrsqrt.pop %v2388
      %v2423 = vmul.f32 %v2388, %v2422
      %vm2424 = vcmp.eq.f32.partialorder %v2388, inf
      %v2425 = vsel %vm2424, %v2388, %v2423
      %vm2426 = vcmp.eq.f32.partialorder %v2388, 0.0
      %v2427 = vand.u32 %v2388, 2147483648
      %v2428 = vsel %vm2426, %v2427, %v2425
      %v2429 = vrsqrt.pop %v2389
      %v2430 = vmul.f32 %v2389, %v2429
      %vm2431 = vcmp.eq.f32.partialorder %v2389, inf
      %v2432 = vsel %vm2431, %v2389, %v2430
      %vm2433 = vcmp.eq.f32.partialorder %v2389, 0.0
      %v2434 = vand.u32 %v2389, 2147483648
      %v2435 = vsel %vm2433, %v2434, %v2432
      %v2436 = vrsqrt.pop %v2390
      %v2437 = vmul.f32 %v2390, %v2436
      %vm2438 = vcmp.eq.f32.partialorder %v2390, inf
      %v2439 = vsel %vm2438, %v2390, %v2437
      %vm2440 = vcmp.eq.f32.partialorder %v2390, 0.0
      %v2441 = vand.u32 %v2390, 2147483648
      %v2442 = vsel %vm2440, %v2441, %v2439
      %v2443 = vrsqrt.pop %v2391
      %v2444 = vmul.f32 %v2391, %v2443
      %vm2445 = vcmp.eq.f32.partialorder %v2391, inf
      %v2446 = vsel %vm2445, %v2391, %v2444
      %vm2447 = vcmp.eq.f32.partialorder %v2391, 0.0
      %v2448 = vand.u32 %v2391, 2147483648
      %v2449 = vsel %vm2447, %v2448, %v2446
      %v2450 = vrsqrt.pop %v2392
      %v2451 = vmul.f32 %v2392, %v2450
      %vm2452 = vcmp.eq.f32.partialorder %v2392, inf
      %v2453 = vsel %vm2452, %v2392, %v2451
      %vm2454 = vcmp.eq.f32.partialorder %v2392, 0.0
      %v2455 = vand.u32 %v2392, 2147483648
      %v2456 = vsel %vm2454, %v2455, %v2453
      %v2457 = vrsqrt.pop %v2393
      %v2458 = vmul.f32 %v2393, %v2457
      %vm2459 = vcmp.eq.f32.partialorder %v2393, inf
      %v2460 = vsel %vm2459, %v2393, %v2458
      %vm2461 = vcmp.eq.f32.partialorder %v2393, 0.0
      %v2462 = vand.u32 %v2393, 2147483648
      %v2463 = vsel %vm2461, %v2462, %v2460
      %v2464 = vrsqrt.pop %v2394
      %v2465 = vmul.f32 %v2394, %v2464
      %vm2466 = vcmp.eq.f32.partialorder %v2394, inf
      %v2467 = vsel %vm2466, %v2394, %v2465
      %vm2468 = vcmp.eq.f32.partialorder %v2394, 0.0
      %v2469 = vand.u32 %v2394, 2147483648
      %v2470 = vsel %vm2468, %v2469, %v2467
      %v2471 = vrsqrt.pop %v2395
      %v2472 = vmul.f32 %v2395, %v2471
      %vm2473 = vcmp.eq.f32.partialorder %v2395, inf
      %v2474 = vsel %vm2473, %v2395, %v2472
      %vm2475 = vcmp.eq.f32.partialorder %v2395, 0.0
      %v2476 = vand.u32 %v2395, 2147483648
      %v2477 = vsel %vm2475, %v2476, %v2474
      %v2478 = vrsqrt.pop %v2396
      %v2479 = vmul.f32 %v2396, %v2478
      %vm2480 = vcmp.eq.f32.partialorder %v2396, inf
      %v2481 = vsel %vm2480, %v2396, %v2479
      %vm2482 = vcmp.eq.f32.partialorder %v2396, 0.0
      %v2483 = vand.u32 %v2396, 2147483648
      %v2484 = vsel %vm2482, %v2483, %v2481
      %v2485 = vrsqrt.pop %v2397
      %v2486 = vmul.f32 %v2397, %v2485
      %vm2487 = vcmp.eq.f32.partialorder %v2397, inf
      %v2488 = vsel %vm2487, %v2397, %v2486
      %vm2489 = vcmp.eq.f32.partialorder %v2397, 0.0
      %v2490 = vand.u32 %v2397, 2147483648
      %v2491 = vsel %vm2489, %v2490, %v2488
      %v2492 = vrsqrt.pop %v2398
      %v2493 = vmul.f32 %v2398, %v2492
      %vm2494 = vcmp.eq.f32.partialorder %v2398, inf
      %v2495 = vsel %vm2494, %v2398, %v2493
      %vm2496 = vcmp.eq.f32.partialorder %v2398, 0.0
      %v2497 = vand.u32 %v2398, 2147483648
      %v2498 = vsel %vm2496, %v2497, %v2495
      %v2499 = vrsqrt.pop %v2399
      %v2500 = vmul.f32 %v2399, %v2499
      %vm2501 = vcmp.eq.f32.partialorder %v2399, inf
      %v2502 = vsel %vm2501, %v2399, %v2500
      %vm2503 = vcmp.eq.f32.partialorder %v2399, 0.0
      %v2504 = vand.u32 %v2399, 2147483648
      %v2505 = vsel %vm2503, %v2504, %v2502
      %v2506 = vrsqrt.pop %v2400
      %v2507 = vmul.f32 %v2400, %v2506
      %vm2508 = vcmp.eq.f32.partialorder %v2400, inf
      %v2509 = vsel %vm2508, %v2400, %v2507
      %vm2510 = vcmp.eq.f32.partialorder %v2400, 0.0
      %v2511 = vand.u32 %v2400, 2147483648
      %v2512 = vsel %vm2510, %v2511, %v2509
      %v2513 = vpack.c.bf16 %v2242, %v2241
      %v2514 = vpack.c.bf16 %v2244, %v2243
      %v2515 = vpack.c.bf16 %v2246, %v2245
      %v2516 = vpack.c.bf16 %v2248, %v2247
      %v2517 = vpack.c.bf16 %v2250, %v2249
      %v2518 = vpack.c.bf16 %v2252, %v2251
      %v2519 = vpack.c.bf16 %v2254, %v2253
      %v2520 = vpack.c.bf16 %v2256, %v2255
      %2529 = vrot.lane.b32.xlu0 %v2513, 116
      %v2530 = vpop.permute.xlu0 %2529
      %2531 = vrot.lane.b32.xlu0 %v2514, 116
      %v2532 = vpop.permute.xlu0 %2531
      %2533 = vrot.lane.b32.xlu0 %v2515, 116
      %v2534 = vpop.permute.xlu0 %2533
      %2535 = vrot.lane.b32.xlu0 %v2516, 116
      %v2536 = vpop.permute.xlu0 %2535
      %2537 = vrot.lane.b32.xlu0 %v2517, 116
      %v2538 = vpop.permute.xlu0 %2537
      %2539 = vrot.lane.b32.xlu0 %v2518, 116
      %v2540 = vpop.permute.xlu0 %2539
      %2541 = vrot.lane.b32.xlu0 %v2519, 116
      %v2542 = vpop.permute.xlu0 %2541
      %2543 = vrot.lane.b32.xlu0 %v2520, 116
      %v2544 = vpop.permute.xlu0 %2543
      %v2546 = vsel %vm322, %v2530, 0
      %v2549 = vsel %vm322, %v2532, 0
      %v2552 = vsel %vm322, %v2534, 0
      %v2555 = vsel %vm322, %v2536, 0
      %v2558 = vsel %vm322, %v2538, 0
      %v2561 = vsel %vm322, %v2540, 0
      %v2564 = vsel %vm322, %v2542, 0
      %v2567 = vsel %vm322, %v2544, 0
      %2569 = vmatprep.subr.bf16.mxu0 0
      %2570 = vmatpush1.bf16.msra.mxu0 %v851
      %2571 = vmatprep.subr.bf16.mxu0 0
      %2572 = vmatpush1.bf16.msra.mxu0 0
      %2573 = vmatprep.subr.bf16.mxu0 0
      %2574 = vmatpush1.bf16.msra.mxu0 0
      %2575 = vmatprep.subr.bf16.mxu0 0
      %2576 = vmatpush1.bf16.msra.mxu0 0
      %2577 = vmatprep.subr.bf16.mxu0 0
      %2578 = vmatpush1.bf16.msra.mxu0 0
      %2579 = vmatprep.subr.bf16.mxu0 0
      %2580 = vmatpush1.bf16.msra.mxu0 0
      %2581 = vmatprep.subr.bf16.mxu0 0
      %2582 = vmatpush1.bf16.msra.mxu0 0
      %2583 = vmatprep.subr.bf16.mxu0 0
      %2584 = vmatpush1.bf16.msra.mxu0 0
      %2585 = vmatprep.subr.bf16.mxu0 0
      %2586 = vmatpush1.bf16.msra.mxu0 0
      %2587 = vmatprep.subr.bf16.mxu0 0
      %2588 = vmatpush1.bf16.msra.mxu0 0
      %2589 = vmatprep.subr.bf16.mxu0 0
      %2590 = vmatpush1.bf16.msra.mxu0 0
      %2591 = vmatprep.subr.bf16.mxu0 0
      %2592 = vmatpush1.bf16.msra.mxu0 0
      %2593 = vmatprep.subr.bf16.mxu0 0
      %2594 = vmatpush1.bf16.msra.mxu0 0
      %2595 = vmatprep.subr.bf16.mxu0 0
      %2596 = vmatpush1.bf16.msra.mxu0 0
      %2597 = vmatprep.subr.bf16.mxu0 0
      %2598 = vmatpush1.bf16.msra.mxu0 0
      %2599 = vmatprep.subr.bf16.mxu0 0
      %2600 = vmatpush1.bf16.msra.mxu0 0
      %2601 = vmatprep.mubr.bf16.mxu0 0
      %2602 = vmatmul.mubr.bf16.gmra.mrb[0].mxu0 %v2546
      %v2603 = vpop.f32.mrb[0].mxu0
      %v2604 = vadd.f32 0.0, %v2603
      %v2605 = vpop.f32.mrb[0].mxu0
      %v2606 = vpop.f32.mrb[0].mxu0
      %v2607 = vadd.f32 0.0, %v2606
      %v2608 = vpop.f32.mrb[0].mxu0
      %2609 = vmatprep.mubr.bf16.mxu0 0
      %2610 = vmatmul.mubr.bf16.gmra.mrb[0].mxu0 %v2549
      %v2611 = vpop.f32.mrb[0].mxu0
      %v2612 = vadd.f32 0.0, %v2611
      %v2613 = vpop.f32.mrb[0].mxu0
      %v2614 = vpop.f32.mrb[0].mxu0
      %v2615 = vadd.f32 0.0, %v2614
      %v2616 = vpop.f32.mrb[0].mxu0
      %2617 = vmatprep.mubr.bf16.mxu0 0
      %2618 = vmatmul.mubr.bf16.gmra.mrb[0].mxu0 %v2552
      %v2619 = vpop.f32.mrb[0].mxu0
      %v2620 = vadd.f32 0.0, %v2619
      %v2621 = vpop.f32.mrb[0].mxu0
      %v2622 = vpop.f32.mrb[0].mxu0
      %v2623 = vadd.f32 0.0, %v2622
      %v2624 = vpop.f32.mrb[0].mxu0
      %2625 = vmatprep.mubr.bf16.mxu0 0
      %2626 = vmatmul.mubr.bf16.gmra.mrb[0].mxu0 %v2555
      %v2627 = vpop.f32.mrb[0].mxu0
      %v2628 = vadd.f32 0.0, %v2627
      %v2629 = vpop.f32.mrb[0].mxu0
      %v2630 = vpop.f32.mrb[0].mxu0
      %v2631 = vadd.f32 0.0, %v2630
      %v2632 = vpop.f32.mrb[0].mxu0
      %2633 = vmatprep.mubr.bf16.mxu0 0
      %2634 = vmatmul.mubr.bf16.gmra.mrb[0].mxu0 %v2558
      %v2635 = vpop.f32.mrb[0].mxu0
      %v2636 = vadd.f32 0.0, %v2635
      %v2637 = vpop.f32.mrb[0].mxu0
      %v2638 = vpop.f32.mrb[0].mxu0
      %v2639 = vadd.f32 0.0, %v2638
      %v2640 = vpop.f32.mrb[0].mxu0
      %2641 = vmatprep.mubr.bf16.mxu0 0
      %2642 = vmatmul.mubr.bf16.gmra.mrb[0].mxu0 %v2561
      %v2643 = vpop.f32.mrb[0].mxu0
      %v2644 = vadd.f32 0.0, %v2643
      %v2645 = vpop.f32.mrb[0].mxu0
      %v2646 = vpop.f32.mrb[0].mxu0
      %v2647 = vadd.f32 0.0, %v2646
      %v2648 = vpop.f32.mrb[0].mxu0
      %2649 = vmatprep.mubr.bf16.mxu0 0
      %2650 = vmatmul.mubr.bf16.gmra.mrb[0].mxu0 %v2564
      %v2651 = vpop.f32.mrb[0].mxu0
      %v2652 = vadd.f32 0.0, %v2651
      %v2653 = vpop.f32.mrb[0].mxu0
      %v2654 = vpop.f32.mrb[0].mxu0
      %v2655 = vadd.f32 0.0, %v2654
      %v2656 = vpop.f32.mrb[0].mxu0
      %2657 = vmatprep.mubr.bf16.mxu0 0
      %2658 = vmatmul.mubr.bf16.gmra.mrb[0].mxu0 %v2567
      %v2659 = vpop.f32.mrb[0].mxu0
      %v2660 = vadd.f32 0.0, %v2659
      %v2661 = vpop.f32.mrb[0].mxu0
      %v2662 = vpop.f32.mrb[0].mxu0
      %v2663 = vadd.f32 0.0, %v2662
      %v2664 = vpop.f32.mrb[0].mxu0
      %2665 = vdwg.mxu0
      %v2666 = vadd.f32 %v389, %v2604
      %v2667 = vadd.f32 %v392, %v2607
      %v2668 = vadd.f32 %v397, %v2612
      %v2669 = vadd.f32 %v400, %v2615
      %v2670 = vadd.f32 %v405, %v2620
      %v2671 = vadd.f32 %v408, %v2623
      %v2672 = vadd.f32 %v413, %v2628
      %v2673 = vadd.f32 %v416, %v2631
      %v2674 = vadd.f32 %v421, %v2636
      %v2675 = vadd.f32 %v424, %v2639
      %v2676 = vadd.f32 %v429, %v2644
      %v2677 = vadd.f32 %v432, %v2647
      %v2678 = vadd.f32 %v437, %v2652
      %v2679 = vadd.f32 %v440, %v2655
      %v2680 = vadd.f32 %v445, %v2660
      %v2681 = vadd.f32 %v448, %v2663
      %v2682 = vmul.f32 %v2407, %v969
      %v2683 = vmul.f32 %v2414, %v969
      %v2684 = vmul.f32 %v2421, %v969
      %v2685 = vmul.f32 %v2428, %v969
      %v2686 = vmul.f32 %v2435, %v969
      %v2687 = vmul.f32 %v2442, %v969
      %v2688 = vmul.f32 %v2449, %v969
      %v2689 = vmul.f32 %v2456, %v969
      %v2690 = vmul.f32 %v2463, %v969
      %v2691 = vmul.f32 %v2470, %v969
      %v2692 = vmul.f32 %v2477, %v969
      %v2693 = vmul.f32 %v2484, %v969
      %v2694 = vmul.f32 %v2491, %v969
      %v2695 = vmul.f32 %v2498, %v969
      %v2696 = vmul.f32 %v2505, %v969
      %v2697 = vmul.f32 %v2512, %v969
      %v2698 = vadd.f32 %v2666, %v2682
      %v2699 = vadd.f32 %v2667, %v2683
      %v2700 = vadd.f32 %v2668, %v2684
      %v2701 = vadd.f32 %v2669, %v2685
      %v2702 = vadd.f32 %v2670, %v2686
      %v2703 = vadd.f32 %v2671, %v2687
      %v2704 = vadd.f32 %v2672, %v2688
      %v2705 = vadd.f32 %v2673, %v2689
      %v2706 = vadd.f32 %v2674, %v2690
      %v2707 = vadd.f32 %v2675, %v2691
      %v2708 = vadd.f32 %v2676, %v2692
      %v2709 = vadd.f32 %v2677, %v2693
      %v2710 = vadd.f32 %v2678, %v2694
      %v2711 = vadd.f32 %v2679, %v2695
      %v2712 = vadd.f32 %v2680, %v2696
      %v2713 = vadd.f32 %v2681, %v2697
      %v2714 = vadd.f32 %v2698, %v1005
      %v2715 = vadd.f32 %v2699, %v1005
      %v2716 = vadd.f32 %v2700, %v1005
      %v2717 = vadd.f32 %v2701, %v1005
      %v2718 = vadd.f32 %v2702, %v1005
      %v2719 = vadd.f32 %v2703, %v1005
      %v2720 = vadd.f32 %v2704, %v1005
      %v2721 = vadd.f32 %v2705, %v1005
      %v2722 = vadd.f32 %v2706, %v1005
      %v2723 = vadd.f32 %v2707, %v1005
      %v2724 = vadd.f32 %v2708, %v1005
      %v2725 = vadd.f32 %v2709, %v1005
      %v2726 = vadd.f32 %v2710, %v1005
      %v2727 = vadd.f32 %v2711, %v1005
      %v2728 = vadd.f32 %v2712, %v1005
      %v2729 = vadd.f32 %v2713, %v1005
      %v2730 = vmax.f32 %v2714, 0.0
      %v2731 = vmax.f32 %v2715, 0.0
      %v2732 = vmax.f32 %v2716, 0.0
      %v2733 = vmax.f32 %v2717, 0.0
      %v2734 = vmax.f32 %v2718, 0.0
      %v2735 = vmax.f32 %v2719, 0.0
      %v2736 = vmax.f32 %v2720, 0.0
      %v2737 = vmax.f32 %v2721, 0.0
      %v2738 = vmax.f32 %v2722, 0.0
      %v2739 = vmax.f32 %v2723, 0.0
      %v2740 = vmax.f32 %v2724, 0.0
      %v2741 = vmax.f32 %v2725, 0.0
      %v2742 = vmax.f32 %v2726, 0.0
      %v2743 = vmax.f32 %v2727, 0.0
      %v2744 = vmax.f32 %v2728, 0.0
      %v2745 = vmax.f32 %v2729, 0.0
      %2746 = vst.msk [vmem:[#allocation2 + $0x180] sm:$0xff] %vm1038, %v2730
      %2747 = vst.msk [vmem:[#allocation2 + $0x188] sm:$0xff] %vm1038, %v2731
      %2748 = vst.msk [vmem:[#allocation2 + $0x190] sm:$0xff] %vm1038, %v2732
      %2749 = vst.msk [vmem:[#allocation2 + $0x198] sm:$0xff] %vm1038, %v2733
      %2750 = vst.msk [vmem:[#allocation2 + $0x1a0] sm:$0xff] %vm1038, %v2734
      %2751 = vst.msk [vmem:[#allocation2 + $0x1a8] sm:$0xff] %vm1038, %v2735
      %2752 = vst.msk [vmem:[#allocation2 + $0x1b0] sm:$0xff] %vm1038, %v2736
      %2753 = vst.msk [vmem:[#allocation2 + $0x1b8] sm:$0xff] %vm1038, %v2737
      %2754 = vst.msk [vmem:[#allocation2 + $0x1c0] sm:$0xff] %vm1038, %v2738
      %2755 = vst.msk [vmem:[#allocation2 + $0x1c8] sm:$0xff] %vm1038, %v2739
      %2756 = vst.msk [vmem:[#allocation2 + $0x1d0] sm:$0xff] %vm1038, %v2740
      %2757 = vst.msk [vmem:[#allocation2 + $0x1d8] sm:$0xff] %vm1038, %v2741
      %2758 = vst.msk [vmem:[#allocation2 + $0x1e0] sm:$0xff] %vm1038, %v2742
      %2759 = vst.msk [vmem:[#allocation2 + $0x1e8] sm:$0xff] %vm1038, %v2743
      %2760 = vst.msk [vmem:[#allocation2 + $0x1f0] sm:$0xff] %vm1038, %v2744
      %2761 = vst.msk [vmem:[#allocation2 + $0x1f8] sm:$0xff] %vm1038, %v2745
      %2762 = vrot.lane.b32.xlu0 %v292, 15
      %v2763 = vpop.permute.xlu0 %2762
      %2764 = vrot.lane.b32.xlu0 %v293, 15
      %v2765 = vpop.permute.xlu0 %2764
      %2766 = vrot.lane.b32.xlu0 %v294, 15
      %v2767 = vpop.permute.xlu0 %2766
      %2768 = vrot.lane.b32.xlu0 %v295, 15
      %v2769 = vpop.permute.xlu0 %2768
      %2770 = vrot.lane.b32.xlu0 %v296, 15
      %v2771 = vpop.permute.xlu0 %2770
      %2772 = vrot.lane.b32.xlu0 %v297, 15
      %v2773 = vpop.permute.xlu0 %2772
      %2774 = vrot.lane.b32.xlu0 %v298, 15
      %v2775 = vpop.permute.xlu0 %2774
      %2776 = vrot.lane.b32.xlu0 %v299, 15
      %v2777 = vpop.permute.xlu0 %2776
      %2778 = vrot.lane.b32.xlu0 %v300, 15
      %v2779 = vpop.permute.xlu0 %2778
      %2780 = vrot.lane.b32.xlu0 %v301, 15
      %v2781 = vpop.permute.xlu0 %2780
      %2782 = vrot.lane.b32.xlu0 %v302, 15
      %v2783 = vpop.permute.xlu0 %2782
      %2784 = vrot.lane.b32.xlu0 %v303, 15
      %v2785 = vpop.permute.xlu0 %2784
      %2786 = vrot.lane.b32.xlu0 %v304, 15
      %v2787 = vpop.permute.xlu0 %2786
      %2788 = vrot.lane.b32.xlu0 %v305, 15
      %v2789 = vpop.permute.xlu0 %2788
      %2790 = vrot.lane.b32.xlu0 %v306, 15
      %v2791 = vpop.permute.xlu0 %2790
      %2792 = vrot.lane.b32.xlu0 %v307, 15
      %v2793 = vpop.permute.xlu0 %2792
      %v2810 = vsub.f32 %v292, %v2763
      %v2811 = vsub.f32 %v293, %v2765
      %v2812 = vsub.f32 %v294, %v2767
      %v2813 = vsub.f32 %v295, %v2769
      %v2814 = vsub.f32 %v296, %v2771
      %v2815 = vsub.f32 %v297, %v2773
      %v2816 = vsub.f32 %v298, %v2775
      %v2817 = vsub.f32 %v299, %v2777
      %v2818 = vsub.f32 %v300, %v2779
      %v2819 = vsub.f32 %v301, %v2781
      %v2820 = vsub.f32 %v302, %v2783
      %v2821 = vsub.f32 %v303, %v2785
      %v2822 = vsub.f32 %v304, %v2787
      %v2823 = vsub.f32 %v305, %v2789
      %v2824 = vsub.f32 %v306, %v2791
      %v2825 = vsub.f32 %v307, %v2793
      %v2826 = vmul.f32 %v2810, %v2810
      %v2827 = vmul.f32 %v2811, %v2811
      %v2828 = vmul.f32 %v2812, %v2812
      %v2829 = vmul.f32 %v2813, %v2813
      %v2830 = vmul.f32 %v2814, %v2814
      %v2831 = vmul.f32 %v2815, %v2815
      %v2832 = vmul.f32 %v2816, %v2816
      %v2833 = vmul.f32 %v2817, %v2817
      %v2834 = vmul.f32 %v2818, %v2818
      %v2835 = vmul.f32 %v2819, %v2819
      %v2836 = vmul.f32 %v2820, %v2820
      %v2837 = vmul.f32 %v2821, %v2821
      %v2838 = vmul.f32 %v2822, %v2822
      %v2839 = vmul.f32 %v2823, %v2823
      %v2840 = vmul.f32 %v2824, %v2824
      %v2841 = vmul.f32 %v2825, %v2825
      %2858 = vrot.lane.b32.xlu0 %v2826, 113
      %v2859 = vpop.permute.xlu0 %2858
      %2860 = vrot.lane.b32.xlu0 %v2827, 113
      %v2861 = vpop.permute.xlu0 %2860
      %2862 = vrot.lane.b32.xlu0 %v2828, 113
      %v2863 = vpop.permute.xlu0 %2862
      %2864 = vrot.lane.b32.xlu0 %v2829, 113
      %v2865 = vpop.permute.xlu0 %2864
      %2866 = vrot.lane.b32.xlu0 %v2830, 113
      %v2867 = vpop.permute.xlu0 %2866
      %2868 = vrot.lane.b32.xlu0 %v2831, 113
      %v2869 = vpop.permute.xlu0 %2868
      %2870 = vrot.lane.b32.xlu0 %v2832, 113
      %v2871 = vpop.permute.xlu0 %2870
      %2872 = vrot.lane.b32.xlu0 %v2833, 113
      %v2873 = vpop.permute.xlu0 %2872
      %2874 = vrot.lane.b32.xlu0 %v2834, 113
      %v2875 = vpop.permute.xlu0 %2874
      %2876 = vrot.lane.b32.xlu0 %v2835, 113
      %v2877 = vpop.permute.xlu0 %2876
      %2878 = vrot.lane.b32.xlu0 %v2836, 113
      %v2879 = vpop.permute.xlu0 %2878
      %2880 = vrot.lane.b32.xlu0 %v2837, 113
      %v2881 = vpop.permute.xlu0 %2880
      %2882 = vrot.lane.b32.xlu0 %v2838, 113
      %v2883 = vpop.permute.xlu0 %2882
      %2884 = vrot.lane.b32.xlu0 %v2839, 113
      %v2885 = vpop.permute.xlu0 %2884
      %2886 = vrot.lane.b32.xlu0 %v2840, 113
      %v2887 = vpop.permute.xlu0 %2886
      %2888 = vrot.lane.b32.xlu0 %v2841, 113
      %v2889 = vpop.permute.xlu0 %2888
      %v2906 = vsel %vm322, %v2859, 0.0
      %2907 = vadd.xlane.f32.xlu0 %v2906
      %v2908 = vpop.xlane.xlu0 %2907
      %v2909 = vsel %vm322, %v2861, 0.0
      %2910 = vadd.xlane.f32.xlu0 %v2909
      %v2911 = vpop.xlane.xlu0 %2910
      %v2912 = vsel %vm322, %v2863, 0.0
      %2913 = vadd.xlane.f32.xlu0 %v2912
      %v2914 = vpop.xlane.xlu0 %2913
      %v2915 = vsel %vm322, %v2865, 0.0
      %2916 = vadd.xlane.f32.xlu0 %v2915
      %v2917 = vpop.xlane.xlu0 %2916
      %v2918 = vsel %vm322, %v2867, 0.0
      %2919 = vadd.xlane.f32.xlu0 %v2918
      %v2920 = vpop.xlane.xlu0 %2919
      %v2921 = vsel %vm322, %v2869, 0.0
      %2922 = vadd.xlane.f32.xlu0 %v2921
      %v2923 = vpop.xlane.xlu0 %2922
      %v2924 = vsel %vm322, %v2871, 0.0
      %2925 = vadd.xlane.f32.xlu0 %v2924
      %v2926 = vpop.xlane.xlu0 %2925
      %v2927 = vsel %vm322, %v2873, 0.0
      %2928 = vadd.xlane.f32.xlu0 %v2927
      %v2929 = vpop.xlane.xlu0 %2928
      %v2930 = vsel %vm322, %v2875, 0.0
      %2931 = vadd.xlane.f32.xlu0 %v2930
      %v2932 = vpop.xlane.xlu0 %2931
      %v2933 = vsel %vm322, %v2877, 0.0
      %2934 = vadd.xlane.f32.xlu0 %v2933
      %v2935 = vpop.xlane.xlu0 %2934
      %v2936 = vsel %vm322, %v2879, 0.0
      %2937 = vadd.xlane.f32.xlu0 %v2936
      %v2938 = vpop.xlane.xlu0 %2937
      %v2939 = vsel %vm322, %v2881, 0.0
      %2940 = vadd.xlane.f32.xlu0 %v2939
      %v2941 = vpop.xlane.xlu0 %2940
      %v2942 = vsel %vm322, %v2883, 0.0
      %2943 = vadd.xlane.f32.xlu0 %v2942
      %v2944 = vpop.xlane.xlu0 %2943
      %v2945 = vsel %vm322, %v2885, 0.0
      %2946 = vadd.xlane.f32.xlu0 %v2945
      %v2947 = vpop.xlane.xlu0 %2946
      %v2948 = vsel %vm322, %v2887, 0.0
      %2949 = vadd.xlane.f32.xlu0 %v2948
      %v2950 = vpop.xlane.xlu0 %2949
      %v2951 = vsel %vm322, %v2889, 0.0
      %2952 = vadd.xlane.f32.xlu0 %v2951
      %v2953 = vpop.xlane.xlu0 %2952
      %v2954 = vadd.f32 %v2908, 1e-08
      %v2955 = vadd.f32 %v2911, 1e-08
      %v2956 = vadd.f32 %v2914, 1e-08
      %v2957 = vadd.f32 %v2917, 1e-08
      %v2958 = vadd.f32 %v2920, 1e-08
      %v2959 = vadd.f32 %v2923, 1e-08
      %v2960 = vadd.f32 %v2926, 1e-08
      %v2961 = vadd.f32 %v2929, 1e-08
      %v2962 = vadd.f32 %v2932, 1e-08
      %v2963 = vadd.f32 %v2935, 1e-08
      %v2964 = vadd.f32 %v2938, 1e-08
      %v2965 = vadd.f32 %v2941, 1e-08
      %v2966 = vadd.f32 %v2944, 1e-08
      %v2967 = vadd.f32 %v2947, 1e-08
      %v2968 = vadd.f32 %v2950, 1e-08
      %v2969 = vadd.f32 %v2953, 1e-08
      %v2970 = vrsqrt.pop %v2954
      %v2971 = vmul.f32 %v2954, %v2970
      %vm2972 = vcmp.eq.f32.partialorder %v2954, inf
      %v2973 = vsel %vm2972, %v2954, %v2971
      %vm2974 = vcmp.eq.f32.partialorder %v2954, 0.0
      %v2975 = vand.u32 %v2954, 2147483648
      %v2976 = vsel %vm2974, %v2975, %v2973
      %v2977 = vrsqrt.pop %v2955
      %v2978 = vmul.f32 %v2955, %v2977
      %vm2979 = vcmp.eq.f32.partialorder %v2955, inf
      %v2980 = vsel %vm2979, %v2955, %v2978
      %vm2981 = vcmp.eq.f32.partialorder %v2955, 0.0
      %v2982 = vand.u32 %v2955, 2147483648
      %v2983 = vsel %vm2981, %v2982, %v2980
      %v2984 = vrsqrt.pop %v2956
      %v2985 = vmul.f32 %v2956, %v2984
      %vm2986 = vcmp.eq.f32.partialorder %v2956, inf
      %v2987 = vsel %vm2986, %v2956, %v2985
      %vm2988 = vcmp.eq.f32.partialorder %v2956, 0.0
      %v2989 = vand.u32 %v2956, 2147483648
      %v2990 = vsel %vm2988, %v2989, %v2987
      %v2991 = vrsqrt.pop %v2957
      %v2992 = vmul.f32 %v2957, %v2991
      %vm2993 = vcmp.eq.f32.partialorder %v2957, inf
      %v2994 = vsel %vm2993, %v2957, %v2992
      %vm2995 = vcmp.eq.f32.partialorder %v2957, 0.0
      %v2996 = vand.u32 %v2957, 2147483648
      %v2997 = vsel %vm2995, %v2996, %v2994
      %v2998 = vrsqrt.pop %v2958
      %v2999 = vmul.f32 %v2958, %v2998
      %vm3000 = vcmp.eq.f32.partialorder %v2958, inf
      %v3001 = vsel %vm3000, %v2958, %v2999
      %vm3002 = vcmp.eq.f32.partialorder %v2958, 0.0
      %v3003 = vand.u32 %v2958, 2147483648
      %v3004 = vsel %vm3002, %v3003, %v3001
      %v3005 = vrsqrt.pop %v2959
      %v3006 = vmul.f32 %v2959, %v3005
      %vm3007 = vcmp.eq.f32.partialorder %v2959, inf
      %v3008 = vsel %vm3007, %v2959, %v3006
      %vm3009 = vcmp.eq.f32.partialorder %v2959, 0.0
      %v3010 = vand.u32 %v2959, 2147483648
      %v3011 = vsel %vm3009, %v3010, %v3008
      %v3012 = vrsqrt.pop %v2960
      %v3013 = vmul.f32 %v2960, %v3012
      %vm3014 = vcmp.eq.f32.partialorder %v2960, inf
      %v3015 = vsel %vm3014, %v2960, %v3013
      %vm3016 = vcmp.eq.f32.partialorder %v2960, 0.0
      %v3017 = vand.u32 %v2960, 2147483648
      %v3018 = vsel %vm3016, %v3017, %v3015
      %v3019 = vrsqrt.pop %v2961
      %v3020 = vmul.f32 %v2961, %v3019
      %vm3021 = vcmp.eq.f32.partialorder %v2961, inf
      %v3022 = vsel %vm3021, %v2961, %v3020
      %vm3023 = vcmp.eq.f32.partialorder %v2961, 0.0
      %v3024 = vand.u32 %v2961, 2147483648
      %v3025 = vsel %vm3023, %v3024, %v3022
      %v3026 = vrsqrt.pop %v2962
      %v3027 = vmul.f32 %v2962, %v3026
      %vm3028 = vcmp.eq.f32.partialorder %v2962, inf
      %v3029 = vsel %vm3028, %v2962, %v3027
      %vm3030 = vcmp.eq.f32.partialorder %v2962, 0.0
      %v3031 = vand.u32 %v2962, 2147483648
      %v3032 = vsel %vm3030, %v3031, %v3029
      %v3033 = vrsqrt.pop %v2963
      %v3034 = vmul.f32 %v2963, %v3033
      %vm3035 = vcmp.eq.f32.partialorder %v2963, inf
      %v3036 = vsel %vm3035, %v2963, %v3034
      %vm3037 = vcmp.eq.f32.partialorder %v2963, 0.0
      %v3038 = vand.u32 %v2963, 2147483648
      %v3039 = vsel %vm3037, %v3038, %v3036
      %v3040 = vrsqrt.pop %v2964
      %v3041 = vmul.f32 %v2964, %v3040
      %vm3042 = vcmp.eq.f32.partialorder %v2964, inf
      %v3043 = vsel %vm3042, %v2964, %v3041
      %vm3044 = vcmp.eq.f32.partialorder %v2964, 0.0
      %v3045 = vand.u32 %v2964, 2147483648
      %v3046 = vsel %vm3044, %v3045, %v3043
      %v3047 = vrsqrt.pop %v2965
      %v3048 = vmul.f32 %v2965, %v3047
      %vm3049 = vcmp.eq.f32.partialorder %v2965, inf
      %v3050 = vsel %vm3049, %v2965, %v3048
      %vm3051 = vcmp.eq.f32.partialorder %v2965, 0.0
      %v3052 = vand.u32 %v2965, 2147483648
      %v3053 = vsel %vm3051, %v3052, %v3050
      %v3054 = vrsqrt.pop %v2966
      %v3055 = vmul.f32 %v2966, %v3054
      %vm3056 = vcmp.eq.f32.partialorder %v2966, inf
      %v3057 = vsel %vm3056, %v2966, %v3055
      %vm3058 = vcmp.eq.f32.partialorder %v2966, 0.0
      %v3059 = vand.u32 %v2966, 2147483648
      %v3060 = vsel %vm3058, %v3059, %v3057
      %v3061 = vrsqrt.pop %v2967
      %v3062 = vmul.f32 %v2967, %v3061
      %vm3063 = vcmp.eq.f32.partialorder %v2967, inf
      %v3064 = vsel %vm3063, %v2967, %v3062
      %vm3065 = vcmp.eq.f32.partialorder %v2967, 0.0
      %v3066 = vand.u32 %v2967, 2147483648
      %v3067 = vsel %vm3065, %v3066, %v3064
      %v3068 = vrsqrt.pop %v2968
      %v3069 = vmul.f32 %v2968, %v3068
      %vm3070 = vcmp.eq.f32.partialorder %v2968, inf
      %v3071 = vsel %vm3070, %v2968, %v3069
      %vm3072 = vcmp.eq.f32.partialorder %v2968, 0.0
      %v3073 = vand.u32 %v2968, 2147483648
      %v3074 = vsel %vm3072, %v3073, %v3071
      %v3075 = vrsqrt.pop %v2969
      %v3076 = vmul.f32 %v2969, %v3075
      %vm3077 = vcmp.eq.f32.partialorder %v2969, inf
      %v3078 = vsel %vm3077, %v2969, %v3076
      %vm3079 = vcmp.eq.f32.partialorder %v2969, 0.0
      %v3080 = vand.u32 %v2969, 2147483648
      %v3081 = vsel %vm3079, %v3080, %v3078
      %v3082 = vpack.c.bf16 %v2811, %v2810
      %v3083 = vpack.c.bf16 %v2813, %v2812
      %v3084 = vpack.c.bf16 %v2815, %v2814
      %v3085 = vpack.c.bf16 %v2817, %v2816
      %v3086 = vpack.c.bf16 %v2819, %v2818
      %v3087 = vpack.c.bf16 %v2821, %v2820
      %v3088 = vpack.c.bf16 %v2823, %v2822
      %v3089 = vpack.c.bf16 %v2825, %v2824
      %3098 = vrot.lane.b32.xlu0 %v3082, 113
      %v3099 = vpop.permute.xlu0 %3098
      %3100 = vrot.lane.b32.xlu0 %v3083, 113
      %v3101 = vpop.permute.xlu0 %3100
      %3102 = vrot.lane.b32.xlu0 %v3084, 113
      %v3103 = vpop.permute.xlu0 %3102
      %3104 = vrot.lane.b32.xlu0 %v3085, 113
      %v3105 = vpop.permute.xlu0 %3104
      %3106 = vrot.lane.b32.xlu0 %v3086, 113
      %v3107 = vpop.permute.xlu0 %3106
      %3108 = vrot.lane.b32.xlu0 %v3087, 113
      %v3109 = vpop.permute.xlu0 %3108
      %3110 = vrot.lane.b32.xlu0 %v3088, 113
      %v3111 = vpop.permute.xlu0 %3110
      %3112 = vrot.lane.b32.xlu0 %v3089, 113
      %v3113 = vpop.permute.xlu0 %3112
      %v3115 = vsel %vm322, %v3099, 0
      %v3118 = vsel %vm322, %v3101, 0
      %v3121 = vsel %vm322, %v3103, 0
      %v3124 = vsel %vm322, %v3105, 0
      %v3127 = vsel %vm322, %v3107, 0
      %v3130 = vsel %vm322, %v3109, 0
      %v3133 = vsel %vm322, %v3111, 0
      %v3136 = vsel %vm322, %v3113, 0
      %3138 = vmatprep.subr.bf16.mxu0 0
      %3139 = vmatpush1.bf16.msra.mxu0 %v851
      %3140 = vmatprep.subr.bf16.mxu0 0
      %3141 = vmatpush1.bf16.msra.mxu0 0
      %3142 = vmatprep.subr.bf16.mxu0 0
      %3143 = vmatpush1.bf16.msra.mxu0 0
      %3144 = vmatprep.subr.bf16.mxu0 0
      %3145 = vmatpush1.bf16.msra.mxu0 0
      %3146 = vmatprep.subr.bf16.mxu0 0
      %3147 = vmatpush1.bf16.msra.mxu0 0
      %3148 = vmatprep.subr.bf16.mxu0 0
      %3149 = vmatpush1.bf16.msra.mxu0 0
      %3150 = vmatprep.subr.bf16.mxu0 0
      %3151 = vmatpush1.bf16.msra.mxu0 0
      %3152 = vmatprep.subr.bf16.mxu0 0
      %3153 = vmatpush1.bf16.msra.mxu0 0
      %3154 = vmatprep.subr.bf16.mxu0 0
      %3155 = vmatpush1.bf16.msra.mxu0 0
      %3156 = vmatprep.subr.bf16.mxu0 0
      %3157 = vmatpush1.bf16.msra.mxu0 0
      %3158 = vmatprep.subr.bf16.mxu0 0
      %3159 = vmatpush1.bf16.msra.mxu0 0
      %3160 = vmatprep.subr.bf16.mxu0 0
      %3161 = vmatpush1.bf16.msra.mxu0 0
      %3162 = vmatprep.subr.bf16.mxu0 0
      %3163 = vmatpush1.bf16.msra.mxu0 0
      %3164 = vmatprep.subr.bf16.mxu0 0
      %3165 = vmatpush1.bf16.msra.mxu0 0
      %3166 = vmatprep.subr.bf16.mxu0 0
      %3167 = vmatpush1.bf16.msra.mxu0 0
      %3168 = vmatprep.subr.bf16.mxu0 0
      %3169 = vmatpush1.bf16.msra.mxu0 0
      %3170 = vmatprep.mubr.bf16.mxu0 0
      %3171 = vmatmul.mubr.bf16.gmra.mrb[0].mxu0 %v3115
      %v3172 = vpop.f32.mrb[0].mxu0
      %v3173 = vadd.f32 0.0, %v3172
      %v3174 = vpop.f32.mrb[0].mxu0
      %v3175 = vpop.f32.mrb[0].mxu0
      %v3176 = vadd.f32 0.0, %v3175
      %v3177 = vpop.f32.mrb[0].mxu0
      %3178 = vmatprep.mubr.bf16.mxu0 0
      %3179 = vmatmul.mubr.bf16.gmra.mrb[0].mxu0 %v3118
      %v3180 = vpop.f32.mrb[0].mxu0
      %v3181 = vadd.f32 0.0, %v3180
      %v3182 = vpop.f32.mrb[0].mxu0
      %v3183 = vpop.f32.mrb[0].mxu0
      %v3184 = vadd.f32 0.0, %v3183
      %v3185 = vpop.f32.mrb[0].mxu0
      %3186 = vmatprep.mubr.bf16.mxu0 0
      %3187 = vmatmul.mubr.bf16.gmra.mrb[0].mxu0 %v3121
      %v3188 = vpop.f32.mrb[0].mxu0
      %v3189 = vadd.f32 0.0, %v3188
      %v3190 = vpop.f32.mrb[0].mxu0
      %v3191 = vpop.f32.mrb[0].mxu0
      %v3192 = vadd.f32 0.0, %v3191
      %v3193 = vpop.f32.mrb[0].mxu0
      %3194 = vmatprep.mubr.bf16.mxu0 0
      %3195 = vmatmul.mubr.bf16.gmra.mrb[0].mxu0 %v3124
      %v3196 = vpop.f32.mrb[0].mxu0
      %v3197 = vadd.f32 0.0, %v3196
      %v3198 = vpop.f32.mrb[0].mxu0
      %v3199 = vpop.f32.mrb[0].mxu0
      %v3200 = vadd.f32 0.0, %v3199
      %v3201 = vpop.f32.mrb[0].mxu0
      %3202 = vmatprep.mubr.bf16.mxu0 0
      %3203 = vmatmul.mubr.bf16.gmra.mrb[0].mxu0 %v3127
      %v3204 = vpop.f32.mrb[0].mxu0
      %v3205 = vadd.f32 0.0, %v3204
      %v3206 = vpop.f32.mrb[0].mxu0
      %v3207 = vpop.f32.mrb[0].mxu0
      %v3208 = vadd.f32 0.0, %v3207
      %v3209 = vpop.f32.mrb[0].mxu0
      %3210 = vmatprep.mubr.bf16.mxu0 0
      %3211 = vmatmul.mubr.bf16.gmra.mrb[0].mxu0 %v3130
      %v3212 = vpop.f32.mrb[0].mxu0
      %v3213 = vadd.f32 0.0, %v3212
      %v3214 = vpop.f32.mrb[0].mxu0
      %v3215 = vpop.f32.mrb[0].mxu0
      %v3216 = vadd.f32 0.0, %v3215
      %v3217 = vpop.f32.mrb[0].mxu0
      %3218 = vmatprep.mubr.bf16.mxu0 0
      %3219 = vmatmul.mubr.bf16.gmra.mrb[0].mxu0 %v3133
      %v3220 = vpop.f32.mrb[0].mxu0
      %v3221 = vadd.f32 0.0, %v3220
      %v3222 = vpop.f32.mrb[0].mxu0
      %v3223 = vpop.f32.mrb[0].mxu0
      %v3224 = vadd.f32 0.0, %v3223
      %v3225 = vpop.f32.mrb[0].mxu0
      %3226 = vmatprep.mubr.bf16.mxu0 0
      %3227 = vmatmul.mubr.bf16.gmra.mrb[0].mxu0 %v3136
      %v3228 = vpop.f32.mrb[0].mxu0
      %v3229 = vadd.f32 0.0, %v3228
      %v3230 = vpop.f32.mrb[0].mxu0
      %v3231 = vpop.f32.mrb[0].mxu0
      %v3232 = vadd.f32 0.0, %v3231
      %v3233 = vpop.f32.mrb[0].mxu0
      %3234 = vdwg.mxu0
      %v3235 = vadd.f32 %v389, %v3173
      %v3236 = vadd.f32 %v392, %v3176
      %v3237 = vadd.f32 %v397, %v3181
      %v3238 = vadd.f32 %v400, %v3184
      %v3239 = vadd.f32 %v405, %v3189
      %v3240 = vadd.f32 %v408, %v3192
      %v3241 = vadd.f32 %v413, %v3197
      %v3242 = vadd.f32 %v416, %v3200
      %v3243 = vadd.f32 %v421, %v3205
      %v3244 = vadd.f32 %v424, %v3208
      %v3245 = vadd.f32 %v429, %v3213
      %v3246 = vadd.f32 %v432, %v3216
      %v3247 = vadd.f32 %v437, %v3221
      %v3248 = vadd.f32 %v440, %v3224
      %v3249 = vadd.f32 %v445, %v3229
      %v3250 = vadd.f32 %v448, %v3232
      %v3251 = vmul.f32 %v2976, %v969
      %v3252 = vmul.f32 %v2983, %v969
      %v3253 = vmul.f32 %v2990, %v969
      %v3254 = vmul.f32 %v2997, %v969
      %v3255 = vmul.f32 %v3004, %v969
      %v3256 = vmul.f32 %v3011, %v969
      %v3257 = vmul.f32 %v3018, %v969
      %v3258 = vmul.f32 %v3025, %v969
      %v3259 = vmul.f32 %v3032, %v969
      %v3260 = vmul.f32 %v3039, %v969
      %v3261 = vmul.f32 %v3046, %v969
      %v3262 = vmul.f32 %v3053, %v969
      %v3263 = vmul.f32 %v3060, %v969
      %v3264 = vmul.f32 %v3067, %v969
      %v3265 = vmul.f32 %v3074, %v969
      %v3266 = vmul.f32 %v3081, %v969
      %v3267 = vadd.f32 %v3235, %v3251
      %v3268 = vadd.f32 %v3236, %v3252
      %v3269 = vadd.f32 %v3237, %v3253
      %v3270 = vadd.f32 %v3238, %v3254
      %v3271 = vadd.f32 %v3239, %v3255
      %v3272 = vadd.f32 %v3240, %v3256
      %v3273 = vadd.f32 %v3241, %v3257
      %v3274 = vadd.f32 %v3242, %v3258
      %v3275 = vadd.f32 %v3243, %v3259
      %v3276 = vadd.f32 %v3244, %v3260
      %v3277 = vadd.f32 %v3245, %v3261
      %v3278 = vadd.f32 %v3246, %v3262
      %v3279 = vadd.f32 %v3247, %v3263
      %v3280 = vadd.f32 %v3248, %v3264
      %v3281 = vadd.f32 %v3249, %v3265
      %v3282 = vadd.f32 %v3250, %v3266
      %v3283 = vadd.f32 %v3267, %v1005
      %v3284 = vadd.f32 %v3268, %v1005
      %v3285 = vadd.f32 %v3269, %v1005
      %v3286 = vadd.f32 %v3270, %v1005
      %v3287 = vadd.f32 %v3271, %v1005
      %v3288 = vadd.f32 %v3272, %v1005
      %v3289 = vadd.f32 %v3273, %v1005
      %v3290 = vadd.f32 %v3274, %v1005
      %v3291 = vadd.f32 %v3275, %v1005
      %v3292 = vadd.f32 %v3276, %v1005
      %v3293 = vadd.f32 %v3277, %v1005
      %v3294 = vadd.f32 %v3278, %v1005
      %v3295 = vadd.f32 %v3279, %v1005
      %v3296 = vadd.f32 %v3280, %v1005
      %v3297 = vadd.f32 %v3281, %v1005
      %v3298 = vadd.f32 %v3282, %v1005
      %v3299 = vmax.f32 %v3283, 0.0
      %v3300 = vmax.f32 %v3284, 0.0
      %v3301 = vmax.f32 %v3285, 0.0
      %v3302 = vmax.f32 %v3286, 0.0
      %v3303 = vmax.f32 %v3287, 0.0
      %v3304 = vmax.f32 %v3288, 0.0
      %v3305 = vmax.f32 %v3289, 0.0
      %v3306 = vmax.f32 %v3290, 0.0
      %v3307 = vmax.f32 %v3291, 0.0
      %v3308 = vmax.f32 %v3292, 0.0
      %v3309 = vmax.f32 %v3293, 0.0
      %v3310 = vmax.f32 %v3294, 0.0
      %v3311 = vmax.f32 %v3295, 0.0
      %v3312 = vmax.f32 %v3296, 0.0
      %v3313 = vmax.f32 %v3297, 0.0
      %v3314 = vmax.f32 %v3298, 0.0
      %3315 = vst.msk [vmem:[#allocation2 + $0x200] sm:$0xff] %vm1038, %v3299
      %3316 = vst.msk [vmem:[#allocation2 + $0x208] sm:$0xff] %vm1038, %v3300
      %3317 = vst.msk [vmem:[#allocation2 + $0x210] sm:$0xff] %vm1038, %v3301
      %3318 = vst.msk [vmem:[#allocation2 + $0x218] sm:$0xff] %vm1038, %v3302
      %3319 = vst.msk [vmem:[#allocation2 + $0x220] sm:$0xff] %vm1038, %v3303
      %3320 = vst.msk [vmem:[#allocation2 + $0x228] sm:$0xff] %vm1038, %v3304
      %3321 = vst.msk [vmem:[#allocation2 + $0x230] sm:$0xff] %vm1038, %v3305
      %3322 = vst.msk [vmem:[#allocation2 + $0x238] sm:$0xff] %vm1038, %v3306
      %3323 = vst.msk [vmem:[#allocation2 + $0x240] sm:$0xff] %vm1038, %v3307
      %3324 = vst.msk [vmem:[#allocation2 + $0x248] sm:$0xff] %vm1038, %v3308
      %3325 = vst.msk [vmem:[#allocation2 + $0x250] sm:$0xff] %vm1038, %v3309
      %3326 = vst.msk [vmem:[#allocation2 + $0x258] sm:$0xff] %vm1038, %v3310
      %3327 = vst.msk [vmem:[#allocation2 + $0x260] sm:$0xff] %vm1038, %v3311
      %3328 = vst.msk [vmem:[#allocation2 + $0x268] sm:$0xff] %vm1038, %v3312
      %3329 = vst.msk [vmem:[#allocation2 + $0x270] sm:$0xff] %vm1038, %v3313
      %3330 = vst.msk [vmem:[#allocation2 + $0x278] sm:$0xff] %vm1038, %v3314
      %3331 = vrot.lane.b32.xlu0 %v292, 18
      %v3332 = vpop.permute.xlu0 %3331
      %3333 = vrot.lane.b32.xlu0 %v293, 18
      %v3334 = vpop.permute.xlu0 %3333
      %3335 = vrot.lane.b32.xlu0 %v294, 18
      %v3336 = vpop.permute.xlu0 %3335
      %3337 = vrot.lane.b32.xlu0 %v295, 18
      %v3338 = vpop.permute.xlu0 %3337
      %3339 = vrot.lane.b32.xlu0 %v296, 18
      %v3340 = vpop.permute.xlu0 %3339
      %3341 = vrot.lane.b32.xlu0 %v297, 18
      %v3342 = vpop.permute.xlu0 %3341
      %3343 = vrot.lane.b32.xlu0 %v298, 18
      %v3344 = vpop.permute.xlu0 %3343
      %3345 = vrot.lane.b32.xlu0 %v299, 18
      %v3346 = vpop.permute.xlu0 %3345
      %3347 = vrot.lane.b32.xlu0 %v300, 18
      %v3348 = vpop.permute.xlu0 %3347
      %3349 = vrot.lane.b32.xlu0 %v301, 18
      %v3350 = vpop.permute.xlu0 %3349
      %3351 = vrot.lane.b32.xlu0 %v302, 18
      %v3352 = vpop.permute.xlu0 %3351
      %3353 = vrot.lane.b32.xlu0 %v303, 18
      %v3354 = vpop.permute.xlu0 %3353
      %3355 = vrot.lane.b32.xlu0 %v304, 18
      %v3356 = vpop.permute.xlu0 %3355
      %3357 = vrot.lane.b32.xlu0 %v305, 18
      %v3358 = vpop.permute.xlu0 %3357
      %3359 = vrot.lane.b32.xlu0 %v306, 18
      %v3360 = vpop.permute.xlu0 %3359
      %3361 = vrot.lane.b32.xlu0 %v307, 18
      %v3362 = vpop.permute.xlu0 %3361
      %v3379 = vsub.f32 %v292, %v3332
      %v3380 = vsub.f32 %v293, %v3334
      %v3381 = vsub.f32 %v294, %v3336
      %v3382 = vsub.f32 %v295, %v3338
      %v3383 = vsub.f32 %v296, %v3340
      %v3384 = vsub.f32 %v297, %v3342
      %v3385 = vsub.f32 %v298, %v3344
      %v3386 = vsub.f32 %v299, %v3346
      %v3387 = vsub.f32 %v300, %v3348
      %v3388 = vsub.f32 %v301, %v3350
      %v3389 = vsub.f32 %v302, %v3352
      %v3390 = vsub.f32 %v303, %v3354
      %v3391 = vsub.f32 %v304, %v3356
      %v3392 = vsub.f32 %v305, %v3358
      %v3393 = vsub.f32 %v306, %v3360
      %v3394 = vsub.f32 %v307, %v3362
      %v3395 = vmul.f32 %v3379, %v3379
      %v3396 = vmul.f32 %v3380, %v3380
      %v3397 = vmul.f32 %v3381, %v3381
      %v3398 = vmul.f32 %v3382, %v3382
      %v3399 = vmul.f32 %v3383, %v3383
      %v3400 = vmul.f32 %v3384, %v3384
      %v3401 = vmul.f32 %v3385, %v3385
      %v3402 = vmul.f32 %v3386, %v3386
      %v3403 = vmul.f32 %v3387, %v3387
      %v3404 = vmul.f32 %v3388, %v3388
      %v3405 = vmul.f32 %v3389, %v3389
      %v3406 = vmul.f32 %v3390, %v3390
      %v3407 = vmul.f32 %v3391, %v3391
      %v3408 = vmul.f32 %v3392, %v3392
      %v3409 = vmul.f32 %v3393, %v3393
      %v3410 = vmul.f32 %v3394, %v3394
      %3427 = vrot.lane.b32.xlu0 %v3395, 110
      %v3428 = vpop.permute.xlu0 %3427
      %3429 = vrot.lane.b32.xlu0 %v3396, 110
      %v3430 = vpop.permute.xlu0 %3429
      %3431 = vrot.lane.b32.xlu0 %v3397, 110
      %v3432 = vpop.permute.xlu0 %3431
      %3433 = vrot.lane.b32.xlu0 %v3398, 110
      %v3434 = vpop.permute.xlu0 %3433
      %3435 = vrot.lane.b32.xlu0 %v3399, 110
      %v3436 = vpop.permute.xlu0 %3435
      %3437 = vrot.lane.b32.xlu0 %v3400, 110
      %v3438 = vpop.permute.xlu0 %3437
      %3439 = vrot.lane.b32.xlu0 %v3401, 110
      %v3440 = vpop.permute.xlu0 %3439
      %3441 = vrot.lane.b32.xlu0 %v3402, 110
      %v3442 = vpop.permute.xlu0 %3441
      %3443 = vrot.lane.b32.xlu0 %v3403, 110
      %v3444 = vpop.permute.xlu0 %3443
      %3445 = vrot.lane.b32.xlu0 %v3404, 110
      %v3446 = vpop.permute.xlu0 %3445
      %3447 = vrot.lane.b32.xlu0 %v3405, 110
      %v3448 = vpop.permute.xlu0 %3447
      %3449 = vrot.lane.b32.xlu0 %v3406, 110
      %v3450 = vpop.permute.xlu0 %3449
      %3451 = vrot.lane.b32.xlu0 %v3407, 110
      %v3452 = vpop.permute.xlu0 %3451
      %3453 = vrot.lane.b32.xlu0 %v3408, 110
      %v3454 = vpop.permute.xlu0 %3453
      %3455 = vrot.lane.b32.xlu0 %v3409, 110
      %v3456 = vpop.permute.xlu0 %3455
      %3457 = vrot.lane.b32.xlu0 %v3410, 110
      %v3458 = vpop.permute.xlu0 %3457
      %v3475 = vsel %vm322, %v3428, 0.0
      %3476 = vadd.xlane.f32.xlu0 %v3475
      %v3477 = vpop.xlane.xlu0 %3476
      %v3478 = vsel %vm322, %v3430, 0.0
      %3479 = vadd.xlane.f32.xlu0 %v3478
      %v3480 = vpop.xlane.xlu0 %3479
      %v3481 = vsel %vm322, %v3432, 0.0
      %3482 = vadd.xlane.f32.xlu0 %v3481
      %v3483 = vpop.xlane.xlu0 %3482
      %v3484 = vsel %vm322, %v3434, 0.0
      %3485 = vadd.xlane.f32.xlu0 %v3484
      %v3486 = vpop.xlane.xlu0 %3485
      %v3487 = vsel %vm322, %v3436, 0.0
      %3488 = vadd.xlane.f32.xlu0 %v3487
      %v3489 = vpop.xlane.xlu0 %3488
      %v3490 = vsel %vm322, %v3438, 0.0
      %3491 = vadd.xlane.f32.xlu0 %v3490
      %v3492 = vpop.xlane.xlu0 %3491
      %v3493 = vsel %vm322, %v3440, 0.0
      %3494 = vadd.xlane.f32.xlu0 %v3493
      %v3495 = vpop.xlane.xlu0 %3494
      %v3496 = vsel %vm322, %v3442, 0.0
      %3497 = vadd.xlane.f32.xlu0 %v3496
      %v3498 = vpop.xlane.xlu0 %3497
      %v3499 = vsel %vm322, %v3444, 0.0
      %3500 = vadd.xlane.f32.xlu0 %v3499
      %v3501 = vpop.xlane.xlu0 %3500
      %v3502 = vsel %vm322, %v3446, 0.0
      %3503 = vadd.xlane.f32.xlu0 %v3502
      %v3504 = vpop.xlane.xlu0 %3503
      %v3505 = vsel %vm322, %v3448, 0.0
      %3506 = vadd.xlane.f32.xlu0 %v3505
      %v3507 = vpop.xlane.xlu0 %3506
      %v3508 = vsel %vm322, %v3450, 0.0
      %3509 = vadd.xlane.f32.xlu0 %v3508
      %v3510 = vpop.xlane.xlu0 %3509
      %v3511 = vsel %vm322, %v3452, 0.0
      %3512 = vadd.xlane.f32.xlu0 %v3511
      %v3513 = vpop.xlane.xlu0 %3512
      %v3514 = vsel %vm322, %v3454, 0.0
      %3515 = vadd.xlane.f32.xlu0 %v3514
      %v3516 = vpop.xlane.xlu0 %3515
      %v3517 = vsel %vm322, %v3456, 0.0
      %3518 = vadd.xlane.f32.xlu0 %v3517
      %v3519 = vpop.xlane.xlu0 %3518
      %v3520 = vsel %vm322, %v3458, 0.0
      %3521 = vadd.xlane.f32.xlu0 %v3520
      %v3522 = vpop.xlane.xlu0 %3521
      %v3523 = vadd.f32 %v3477, 1e-08
      %v3524 = vadd.f32 %v3480, 1e-08
      %v3525 = vadd.f32 %v3483, 1e-08
      %v3526 = vadd.f32 %v3486, 1e-08
      %v3527 = vadd.f32 %v3489, 1e-08
      %v3528 = vadd.f32 %v3492, 1e-08
      %v3529 = vadd.f32 %v3495, 1e-08
      %v3530 = vadd.f32 %v3498, 1e-08
      %v3531 = vadd.f32 %v3501, 1e-08
      %v3532 = vadd.f32 %v3504, 1e-08
      %v3533 = vadd.f32 %v3507, 1e-08
      %v3534 = vadd.f32 %v3510, 1e-08
      %v3535 = vadd.f32 %v3513, 1e-08
      %v3536 = vadd.f32 %v3516, 1e-08
      %v3537 = vadd.f32 %v3519, 1e-08
      %v3538 = vadd.f32 %v3522, 1e-08
      %v3539 = vrsqrt.pop %v3523
      %v3540 = vmul.f32 %v3523, %v3539
      %vm3541 = vcmp.eq.f32.partialorder %v3523, inf
      %v3542 = vsel %vm3541, %v3523, %v3540
      %vm3543 = vcmp.eq.f32.partialorder %v3523, 0.0
      %v3544 = vand.u32 %v3523, 2147483648
      %v3545 = vsel %vm3543, %v3544, %v3542
      %v3546 = vrsqrt.pop %v3524
      %v3547 = vmul.f32 %v3524, %v3546
      %vm3548 = vcmp.eq.f32.partialorder %v3524, inf
      %v3549 = vsel %vm3548, %v3524, %v3547
      %vm3550 = vcmp.eq.f32.partialorder %v3524, 0.0
      %v3551 = vand.u32 %v3524, 2147483648
      %v3552 = vsel %vm3550, %v3551, %v3549
      %v3553 = vrsqrt.pop %v3525
      %v3554 = vmul.f32 %v3525, %v3553
      %vm3555 = vcmp.eq.f32.partialorder %v3525, inf
      %v3556 = vsel %vm3555, %v3525, %v3554
      %vm3557 = vcmp.eq.f32.partialorder %v3525, 0.0
      %v3558 = vand.u32 %v3525, 2147483648
      %v3559 = vsel %vm3557, %v3558, %v3556
      %v3560 = vrsqrt.pop %v3526
      %v3561 = vmul.f32 %v3526, %v3560
      %vm3562 = vcmp.eq.f32.partialorder %v3526, inf
      %v3563 = vsel %vm3562, %v3526, %v3561
      %vm3564 = vcmp.eq.f32.partialorder %v3526, 0.0
      %v3565 = vand.u32 %v3526, 2147483648
      %v3566 = vsel %vm3564, %v3565, %v3563
      %v3567 = vrsqrt.pop %v3527
      %v3568 = vmul.f32 %v3527, %v3567
      %vm3569 = vcmp.eq.f32.partialorder %v3527, inf
      %v3570 = vsel %vm3569, %v3527, %v3568
      %vm3571 = vcmp.eq.f32.partialorder %v3527, 0.0
      %v3572 = vand.u32 %v3527, 2147483648
      %v3573 = vsel %vm3571, %v3572, %v3570
      %v3574 = vrsqrt.pop %v3528
      %v3575 = vmul.f32 %v3528, %v3574
      %vm3576 = vcmp.eq.f32.partialorder %v3528, inf
      %v3577 = vsel %vm3576, %v3528, %v3575
      %vm3578 = vcmp.eq.f32.partialorder %v3528, 0.0
      %v3579 = vand.u32 %v3528, 2147483648
      %v3580 = vsel %vm3578, %v3579, %v3577
      %v3581 = vrsqrt.pop %v3529
      %v3582 = vmul.f32 %v3529, %v3581
      %vm3583 = vcmp.eq.f32.partialorder %v3529, inf
      %v3584 = vsel %vm3583, %v3529, %v3582
      %vm3585 = vcmp.eq.f32.partialorder %v3529, 0.0
      %v3586 = vand.u32 %v3529, 2147483648
      %v3587 = vsel %vm3585, %v3586, %v3584
      %v3588 = vrsqrt.pop %v3530
      %v3589 = vmul.f32 %v3530, %v3588
      %vm3590 = vcmp.eq.f32.partialorder %v3530, inf
      %v3591 = vsel %vm3590, %v3530, %v3589
      %vm3592 = vcmp.eq.f32.partialorder %v3530, 0.0
      %v3593 = vand.u32 %v3530, 2147483648
      %v3594 = vsel %vm3592, %v3593, %v3591
      %v3595 = vrsqrt.pop %v3531
      %v3596 = vmul.f32 %v3531, %v3595
      %vm3597 = vcmp.eq.f32.partialorder %v3531, inf
      %v3598 = vsel %vm3597, %v3531, %v3596
      %vm3599 = vcmp.eq.f32.partialorder %v3531, 0.0
      %v3600 = vand.u32 %v3531, 2147483648
      %v3601 = vsel %vm3599, %v3600, %v3598
      %v3602 = vrsqrt.pop %v3532
      %v3603 = vmul.f32 %v3532, %v3602
      %vm3604 = vcmp.eq.f32.partialorder %v3532, inf
      %v3605 = vsel %vm3604, %v3532, %v3603
      %vm3606 = vcmp.eq.f32.partialorder %v3532, 0.0
      %v3607 = vand.u32 %v3532, 2147483648
      %v3608 = vsel %vm3606, %v3607, %v3605
      %v3609 = vrsqrt.pop %v3533
      %v3610 = vmul.f32 %v3533, %v3609
      %vm3611 = vcmp.eq.f32.partialorder %v3533, inf
      %v3612 = vsel %vm3611, %v3533, %v3610
      %vm3613 = vcmp.eq.f32.partialorder %v3533, 0.0
      %v3614 = vand.u32 %v3533, 2147483648
      %v3615 = vsel %vm3613, %v3614, %v3612
      %v3616 = vrsqrt.pop %v3534
      %v3617 = vmul.f32 %v3534, %v3616
      %vm3618 = vcmp.eq.f32.partialorder %v3534, inf
      %v3619 = vsel %vm3618, %v3534, %v3617
      %vm3620 = vcmp.eq.f32.partialorder %v3534, 0.0
      %v3621 = vand.u32 %v3534, 2147483648
      %v3622 = vsel %vm3620, %v3621, %v3619
      %v3623 = vrsqrt.pop %v3535
      %v3624 = vmul.f32 %v3535, %v3623
      %vm3625 = vcmp.eq.f32.partialorder %v3535, inf
      %v3626 = vsel %vm3625, %v3535, %v3624
      %vm3627 = vcmp.eq.f32.partialorder %v3535, 0.0
      %v3628 = vand.u32 %v3535, 2147483648
      %v3629 = vsel %vm3627, %v3628, %v3626
      %v3630 = vrsqrt.pop %v3536
      %v3631 = vmul.f32 %v3536, %v3630
      %vm3632 = vcmp.eq.f32.partialorder %v3536, inf
      %v3633 = vsel %vm3632, %v3536, %v3631
      %vm3634 = vcmp.eq.f32.partialorder %v3536, 0.0
      %v3635 = vand.u32 %v3536, 2147483648
      %v3636 = vsel %vm3634, %v3635, %v3633
      %v3637 = vrsqrt.pop %v3537
      %v3638 = vmul.f32 %v3537, %v3637
      %vm3639 = vcmp.eq.f32.partialorder %v3537, inf
      %v3640 = vsel %vm3639, %v3537, %v3638
      %vm3641 = vcmp.eq.f32.partialorder %v3537, 0.0
      %v3642 = vand.u32 %v3537, 2147483648
      %v3643 = vsel %vm3641, %v3642, %v3640
      %v3644 = vrsqrt.pop %v3538
      %v3645 = vmul.f32 %v3538, %v3644
      %vm3646 = vcmp.eq.f32.partialorder %v3538, inf
      %v3647 = vsel %vm3646, %v3538, %v3645
      %vm3648 = vcmp.eq.f32.partialorder %v3538, 0.0
      %v3649 = vand.u32 %v3538, 2147483648
      %v3650 = vsel %vm3648, %v3649, %v3647
      %v3651 = vpack.c.bf16 %v3380, %v3379
      %v3652 = vpack.c.bf16 %v3382, %v3381
      %v3653 = vpack.c.bf16 %v3384, %v3383
      %v3654 = vpack.c.bf16 %v3386, %v3385
      %v3655 = vpack.c.bf16 %v3388, %v3387
      %v3656 = vpack.c.bf16 %v3390, %v3389
      %v3657 = vpack.c.bf16 %v3392, %v3391
      %v3658 = vpack.c.bf16 %v3394, %v3393
      %3667 = vrot.lane.b32.xlu0 %v3651, 110
      %v3668 = vpop.permute.xlu0 %3667
      %3669 = vrot.lane.b32.xlu0 %v3652, 110
      %v3670 = vpop.permute.xlu0 %3669
      %3671 = vrot.lane.b32.xlu0 %v3653, 110
      %v3672 = vpop.permute.xlu0 %3671
      %3673 = vrot.lane.b32.xlu0 %v3654, 110
      %v3674 = vpop.permute.xlu0 %3673
      %3675 = vrot.lane.b32.xlu0 %v3655, 110
      %v3676 = vpop.permute.xlu0 %3675
      %3677 = vrot.lane.b32.xlu0 %v3656, 110
      %v3678 = vpop.permute.xlu0 %3677
      %3679 = vrot.lane.b32.xlu0 %v3657, 110
      %v3680 = vpop.permute.xlu0 %3679
      %3681 = vrot.lane.b32.xlu0 %v3658, 110
      %v3682 = vpop.permute.xlu0 %3681
      %v3684 = vsel %vm322, %v3668, 0
      %v3687 = vsel %vm322, %v3670, 0
      %v3690 = vsel %vm322, %v3672, 0
      %v3693 = vsel %vm322, %v3674, 0
      %v3696 = vsel %vm322, %v3676, 0
      %v3699 = vsel %vm322, %v3678, 0
      %v3702 = vsel %vm322, %v3680, 0
      %v3705 = vsel %vm322, %v3682, 0
      %3707 = vmatprep.subr.bf16.mxu0 0
      %3708 = vmatpush1.bf16.msra.mxu0 %v851
      %3709 = vmatprep.subr.bf16.mxu0 0
      %3710 = vmatpush1.bf16.msra.mxu0 0
      %3711 = vmatprep.subr.bf16.mxu0 0
      %3712 = vmatpush1.bf16.msra.mxu0 0
      %3713 = vmatprep.subr.bf16.mxu0 0
      %3714 = vmatpush1.bf16.msra.mxu0 0
      %3715 = vmatprep.subr.bf16.mxu0 0
      %3716 = vmatpush1.bf16.msra.mxu0 0
      %3717 = vmatprep.subr.bf16.mxu0 0
      %3718 = vmatpush1.bf16.msra.mxu0 0
      %3719 = vmatprep.subr.bf16.mxu0 0
      %3720 = vmatpush1.bf16.msra.mxu0 0
      %3721 = vmatprep.subr.bf16.mxu0 0
      %3722 = vmatpush1.bf16.msra.mxu0 0
      %3723 = vmatprep.subr.bf16.mxu0 0
      %3724 = vmatpush1.bf16.msra.mxu0 0
      %3725 = vmatprep.subr.bf16.mxu0 0
      %3726 = vmatpush1.bf16.msra.mxu0 0
      %3727 = vmatprep.subr.bf16.mxu0 0
      %3728 = vmatpush1.bf16.msra.mxu0 0
      %3729 = vmatprep.subr.bf16.mxu0 0
      %3730 = vmatpush1.bf16.msra.mxu0 0
      %3731 = vmatprep.subr.bf16.mxu0 0
      %3732 = vmatpush1.bf16.msra.mxu0 0
      %3733 = vmatprep.subr.bf16.mxu0 0
      %3734 = vmatpush1.bf16.msra.mxu0 0
      %3735 = vmatprep.subr.bf16.mxu0 0
      %3736 = vmatpush1.bf16.msra.mxu0 0
      %3737 = vmatprep.subr.bf16.mxu0 0
      %3738 = vmatpush1.bf16.msra.mxu0 0
      %3739 = vmatprep.mubr.bf16.mxu0 0
      %3740 = vmatmul.mubr.bf16.gmra.mrb[0].mxu0 %v3684
      %v3741 = vpop.f32.mrb[0].mxu0
      %v3742 = vadd.f32 0.0, %v3741
      %v3743 = vpop.f32.mrb[0].mxu0
      %v3744 = vpop.f32.mrb[0].mxu0
      %v3745 = vadd.f32 0.0, %v3744
      %v3746 = vpop.f32.mrb[0].mxu0
      %3747 = vmatprep.mubr.bf16.mxu0 0
      %3748 = vmatmul.mubr.bf16.gmra.mrb[0].mxu0 %v3687
      %v3749 = vpop.f32.mrb[0].mxu0
      %v3750 = vadd.f32 0.0, %v3749
      %v3751 = vpop.f32.mrb[0].mxu0
      %v3752 = vpop.f32.mrb[0].mxu0
      %v3753 = vadd.f32 0.0, %v3752
      %v3754 = vpop.f32.mrb[0].mxu0
      %3755 = vmatprep.mubr.bf16.mxu0 0
      %3756 = vmatmul.mubr.bf16.gmra.mrb[0].mxu0 %v3690
      %v3757 = vpop.f32.mrb[0].mxu0
      %v3758 = vadd.f32 0.0, %v3757
      %v3759 = vpop.f32.mrb[0].mxu0
      %v3760 = vpop.f32.mrb[0].mxu0
      %v3761 = vadd.f32 0.0, %v3760
      %v3762 = vpop.f32.mrb[0].mxu0
      %3763 = vmatprep.mubr.bf16.mxu0 0
      %3764 = vmatmul.mubr.bf16.gmra.mrb[0].mxu0 %v3693
      %v3765 = vpop.f32.mrb[0].mxu0
      %v3766 = vadd.f32 0.0, %v3765
      %v3767 = vpop.f32.mrb[0].mxu0
      %v3768 = vpop.f32.mrb[0].mxu0
      %v3769 = vadd.f32 0.0, %v3768
      %v3770 = vpop.f32.mrb[0].mxu0
      %3771 = vmatprep.mubr.bf16.mxu0 0
      %3772 = vmatmul.mubr.bf16.gmra.mrb[0].mxu0 %v3696
      %v3773 = vpop.f32.mrb[0].mxu0
      %v3774 = vadd.f32 0.0, %v3773
      %v3775 = vpop.f32.mrb[0].mxu0
      %v3776 = vpop.f32.mrb[0].mxu0
      %v3777 = vadd.f32 0.0, %v3776
      %v3778 = vpop.f32.mrb[0].mxu0
      %3779 = vmatprep.mubr.bf16.mxu0 0
      %3780 = vmatmul.mubr.bf16.gmra.mrb[0].mxu0 %v3699
      %v3781 = vpop.f32.mrb[0].mxu0
      %v3782 = vadd.f32 0.0, %v3781
      %v3783 = vpop.f32.mrb[0].mxu0
      %v3784 = vpop.f32.mrb[0].mxu0
      %v3785 = vadd.f32 0.0, %v3784
      %v3786 = vpop.f32.mrb[0].mxu0
      %3787 = vmatprep.mubr.bf16.mxu0 0
      %3788 = vmatmul.mubr.bf16.gmra.mrb[0].mxu0 %v3702
      %v3789 = vpop.f32.mrb[0].mxu0
      %v3790 = vadd.f32 0.0, %v3789
      %v3791 = vpop.f32.mrb[0].mxu0
      %v3792 = vpop.f32.mrb[0].mxu0
      %v3793 = vadd.f32 0.0, %v3792
      %v3794 = vpop.f32.mrb[0].mxu0
      %3795 = vmatprep.mubr.bf16.mxu0 0
      %3796 = vmatmul.mubr.bf16.gmra.mrb[0].mxu0 %v3705
      %v3797 = vpop.f32.mrb[0].mxu0
      %v3798 = vadd.f32 0.0, %v3797
      %v3799 = vpop.f32.mrb[0].mxu0
      %v3800 = vpop.f32.mrb[0].mxu0
      %v3801 = vadd.f32 0.0, %v3800
      %v3802 = vpop.f32.mrb[0].mxu0
      %3803 = vdwg.mxu0
      %v3804 = vadd.f32 %v389, %v3742
      %v3805 = vadd.f32 %v392, %v3745
      %v3806 = vadd.f32 %v397, %v3750
      %v3807 = vadd.f32 %v400, %v3753
      %v3808 = vadd.f32 %v405, %v3758
      %v3809 = vadd.f32 %v408, %v3761
      %v3810 = vadd.f32 %v413, %v3766
      %v3811 = vadd.f32 %v416, %v3769
      %v3812 = vadd.f32 %v421, %v3774
      %v3813 = vadd.f32 %v424, %v3777
      %v3814 = vadd.f32 %v429, %v3782
      %v3815 = vadd.f32 %v432, %v3785
      %v3816 = vadd.f32 %v437, %v3790
      %v3817 = vadd.f32 %v440, %v3793
      %v3818 = vadd.f32 %v445, %v3798
      %v3819 = vadd.f32 %v448, %v3801
      %v3820 = vmul.f32 %v3545, %v969
      %v3821 = vmul.f32 %v3552, %v969
      %v3822 = vmul.f32 %v3559, %v969
      %v3823 = vmul.f32 %v3566, %v969
      %v3824 = vmul.f32 %v3573, %v969
      %v3825 = vmul.f32 %v3580, %v969
      %v3826 = vmul.f32 %v3587, %v969
      %v3827 = vmul.f32 %v3594, %v969
      %v3828 = vmul.f32 %v3601, %v969
      %v3829 = vmul.f32 %v3608, %v969
      %v3830 = vmul.f32 %v3615, %v969
      %v3831 = vmul.f32 %v3622, %v969
      %v3832 = vmul.f32 %v3629, %v969
      %v3833 = vmul.f32 %v3636, %v969
      %v3834 = vmul.f32 %v3643, %v969
      %v3835 = vmul.f32 %v3650, %v969
      %v3836 = vadd.f32 %v3804, %v3820
      %v3837 = vadd.f32 %v3805, %v3821
      %v3838 = vadd.f32 %v3806, %v3822
      %v3839 = vadd.f32 %v3807, %v3823
      %v3840 = vadd.f32 %v3808, %v3824
      %v3841 = vadd.f32 %v3809, %v3825
      %v3842 = vadd.f32 %v3810, %v3826
      %v3843 = vadd.f32 %v3811, %v3827
      %v3844 = vadd.f32 %v3812, %v3828
      %v3845 = vadd.f32 %v3813, %v3829
      %v3846 = vadd.f32 %v3814, %v3830
      %v3847 = vadd.f32 %v3815, %v3831
      %v3848 = vadd.f32 %v3816, %v3832
      %v3849 = vadd.f32 %v3817, %v3833
      %v3850 = vadd.f32 %v3818, %v3834
      %v3851 = vadd.f32 %v3819, %v3835
      %v3852 = vadd.f32 %v3836, %v1005
      %v3853 = vadd.f32 %v3837, %v1005
      %v3854 = vadd.f32 %v3838, %v1005
      %v3855 = vadd.f32 %v3839, %v1005
      %v3856 = vadd.f32 %v3840, %v1005
      %v3857 = vadd.f32 %v3841, %v1005
      %v3858 = vadd.f32 %v3842, %v1005
      %v3859 = vadd.f32 %v3843, %v1005
      %v3860 = vadd.f32 %v3844, %v1005
      %v3861 = vadd.f32 %v3845, %v1005
      %v3862 = vadd.f32 %v3846, %v1005
      %v3863 = vadd.f32 %v3847, %v1005
      %v3864 = vadd.f32 %v3848, %v1005
      %v3865 = vadd.f32 %v3849, %v1005
      %v3866 = vadd.f32 %v3850, %v1005
      %v3867 = vadd.f32 %v3851, %v1005
      %v3868 = vmax.f32 %v3852, 0.0
      %v3869 = vmax.f32 %v3853, 0.0
      %v3870 = vmax.f32 %v3854, 0.0
      %v3871 = vmax.f32 %v3855, 0.0
      %v3872 = vmax.f32 %v3856, 0.0
      %v3873 = vmax.f32 %v3857, 0.0
      %v3874 = vmax.f32 %v3858, 0.0
      %v3875 = vmax.f32 %v3859, 0.0
      %v3876 = vmax.f32 %v3860, 0.0
      %v3877 = vmax.f32 %v3861, 0.0
      %v3878 = vmax.f32 %v3862, 0.0
      %v3879 = vmax.f32 %v3863, 0.0
      %v3880 = vmax.f32 %v3864, 0.0
      %v3881 = vmax.f32 %v3865, 0.0
      %v3882 = vmax.f32 %v3866, 0.0
      %v3883 = vmax.f32 %v3867, 0.0
      %3884 = vst.msk [vmem:[#allocation2 + $0x280] sm:$0xff] %vm1038, %v3868
      %3885 = vst.msk [vmem:[#allocation2 + $0x288] sm:$0xff] %vm1038, %v3869
      %3886 = vst.msk [vmem:[#allocation2 + $0x290] sm:$0xff] %vm1038, %v3870
      %3887 = vst.msk [vmem:[#allocation2 + $0x298] sm:$0xff] %vm1038, %v3871
      %3888 = vst.msk [vmem:[#allocation2 + $0x2a0] sm:$0xff] %vm1038, %v3872
      %3889 = vst.msk [vmem:[#allocation2 + $0x2a8] sm:$0xff] %vm1038, %v3873
      %3890 = vst.msk [vmem:[#allocation2 + $0x2b0] sm:$0xff] %vm1038, %v3874
      %3891 = vst.msk [vmem:[#allocation2 + $0x2b8] sm:$0xff] %vm1038, %v3875
      %3892 = vst.msk [vmem:[#allocation2 + $0x2c0] sm:$0xff] %vm1038, %v3876
      %3893 = vst.msk [vmem:[#allocation2 + $0x2c8] sm:$0xff] %vm1038, %v3877
      %3894 = vst.msk [vmem:[#allocation2 + $0x2d0] sm:$0xff] %vm1038, %v3878
      %3895 = vst.msk [vmem:[#allocation2 + $0x2d8] sm:$0xff] %vm1038, %v3879
      %3896 = vst.msk [vmem:[#allocation2 + $0x2e0] sm:$0xff] %vm1038, %v3880
      %3897 = vst.msk [vmem:[#allocation2 + $0x2e8] sm:$0xff] %vm1038, %v3881
      %3898 = vst.msk [vmem:[#allocation2 + $0x2f0] sm:$0xff] %vm1038, %v3882
      %3899 = vst.msk [vmem:[#allocation2 + $0x2f8] sm:$0xff] %vm1038, %v3883
      %3900 = vrot.lane.b32.xlu0 %v292, 21
      %v3901 = vpop.permute.xlu0 %3900
      %3902 = vrot.lane.b32.xlu0 %v293, 21
      %v3903 = vpop.permute.xlu0 %3902
      %3904 = vrot.lane.b32.xlu0 %v294, 21
      %v3905 = vpop.permute.xlu0 %3904
      %3906 = vrot.lane.b32.xlu0 %v295, 21
      %v3907 = vpop.permute.xlu0 %3906
      %3908 = vrot.lane.b32.xlu0 %v296, 21
      %v3909 = vpop.permute.xlu0 %3908
      %3910 = vrot.lane.b32.xlu0 %v297, 21
      %v3911 = vpop.permute.xlu0 %3910
      %3912 = vrot.lane.b32.xlu0 %v298, 21
      %v3913 = vpop.permute.xlu0 %3912
      %3914 = vrot.lane.b32.xlu0 %v299, 21
      %v3915 = vpop.permute.xlu0 %3914
      %3916 = vrot.lane.b32.xlu0 %v300, 21
      %v3917 = vpop.permute.xlu0 %3916
      %3918 = vrot.lane.b32.xlu0 %v301, 21
      %v3919 = vpop.permute.xlu0 %3918
      %3920 = vrot.lane.b32.xlu0 %v302, 21
      %v3921 = vpop.permute.xlu0 %3920
      %3922 = vrot.lane.b32.xlu0 %v303, 21
      %v3923 = vpop.permute.xlu0 %3922
      %3924 = vrot.lane.b32.xlu0 %v304, 21
      %v3925 = vpop.permute.xlu0 %3924
      %3926 = vrot.lane.b32.xlu0 %v305, 21
      %v3927 = vpop.permute.xlu0 %3926
      %3928 = vrot.lane.b32.xlu0 %v306, 21
      %v3929 = vpop.permute.xlu0 %3928
      %3930 = vrot.lane.b32.xlu0 %v307, 21
      %v3931 = vpop.permute.xlu0 %3930
      %v3948 = vsub.f32 %v292, %v3901
      %v3949 = vsub.f32 %v293, %v3903
      %v3950 = vsub.f32 %v294, %v3905
      %v3951 = vsub.f32 %v295, %v3907
      %v3952 = vsub.f32 %v296, %v3909
      %v3953 = vsub.f32 %v297, %v3911
      %v3954 = vsub.f32 %v298, %v3913
      %v3955 = vsub.f32 %v299, %v3915
      %v3956 = vsub.f32 %v300, %v3917
      %v3957 = vsub.f32 %v301, %v3919
      %v3958 = vsub.f32 %v302, %v3921
      %v3959 = vsub.f32 %v303, %v3923
      %v3960 = vsub.f32 %v304, %v3925
      %v3961 = vsub.f32 %v305, %v3927
      %v3962 = vsub.f32 %v306, %v3929
      %v3963 = vsub.f32 %v307, %v3931
      %v3964 = vmul.f32 %v3948, %v3948
      %v3965 = vmul.f32 %v3949, %v3949
      %v3966 = vmul.f32 %v3950, %v3950
      %v3967 = vmul.f32 %v3951, %v3951
      %v3968 = vmul.f32 %v3952, %v3952
      %v3969 = vmul.f32 %v3953, %v3953
      %v3970 = vmul.f32 %v3954, %v3954
      %v3971 = vmul.f32 %v3955, %v3955
      %v3972 = vmul.f32 %v3956, %v3956
      %v3973 = vmul.f32 %v3957, %v3957
      %v3974 = vmul.f32 %v3958, %v3958
      %v3975 = vmul.f32 %v3959, %v3959
      %v3976 = vmul.f32 %v3960, %v3960
      %v3977 = vmul.f32 %v3961, %v3961
      %v3978 = vmul.f32 %v3962, %v3962
      %v3979 = vmul.f32 %v3963, %v3963
      %3996 = vrot.lane.b32.xlu0 %v3964, 107
      %v3997 = vpop.permute.xlu0 %3996
      %3998 = vrot.lane.b32.xlu0 %v3965, 107
      %v3999 = vpop.permute.xlu0 %3998
      %4000 = vrot.lane.b32.xlu0 %v3966, 107
      %v4001 = vpop.permute.xlu0 %4000
      %4002 = vrot.lane.b32.xlu0 %v3967, 107
      %v4003 = vpop.permute.xlu0 %4002
      %4004 = vrot.lane.b32.xlu0 %v3968, 107
      %v4005 = vpop.permute.xlu0 %4004
      %4006 = vrot.lane.b32.xlu0 %v3969, 107
      %v4007 = vpop.permute.xlu0 %4006
      %4008 = vrot.lane.b32.xlu0 %v3970, 107
      %v4009 = vpop.permute.xlu0 %4008
      %4010 = vrot.lane.b32.xlu0 %v3971, 107
      %v4011 = vpop.permute.xlu0 %4010
      %4012 = vrot.lane.b32.xlu0 %v3972, 107
      %v4013 = vpop.permute.xlu0 %4012
      %4014 = vrot.lane.b32.xlu0 %v3973, 107
      %v4015 = vpop.permute.xlu0 %4014
      %4016 = vrot.lane.b32.xlu0 %v3974, 107
      %v4017 = vpop.permute.xlu0 %4016
      %4018 = vrot.lane.b32.xlu0 %v3975, 107
      %v4019 = vpop.permute.xlu0 %4018
      %4020 = vrot.lane.b32.xlu0 %v3976, 107
      %v4021 = vpop.permute.xlu0 %4020
      %4022 = vrot.lane.b32.xlu0 %v3977, 107
      %v4023 = vpop.permute.xlu0 %4022
      %4024 = vrot.lane.b32.xlu0 %v3978, 107
      %v4025 = vpop.permute.xlu0 %4024
      %4026 = vrot.lane.b32.xlu0 %v3979, 107
      %v4027 = vpop.permute.xlu0 %4026
      %v4044 = vsel %vm322, %v3997, 0.0
      %4045 = vadd.xlane.f32.xlu0 %v4044
      %v4046 = vpop.xlane.xlu0 %4045
      %v4047 = vsel %vm322, %v3999, 0.0
      %4048 = vadd.xlane.f32.xlu0 %v4047
      %v4049 = vpop.xlane.xlu0 %4048
      %v4050 = vsel %vm322, %v4001, 0.0
      %4051 = vadd.xlane.f32.xlu0 %v4050
      %v4052 = vpop.xlane.xlu0 %4051
      %v4053 = vsel %vm322, %v4003, 0.0
      %4054 = vadd.xlane.f32.xlu0 %v4053
      %v4055 = vpop.xlane.xlu0 %4054
      %v4056 = vsel %vm322, %v4005, 0.0
      %4057 = vadd.xlane.f32.xlu0 %v4056
      %v4058 = vpop.xlane.xlu0 %4057
      %v4059 = vsel %vm322, %v4007, 0.0
      %4060 = vadd.xlane.f32.xlu0 %v4059
      %v4061 = vpop.xlane.xlu0 %4060
      %v4062 = vsel %vm322, %v4009, 0.0
      %4063 = vadd.xlane.f32.xlu0 %v4062
      %v4064 = vpop.xlane.xlu0 %4063
      %v4065 = vsel %vm322, %v4011, 0.0
      %4066 = vadd.xlane.f32.xlu0 %v4065
      %v4067 = vpop.xlane.xlu0 %4066
      %v4068 = vsel %vm322, %v4013, 0.0
      %4069 = vadd.xlane.f32.xlu0 %v4068
      %v4070 = vpop.xlane.xlu0 %4069
      %v4071 = vsel %vm322, %v4015, 0.0
      %4072 = vadd.xlane.f32.xlu0 %v4071
      %v4073 = vpop.xlane.xlu0 %4072
      %v4074 = vsel %vm322, %v4017, 0.0
      %4075 = vadd.xlane.f32.xlu0 %v4074
      %v4076 = vpop.xlane.xlu0 %4075
      %v4077 = vsel %vm322, %v4019, 0.0
      %4078 = vadd.xlane.f32.xlu0 %v4077
      %v4079 = vpop.xlane.xlu0 %4078
      %v4080 = vsel %vm322, %v4021, 0.0
      %4081 = vadd.xlane.f32.xlu0 %v4080
      %v4082 = vpop.xlane.xlu0 %4081
      %v4083 = vsel %vm322, %v4023, 0.0
      %4084 = vadd.xlane.f32.xlu0 %v4083
      %v4085 = vpop.xlane.xlu0 %4084
      %v4086 = vsel %vm322, %v4025, 0.0
      %4087 = vadd.xlane.f32.xlu0 %v4086
      %v4088 = vpop.xlane.xlu0 %4087
      %v4089 = vsel %vm322, %v4027, 0.0
      %4090 = vadd.xlane.f32.xlu0 %v4089
      %v4091 = vpop.xlane.xlu0 %4090
      %v4092 = vadd.f32 %v4046, 1e-08
      %v4093 = vadd.f32 %v4049, 1e-08
      %v4094 = vadd.f32 %v4052, 1e-08
      %v4095 = vadd.f32 %v4055, 1e-08
      %v4096 = vadd.f32 %v4058, 1e-08
      %v4097 = vadd.f32 %v4061, 1e-08
      %v4098 = vadd.f32 %v4064, 1e-08
      %v4099 = vadd.f32 %v4067, 1e-08
      %v4100 = vadd.f32 %v4070, 1e-08
      %v4101 = vadd.f32 %v4073, 1e-08
      %v4102 = vadd.f32 %v4076, 1e-08
      %v4103 = vadd.f32 %v4079, 1e-08
      %v4104 = vadd.f32 %v4082, 1e-08
      %v4105 = vadd.f32 %v4085, 1e-08
      %v4106 = vadd.f32 %v4088, 1e-08
      %v4107 = vadd.f32 %v4091, 1e-08
      %v4108 = vrsqrt.pop %v4092
      %v4109 = vmul.f32 %v4092, %v4108
      %vm4110 = vcmp.eq.f32.partialorder %v4092, inf
      %v4111 = vsel %vm4110, %v4092, %v4109
      %vm4112 = vcmp.eq.f32.partialorder %v4092, 0.0
      %v4113 = vand.u32 %v4092, 2147483648
      %v4114 = vsel %vm4112, %v4113, %v4111
      %v4115 = vrsqrt.pop %v4093
      %v4116 = vmul.f32 %v4093, %v4115
      %vm4117 = vcmp.eq.f32.partialorder %v4093, inf
      %v4118 = vsel %vm4117, %v4093, %v4116
      %vm4119 = vcmp.eq.f32.partialorder %v4093, 0.0
      %v4120 = vand.u32 %v4093, 2147483648
      %v4121 = vsel %vm4119, %v4120, %v4118
      %v4122 = vrsqrt.pop %v4094
      %v4123 = vmul.f32 %v4094, %v4122
      %vm4124 = vcmp.eq.f32.partialorder %v4094, inf
      %v4125 = vsel %vm4124, %v4094, %v4123
      %vm4126 = vcmp.eq.f32.partialorder %v4094, 0.0
      %v4127 = vand.u32 %v4094, 2147483648
      %v4128 = vsel %vm4126, %v4127, %v4125
      %v4129 = vrsqrt.pop %v4095
      %v4130 = vmul.f32 %v4095, %v4129
      %vm4131 = vcmp.eq.f32.partialorder %v4095, inf
      %v4132 = vsel %vm4131, %v4095, %v4130
      %vm4133 = vcmp.eq.f32.partialorder %v4095, 0.0
      %v4134 = vand.u32 %v4095, 2147483648
      %v4135 = vsel %vm4133, %v4134, %v4132
      %v4136 = vrsqrt.pop %v4096
      %v4137 = vmul.f32 %v4096, %v4136
      %vm4138 = vcmp.eq.f32.partialorder %v4096, inf
      %v4139 = vsel %vm4138, %v4096, %v4137
      %vm4140 = vcmp.eq.f32.partialorder %v4096, 0.0
      %v4141 = vand.u32 %v4096, 2147483648
      %v4142 = vsel %vm4140, %v4141, %v4139
      %v4143 = vrsqrt.pop %v4097
      %v4144 = vmul.f32 %v4097, %v4143
      %vm4145 = vcmp.eq.f32.partialorder %v4097, inf
      %v4146 = vsel %vm4145, %v4097, %v4144
      %vm4147 = vcmp.eq.f32.partialorder %v4097, 0.0
      %v4148 = vand.u32 %v4097, 2147483648
      %v4149 = vsel %vm4147, %v4148, %v4146
      %v4150 = vrsqrt.pop %v4098
      %v4151 = vmul.f32 %v4098, %v4150
      %vm4152 = vcmp.eq.f32.partialorder %v4098, inf
      %v4153 = vsel %vm4152, %v4098, %v4151
      %vm4154 = vcmp.eq.f32.partialorder %v4098, 0.0
      %v4155 = vand.u32 %v4098, 2147483648
      %v4156 = vsel %vm4154, %v4155, %v4153
      %v4157 = vrsqrt.pop %v4099
      %v4158 = vmul.f32 %v4099, %v4157
      %vm4159 = vcmp.eq.f32.partialorder %v4099, inf
      %v4160 = vsel %vm4159, %v4099, %v4158
      %vm4161 = vcmp.eq.f32.partialorder %v4099, 0.0
      %v4162 = vand.u32 %v4099, 2147483648
      %v4163 = vsel %vm4161, %v4162, %v4160
      %v4164 = vrsqrt.pop %v4100
      %v4165 = vmul.f32 %v4100, %v4164
      %vm4166 = vcmp.eq.f32.partialorder %v4100, inf
      %v4167 = vsel %vm4166, %v4100, %v4165
      %vm4168 = vcmp.eq.f32.partialorder %v4100, 0.0
      %v4169 = vand.u32 %v4100, 2147483648
      %v4170 = vsel %vm4168, %v4169, %v4167
      %v4171 = vrsqrt.pop %v4101
      %v4172 = vmul.f32 %v4101, %v4171
      %vm4173 = vcmp.eq.f32.partialorder %v4101, inf
      %v4174 = vsel %vm4173, %v4101, %v4172
      %vm4175 = vcmp.eq.f32.partialorder %v4101, 0.0
      %v4176 = vand.u32 %v4101, 2147483648
      %v4177 = vsel %vm4175, %v4176, %v4174
      %v4178 = vrsqrt.pop %v4102
      %v4179 = vmul.f32 %v4102, %v4178
      %vm4180 = vcmp.eq.f32.partialorder %v4102, inf
      %v4181 = vsel %vm4180, %v4102, %v4179
      %vm4182 = vcmp.eq.f32.partialorder %v4102, 0.0
      %v4183 = vand.u32 %v4102, 2147483648
      %v4184 = vsel %vm4182, %v4183, %v4181
      %v4185 = vrsqrt.pop %v4103
      %v4186 = vmul.f32 %v4103, %v4185
      %vm4187 = vcmp.eq.f32.partialorder %v4103, inf
      %v4188 = vsel %vm4187, %v4103, %v4186
      %vm4189 = vcmp.eq.f32.partialorder %v4103, 0.0
      %v4190 = vand.u32 %v4103, 2147483648
      %v4191 = vsel %vm4189, %v4190, %v4188
      %v4192 = vrsqrt.pop %v4104
      %v4193 = vmul.f32 %v4104, %v4192
      %vm4194 = vcmp.eq.f32.partialorder %v4104, inf
      %v4195 = vsel %vm4194, %v4104, %v4193
      %vm4196 = vcmp.eq.f32.partialorder %v4104, 0.0
      %v4197 = vand.u32 %v4104, 2147483648
      %v4198 = vsel %vm4196, %v4197, %v4195
      %v4199 = vrsqrt.pop %v4105
      %v4200 = vmul.f32 %v4105, %v4199
      %vm4201 = vcmp.eq.f32.partialorder %v4105, inf
      %v4202 = vsel %vm4201, %v4105, %v4200
      %vm4203 = vcmp.eq.f32.partialorder %v4105, 0.0
      %v4204 = vand.u32 %v4105, 2147483648
      %v4205 = vsel %vm4203, %v4204, %v4202
      %v4206 = vrsqrt.pop %v4106
      %v4207 = vmul.f32 %v4106, %v4206
      %vm4208 = vcmp.eq.f32.partialorder %v4106, inf
      %v4209 = vsel %vm4208, %v4106, %v4207
      %vm4210 = vcmp.eq.f32.partialorder %v4106, 0.0
      %v4211 = vand.u32 %v4106, 2147483648
      %v4212 = vsel %vm4210, %v4211, %v4209
      %v4213 = vrsqrt.pop %v4107
      %v4214 = vmul.f32 %v4107, %v4213
      %vm4215 = vcmp.eq.f32.partialorder %v4107, inf
      %v4216 = vsel %vm4215, %v4107, %v4214
      %vm4217 = vcmp.eq.f32.partialorder %v4107, 0.0
      %v4218 = vand.u32 %v4107, 2147483648
      %v4219 = vsel %vm4217, %v4218, %v4216
      %v4220 = vpack.c.bf16 %v3949, %v3948
      %v4221 = vpack.c.bf16 %v3951, %v3950
      %v4222 = vpack.c.bf16 %v3953, %v3952
      %v4223 = vpack.c.bf16 %v3955, %v3954
      %v4224 = vpack.c.bf16 %v3957, %v3956
      %v4225 = vpack.c.bf16 %v3959, %v3958
      %v4226 = vpack.c.bf16 %v3961, %v3960
      %v4227 = vpack.c.bf16 %v3963, %v3962
      %4236 = vrot.lane.b32.xlu0 %v4220, 107
      %v4237 = vpop.permute.xlu0 %4236
      %4238 = vrot.lane.b32.xlu0 %v4221, 107
      %v4239 = vpop.permute.xlu0 %4238
      %4240 = vrot.lane.b32.xlu0 %v4222, 107
      %v4241 = vpop.permute.xlu0 %4240
      %4242 = vrot.lane.b32.xlu0 %v4223, 107
      %v4243 = vpop.permute.xlu0 %4242
      %4244 = vrot.lane.b32.xlu0 %v4224, 107
      %v4245 = vpop.permute.xlu0 %4244
      %4246 = vrot.lane.b32.xlu0 %v4225, 107
      %v4247 = vpop.permute.xlu0 %4246
      %4248 = vrot.lane.b32.xlu0 %v4226, 107
      %v4249 = vpop.permute.xlu0 %4248
      %4250 = vrot.lane.b32.xlu0 %v4227, 107
      %v4251 = vpop.permute.xlu0 %4250
      %v4253 = vsel %vm322, %v4237, 0
      %v4256 = vsel %vm322, %v4239, 0
      %v4259 = vsel %vm322, %v4241, 0
      %v4262 = vsel %vm322, %v4243, 0
      %v4265 = vsel %vm322, %v4245, 0
      %v4268 = vsel %vm322, %v4247, 0
      %v4271 = vsel %vm322, %v4249, 0
      %v4274 = vsel %vm322, %v4251, 0
      %4276 = vmatprep.subr.bf16.mxu0 0
      %4277 = vmatpush1.bf16.msra.mxu0 %v851
      %4278 = vmatprep.subr.bf16.mxu0 0
      %4279 = vmatpush1.bf16.msra.mxu0 0
      %4280 = vmatprep.subr.bf16.mxu0 0
      %4281 = vmatpush1.bf16.msra.mxu0 0
      %4282 = vmatprep.subr.bf16.mxu0 0
      %4283 = vmatpush1.bf16.msra.mxu0 0
      %4284 = vmatprep.subr.bf16.mxu0 0
      %4285 = vmatpush1.bf16.msra.mxu0 0
      %4286 = vmatprep.subr.bf16.mxu0 0
      %4287 = vmatpush1.bf16.msra.mxu0 0
      %4288 = vmatprep.subr.bf16.mxu0 0
      %4289 = vmatpush1.bf16.msra.mxu0 0
      %4290 = vmatprep.subr.bf16.mxu0 0
      %4291 = vmatpush1.bf16.msra.mxu0 0
      %4292 = vmatprep.subr.bf16.mxu0 0
      %4293 = vmatpush1.bf16.msra.mxu0 0
      %4294 = vmatprep.subr.bf16.mxu0 0
      %4295 = vmatpush1.bf16.msra.mxu0 0
      %4296 = vmatprep.subr.bf16.mxu0 0
      %4297 = vmatpush1.bf16.msra.mxu0 0
      %4298 = vmatprep.subr.bf16.mxu0 0
      %4299 = vmatpush1.bf16.msra.mxu0 0
      %4300 = vmatprep.subr.bf16.mxu0 0
      %4301 = vmatpush1.bf16.msra.mxu0 0
      %4302 = vmatprep.subr.bf16.mxu0 0
      %4303 = vmatpush1.bf16.msra.mxu0 0
      %4304 = vmatprep.subr.bf16.mxu0 0
      %4305 = vmatpush1.bf16.msra.mxu0 0
      %4306 = vmatprep.subr.bf16.mxu0 0
      %4307 = vmatpush1.bf16.msra.mxu0 0
      %4308 = vmatprep.mubr.bf16.mxu0 0
      %4309 = vmatmul.mubr.bf16.gmra.mrb[0].mxu0 %v4253
      %v4310 = vpop.f32.mrb[0].mxu0
      %v4311 = vadd.f32 0.0, %v4310
      %v4312 = vpop.f32.mrb[0].mxu0
      %v4313 = vpop.f32.mrb[0].mxu0
      %v4314 = vadd.f32 0.0, %v4313
      %v4315 = vpop.f32.mrb[0].mxu0
      %4316 = vmatprep.mubr.bf16.mxu0 0
      %4317 = vmatmul.mubr.bf16.gmra.mrb[0].mxu0 %v4256
      %v4318 = vpop.f32.mrb[0].mxu0
      %v4319 = vadd.f32 0.0, %v4318
      %v4320 = vpop.f32.mrb[0].mxu0
      %v4321 = vpop.f32.mrb[0].mxu0
      %v4322 = vadd.f32 0.0, %v4321
      %v4323 = vpop.f32.mrb[0].mxu0
      %4324 = vmatprep.mubr.bf16.mxu0 0
      %4325 = vmatmul.mubr.bf16.gmra.mrb[0].mxu0 %v4259
      %v4326 = vpop.f32.mrb[0].mxu0
      %v4327 = vadd.f32 0.0, %v4326
      %v4328 = vpop.f32.mrb[0].mxu0
      %v4329 = vpop.f32.mrb[0].mxu0
      %v4330 = vadd.f32 0.0, %v4329
      %v4331 = vpop.f32.mrb[0].mxu0
      %4332 = vmatprep.mubr.bf16.mxu0 0
      %4333 = vmatmul.mubr.bf16.gmra.mrb[0].mxu0 %v4262
      %v4334 = vpop.f32.mrb[0].mxu0
      %v4335 = vadd.f32 0.0, %v4334
      %v4336 = vpop.f32.mrb[0].mxu0
      %v4337 = vpop.f32.mrb[0].mxu0
      %v4338 = vadd.f32 0.0, %v4337
      %v4339 = vpop.f32.mrb[0].mxu0
      %4340 = vmatprep.mubr.bf16.mxu0 0
      %4341 = vmatmul.mubr.bf16.gmra.mrb[0].mxu0 %v4265
      %v4342 = vpop.f32.mrb[0].mxu0
      %v4343 = vadd.f32 0.0, %v4342
      %v4344 = vpop.f32.mrb[0].mxu0
      %v4345 = vpop.f32.mrb[0].mxu0
      %v4346 = vadd.f32 0.0, %v4345
      %v4347 = vpop.f32.mrb[0].mxu0
      %4348 = vmatprep.mubr.bf16.mxu0 0
      %4349 = vmatmul.mubr.bf16.gmra.mrb[0].mxu0 %v4268
      %v4350 = vpop.f32.mrb[0].mxu0
      %v4351 = vadd.f32 0.0, %v4350
      %v4352 = vpop.f32.mrb[0].mxu0
      %v4353 = vpop.f32.mrb[0].mxu0
      %v4354 = vadd.f32 0.0, %v4353
      %v4355 = vpop.f32.mrb[0].mxu0
      %4356 = vmatprep.mubr.bf16.mxu0 0
      %4357 = vmatmul.mubr.bf16.gmra.mrb[0].mxu0 %v4271
      %v4358 = vpop.f32.mrb[0].mxu0
      %v4359 = vadd.f32 0.0, %v4358
      %v4360 = vpop.f32.mrb[0].mxu0
      %v4361 = vpop.f32.mrb[0].mxu0
      %v4362 = vadd.f32 0.0, %v4361
      %v4363 = vpop.f32.mrb[0].mxu0
      %4364 = vmatprep.mubr.bf16.mxu0 0
      %4365 = vmatmul.mubr.bf16.gmra.mrb[0].mxu0 %v4274
      %v4366 = vpop.f32.mrb[0].mxu0
      %v4367 = vadd.f32 0.0, %v4366
      %v4368 = vpop.f32.mrb[0].mxu0
      %v4369 = vpop.f32.mrb[0].mxu0
      %v4370 = vadd.f32 0.0, %v4369
      %v4371 = vpop.f32.mrb[0].mxu0
      %4372 = vdwg.mxu0
      %v4373 = vadd.f32 %v389, %v4311
      %v4374 = vadd.f32 %v392, %v4314
      %v4375 = vadd.f32 %v397, %v4319
      %v4376 = vadd.f32 %v400, %v4322
      %v4377 = vadd.f32 %v405, %v4327
      %v4378 = vadd.f32 %v408, %v4330
      %v4379 = vadd.f32 %v413, %v4335
      %v4380 = vadd.f32 %v416, %v4338
      %v4381 = vadd.f32 %v421, %v4343
      %v4382 = vadd.f32 %v424, %v4346
      %v4383 = vadd.f32 %v429, %v4351
      %v4384 = vadd.f32 %v432, %v4354
      %v4385 = vadd.f32 %v437, %v4359
      %v4386 = vadd.f32 %v440, %v4362
      %v4387 = vadd.f32 %v445, %v4367
      %v4388 = vadd.f32 %v448, %v4370
      %v4389 = vmul.f32 %v4114, %v969
      %v4390 = vmul.f32 %v4121, %v969
      %v4391 = vmul.f32 %v4128, %v969
      %v4392 = vmul.f32 %v4135, %v969
      %v4393 = vmul.f32 %v4142, %v969
      %v4394 = vmul.f32 %v4149, %v969
      %v4395 = vmul.f32 %v4156, %v969
      %v4396 = vmul.f32 %v4163, %v969
      %v4397 = vmul.f32 %v4170, %v969
      %v4398 = vmul.f32 %v4177, %v969
      %v4399 = vmul.f32 %v4184, %v969
      %v4400 = vmul.f32 %v4191, %v969
      %v4401 = vmul.f32 %v4198, %v969
      %v4402 = vmul.f32 %v4205, %v969
      %v4403 = vmul.f32 %v4212, %v969
      %v4404 = vmul.f32 %v4219, %v969
      %v4405 = vadd.f32 %v4373, %v4389
      %v4406 = vadd.f32 %v4374, %v4390
      %v4407 = vadd.f32 %v4375, %v4391
      %v4408 = vadd.f32 %v4376, %v4392
      %v4409 = vadd.f32 %v4377, %v4393
      %v4410 = vadd.f32 %v4378, %v4394
      %v4411 = vadd.f32 %v4379, %v4395
      %v4412 = vadd.f32 %v4380, %v4396
      %v4413 = vadd.f32 %v4381, %v4397
      %v4414 = vadd.f32 %v4382, %v4398
      %v4415 = vadd.f32 %v4383, %v4399
      %v4416 = vadd.f32 %v4384, %v4400
      %v4417 = vadd.f32 %v4385, %v4401
      %v4418 = vadd.f32 %v4386, %v4402
      %v4419 = vadd.f32 %v4387, %v4403
      %v4420 = vadd.f32 %v4388, %v4404
      %v4421 = vadd.f32 %v4405, %v1005
      %v4422 = vadd.f32 %v4406, %v1005
      %v4423 = vadd.f32 %v4407, %v1005
      %v4424 = vadd.f32 %v4408, %v1005
      %v4425 = vadd.f32 %v4409, %v1005
      %v4426 = vadd.f32 %v4410, %v1005
      %v4427 = vadd.f32 %v4411, %v1005
      %v4428 = vadd.f32 %v4412, %v1005
      %v4429 = vadd.f32 %v4413, %v1005
      %v4430 = vadd.f32 %v4414, %v1005
      %v4431 = vadd.f32 %v4415, %v1005
      %v4432 = vadd.f32 %v4416, %v1005
      %v4433 = vadd.f32 %v4417, %v1005
      %v4434 = vadd.f32 %v4418, %v1005
      %v4435 = vadd.f32 %v4419, %v1005
      %v4436 = vadd.f32 %v4420, %v1005
      %v4437 = vmax.f32 %v4421, 0.0
      %v4438 = vmax.f32 %v4422, 0.0
      %v4439 = vmax.f32 %v4423, 0.0
      %v4440 = vmax.f32 %v4424, 0.0
      %v4441 = vmax.f32 %v4425, 0.0
      %v4442 = vmax.f32 %v4426, 0.0
      %v4443 = vmax.f32 %v4427, 0.0
      %v4444 = vmax.f32 %v4428, 0.0
      %v4445 = vmax.f32 %v4429, 0.0
      %v4446 = vmax.f32 %v4430, 0.0
      %v4447 = vmax.f32 %v4431, 0.0
      %v4448 = vmax.f32 %v4432, 0.0
      %v4449 = vmax.f32 %v4433, 0.0
      %v4450 = vmax.f32 %v4434, 0.0
      %v4451 = vmax.f32 %v4435, 0.0
      %v4452 = vmax.f32 %v4436, 0.0
      %4453 = vst.msk [vmem:[#allocation2 + $0x300] sm:$0xff] %vm1038, %v4437
      %4454 = vst.msk [vmem:[#allocation2 + $0x308] sm:$0xff] %vm1038, %v4438
      %4455 = vst.msk [vmem:[#allocation2 + $0x310] sm:$0xff] %vm1038, %v4439
      %4456 = vst.msk [vmem:[#allocation2 + $0x318] sm:$0xff] %vm1038, %v4440
      %4457 = vst.msk [vmem:[#allocation2 + $0x320] sm:$0xff] %vm1038, %v4441
      %4458 = vst.msk [vmem:[#allocation2 + $0x328] sm:$0xff] %vm1038, %v4442
      %4459 = vst.msk [vmem:[#allocation2 + $0x330] sm:$0xff] %vm1038, %v4443
      %4460 = vst.msk [vmem:[#allocation2 + $0x338] sm:$0xff] %vm1038, %v4444
      %4461 = vst.msk [vmem:[#allocation2 + $0x340] sm:$0xff] %vm1038, %v4445
      %4462 = vst.msk [vmem:[#allocation2 + $0x348] sm:$0xff] %vm1038, %v4446
      %4463 = vst.msk [vmem:[#allocation2 + $0x350] sm:$0xff] %vm1038, %v4447
      %4464 = vst.msk [vmem:[#allocation2 + $0x358] sm:$0xff] %vm1038, %v4448
      %4465 = vst.msk [vmem:[#allocation2 + $0x360] sm:$0xff] %vm1038, %v4449
      %4466 = vst.msk [vmem:[#allocation2 + $0x368] sm:$0xff] %vm1038, %v4450
      %4467 = vst.msk [vmem:[#allocation2 + $0x370] sm:$0xff] %vm1038, %v4451
      %4468 = vst.msk [vmem:[#allocation2 + $0x378] sm:$0xff] %vm1038, %v4452
      %4469 = vrot.lane.b32.xlu0 %v292, 24
      %v4470 = vpop.permute.xlu0 %4469
      %4471 = vrot.lane.b32.xlu0 %v293, 24
      %v4472 = vpop.permute.xlu0 %4471
      %4473 = vrot.lane.b32.xlu0 %v294, 24
      %v4474 = vpop.permute.xlu0 %4473
      %4475 = vrot.lane.b32.xlu0 %v295, 24
      %v4476 = vpop.permute.xlu0 %4475
      %4477 = vrot.lane.b32.xlu0 %v296, 24
      %v4478 = vpop.permute.xlu0 %4477
      %4479 = vrot.lane.b32.xlu0 %v297, 24
      %v4480 = vpop.permute.xlu0 %4479
      %4481 = vrot.lane.b32.xlu0 %v298, 24
      %v4482 = vpop.permute.xlu0 %4481
      %4483 = vrot.lane.b32.xlu0 %v299, 24
      %v4484 = vpop.permute.xlu0 %4483
      %4485 = vrot.lane.b32.xlu0 %v300, 24
      %v4486 = vpop.permute.xlu0 %4485
      %4487 = vrot.lane.b32.xlu0 %v301, 24
      %v4488 = vpop.permute.xlu0 %4487
      %4489 = vrot.lane.b32.xlu0 %v302, 24
      %v4490 = vpop.permute.xlu0 %4489
      %4491 = vrot.lane.b32.xlu0 %v303, 24
      %v4492 = vpop.permute.xlu0 %4491
      %4493 = vrot.lane.b32.xlu0 %v304, 24
      %v4494 = vpop.permute.xlu0 %4493
      %4495 = vrot.lane.b32.xlu0 %v305, 24
      %v4496 = vpop.permute.xlu0 %4495
      %4497 = vrot.lane.b32.xlu0 %v306, 24
      %v4498 = vpop.permute.xlu0 %4497
      %4499 = vrot.lane.b32.xlu0 %v307, 24
      %v4500 = vpop.permute.xlu0 %4499
      %v4517 = vsub.f32 %v292, %v4470
      %v4518 = vsub.f32 %v293, %v4472
      %v4519 = vsub.f32 %v294, %v4474
      %v4520 = vsub.f32 %v295, %v4476
      %v4521 = vsub.f32 %v296, %v4478
      %v4522 = vsub.f32 %v297, %v4480
      %v4523 = vsub.f32 %v298, %v4482
      %v4524 = vsub.f32 %v299, %v4484
      %v4525 = vsub.f32 %v300, %v4486
      %v4526 = vsub.f32 %v301, %v4488
      %v4527 = vsub.f32 %v302, %v4490
      %v4528 = vsub.f32 %v303, %v4492
      %v4529 = vsub.f32 %v304, %v4494
      %v4530 = vsub.f32 %v305, %v4496
      %v4531 = vsub.f32 %v306, %v4498
      %v4532 = vsub.f32 %v307, %v4500
      %v4533 = vmul.f32 %v4517, %v4517
      %v4534 = vmul.f32 %v4518, %v4518
      %v4535 = vmul.f32 %v4519, %v4519
      %v4536 = vmul.f32 %v4520, %v4520
      %v4537 = vmul.f32 %v4521, %v4521
      %v4538 = vmul.f32 %v4522, %v4522
      %v4539 = vmul.f32 %v4523, %v4523
      %v4540 = vmul.f32 %v4524, %v4524
      %v4541 = vmul.f32 %v4525, %v4525
      %v4542 = vmul.f32 %v4526, %v4526
      %v4543 = vmul.f32 %v4527, %v4527
      %v4544 = vmul.f32 %v4528, %v4528
      %v4545 = vmul.f32 %v4529, %v4529
      %v4546 = vmul.f32 %v4530, %v4530
      %v4547 = vmul.f32 %v4531, %v4531
      %v4548 = vmul.f32 %v4532, %v4532
      %4565 = vrot.lane.b32.xlu0 %v4533, 104
      %v4566 = vpop.permute.xlu0 %4565
      %4567 = vrot.lane.b32.xlu0 %v4534, 104
      %v4568 = vpop.permute.xlu0 %4567
      %4569 = vrot.lane.b32.xlu0 %v4535, 104
      %v4570 = vpop.permute.xlu0 %4569
      %4571 = vrot.lane.b32.xlu0 %v4536, 104
      %v4572 = vpop.permute.xlu0 %4571
      %4573 = vrot.lane.b32.xlu0 %v4537, 104
      %v4574 = vpop.permute.xlu0 %4573
      %4575 = vrot.lane.b32.xlu0 %v4538, 104
      %v4576 = vpop.permute.xlu0 %4575
      %4577 = vrot.lane.b32.xlu0 %v4539, 104
      %v4578 = vpop.permute.xlu0 %4577
      %4579 = vrot.lane.b32.xlu0 %v4540, 104
      %v4580 = vpop.permute.xlu0 %4579
      %4581 = vrot.lane.b32.xlu0 %v4541, 104
      %v4582 = vpop.permute.xlu0 %4581
      %4583 = vrot.lane.b32.xlu0 %v4542, 104
      %v4584 = vpop.permute.xlu0 %4583
      %4585 = vrot.lane.b32.xlu0 %v4543, 104
      %v4586 = vpop.permute.xlu0 %4585
      %4587 = vrot.lane.b32.xlu0 %v4544, 104
      %v4588 = vpop.permute.xlu0 %4587
      %4589 = vrot.lane.b32.xlu0 %v4545, 104
      %v4590 = vpop.permute.xlu0 %4589
      %4591 = vrot.lane.b32.xlu0 %v4546, 104
      %v4592 = vpop.permute.xlu0 %4591
      %4593 = vrot.lane.b32.xlu0 %v4547, 104
      %v4594 = vpop.permute.xlu0 %4593
      %4595 = vrot.lane.b32.xlu0 %v4548, 104
      %v4596 = vpop.permute.xlu0 %4595
      %v4613 = vsel %vm322, %v4566, 0.0
      %4614 = vadd.xlane.f32.xlu0 %v4613
      %v4615 = vpop.xlane.xlu0 %4614
      %v4616 = vsel %vm322, %v4568, 0.0
      %4617 = vadd.xlane.f32.xlu0 %v4616
      %v4618 = vpop.xlane.xlu0 %4617
      %v4619 = vsel %vm322, %v4570, 0.0
      %4620 = vadd.xlane.f32.xlu0 %v4619
      %v4621 = vpop.xlane.xlu0 %4620
      %v4622 = vsel %vm322, %v4572, 0.0
      %4623 = vadd.xlane.f32.xlu0 %v4622
      %v4624 = vpop.xlane.xlu0 %4623
      %v4625 = vsel %vm322, %v4574, 0.0
      %4626 = vadd.xlane.f32.xlu0 %v4625
      %v4627 = vpop.xlane.xlu0 %4626
      %v4628 = vsel %vm322, %v4576, 0.0
      %4629 = vadd.xlane.f32.xlu0 %v4628
      %v4630 = vpop.xlane.xlu0 %4629
      %v4631 = vsel %vm322, %v4578, 0.0
      %4632 = vadd.xlane.f32.xlu0 %v4631
      %v4633 = vpop.xlane.xlu0 %4632
      %v4634 = vsel %vm322, %v4580, 0.0
      %4635 = vadd.xlane.f32.xlu0 %v4634
      %v4636 = vpop.xlane.xlu0 %4635
      %v4637 = vsel %vm322, %v4582, 0.0
      %4638 = vadd.xlane.f32.xlu0 %v4637
      %v4639 = vpop.xlane.xlu0 %4638
      %v4640 = vsel %vm322, %v4584, 0.0
      %4641 = vadd.xlane.f32.xlu0 %v4640
      %v4642 = vpop.xlane.xlu0 %4641
      %v4643 = vsel %vm322, %v4586, 0.0
      %4644 = vadd.xlane.f32.xlu0 %v4643
      %v4645 = vpop.xlane.xlu0 %4644
      %v4646 = vsel %vm322, %v4588, 0.0
      %4647 = vadd.xlane.f32.xlu0 %v4646
      %v4648 = vpop.xlane.xlu0 %4647
      %v4649 = vsel %vm322, %v4590, 0.0
      %4650 = vadd.xlane.f32.xlu0 %v4649
      %v4651 = vpop.xlane.xlu0 %4650
      %v4652 = vsel %vm322, %v4592, 0.0
      %4653 = vadd.xlane.f32.xlu0 %v4652
      %v4654 = vpop.xlane.xlu0 %4653
      %v4655 = vsel %vm322, %v4594, 0.0
      %4656 = vadd.xlane.f32.xlu0 %v4655
      %v4657 = vpop.xlane.xlu0 %4656
      %v4658 = vsel %vm322, %v4596, 0.0
      %4659 = vadd.xlane.f32.xlu0 %v4658
      %v4660 = vpop.xlane.xlu0 %4659
      %v4661 = vadd.f32 %v4615, 1e-08
      %v4662 = vadd.f32 %v4618, 1e-08
      %v4663 = vadd.f32 %v4621, 1e-08
      %v4664 = vadd.f32 %v4624, 1e-08
      %v4665 = vadd.f32 %v4627, 1e-08
      %v4666 = vadd.f32 %v4630, 1e-08
      %v4667 = vadd.f32 %v4633, 1e-08
      %v4668 = vadd.f32 %v4636, 1e-08
      %v4669 = vadd.f32 %v4639, 1e-08
      %v4670 = vadd.f32 %v4642, 1e-08
      %v4671 = vadd.f32 %v4645, 1e-08
      %v4672 = vadd.f32 %v4648, 1e-08
      %v4673 = vadd.f32 %v4651, 1e-08
      %v4674 = vadd.f32 %v4654, 1e-08
      %v4675 = vadd.f32 %v4657, 1e-08
      %v4676 = vadd.f32 %v4660, 1e-08
      %v4677 = vrsqrt.pop %v4661
      %v4678 = vmul.f32 %v4661, %v4677
      %vm4679 = vcmp.eq.f32.partialorder %v4661, inf
      %v4680 = vsel %vm4679, %v4661, %v4678
      %vm4681 = vcmp.eq.f32.partialorder %v4661, 0.0
      %v4682 = vand.u32 %v4661, 2147483648
      %v4683 = vsel %vm4681, %v4682, %v4680
      %v4684 = vrsqrt.pop %v4662
      %v4685 = vmul.f32 %v4662, %v4684
      %vm4686 = vcmp.eq.f32.partialorder %v4662, inf
      %v4687 = vsel %vm4686, %v4662, %v4685
      %vm4688 = vcmp.eq.f32.partialorder %v4662, 0.0
      %v4689 = vand.u32 %v4662, 2147483648
      %v4690 = vsel %vm4688, %v4689, %v4687
      %v4691 = vrsqrt.pop %v4663
      %v4692 = vmul.f32 %v4663, %v4691
      %vm4693 = vcmp.eq.f32.partialorder %v4663, inf
      %v4694 = vsel %vm4693, %v4663, %v4692
      %vm4695 = vcmp.eq.f32.partialorder %v4663, 0.0
      %v4696 = vand.u32 %v4663, 2147483648
      %v4697 = vsel %vm4695, %v4696, %v4694
      %v4698 = vrsqrt.pop %v4664
      %v4699 = vmul.f32 %v4664, %v4698
      %vm4700 = vcmp.eq.f32.partialorder %v4664, inf
      %v4701 = vsel %vm4700, %v4664, %v4699
      %vm4702 = vcmp.eq.f32.partialorder %v4664, 0.0
      %v4703 = vand.u32 %v4664, 2147483648
      %v4704 = vsel %vm4702, %v4703, %v4701
      %v4705 = vrsqrt.pop %v4665
      %v4706 = vmul.f32 %v4665, %v4705
      %vm4707 = vcmp.eq.f32.partialorder %v4665, inf
      %v4708 = vsel %vm4707, %v4665, %v4706
      %vm4709 = vcmp.eq.f32.partialorder %v4665, 0.0
      %v4710 = vand.u32 %v4665, 2147483648
      %v4711 = vsel %vm4709, %v4710, %v4708
      %v4712 = vrsqrt.pop %v4666
      %v4713 = vmul.f32 %v4666, %v4712
      %vm4714 = vcmp.eq.f32.partialorder %v4666, inf
      %v4715 = vsel %vm4714, %v4666, %v4713
      %vm4716 = vcmp.eq.f32.partialorder %v4666, 0.0
      %v4717 = vand.u32 %v4666, 2147483648
      %v4718 = vsel %vm4716, %v4717, %v4715
      %v4719 = vrsqrt.pop %v4667
      %v4720 = vmul.f32 %v4667, %v4719
      %vm4721 = vcmp.eq.f32.partialorder %v4667, inf
      %v4722 = vsel %vm4721, %v4667, %v4720
      %vm4723 = vcmp.eq.f32.partialorder %v4667, 0.0
      %v4724 = vand.u32 %v4667, 2147483648
      %v4725 = vsel %vm4723, %v4724, %v4722
      %v4726 = vrsqrt.pop %v4668
      %v4727 = vmul.f32 %v4668, %v4726
      %vm4728 = vcmp.eq.f32.partialorder %v4668, inf
      %v4729 = vsel %vm4728, %v4668, %v4727
      %vm4730 = vcmp.eq.f32.partialorder %v4668, 0.0
      %v4731 = vand.u32 %v4668, 2147483648
      %v4732 = vsel %vm4730, %v4731, %v4729
      %v4733 = vrsqrt.pop %v4669
      %v4734 = vmul.f32 %v4669, %v4733
      %vm4735 = vcmp.eq.f32.partialorder %v4669, inf
      %v4736 = vsel %vm4735, %v4669, %v4734
      %vm4737 = vcmp.eq.f32.partialorder %v4669, 0.0
      %v4738 = vand.u32 %v4669, 2147483648
      %v4739 = vsel %vm4737, %v4738, %v4736
      %v4740 = vrsqrt.pop %v4670
      %v4741 = vmul.f32 %v4670, %v4740
      %vm4742 = vcmp.eq.f32.partialorder %v4670, inf
      %v4743 = vsel %vm4742, %v4670, %v4741
      %vm4744 = vcmp.eq.f32.partialorder %v4670, 0.0
      %v4745 = vand.u32 %v4670, 2147483648
      %v4746 = vsel %vm4744, %v4745, %v4743
      %v4747 = vrsqrt.pop %v4671
      %v4748 = vmul.f32 %v4671, %v4747
      %vm4749 = vcmp.eq.f32.partialorder %v4671, inf
      %v4750 = vsel %vm4749, %v4671, %v4748
      %vm4751 = vcmp.eq.f32.partialorder %v4671, 0.0
      %v4752 = vand.u32 %v4671, 2147483648
      %v4753 = vsel %vm4751, %v4752, %v4750
      %v4754 = vrsqrt.pop %v4672
      %v4755 = vmul.f32 %v4672, %v4754
      %vm4756 = vcmp.eq.f32.partialorder %v4672, inf
      %v4757 = vsel %vm4756, %v4672, %v4755
      %vm4758 = vcmp.eq.f32.partialorder %v4672, 0.0
      %v4759 = vand.u32 %v4672, 2147483648
      %v4760 = vsel %vm4758, %v4759, %v4757
      %v4761 = vrsqrt.pop %v4673
      %v4762 = vmul.f32 %v4673, %v4761
      %vm4763 = vcmp.eq.f32.partialorder %v4673, inf
      %v4764 = vsel %vm4763, %v4673, %v4762
      %vm4765 = vcmp.eq.f32.partialorder %v4673, 0.0
      %v4766 = vand.u32 %v4673, 2147483648
      %v4767 = vsel %vm4765, %v4766, %v4764
      %v4768 = vrsqrt.pop %v4674
      %v4769 = vmul.f32 %v4674, %v4768
      %vm4770 = vcmp.eq.f32.partialorder %v4674, inf
      %v4771 = vsel %vm4770, %v4674, %v4769
      %vm4772 = vcmp.eq.f32.partialorder %v4674, 0.0
      %v4773 = vand.u32 %v4674, 2147483648
      %v4774 = vsel %vm4772, %v4773, %v4771
      %v4775 = vrsqrt.pop %v4675
      %v4776 = vmul.f32 %v4675, %v4775
      %vm4777 = vcmp.eq.f32.partialorder %v4675, inf
      %v4778 = vsel %vm4777, %v4675, %v4776
      %vm4779 = vcmp.eq.f32.partialorder %v4675, 0.0
      %v4780 = vand.u32 %v4675, 2147483648
      %v4781 = vsel %vm4779, %v4780, %v4778
      %v4782 = vrsqrt.pop %v4676
      %v4783 = vmul.f32 %v4676, %v4782
      %vm4784 = vcmp.eq.f32.partialorder %v4676, inf
      %v4785 = vsel %vm4784, %v4676, %v4783
      %vm4786 = vcmp.eq.f32.partialorder %v4676, 0.0
      %v4787 = vand.u32 %v4676, 2147483648
      %v4788 = vsel %vm4786, %v4787, %v4785
      %v4789 = vpack.c.bf16 %v4518, %v4517
      %v4790 = vpack.c.bf16 %v4520, %v4519
      %v4791 = vpack.c.bf16 %v4522, %v4521
      %v4792 = vpack.c.bf16 %v4524, %v4523
      %v4793 = vpack.c.bf16 %v4526, %v4525
      %v4794 = vpack.c.bf16 %v4528, %v4527
      %v4795 = vpack.c.bf16 %v4530, %v4529
      %v4796 = vpack.c.bf16 %v4532, %v4531
      %4805 = vrot.lane.b32.xlu0 %v4789, 104
      %v4806 = vpop.permute.xlu0 %4805
      %4807 = vrot.lane.b32.xlu0 %v4790, 104
      %v4808 = vpop.permute.xlu0 %4807
      %4809 = vrot.lane.b32.xlu0 %v4791, 104
      %v4810 = vpop.permute.xlu0 %4809
      %4811 = vrot.lane.b32.xlu0 %v4792, 104
      %v4812 = vpop.permute.xlu0 %4811
      %4813 = vrot.lane.b32.xlu0 %v4793, 104
      %v4814 = vpop.permute.xlu0 %4813
      %4815 = vrot.lane.b32.xlu0 %v4794, 104
      %v4816 = vpop.permute.xlu0 %4815
      %4817 = vrot.lane.b32.xlu0 %v4795, 104
      %v4818 = vpop.permute.xlu0 %4817
      %4819 = vrot.lane.b32.xlu0 %v4796, 104
      %v4820 = vpop.permute.xlu0 %4819
      %v4822 = vsel %vm322, %v4806, 0
      %v4825 = vsel %vm322, %v4808, 0
      %v4828 = vsel %vm322, %v4810, 0
      %v4831 = vsel %vm322, %v4812, 0
      %v4834 = vsel %vm322, %v4814, 0
      %v4837 = vsel %vm322, %v4816, 0
      %v4840 = vsel %vm322, %v4818, 0
      %v4843 = vsel %vm322, %v4820, 0
      %4845 = vmatprep.subr.bf16.mxu0 0
      %4846 = vmatpush1.bf16.msra.mxu0 %v851
      %4847 = vmatprep.subr.bf16.mxu0 0
      %4848 = vmatpush1.bf16.msra.mxu0 0
      %4849 = vmatprep.subr.bf16.mxu0 0
      %4850 = vmatpush1.bf16.msra.mxu0 0
      %4851 = vmatprep.subr.bf16.mxu0 0
      %4852 = vmatpush1.bf16.msra.mxu0 0
      %4853 = vmatprep.subr.bf16.mxu0 0
      %4854 = vmatpush1.bf16.msra.mxu0 0
      %4855 = vmatprep.subr.bf16.mxu0 0
      %4856 = vmatpush1.bf16.msra.mxu0 0
      %4857 = vmatprep.subr.bf16.mxu0 0
      %4858 = vmatpush1.bf16.msra.mxu0 0
      %4859 = vmatprep.subr.bf16.mxu0 0
      %4860 = vmatpush1.bf16.msra.mxu0 0
      %4861 = vmatprep.subr.bf16.mxu0 0
      %4862 = vmatpush1.bf16.msra.mxu0 0
      %4863 = vmatprep.subr.bf16.mxu0 0
      %4864 = vmatpush1.bf16.msra.mxu0 0
      %4865 = vmatprep.subr.bf16.mxu0 0
      %4866 = vmatpush1.bf16.msra.mxu0 0
      %4867 = vmatprep.subr.bf16.mxu0 0
      %4868 = vmatpush1.bf16.msra.mxu0 0
      %4869 = vmatprep.subr.bf16.mxu0 0
      %4870 = vmatpush1.bf16.msra.mxu0 0
      %4871 = vmatprep.subr.bf16.mxu0 0
      %4872 = vmatpush1.bf16.msra.mxu0 0
      %4873 = vmatprep.subr.bf16.mxu0 0
      %4874 = vmatpush1.bf16.msra.mxu0 0
      %4875 = vmatprep.subr.bf16.mxu0 0
      %4876 = vmatpush1.bf16.msra.mxu0 0
      %4877 = vmatprep.mubr.bf16.mxu0 0
      %4878 = vmatmul.mubr.bf16.gmra.mrb[0].mxu0 %v4822
      %v4879 = vpop.f32.mrb[0].mxu0
      %v4880 = vadd.f32 0.0, %v4879
      %v4881 = vpop.f32.mrb[0].mxu0
      %v4882 = vpop.f32.mrb[0].mxu0
      %v4883 = vadd.f32 0.0, %v4882
      %v4884 = vpop.f32.mrb[0].mxu0
      %4885 = vmatprep.mubr.bf16.mxu0 0
      %4886 = vmatmul.mubr.bf16.gmra.mrb[0].mxu0 %v4825
      %v4887 = vpop.f32.mrb[0].mxu0
      %v4888 = vadd.f32 0.0, %v4887
      %v4889 = vpop.f32.mrb[0].mxu0
      %v4890 = vpop.f32.mrb[0].mxu0
      %v4891 = vadd.f32 0.0, %v4890
      %v4892 = vpop.f32.mrb[0].mxu0
      %4893 = vmatprep.mubr.bf16.mxu0 0
      %4894 = vmatmul.mubr.bf16.gmra.mrb[0].mxu0 %v4828
      %v4895 = vpop.f32.mrb[0].mxu0
      %v4896 = vadd.f32 0.0, %v4895
      %v4897 = vpop.f32.mrb[0].mxu0
      %v4898 = vpop.f32.mrb[0].mxu0
      %v4899 = vadd.f32 0.0, %v4898
      %v4900 = vpop.f32.mrb[0].mxu0
      %4901 = vmatprep.mubr.bf16.mxu0 0
      %4902 = vmatmul.mubr.bf16.gmra.mrb[0].mxu0 %v4831
      %v4903 = vpop.f32.mrb[0].mxu0
      %v4904 = vadd.f32 0.0, %v4903
      %v4905 = vpop.f32.mrb[0].mxu0
      %v4906 = vpop.f32.mrb[0].mxu0
      %v4907 = vadd.f32 0.0, %v4906
      %v4908 = vpop.f32.mrb[0].mxu0
      %4909 = vmatprep.mubr.bf16.mxu0 0
      %4910 = vmatmul.mubr.bf16.gmra.mrb[0].mxu0 %v4834
      %v4911 = vpop.f32.mrb[0].mxu0
      %v4912 = vadd.f32 0.0, %v4911
      %v4913 = vpop.f32.mrb[0].mxu0
      %v4914 = vpop.f32.mrb[0].mxu0
      %v4915 = vadd.f32 0.0, %v4914
      %v4916 = vpop.f32.mrb[0].mxu0
      %4917 = vmatprep.mubr.bf16.mxu0 0
      %4918 = vmatmul.mubr.bf16.gmra.mrb[0].mxu0 %v4837
      %v4919 = vpop.f32.mrb[0].mxu0
      %v4920 = vadd.f32 0.0, %v4919
      %v4921 = vpop.f32.mrb[0].mxu0
      %v4922 = vpop.f32.mrb[0].mxu0
      %v4923 = vadd.f32 0.0, %v4922
      %v4924 = vpop.f32.mrb[0].mxu0
      %4925 = vmatprep.mubr.bf16.mxu0 0
      %4926 = vmatmul.mubr.bf16.gmra.mrb[0].mxu0 %v4840
      %v4927 = vpop.f32.mrb[0].mxu0
      %v4928 = vadd.f32 0.0, %v4927
      %v4929 = vpop.f32.mrb[0].mxu0
      %v4930 = vpop.f32.mrb[0].mxu0
      %v4931 = vadd.f32 0.0, %v4930
      %v4932 = vpop.f32.mrb[0].mxu0
      %4933 = vmatprep.mubr.bf16.mxu0 0
      %4934 = vmatmul.mubr.bf16.gmra.mrb[0].mxu0 %v4843
      %v4935 = vpop.f32.mrb[0].mxu0
      %v4936 = vadd.f32 0.0, %v4935
      %v4937 = vpop.f32.mrb[0].mxu0
      %v4938 = vpop.f32.mrb[0].mxu0
      %v4939 = vadd.f32 0.0, %v4938
      %v4940 = vpop.f32.mrb[0].mxu0
      %4941 = vdwg.mxu0
      %v4942 = vadd.f32 %v389, %v4880
      %v4943 = vadd.f32 %v392, %v4883
      %v4944 = vadd.f32 %v397, %v4888
      %v4945 = vadd.f32 %v400, %v4891
      %v4946 = vadd.f32 %v405, %v4896
      %v4947 = vadd.f32 %v408, %v4899
      %v4948 = vadd.f32 %v413, %v4904
      %v4949 = vadd.f32 %v416, %v4907
      %v4950 = vadd.f32 %v421, %v4912
      %v4951 = vadd.f32 %v424, %v4915
      %v4952 = vadd.f32 %v429, %v4920
      %v4953 = vadd.f32 %v432, %v4923
      %v4954 = vadd.f32 %v437, %v4928
      %v4955 = vadd.f32 %v440, %v4931
      %v4956 = vadd.f32 %v445, %v4936
      %v4957 = vadd.f32 %v448, %v4939
      %v4958 = vmul.f32 %v4683, %v969
      %v4959 = vmul.f32 %v4690, %v969
      %v4960 = vmul.f32 %v4697, %v969
      %v4961 = vmul.f32 %v4704, %v969
      %v4962 = vmul.f32 %v4711, %v969
      %v4963 = vmul.f32 %v4718, %v969
      %v4964 = vmul.f32 %v4725, %v969
      %v4965 = vmul.f32 %v4732, %v969
      %v4966 = vmul.f32 %v4739, %v969
      %v4967 = vmul.f32 %v4746, %v969
      %v4968 = vmul.f32 %v4753, %v969
      %v4969 = vmul.f32 %v4760, %v969
      %v4970 = vmul.f32 %v4767, %v969
      %v4971 = vmul.f32 %v4774, %v969
      %v4972 = vmul.f32 %v4781, %v969
      %v4973 = vmul.f32 %v4788, %v969
      %v4974 = vadd.f32 %v4942, %v4958
      %v4975 = vadd.f32 %v4943, %v4959
      %v4976 = vadd.f32 %v4944, %v4960
      %v4977 = vadd.f32 %v4945, %v4961
      %v4978 = vadd.f32 %v4946, %v4962
      %v4979 = vadd.f32 %v4947, %v4963
      %v4980 = vadd.f32 %v4948, %v4964
      %v4981 = vadd.f32 %v4949, %v4965
      %v4982 = vadd.f32 %v4950, %v4966
      %v4983 = vadd.f32 %v4951, %v4967
      %v4984 = vadd.f32 %v4952, %v4968
      %v4985 = vadd.f32 %v4953, %v4969
      %v4986 = vadd.f32 %v4954, %v4970
      %v4987 = vadd.f32 %v4955, %v4971
      %v4988 = vadd.f32 %v4956, %v4972
      %v4989 = vadd.f32 %v4957, %v4973
      %v4990 = vadd.f32 %v4974, %v1005
      %v4991 = vadd.f32 %v4975, %v1005
      %v4992 = vadd.f32 %v4976, %v1005
      %v4993 = vadd.f32 %v4977, %v1005
      %v4994 = vadd.f32 %v4978, %v1005
      %v4995 = vadd.f32 %v4979, %v1005
      %v4996 = vadd.f32 %v4980, %v1005
      %v4997 = vadd.f32 %v4981, %v1005
      %v4998 = vadd.f32 %v4982, %v1005
      %v4999 = vadd.f32 %v4983, %v1005
      %v5000 = vadd.f32 %v4984, %v1005
      %v5001 = vadd.f32 %v4985, %v1005
      %v5002 = vadd.f32 %v4986, %v1005
      %v5003 = vadd.f32 %v4987, %v1005
      %v5004 = vadd.f32 %v4988, %v1005
      %v5005 = vadd.f32 %v4989, %v1005
      %v5006 = vmax.f32 %v4990, 0.0
      %v5007 = vmax.f32 %v4991, 0.0
      %v5008 = vmax.f32 %v4992, 0.0
      %v5009 = vmax.f32 %v4993, 0.0
      %v5010 = vmax.f32 %v4994, 0.0
      %v5011 = vmax.f32 %v4995, 0.0
      %v5012 = vmax.f32 %v4996, 0.0
      %v5013 = vmax.f32 %v4997, 0.0
      %v5014 = vmax.f32 %v4998, 0.0
      %v5015 = vmax.f32 %v4999, 0.0
      %v5016 = vmax.f32 %v5000, 0.0
      %v5017 = vmax.f32 %v5001, 0.0
      %v5018 = vmax.f32 %v5002, 0.0
      %v5019 = vmax.f32 %v5003, 0.0
      %v5020 = vmax.f32 %v5004, 0.0
      %v5021 = vmax.f32 %v5005, 0.0
      %5022 = vst.msk [vmem:[#allocation2 + $0x380] sm:$0xff] %vm1038, %v5006
      %5023 = vst.msk [vmem:[#allocation2 + $0x388] sm:$0xff] %vm1038, %v5007
      %5024 = vst.msk [vmem:[#allocation2 + $0x390] sm:$0xff] %vm1038, %v5008
      %5025 = vst.msk [vmem:[#allocation2 + $0x398] sm:$0xff] %vm1038, %v5009
      %5026 = vst.msk [vmem:[#allocation2 + $0x3a0] sm:$0xff] %vm1038, %v5010
      %5027 = vst.msk [vmem:[#allocation2 + $0x3a8] sm:$0xff] %vm1038, %v5011
      %5028 = vst.msk [vmem:[#allocation2 + $0x3b0] sm:$0xff] %vm1038, %v5012
      %5029 = vst.msk [vmem:[#allocation2 + $0x3b8] sm:$0xff] %vm1038, %v5013
      %5030 = vst.msk [vmem:[#allocation2 + $0x3c0] sm:$0xff] %vm1038, %v5014
      %5031 = vst.msk [vmem:[#allocation2 + $0x3c8] sm:$0xff] %vm1038, %v5015
      %5032 = vst.msk [vmem:[#allocation2 + $0x3d0] sm:$0xff] %vm1038, %v5016
      %5033 = vst.msk [vmem:[#allocation2 + $0x3d8] sm:$0xff] %vm1038, %v5017
      %5034 = vst.msk [vmem:[#allocation2 + $0x3e0] sm:$0xff] %vm1038, %v5018
      %5035 = vst.msk [vmem:[#allocation2 + $0x3e8] sm:$0xff] %vm1038, %v5019
      %5036 = vst.msk [vmem:[#allocation2 + $0x3f0] sm:$0xff] %vm1038, %v5020
      %5037 = vst.msk [vmem:[#allocation2 + $0x3f8] sm:$0xff] %vm1038, %v5021
      %v5038 = vld [vmem:[#allocation2] sm:$0xff]
      %v5039 = vld [vmem:[#allocation2 + $0x8] sm:$0xff]
      %v5040 = vld [vmem:[#allocation2 + $0x10] sm:$0xff]
      %v5041 = vld [vmem:[#allocation2 + $0x18] sm:$0xff]
      %v5042 = vld [vmem:[#allocation2 + $0x20] sm:$0xff]
      %v5043 = vld [vmem:[#allocation2 + $0x28] sm:$0xff]
      %v5044 = vld [vmem:[#allocation2 + $0x30] sm:$0xff]
      %v5045 = vld [vmem:[#allocation2 + $0x38] sm:$0xff]
      %v5046 = vld [vmem:[#allocation2 + $0x40] sm:$0xff]
      %v5047 = vld [vmem:[#allocation2 + $0x48] sm:$0xff]
      %v5048 = vld [vmem:[#allocation2 + $0x50] sm:$0xff]
      %v5049 = vld [vmem:[#allocation2 + $0x58] sm:$0xff]
      %v5050 = vld [vmem:[#allocation2 + $0x60] sm:$0xff]
      %v5051 = vld [vmem:[#allocation2 + $0x68] sm:$0xff]
      %v5052 = vld [vmem:[#allocation2 + $0x70] sm:$0xff]
      %v5053 = vld [vmem:[#allocation2 + $0x78] sm:$0xff]
      %v5054 = vld [vmem:[#allocation2 + $0x80] sm:$0xff]
      %v5055 = vld [vmem:[#allocation2 + $0x88] sm:$0xff]
      %v5056 = vld [vmem:[#allocation2 + $0x90] sm:$0xff]
      %v5057 = vld [vmem:[#allocation2 + $0x98] sm:$0xff]
      %v5058 = vld [vmem:[#allocation2 + $0xa0] sm:$0xff]
      %v5059 = vld [vmem:[#allocation2 + $0xa8] sm:$0xff]
      %v5060 = vld [vmem:[#allocation2 + $0xb0] sm:$0xff]
      %v5061 = vld [vmem:[#allocation2 + $0xb8] sm:$0xff]
      %v5062 = vld [vmem:[#allocation2 + $0xc0] sm:$0xff]
      %v5063 = vld [vmem:[#allocation2 + $0xc8] sm:$0xff]
      %v5064 = vld [vmem:[#allocation2 + $0xd0] sm:$0xff]
      %v5065 = vld [vmem:[#allocation2 + $0xd8] sm:$0xff]
      %v5066 = vld [vmem:[#allocation2 + $0xe0] sm:$0xff]
      %v5067 = vld [vmem:[#allocation2 + $0xe8] sm:$0xff]
      %v5068 = vld [vmem:[#allocation2 + $0xf0] sm:$0xff]
      %v5069 = vld [vmem:[#allocation2 + $0xf8] sm:$0xff]
      %v5070 = vld [vmem:[#allocation2 + $0x100] sm:$0xff]
      %v5071 = vld [vmem:[#allocation2 + $0x108] sm:$0xff]
      %v5072 = vld [vmem:[#allocation2 + $0x110] sm:$0xff]
      %v5073 = vld [vmem:[#allocation2 + $0x118] sm:$0xff]
      %v5074 = vld [vmem:[#allocation2 + $0x120] sm:$0xff]
      %v5075 = vld [vmem:[#allocation2 + $0x128] sm:$0xff]
      %v5076 = vld [vmem:[#allocation2 + $0x130] sm:$0xff]
      %v5077 = vld [vmem:[#allocation2 + $0x138] sm:$0xff]
      %v5078 = vld [vmem:[#allocation2 + $0x140] sm:$0xff]
      %v5079 = vld [vmem:[#allocation2 + $0x148] sm:$0xff]
      %v5080 = vld [vmem:[#allocation2 + $0x150] sm:$0xff]
      %v5081 = vld [vmem:[#allocation2 + $0x158] sm:$0xff]
      %v5082 = vld [vmem:[#allocation2 + $0x160] sm:$0xff]
      %v5083 = vld [vmem:[#allocation2 + $0x168] sm:$0xff]
      %v5084 = vld [vmem:[#allocation2 + $0x170] sm:$0xff]
      %v5085 = vld [vmem:[#allocation2 + $0x178] sm:$0xff]
      %v5086 = vld [vmem:[#allocation2 + $0x180] sm:$0xff]
      %v5087 = vld [vmem:[#allocation2 + $0x188] sm:$0xff]
      %v5088 = vld [vmem:[#allocation2 + $0x190] sm:$0xff]
      %v5089 = vld [vmem:[#allocation2 + $0x198] sm:$0xff]
      %v5090 = vld [vmem:[#allocation2 + $0x1a0] sm:$0xff]
      %v5091 = vld [vmem:[#allocation2 + $0x1a8] sm:$0xff]
      %v5092 = vld [vmem:[#allocation2 + $0x1b0] sm:$0xff]
      %v5093 = vld [vmem:[#allocation2 + $0x1b8] sm:$0xff]
      %v5094 = vld [vmem:[#allocation2 + $0x1c0] sm:$0xff]
      %v5095 = vld [vmem:[#allocation2 + $0x1c8] sm:$0xff]
      %v5096 = vld [vmem:[#allocation2 + $0x1d0] sm:$0xff]
      %v5097 = vld [vmem:[#allocation2 + $0x1d8] sm:$0xff]
      %v5098 = vld [vmem:[#allocation2 + $0x1e0] sm:$0xff]
      %v5099 = vld [vmem:[#allocation2 + $0x1e8] sm:$0xff]
      %v5100 = vld [vmem:[#allocation2 + $0x1f0] sm:$0xff]
      %v5101 = vld [vmem:[#allocation2 + $0x1f8] sm:$0xff]
      %v5102 = vld [vmem:[#allocation2 + $0x200] sm:$0xff]
      %v5103 = vld [vmem:[#allocation2 + $0x208] sm:$0xff]
      %v5104 = vld [vmem:[#allocation2 + $0x210] sm:$0xff]
      %v5105 = vld [vmem:[#allocation2 + $0x218] sm:$0xff]
      %v5106 = vld [vmem:[#allocation2 + $0x220] sm:$0xff]
      %v5107 = vld [vmem:[#allocation2 + $0x228] sm:$0xff]
      %v5108 = vld [vmem:[#allocation2 + $0x230] sm:$0xff]
      %v5109 = vld [vmem:[#allocation2 + $0x238] sm:$0xff]
      %v5110 = vld [vmem:[#allocation2 + $0x240] sm:$0xff]
      %v5111 = vld [vmem:[#allocation2 + $0x248] sm:$0xff]
      %v5112 = vld [vmem:[#allocation2 + $0x250] sm:$0xff]
      %v5113 = vld [vmem:[#allocation2 + $0x258] sm:$0xff]
      %v5114 = vld [vmem:[#allocation2 + $0x260] sm:$0xff]
      %v5115 = vld [vmem:[#allocation2 + $0x268] sm:$0xff]
      %v5116 = vld [vmem:[#allocation2 + $0x270] sm:$0xff]
      %v5117 = vld [vmem:[#allocation2 + $0x278] sm:$0xff]
      %v5118 = vld [vmem:[#allocation2 + $0x280] sm:$0xff]
      %v5119 = vld [vmem:[#allocation2 + $0x288] sm:$0xff]
      %v5120 = vld [vmem:[#allocation2 + $0x290] sm:$0xff]
      %v5121 = vld [vmem:[#allocation2 + $0x298] sm:$0xff]
      %v5122 = vld [vmem:[#allocation2 + $0x2a0] sm:$0xff]
      %v5123 = vld [vmem:[#allocation2 + $0x2a8] sm:$0xff]
      %v5124 = vld [vmem:[#allocation2 + $0x2b0] sm:$0xff]
      %v5125 = vld [vmem:[#allocation2 + $0x2b8] sm:$0xff]
      %v5126 = vld [vmem:[#allocation2 + $0x2c0] sm:$0xff]
      %v5127 = vld [vmem:[#allocation2 + $0x2c8] sm:$0xff]
      %v5128 = vld [vmem:[#allocation2 + $0x2d0] sm:$0xff]
      %v5129 = vld [vmem:[#allocation2 + $0x2d8] sm:$0xff]
      %v5130 = vld [vmem:[#allocation2 + $0x2e0] sm:$0xff]
      %v5131 = vld [vmem:[#allocation2 + $0x2e8] sm:$0xff]
      %v5132 = vld [vmem:[#allocation2 + $0x2f0] sm:$0xff]
      %v5133 = vld [vmem:[#allocation2 + $0x2f8] sm:$0xff]
      %v5134 = vld [vmem:[#allocation2 + $0x300] sm:$0xff]
      %v5135 = vld [vmem:[#allocation2 + $0x308] sm:$0xff]
      %v5136 = vld [vmem:[#allocation2 + $0x310] sm:$0xff]
      %v5137 = vld [vmem:[#allocation2 + $0x318] sm:$0xff]
      %v5138 = vld [vmem:[#allocation2 + $0x320] sm:$0xff]
      %v5139 = vld [vmem:[#allocation2 + $0x328] sm:$0xff]
      %v5140 = vld [vmem:[#allocation2 + $0x330] sm:$0xff]
      %v5141 = vld [vmem:[#allocation2 + $0x338] sm:$0xff]
      %v5142 = vld [vmem:[#allocation2 + $0x340] sm:$0xff]
      %v5143 = vld [vmem:[#allocation2 + $0x348] sm:$0xff]
      %v5144 = vld [vmem:[#allocation2 + $0x350] sm:$0xff]
      %v5145 = vld [vmem:[#allocation2 + $0x358] sm:$0xff]
      %v5146 = vld [vmem:[#allocation2 + $0x360] sm:$0xff]
      %v5147 = vld [vmem:[#allocation2 + $0x368] sm:$0xff]
      %v5148 = vld [vmem:[#allocation2 + $0x370] sm:$0xff]
      %v5149 = vld [vmem:[#allocation2 + $0x378] sm:$0xff]
      %v5150 = vld [vmem:[#allocation2 + $0x380] sm:$0xff]
      %v5151 = vld [vmem:[#allocation2 + $0x388] sm:$0xff]
      %v5152 = vld [vmem:[#allocation2 + $0x390] sm:$0xff]
      %v5153 = vld [vmem:[#allocation2 + $0x398] sm:$0xff]
      %v5154 = vld [vmem:[#allocation2 + $0x3a0] sm:$0xff]
      %v5155 = vld [vmem:[#allocation2 + $0x3a8] sm:$0xff]
      %v5156 = vld [vmem:[#allocation2 + $0x3b0] sm:$0xff]
      %v5157 = vld [vmem:[#allocation2 + $0x3b8] sm:$0xff]
      %v5158 = vld [vmem:[#allocation2 + $0x3c0] sm:$0xff]
      %v5159 = vld [vmem:[#allocation2 + $0x3c8] sm:$0xff]
      %v5160 = vld [vmem:[#allocation2 + $0x3d0] sm:$0xff]
      %v5161 = vld [vmem:[#allocation2 + $0x3d8] sm:$0xff]
      %v5162 = vld [vmem:[#allocation2 + $0x3e0] sm:$0xff]
      %v5163 = vld [vmem:[#allocation2 + $0x3e8] sm:$0xff]
      %v5164 = vld [vmem:[#allocation2 + $0x3f0] sm:$0xff]
      %v5165 = vld [vmem:[#allocation2 + $0x3f8] sm:$0xff]
      %v5166 = vpack.c.bf16 %v5039, %v5038
      %v5167 = vpack.c.bf16 %v5041, %v5040
      %v5168 = vpack.c.bf16 %v5043, %v5042
      %v5169 = vpack.c.bf16 %v5045, %v5044
      %v5170 = vpack.c.bf16 %v5047, %v5046
      %v5171 = vpack.c.bf16 %v5049, %v5048
      %v5172 = vpack.c.bf16 %v5051, %v5050
      %v5173 = vpack.c.bf16 %v5053, %v5052
      %v5174 = vpack.c.bf16 %v5055, %v5054
      %v5175 = vpack.c.bf16 %v5057, %v5056
      %v5176 = vpack.c.bf16 %v5059, %v5058
      %v5177 = vpack.c.bf16 %v5061, %v5060
      %v5178 = vpack.c.bf16 %v5063, %v5062
      %v5179 = vpack.c.bf16 %v5065, %v5064
      %v5180 = vpack.c.bf16 %v5067, %v5066
      %v5181 = vpack.c.bf16 %v5069, %v5068
      %v5182 = vpack.c.bf16 %v5071, %v5070
      %v5183 = vpack.c.bf16 %v5073, %v5072
      %v5184 = vpack.c.bf16 %v5075, %v5074
      %v5185 = vpack.c.bf16 %v5077, %v5076
      %v5186 = vpack.c.bf16 %v5079, %v5078
      %v5187 = vpack.c.bf16 %v5081, %v5080
      %v5188 = vpack.c.bf16 %v5083, %v5082
      %v5189 = vpack.c.bf16 %v5085, %v5084
      %v5190 = vpack.c.bf16 %v5087, %v5086
      %v5191 = vpack.c.bf16 %v5089, %v5088
      %v5192 = vpack.c.bf16 %v5091, %v5090
      %v5193 = vpack.c.bf16 %v5093, %v5092
      %v5194 = vpack.c.bf16 %v5095, %v5094
      %v5195 = vpack.c.bf16 %v5097, %v5096
      %v5196 = vpack.c.bf16 %v5099, %v5098
      %v5197 = vpack.c.bf16 %v5101, %v5100
      %v5198 = vpack.c.bf16 %v5103, %v5102
      %v5199 = vpack.c.bf16 %v5105, %v5104
      %v5200 = vpack.c.bf16 %v5107, %v5106
      %v5201 = vpack.c.bf16 %v5109, %v5108
      %v5202 = vpack.c.bf16 %v5111, %v5110
      %v5203 = vpack.c.bf16 %v5113, %v5112
      %v5204 = vpack.c.bf16 %v5115, %v5114
      %v5205 = vpack.c.bf16 %v5117, %v5116
      %v5206 = vpack.c.bf16 %v5119, %v5118
      %v5207 = vpack.c.bf16 %v5121, %v5120
      %v5208 = vpack.c.bf16 %v5123, %v5122
      %v5209 = vpack.c.bf16 %v5125, %v5124
      %v5210 = vpack.c.bf16 %v5127, %v5126
      %v5211 = vpack.c.bf16 %v5129, %v5128
      %v5212 = vpack.c.bf16 %v5131, %v5130
      %v5213 = vpack.c.bf16 %v5133, %v5132
      %v5214 = vpack.c.bf16 %v5135, %v5134
      %v5215 = vpack.c.bf16 %v5137, %v5136
      %v5216 = vpack.c.bf16 %v5139, %v5138
      %v5217 = vpack.c.bf16 %v5141, %v5140
      %v5218 = vpack.c.bf16 %v5143, %v5142
      %v5219 = vpack.c.bf16 %v5145, %v5144
      %v5220 = vpack.c.bf16 %v5147, %v5146
      %v5221 = vpack.c.bf16 %v5149, %v5148
      %v5222 = vpack.c.bf16 %v5151, %v5150
      %v5223 = vpack.c.bf16 %v5153, %v5152
      %v5224 = vpack.c.bf16 %v5155, %v5154
      %v5225 = vpack.c.bf16 %v5157, %v5156
      %v5226 = vpack.c.bf16 %v5159, %v5158
      %v5227 = vpack.c.bf16 %v5161, %v5160
      %v5228 = vpack.c.bf16 %v5163, %v5162
      %v5229 = vpack.c.bf16 %v5165, %v5164
      %v5232 = vunpack.c.l.b16 %v318
      %v5233 = vunpack.c.l.b16 %v319
      %v5234 = vpack.c.b16 %v5233, %v5232
      %v5237 = vsel %vm1038, %v5166, 0
      %v5240 = vsel %vm1038, %v5167, 0
      %v5243 = vsel %vm1038, %v5168, 0
      %v5246 = vsel %vm1038, %v5169, 0
      %v5249 = vsel %vm1038, %v5170, 0
      %v5252 = vsel %vm1038, %v5171, 0
      %v5255 = vsel %vm1038, %v5172, 0
      %v5258 = vsel %vm1038, %v5173, 0
      %v5261 = vsel %vm1038, %v5174, 0
      %v5264 = vsel %vm1038, %v5175, 0
      %v5267 = vsel %vm1038, %v5176, 0
      %v5270 = vsel %vm1038, %v5177, 0
      %v5273 = vsel %vm1038, %v5178, 0
      %v5276 = vsel %vm1038, %v5179, 0
      %v5279 = vsel %vm1038, %v5180, 0
      %v5282 = vsel %vm1038, %v5181, 0
      %v5285 = vsel %vm1038, %v5182, 0
      %v5288 = vsel %vm1038, %v5183, 0
      %v5291 = vsel %vm1038, %v5184, 0
      %v5294 = vsel %vm1038, %v5185, 0
      %v5297 = vsel %vm1038, %v5186, 0
      %v5300 = vsel %vm1038, %v5187, 0
      %v5303 = vsel %vm1038, %v5188, 0
      %v5306 = vsel %vm1038, %v5189, 0
      %v5309 = vsel %vm1038, %v5190, 0
      %v5312 = vsel %vm1038, %v5191, 0
      %v5315 = vsel %vm1038, %v5192, 0
      %v5318 = vsel %vm1038, %v5193, 0
      %v5321 = vsel %vm1038, %v5194, 0
      %v5324 = vsel %vm1038, %v5195, 0
      %v5327 = vsel %vm1038, %v5196, 0
      %v5330 = vsel %vm1038, %v5197, 0
      %v5333 = vsel %vm1038, %v5198, 0
      %v5336 = vsel %vm1038, %v5199, 0
      %v5339 = vsel %vm1038, %v5200, 0
      %v5342 = vsel %vm1038, %v5201, 0
      %v5345 = vsel %vm1038, %v5202, 0
      %v5348 = vsel %vm1038, %v5203, 0
      %v5351 = vsel %vm1038, %v5204, 0
      %v5354 = vsel %vm1038, %v5205, 0
      %v5357 = vsel %vm1038, %v5206, 0
      %v5360 = vsel %vm1038, %v5207, 0
      %v5363 = vsel %vm1038, %v5208, 0
      %v5366 = vsel %vm1038, %v5209, 0
      %v5369 = vsel %vm1038, %v5210, 0
      %v5372 = vsel %vm1038, %v5211, 0
      %v5375 = vsel %vm1038, %v5212, 0
      %v5378 = vsel %vm1038, %v5213, 0
      %v5381 = vsel %vm1038, %v5214, 0
      %v5384 = vsel %vm1038, %v5215, 0
      %v5387 = vsel %vm1038, %v5216, 0
      %v5390 = vsel %vm1038, %v5217, 0
      %v5393 = vsel %vm1038, %v5218, 0
      %v5396 = vsel %vm1038, %v5219, 0
      %v5399 = vsel %vm1038, %v5220, 0
      %v5402 = vsel %vm1038, %v5221, 0
      %v5405 = vsel %vm1038, %v5222, 0
      %v5408 = vsel %vm1038, %v5223, 0
      %v5411 = vsel %vm1038, %v5224, 0
      %v5414 = vsel %vm1038, %v5225, 0
      %v5417 = vsel %vm1038, %v5226, 0
      %v5420 = vsel %vm1038, %v5227, 0
      %v5423 = vsel %vm1038, %v5228, 0
      %v5426 = vsel %vm1038, %v5229, 0
      %5428 = vmatprep.subr.bf16.mxu0 0
      %5429 = vmatpush1.bf16.msra.mxu0 %v5234
      %5430 = vmatprep.subr.bf16.mxu0 0
      %5431 = vmatpush1.bf16.msra.mxu0 0
      %5432 = vmatprep.subr.bf16.mxu0 0
      %5433 = vmatpush1.bf16.msra.mxu0 0
      %5434 = vmatprep.subr.bf16.mxu0 0
      %5435 = vmatpush1.bf16.msra.mxu0 0
      %5436 = vmatprep.subr.bf16.mxu0 0
      %5437 = vmatpush1.bf16.msra.mxu0 0
      %5438 = vmatprep.subr.bf16.mxu0 0
      %5439 = vmatpush1.bf16.msra.mxu0 0
      %5440 = vmatprep.subr.bf16.mxu0 0
      %5441 = vmatpush1.bf16.msra.mxu0 0
      %5442 = vmatprep.subr.bf16.mxu0 0
      %5443 = vmatpush1.bf16.msra.mxu0 0
      %5444 = vmatprep.subr.bf16.mxu0 0
      %5445 = vmatpush1.bf16.msra.mxu0 0
      %5446 = vmatprep.subr.bf16.mxu0 0
      %5447 = vmatpush1.bf16.msra.mxu0 0
      %5448 = vmatprep.subr.bf16.mxu0 0
      %5449 = vmatpush1.bf16.msra.mxu0 0
      %5450 = vmatprep.subr.bf16.mxu0 0
      %5451 = vmatpush1.bf16.msra.mxu0 0
      %5452 = vmatprep.subr.bf16.mxu0 0
      %5453 = vmatpush1.bf16.msra.mxu0 0
      %5454 = vmatprep.subr.bf16.mxu0 0
      %5455 = vmatpush1.bf16.msra.mxu0 0
      %5456 = vmatprep.subr.bf16.mxu0 0
      %5457 = vmatpush1.bf16.msra.mxu0 0
      %5458 = vmatprep.subr.bf16.mxu0 0
      %5459 = vmatpush1.bf16.msra.mxu0 0
      %5460 = vmatprep.mubr.bf16.mxu0 0
      %5461 = vmatmul.mubr.bf16.gmra.mrb[0].mxu0 %v5237
      %v5462 = vpop.f32.mrb[0].mxu0
      %v5463 = vadd.f32 0.0, %v5462
      %v5464 = vpop.f32.mrb[0].mxu0
      %v5465 = vpop.f32.mrb[0].mxu0
      %v5466 = vadd.f32 0.0, %v5465
      %v5467 = vpop.f32.mrb[0].mxu0
      %5468 = vmatprep.mubr.bf16.mxu0 0
      %5469 = vmatmul.mubr.bf16.gmra.mrb[0].mxu0 %v5240
      %v5470 = vpop.f32.mrb[0].mxu0
      %v5471 = vadd.f32 0.0, %v5470
      %v5472 = vpop.f32.mrb[0].mxu0
      %v5473 = vpop.f32.mrb[0].mxu0
      %v5474 = vadd.f32 0.0, %v5473
      %v5475 = vpop.f32.mrb[0].mxu0
      %5476 = vmatprep.mubr.bf16.mxu0 0
      %5477 = vmatmul.mubr.bf16.gmra.mrb[0].mxu0 %v5243
      %v5478 = vpop.f32.mrb[0].mxu0
      %v5479 = vadd.f32 0.0, %v5478
      %v5480 = vpop.f32.mrb[0].mxu0
      %v5481 = vpop.f32.mrb[0].mxu0
      %v5482 = vadd.f32 0.0, %v5481
      %v5483 = vpop.f32.mrb[0].mxu0
      %5484 = vmatprep.mubr.bf16.mxu0 0
      %5485 = vmatmul.mubr.bf16.gmra.mrb[0].mxu0 %v5246
      %v5486 = vpop.f32.mrb[0].mxu0
      %v5487 = vadd.f32 0.0, %v5486
      %v5488 = vpop.f32.mrb[0].mxu0
      %v5489 = vpop.f32.mrb[0].mxu0
      %v5490 = vadd.f32 0.0, %v5489
      %v5491 = vpop.f32.mrb[0].mxu0
      %5492 = vmatprep.mubr.bf16.mxu0 0
      %5493 = vmatmul.mubr.bf16.gmra.mrb[0].mxu0 %v5249
      %v5494 = vpop.f32.mrb[0].mxu0
      %v5495 = vadd.f32 0.0, %v5494
      %v5496 = vpop.f32.mrb[0].mxu0
      %v5497 = vpop.f32.mrb[0].mxu0
      %v5498 = vadd.f32 0.0, %v5497
      %v5499 = vpop.f32.mrb[0].mxu0
      %5500 = vmatprep.mubr.bf16.mxu0 0
      %5501 = vmatmul.mubr.bf16.gmra.mrb[0].mxu0 %v5252
      %v5502 = vpop.f32.mrb[0].mxu0
      %v5503 = vadd.f32 0.0, %v5502
      %v5504 = vpop.f32.mrb[0].mxu0
      %v5505 = vpop.f32.mrb[0].mxu0
      %v5506 = vadd.f32 0.0, %v5505
      %v5507 = vpop.f32.mrb[0].mxu0
      %5508 = vmatprep.mubr.bf16.mxu0 0
      %5509 = vmatmul.mubr.bf16.gmra.mrb[0].mxu0 %v5255
      %v5510 = vpop.f32.mrb[0].mxu0
      %v5511 = vadd.f32 0.0, %v5510
      %v5512 = vpop.f32.mrb[0].mxu0
      %v5513 = vpop.f32.mrb[0].mxu0
      %v5514 = vadd.f32 0.0, %v5513
      %v5515 = vpop.f32.mrb[0].mxu0
      %5516 = vmatprep.mubr.bf16.mxu0 0
      %5517 = vmatmul.mubr.bf16.gmra.mrb[0].mxu0 %v5258
      %v5518 = vpop.f32.mrb[0].mxu0
      %v5519 = vadd.f32 0.0, %v5518
      %v5520 = vpop.f32.mrb[0].mxu0
      %v5521 = vpop.f32.mrb[0].mxu0
      %v5522 = vadd.f32 0.0, %v5521
      %v5523 = vpop.f32.mrb[0].mxu0
      %5524 = vmatprep.mubr.bf16.mxu0 0
      %5525 = vmatmul.mubr.bf16.gmra.mrb[0].mxu0 %v5261
      %v5526 = vpop.f32.mrb[0].mxu0
      %v5527 = vadd.f32 0.0, %v5526
      %v5528 = vpop.f32.mrb[0].mxu0
      %v5529 = vpop.f32.mrb[0].mxu0
      %v5530 = vadd.f32 0.0, %v5529
      %v5531 = vpop.f32.mrb[0].mxu0
      %5532 = vmatprep.mubr.bf16.mxu0 0
      %5533 = vmatmul.mubr.bf16.gmra.mrb[0].mxu0 %v5264
      %v5534 = vpop.f32.mrb[0].mxu0
      %v5535 = vadd.f32 0.0, %v5534
      %v5536 = vpop.f32.mrb[0].mxu0
      %v5537 = vpop.f32.mrb[0].mxu0
      %v5538 = vadd.f32 0.0, %v5537
      %v5539 = vpop.f32.mrb[0].mxu0
      %5540 = vmatprep.mubr.bf16.mxu0 0
      %5541 = vmatmul.mubr.bf16.gmra.mrb[0].mxu0 %v5267
      %v5542 = vpop.f32.mrb[0].mxu0
      %v5543 = vadd.f32 0.0, %v5542
      %v5544 = vpop.f32.mrb[0].mxu0
      %v5545 = vpop.f32.mrb[0].mxu0
      %v5546 = vadd.f32 0.0, %v5545
      %v5547 = vpop.f32.mrb[0].mxu0
      %5548 = vmatprep.mubr.bf16.mxu0 0
      %5549 = vmatmul.mubr.bf16.gmra.mrb[0].mxu0 %v5270
      %v5550 = vpop.f32.mrb[0].mxu0
      %v5551 = vadd.f32 0.0, %v5550
      %v5552 = vpop.f32.mrb[0].mxu0
      %v5553 = vpop.f32.mrb[0].mxu0
      %v5554 = vadd.f32 0.0, %v5553
      %v5555 = vpop.f32.mrb[0].mxu0
      %5556 = vmatprep.mubr.bf16.mxu0 0
      %5557 = vmatmul.mubr.bf16.gmra.mrb[0].mxu0 %v5273
      %v5558 = vpop.f32.mrb[0].mxu0
      %v5559 = vadd.f32 0.0, %v5558
      %v5560 = vpop.f32.mrb[0].mxu0
      %v5561 = vpop.f32.mrb[0].mxu0
      %v5562 = vadd.f32 0.0, %v5561
      %v5563 = vpop.f32.mrb[0].mxu0
      %5564 = vmatprep.mubr.bf16.mxu0 0
      %5565 = vmatmul.mubr.bf16.gmra.mrb[0].mxu0 %v5276
      %v5566 = vpop.f32.mrb[0].mxu0
      %v5567 = vadd.f32 0.0, %v5566
      %v5568 = vpop.f32.mrb[0].mxu0
      %v5569 = vpop.f32.mrb[0].mxu0
      %v5570 = vadd.f32 0.0, %v5569
      %v5571 = vpop.f32.mrb[0].mxu0
      %5572 = vmatprep.mubr.bf16.mxu0 0
      %5573 = vmatmul.mubr.bf16.gmra.mrb[0].mxu0 %v5279
      %v5574 = vpop.f32.mrb[0].mxu0
      %v5575 = vadd.f32 0.0, %v5574
      %v5576 = vpop.f32.mrb[0].mxu0
      %v5577 = vpop.f32.mrb[0].mxu0
      %v5578 = vadd.f32 0.0, %v5577
      %v5579 = vpop.f32.mrb[0].mxu0
      %5580 = vmatprep.mubr.bf16.mxu0 0
      %5581 = vmatmul.mubr.bf16.gmra.mrb[0].mxu0 %v5282
      %v5582 = vpop.f32.mrb[0].mxu0
      %v5583 = vadd.f32 0.0, %v5582
      %v5584 = vpop.f32.mrb[0].mxu0
      %v5585 = vpop.f32.mrb[0].mxu0
      %v5586 = vadd.f32 0.0, %v5585
      %v5587 = vpop.f32.mrb[0].mxu0
      %5588 = vmatprep.mubr.bf16.mxu0 0
      %5589 = vmatmul.mubr.bf16.gmra.mrb[0].mxu0 %v5285
      %v5590 = vpop.f32.mrb[0].mxu0
      %v5591 = vadd.f32 0.0, %v5590
      %v5592 = vpop.f32.mrb[0].mxu0
      %v5593 = vpop.f32.mrb[0].mxu0
      %v5594 = vadd.f32 0.0, %v5593
      %v5595 = vpop.f32.mrb[0].mxu0
      %5596 = vmatprep.mubr.bf16.mxu0 0
      %5597 = vmatmul.mubr.bf16.gmra.mrb[0].mxu0 %v5288
      %v5598 = vpop.f32.mrb[0].mxu0
      %v5599 = vadd.f32 0.0, %v5598
      %v5600 = vpop.f32.mrb[0].mxu0
      %v5601 = vpop.f32.mrb[0].mxu0
      %v5602 = vadd.f32 0.0, %v5601
      %v5603 = vpop.f32.mrb[0].mxu0
      %5604 = vmatprep.mubr.bf16.mxu0 0
      %5605 = vmatmul.mubr.bf16.gmra.mrb[0].mxu0 %v5291
      %v5606 = vpop.f32.mrb[0].mxu0
      %v5607 = vadd.f32 0.0, %v5606
      %v5608 = vpop.f32.mrb[0].mxu0
      %v5609 = vpop.f32.mrb[0].mxu0
      %v5610 = vadd.f32 0.0, %v5609
      %v5611 = vpop.f32.mrb[0].mxu0
      %5612 = vmatprep.mubr.bf16.mxu0 0
      %5613 = vmatmul.mubr.bf16.gmra.mrb[0].mxu0 %v5294
      %v5614 = vpop.f32.mrb[0].mxu0
      %v5615 = vadd.f32 0.0, %v5614
      %v5616 = vpop.f32.mrb[0].mxu0
      %v5617 = vpop.f32.mrb[0].mxu0
      %v5618 = vadd.f32 0.0, %v5617
      %v5619 = vpop.f32.mrb[0].mxu0
      %5620 = vmatprep.mubr.bf16.mxu0 0
      %5621 = vmatmul.mubr.bf16.gmra.mrb[0].mxu0 %v5297
      %v5622 = vpop.f32.mrb[0].mxu0
      %v5623 = vadd.f32 0.0, %v5622
      %v5624 = vpop.f32.mrb[0].mxu0
      %v5625 = vpop.f32.mrb[0].mxu0
      %v5626 = vadd.f32 0.0, %v5625
      %v5627 = vpop.f32.mrb[0].mxu0
      %5628 = vmatprep.mubr.bf16.mxu0 0
      %5629 = vmatmul.mubr.bf16.gmra.mrb[0].mxu0 %v5300
      %v5630 = vpop.f32.mrb[0].mxu0
      %v5631 = vadd.f32 0.0, %v5630
      %v5632 = vpop.f32.mrb[0].mxu0
      %v5633 = vpop.f32.mrb[0].mxu0
      %v5634 = vadd.f32 0.0, %v5633
      %v5635 = vpop.f32.mrb[0].mxu0
      %5636 = vmatprep.mubr.bf16.mxu0 0
      %5637 = vmatmul.mubr.bf16.gmra.mrb[0].mxu0 %v5303
      %v5638 = vpop.f32.mrb[0].mxu0
      %v5639 = vadd.f32 0.0, %v5638
      %v5640 = vpop.f32.mrb[0].mxu0
      %v5641 = vpop.f32.mrb[0].mxu0
      %v5642 = vadd.f32 0.0, %v5641
      %v5643 = vpop.f32.mrb[0].mxu0
      %5644 = vmatprep.mubr.bf16.mxu0 0
      %5645 = vmatmul.mubr.bf16.gmra.mrb[0].mxu0 %v5306
      %v5646 = vpop.f32.mrb[0].mxu0
      %v5647 = vadd.f32 0.0, %v5646
      %v5648 = vpop.f32.mrb[0].mxu0
      %v5649 = vpop.f32.mrb[0].mxu0
      %v5650 = vadd.f32 0.0, %v5649
      %v5651 = vpop.f32.mrb[0].mxu0
      %5652 = vmatprep.mubr.bf16.mxu0 0
      %5653 = vmatmul.mubr.bf16.gmra.mrb[0].mxu0 %v5309
      %v5654 = vpop.f32.mrb[0].mxu0
      %v5655 = vadd.f32 0.0, %v5654
      %v5656 = vpop.f32.mrb[0].mxu0
      %v5657 = vpop.f32.mrb[0].mxu0
      %v5658 = vadd.f32 0.0, %v5657
      %v5659 = vpop.f32.mrb[0].mxu0
      %5660 = vmatprep.mubr.bf16.mxu0 0
      %5661 = vmatmul.mubr.bf16.gmra.mrb[0].mxu0 %v5312
      %v5662 = vpop.f32.mrb[0].mxu0
      %v5663 = vadd.f32 0.0, %v5662
      %v5664 = vpop.f32.mrb[0].mxu0
      %v5665 = vpop.f32.mrb[0].mxu0
      %v5666 = vadd.f32 0.0, %v5665
      %v5667 = vpop.f32.mrb[0].mxu0
      %5668 = vmatprep.mubr.bf16.mxu0 0
      %5669 = vmatmul.mubr.bf16.gmra.mrb[0].mxu0 %v5315
      %v5670 = vpop.f32.mrb[0].mxu0
      %v5671 = vadd.f32 0.0, %v5670
      %v5672 = vpop.f32.mrb[0].mxu0
      %v5673 = vpop.f32.mrb[0].mxu0
      %v5674 = vadd.f32 0.0, %v5673
      %v5675 = vpop.f32.mrb[0].mxu0
      %5676 = vmatprep.mubr.bf16.mxu0 0
      %5677 = vmatmul.mubr.bf16.gmra.mrb[0].mxu0 %v5318
      %v5678 = vpop.f32.mrb[0].mxu0
      %v5679 = vadd.f32 0.0, %v5678
      %v5680 = vpop.f32.mrb[0].mxu0
      %v5681 = vpop.f32.mrb[0].mxu0
      %v5682 = vadd.f32 0.0, %v5681
      %v5683 = vpop.f32.mrb[0].mxu0
      %5684 = vmatprep.mubr.bf16.mxu0 0
      %5685 = vmatmul.mubr.bf16.gmra.mrb[0].mxu0 %v5321
      %v5686 = vpop.f32.mrb[0].mxu0
      %v5687 = vadd.f32 0.0, %v5686
      %v5688 = vpop.f32.mrb[0].mxu0
      %v5689 = vpop.f32.mrb[0].mxu0
      %v5690 = vadd.f32 0.0, %v5689
      %v5691 = vpop.f32.mrb[0].mxu0
      %5692 = vmatprep.mubr.bf16.mxu0 0
      %5693 = vmatmul.mubr.bf16.gmra.mrb[0].mxu0 %v5324
      %v5694 = vpop.f32.mrb[0].mxu0
      %v5695 = vadd.f32 0.0, %v5694
      %v5696 = vpop.f32.mrb[0].mxu0
      %v5697 = vpop.f32.mrb[0].mxu0
      %v5698 = vadd.f32 0.0, %v5697
      %v5699 = vpop.f32.mrb[0].mxu0
      %5700 = vmatprep.mubr.bf16.mxu0 0
      %5701 = vmatmul.mubr.bf16.gmra.mrb[0].mxu0 %v5327
      %v5702 = vpop.f32.mrb[0].mxu0
      %v5703 = vadd.f32 0.0, %v5702
      %v5704 = vpop.f32.mrb[0].mxu0
      %v5705 = vpop.f32.mrb[0].mxu0
      %v5706 = vadd.f32 0.0, %v5705
      %v5707 = vpop.f32.mrb[0].mxu0
      %5708 = vmatprep.mubr.bf16.mxu0 0
      %5709 = vmatmul.mubr.bf16.gmra.mrb[0].mxu0 %v5330
      %v5710 = vpop.f32.mrb[0].mxu0
      %v5711 = vadd.f32 0.0, %v5710
      %v5712 = vpop.f32.mrb[0].mxu0
      %v5713 = vpop.f32.mrb[0].mxu0
      %v5714 = vadd.f32 0.0, %v5713
      %v5715 = vpop.f32.mrb[0].mxu0
      %5716 = vmatprep.mubr.bf16.mxu0 0
      %5717 = vmatmul.mubr.bf16.gmra.mrb[0].mxu0 %v5333
      %v5718 = vpop.f32.mrb[0].mxu0
      %v5719 = vadd.f32 0.0, %v5718
      %v5720 = vpop.f32.mrb[0].mxu0
      %v5721 = vpop.f32.mrb[0].mxu0
      %v5722 = vadd.f32 0.0, %v5721
      %v5723 = vpop.f32.mrb[0].mxu0
      %5724 = vmatprep.mubr.bf16.mxu0 0
      %5725 = vmatmul.mubr.bf16.gmra.mrb[0].mxu0 %v5336
      %v5726 = vpop.f32.mrb[0].mxu0
      %v5727 = vadd.f32 0.0, %v5726
      %v5728 = vpop.f32.mrb[0].mxu0
      %v5729 = vpop.f32.mrb[0].mxu0
      %v5730 = vadd.f32 0.0, %v5729
      %v5731 = vpop.f32.mrb[0].mxu0
      %5732 = vmatprep.mubr.bf16.mxu0 0
      %5733 = vmatmul.mubr.bf16.gmra.mrb[0].mxu0 %v5339
      %v5734 = vpop.f32.mrb[0].mxu0
      %v5735 = vadd.f32 0.0, %v5734
      %v5736 = vpop.f32.mrb[0].mxu0
      %v5737 = vpop.f32.mrb[0].mxu0
      %v5738 = vadd.f32 0.0, %v5737
      %v5739 = vpop.f32.mrb[0].mxu0
      %5740 = vmatprep.mubr.bf16.mxu0 0
      %5741 = vmatmul.mubr.bf16.gmra.mrb[0].mxu0 %v5342
      %v5742 = vpop.f32.mrb[0].mxu0
      %v5743 = vadd.f32 0.0, %v5742
      %v5744 = vpop.f32.mrb[0].mxu0
      %v5745 = vpop.f32.mrb[0].mxu0
      %v5746 = vadd.f32 0.0, %v5745
      %v5747 = vpop.f32.mrb[0].mxu0
      %5748 = vmatprep.mubr.bf16.mxu0 0
      %5749 = vmatmul.mubr.bf16.gmra.mrb[0].mxu0 %v5345
      %v5750 = vpop.f32.mrb[0].mxu0
      %v5751 = vadd.f32 0.0, %v5750
      %v5752 = vpop.f32.mrb[0].mxu0
      %v5753 = vpop.f32.mrb[0].mxu0
      %v5754 = vadd.f32 0.0, %v5753
      %v5755 = vpop.f32.mrb[0].mxu0
      %5756 = vmatprep.mubr.bf16.mxu0 0
      %5757 = vmatmul.mubr.bf16.gmra.mrb[0].mxu0 %v5348
      %v5758 = vpop.f32.mrb[0].mxu0
      %v5759 = vadd.f32 0.0, %v5758
      %v5760 = vpop.f32.mrb[0].mxu0
      %v5761 = vpop.f32.mrb[0].mxu0
      %v5762 = vadd.f32 0.0, %v5761
      %v5763 = vpop.f32.mrb[0].mxu0
      %5764 = vmatprep.mubr.bf16.mxu0 0
      %5765 = vmatmul.mubr.bf16.gmra.mrb[0].mxu0 %v5351
      %v5766 = vpop.f32.mrb[0].mxu0
      %v5767 = vadd.f32 0.0, %v5766
      %v5768 = vpop.f32.mrb[0].mxu0
      %v5769 = vpop.f32.mrb[0].mxu0
      %v5770 = vadd.f32 0.0, %v5769
      %v5771 = vpop.f32.mrb[0].mxu0
      %5772 = vmatprep.mubr.bf16.mxu0 0
      %5773 = vmatmul.mubr.bf16.gmra.mrb[0].mxu0 %v5354
      %v5774 = vpop.f32.mrb[0].mxu0
      %v5775 = vadd.f32 0.0, %v5774
      %v5776 = vpop.f32.mrb[0].mxu0
      %v5777 = vpop.f32.mrb[0].mxu0
      %v5778 = vadd.f32 0.0, %v5777
      %v5779 = vpop.f32.mrb[0].mxu0
      %5780 = vmatprep.mubr.bf16.mxu0 0
      %5781 = vmatmul.mubr.bf16.gmra.mrb[0].mxu0 %v5357
      %v5782 = vpop.f32.mrb[0].mxu0
      %v5783 = vadd.f32 0.0, %v5782
      %v5784 = vpop.f32.mrb[0].mxu0
      %v5785 = vpop.f32.mrb[0].mxu0
      %v5786 = vadd.f32 0.0, %v5785
      %v5787 = vpop.f32.mrb[0].mxu0
      %5788 = vmatprep.mubr.bf16.mxu0 0
      %5789 = vmatmul.mubr.bf16.gmra.mrb[0].mxu0 %v5360
      %v5790 = vpop.f32.mrb[0].mxu0
      %v5791 = vadd.f32 0.0, %v5790
      %v5792 = vpop.f32.mrb[0].mxu0
      %v5793 = vpop.f32.mrb[0].mxu0
      %v5794 = vadd.f32 0.0, %v5793
      %v5795 = vpop.f32.mrb[0].mxu0
      %5796 = vmatprep.mubr.bf16.mxu0 0
      %5797 = vmatmul.mubr.bf16.gmra.mrb[0].mxu0 %v5363
      %v5798 = vpop.f32.mrb[0].mxu0
      %v5799 = vadd.f32 0.0, %v5798
      %v5800 = vpop.f32.mrb[0].mxu0
      %v5801 = vpop.f32.mrb[0].mxu0
      %v5802 = vadd.f32 0.0, %v5801
      %v5803 = vpop.f32.mrb[0].mxu0
      %5804 = vmatprep.mubr.bf16.mxu0 0
      %5805 = vmatmul.mubr.bf16.gmra.mrb[0].mxu0 %v5366
      %v5806 = vpop.f32.mrb[0].mxu0
      %v5807 = vadd.f32 0.0, %v5806
      %v5808 = vpop.f32.mrb[0].mxu0
      %v5809 = vpop.f32.mrb[0].mxu0
      %v5810 = vadd.f32 0.0, %v5809
      %v5811 = vpop.f32.mrb[0].mxu0
      %5812 = vmatprep.mubr.bf16.mxu0 0
      %5813 = vmatmul.mubr.bf16.gmra.mrb[0].mxu0 %v5369
      %v5814 = vpop.f32.mrb[0].mxu0
      %v5815 = vadd.f32 0.0, %v5814
      %v5816 = vpop.f32.mrb[0].mxu0
      %v5817 = vpop.f32.mrb[0].mxu0
      %v5818 = vadd.f32 0.0, %v5817
      %v5819 = vpop.f32.mrb[0].mxu0
      %5820 = vmatprep.mubr.bf16.mxu0 0
      %5821 = vmatmul.mubr.bf16.gmra.mrb[0].mxu0 %v5372
      %v5822 = vpop.f32.mrb[0].mxu0
      %v5823 = vadd.f32 0.0, %v5822
      %v5824 = vpop.f32.mrb[0].mxu0
      %v5825 = vpop.f32.mrb[0].mxu0
      %v5826 = vadd.f32 0.0, %v5825
      %v5827 = vpop.f32.mrb[0].mxu0
      %5828 = vmatprep.mubr.bf16.mxu0 0
      %5829 = vmatmul.mubr.bf16.gmra.mrb[0].mxu0 %v5375
      %v5830 = vpop.f32.mrb[0].mxu0
      %v5831 = vadd.f32 0.0, %v5830
      %v5832 = vpop.f32.mrb[0].mxu0
      %v5833 = vpop.f32.mrb[0].mxu0
      %v5834 = vadd.f32 0.0, %v5833
      %v5835 = vpop.f32.mrb[0].mxu0
      %5836 = vmatprep.mubr.bf16.mxu0 0
      %5837 = vmatmul.mubr.bf16.gmra.mrb[0].mxu0 %v5378
      %v5838 = vpop.f32.mrb[0].mxu0
      %v5839 = vadd.f32 0.0, %v5838
      %v5840 = vpop.f32.mrb[0].mxu0
      %v5841 = vpop.f32.mrb[0].mxu0
      %v5842 = vadd.f32 0.0, %v5841
      %v5843 = vpop.f32.mrb[0].mxu0
      %5844 = vmatprep.mubr.bf16.mxu0 0
      %5845 = vmatmul.mubr.bf16.gmra.mrb[0].mxu0 %v5381
      %v5846 = vpop.f32.mrb[0].mxu0
      %v5847 = vadd.f32 0.0, %v5846
      %v5848 = vpop.f32.mrb[0].mxu0
      %v5849 = vpop.f32.mrb[0].mxu0
      %v5850 = vadd.f32 0.0, %v5849
      %v5851 = vpop.f32.mrb[0].mxu0
      %5852 = vmatprep.mubr.bf16.mxu0 0
      %5853 = vmatmul.mubr.bf16.gmra.mrb[0].mxu0 %v5384
      %v5854 = vpop.f32.mrb[0].mxu0
      %v5855 = vadd.f32 0.0, %v5854
      %v5856 = vpop.f32.mrb[0].mxu0
      %v5857 = vpop.f32.mrb[0].mxu0
      %v5858 = vadd.f32 0.0, %v5857
      %v5859 = vpop.f32.mrb[0].mxu0
      %5860 = vmatprep.mubr.bf16.mxu0 0
      %5861 = vmatmul.mubr.bf16.gmra.mrb[0].mxu0 %v5387
      %v5862 = vpop.f32.mrb[0].mxu0
      %v5863 = vadd.f32 0.0, %v5862
      %v5864 = vpop.f32.mrb[0].mxu0
      %v5865 = vpop.f32.mrb[0].mxu0
      %v5866 = vadd.f32 0.0, %v5865
      %v5867 = vpop.f32.mrb[0].mxu0
      %5868 = vmatprep.mubr.bf16.mxu0 0
      %5869 = vmatmul.mubr.bf16.gmra.mrb[0].mxu0 %v5390
      %v5870 = vpop.f32.mrb[0].mxu0
      %v5871 = vadd.f32 0.0, %v5870
      %v5872 = vpop.f32.mrb[0].mxu0
      %v5873 = vpop.f32.mrb[0].mxu0
      %v5874 = vadd.f32 0.0, %v5873
      %v5875 = vpop.f32.mrb[0].mxu0
      %5876 = vmatprep.mubr.bf16.mxu0 0
      %5877 = vmatmul.mubr.bf16.gmra.mrb[0].mxu0 %v5393
      %v5878 = vpop.f32.mrb[0].mxu0
      %v5879 = vadd.f32 0.0, %v5878
      %v5880 = vpop.f32.mrb[0].mxu0
      %v5881 = vpop.f32.mrb[0].mxu0
      %v5882 = vadd.f32 0.0, %v5881
      %v5883 = vpop.f32.mrb[0].mxu0
      %5884 = vmatprep.mubr.bf16.mxu0 0
      %5885 = vmatmul.mubr.bf16.gmra.mrb[0].mxu0 %v5396
      %v5886 = vpop.f32.mrb[0].mxu0
      %v5887 = vadd.f32 0.0, %v5886
      %v5888 = vpop.f32.mrb[0].mxu0
      %v5889 = vpop.f32.mrb[0].mxu0
      %v5890 = vadd.f32 0.0, %v5889
      %v5891 = vpop.f32.mrb[0].mxu0
      %5892 = vmatprep.mubr.bf16.mxu0 0
      %5893 = vmatmul.mubr.bf16.gmra.mrb[0].mxu0 %v5399
      %v5894 = vpop.f32.mrb[0].mxu0
      %v5895 = vadd.f32 0.0, %v5894
      %v5896 = vpop.f32.mrb[0].mxu0
      %v5897 = vpop.f32.mrb[0].mxu0
      %v5898 = vadd.f32 0.0, %v5897
      %v5899 = vpop.f32.mrb[0].mxu0
      %5900 = vmatprep.mubr.bf16.mxu0 0
      %5901 = vmatmul.mubr.bf16.gmra.mrb[0].mxu0 %v5402
      %v5902 = vpop.f32.mrb[0].mxu0
      %v5903 = vadd.f32 0.0, %v5902
      %v5904 = vpop.f32.mrb[0].mxu0
      %v5905 = vpop.f32.mrb[0].mxu0
      %v5906 = vadd.f32 0.0, %v5905
      %v5907 = vpop.f32.mrb[0].mxu0
      %5908 = vmatprep.mubr.bf16.mxu0 0
      %5909 = vmatmul.mubr.bf16.gmra.mrb[0].mxu0 %v5405
      %v5910 = vpop.f32.mrb[0].mxu0
      %v5911 = vadd.f32 0.0, %v5910
      %v5912 = vpop.f32.mrb[0].mxu0
      %v5913 = vpop.f32.mrb[0].mxu0
      %v5914 = vadd.f32 0.0, %v5913
      %v5915 = vpop.f32.mrb[0].mxu0
      %5916 = vmatprep.mubr.bf16.mxu0 0
      %5917 = vmatmul.mubr.bf16.gmra.mrb[0].mxu0 %v5408
      %v5918 = vpop.f32.mrb[0].mxu0
      %v5919 = vadd.f32 0.0, %v5918
      %v5920 = vpop.f32.mrb[0].mxu0
      %v5921 = vpop.f32.mrb[0].mxu0
      %v5922 = vadd.f32 0.0, %v5921
      %v5923 = vpop.f32.mrb[0].mxu0
      %5924 = vmatprep.mubr.bf16.mxu0 0
      %5925 = vmatmul.mubr.bf16.gmra.mrb[0].mxu0 %v5411
      %v5926 = vpop.f32.mrb[0].mxu0
      %v5927 = vadd.f32 0.0, %v5926
      %v5928 = vpop.f32.mrb[0].mxu0
      %v5929 = vpop.f32.mrb[0].mxu0
      %v5930 = vadd.f32 0.0, %v5929
      %v5931 = vpop.f32.mrb[0].mxu0
      %5932 = vmatprep.mubr.bf16.mxu0 0
      %5933 = vmatmul.mubr.bf16.gmra.mrb[0].mxu0 %v5414
      %v5934 = vpop.f32.mrb[0].mxu0
      %v5935 = vadd.f32 0.0, %v5934
      %v5936 = vpop.f32.mrb[0].mxu0
      %v5937 = vpop.f32.mrb[0].mxu0
      %v5938 = vadd.f32 0.0, %v5937
      %v5939 = vpop.f32.mrb[0].mxu0
      %5940 = vmatprep.mubr.bf16.mxu0 0
      %5941 = vmatmul.mubr.bf16.gmra.mrb[0].mxu0 %v5417
      %v5942 = vpop.f32.mrb[0].mxu0
      %v5943 = vadd.f32 0.0, %v5942
      %v5944 = vpop.f32.mrb[0].mxu0
      %v5945 = vpop.f32.mrb[0].mxu0
      %v5946 = vadd.f32 0.0, %v5945
      %v5947 = vpop.f32.mrb[0].mxu0
      %5948 = vmatprep.mubr.bf16.mxu0 0
      %5949 = vmatmul.mubr.bf16.gmra.mrb[0].mxu0 %v5420
      %v5950 = vpop.f32.mrb[0].mxu0
      %v5951 = vadd.f32 0.0, %v5950
      %v5952 = vpop.f32.mrb[0].mxu0
      %v5953 = vpop.f32.mrb[0].mxu0
      %v5954 = vadd.f32 0.0, %v5953
      %v5955 = vpop.f32.mrb[0].mxu0
      %5956 = vmatprep.mubr.bf16.mxu0 0
      %5957 = vmatmul.mubr.bf16.gmra.mrb[0].mxu0 %v5423
      %v5958 = vpop.f32.mrb[0].mxu0
      %v5959 = vadd.f32 0.0, %v5958
      %v5960 = vpop.f32.mrb[0].mxu0
      %v5961 = vpop.f32.mrb[0].mxu0
      %v5962 = vadd.f32 0.0, %v5961
      %v5963 = vpop.f32.mrb[0].mxu0
      %5964 = vmatprep.mubr.bf16.mxu0 0
      %5965 = vmatmul.mubr.bf16.gmra.mrb[0].mxu0 %v5426
      %v5966 = vpop.f32.mrb[0].mxu0
      %v5967 = vadd.f32 0.0, %v5966
      %v5968 = vpop.f32.mrb[0].mxu0
      %v5969 = vpop.f32.mrb[0].mxu0
      %v5970 = vadd.f32 0.0, %v5969
      %v5971 = vpop.f32.mrb[0].mxu0
      %5972 = vdwg.mxu0
      %vm5973 = vcmask 261120
      %5974 = vst.msk [vmem:[#allocation3] sm:$0xff] %vm5973, %v5463
      %5975 = vst.msk [vmem:[#allocation3 + $0x8] sm:$0xff] %vm5973, %v5466
      %5976 = vst.msk [vmem:[#allocation3 + $0x10] sm:$0xff] %vm5973, %v5471
      %5977 = vst.msk [vmem:[#allocation3 + $0x18] sm:$0xff] %vm5973, %v5474
      %5978 = vst.msk [vmem:[#allocation3 + $0x20] sm:$0xff] %vm5973, %v5479
      %5979 = vst.msk [vmem:[#allocation3 + $0x28] sm:$0xff] %vm5973, %v5482
      %5980 = vst.msk [vmem:[#allocation3 + $0x30] sm:$0xff] %vm5973, %v5487
      %5981 = vst.msk [vmem:[#allocation3 + $0x38] sm:$0xff] %vm5973, %v5490
      %5982 = vst.msk [vmem:[#allocation3 + $0x40] sm:$0xff] %vm5973, %v5495
      %5983 = vst.msk [vmem:[#allocation3 + $0x48] sm:$0xff] %vm5973, %v5498
      %5984 = vst.msk [vmem:[#allocation3 + $0x50] sm:$0xff] %vm5973, %v5503
      %5985 = vst.msk [vmem:[#allocation3 + $0x58] sm:$0xff] %vm5973, %v5506
      %5986 = vst.msk [vmem:[#allocation3 + $0x60] sm:$0xff] %vm5973, %v5511
      %5987 = vst.msk [vmem:[#allocation3 + $0x68] sm:$0xff] %vm5973, %v5514
      %5988 = vst.msk [vmem:[#allocation3 + $0x70] sm:$0xff] %vm5973, %v5519
      %5989 = vst.msk [vmem:[#allocation3 + $0x78] sm:$0xff] %vm5973, %v5522
      %5990 = vst.msk [vmem:[#allocation3 + $0x80] sm:$0xff] %vm5973, %v5527
      %5991 = vst.msk [vmem:[#allocation3 + $0x88] sm:$0xff] %vm5973, %v5530
      %5992 = vst.msk [vmem:[#allocation3 + $0x90] sm:$0xff] %vm5973, %v5535
      %5993 = vst.msk [vmem:[#allocation3 + $0x98] sm:$0xff] %vm5973, %v5538
      %5994 = vst.msk [vmem:[#allocation3 + $0xa0] sm:$0xff] %vm5973, %v5543
      %5995 = vst.msk [vmem:[#allocation3 + $0xa8] sm:$0xff] %vm5973, %v5546
      %5996 = vst.msk [vmem:[#allocation3 + $0xb0] sm:$0xff] %vm5973, %v5551
      %5997 = vst.msk [vmem:[#allocation3 + $0xb8] sm:$0xff] %vm5973, %v5554
      %5998 = vst.msk [vmem:[#allocation3 + $0xc0] sm:$0xff] %vm5973, %v5559
      %5999 = vst.msk [vmem:[#allocation3 + $0xc8] sm:$0xff] %vm5973, %v5562
      %6000 = vst.msk [vmem:[#allocation3 + $0xd0] sm:$0xff] %vm5973, %v5567
      %6001 = vst.msk [vmem:[#allocation3 + $0xd8] sm:$0xff] %vm5973, %v5570
      %6002 = vst.msk [vmem:[#allocation3 + $0xe0] sm:$0xff] %vm5973, %v5575
      %6003 = vst.msk [vmem:[#allocation3 + $0xe8] sm:$0xff] %vm5973, %v5578
      %6004 = vst.msk [vmem:[#allocation3 + $0xf0] sm:$0xff] %vm5973, %v5583
      %6005 = vst.msk [vmem:[#allocation3 + $0xf8] sm:$0xff] %vm5973, %v5586
      %6006 = vst.msk [vmem:[#allocation3 + $0x100] sm:$0xff] %vm5973, %v5591
      %6007 = vst.msk [vmem:[#allocation3 + $0x108] sm:$0xff] %vm5973, %v5594
      %6008 = vst.msk [vmem:[#allocation3 + $0x110] sm:$0xff] %vm5973, %v5599
      %6009 = vst.msk [vmem:[#allocation3 + $0x118] sm:$0xff] %vm5973, %v5602
      %6010 = vst.msk [vmem:[#allocation3 + $0x120] sm:$0xff] %vm5973, %v5607
      %6011 = vst.msk [vmem:[#allocation3 + $0x128] sm:$0xff] %vm5973, %v5610
      %6012 = vst.msk [vmem:[#allocation3 + $0x130] sm:$0xff] %vm5973, %v5615
      %6013 = vst.msk [vmem:[#allocation3 + $0x138] sm:$0xff] %vm5973, %v5618
      %6014 = vst.msk [vmem:[#allocation3 + $0x140] sm:$0xff] %vm5973, %v5623
      %6015 = vst.msk [vmem:[#allocation3 + $0x148] sm:$0xff] %vm5973, %v5626
      %6016 = vst.msk [vmem:[#allocation3 + $0x150] sm:$0xff] %vm5973, %v5631
      %6017 = vst.msk [vmem:[#allocation3 + $0x158] sm:$0xff] %vm5973, %v5634
      %6018 = vst.msk [vmem:[#allocation3 + $0x160] sm:$0xff] %vm5973, %v5639
      %6019 = vst.msk [vmem:[#allocation3 + $0x168] sm:$0xff] %vm5973, %v5642
      %6020 = vst.msk [vmem:[#allocation3 + $0x170] sm:$0xff] %vm5973, %v5647
      %6021 = vst.msk [vmem:[#allocation3 + $0x178] sm:$0xff] %vm5973, %v5650
      %6022 = vst.msk [vmem:[#allocation3 + $0x180] sm:$0xff] %vm5973, %v5655
      %6023 = vst.msk [vmem:[#allocation3 + $0x188] sm:$0xff] %vm5973, %v5658
      %6024 = vst.msk [vmem:[#allocation3 + $0x190] sm:$0xff] %vm5973, %v5663
      %6025 = vst.msk [vmem:[#allocation3 + $0x198] sm:$0xff] %vm5973, %v5666
      %6026 = vst.msk [vmem:[#allocation3 + $0x1a0] sm:$0xff] %vm5973, %v5671
      %6027 = vst.msk [vmem:[#allocation3 + $0x1a8] sm:$0xff] %vm5973, %v5674
      %6028 = vst.msk [vmem:[#allocation3 + $0x1b0] sm:$0xff] %vm5973, %v5679
      %6029 = vst.msk [vmem:[#allocation3 + $0x1b8] sm:$0xff] %vm5973, %v5682
      %6030 = vst.msk [vmem:[#allocation3 + $0x1c0] sm:$0xff] %vm5973, %v5687
      %6031 = vst.msk [vmem:[#allocation3 + $0x1c8] sm:$0xff] %vm5973, %v5690
      %6032 = vst.msk [vmem:[#allocation3 + $0x1d0] sm:$0xff] %vm5973, %v5695
      %6033 = vst.msk [vmem:[#allocation3 + $0x1d8] sm:$0xff] %vm5973, %v5698
      %6034 = vst.msk [vmem:[#allocation3 + $0x1e0] sm:$0xff] %vm5973, %v5703
      %6035 = vst.msk [vmem:[#allocation3 + $0x1e8] sm:$0xff] %vm5973, %v5706
      %6036 = vst.msk [vmem:[#allocation3 + $0x1f0] sm:$0xff] %vm5973, %v5711
      %6037 = vst.msk [vmem:[#allocation3 + $0x1f8] sm:$0xff] %vm5973, %v5714
      %6038 = vst.msk [vmem:[#allocation3 + $0x200] sm:$0xff] %vm5973, %v5719
      %6039 = vst.msk [vmem:[#allocation3 + $0x208] sm:$0xff] %vm5973, %v5722
      %6040 = vst.msk [vmem:[#allocation3 + $0x210] sm:$0xff] %vm5973, %v5727
      %6041 = vst.msk [vmem:[#allocation3 + $0x218] sm:$0xff] %vm5973, %v5730
      %6042 = vst.msk [vmem:[#allocation3 + $0x220] sm:$0xff] %vm5973, %v5735
      %6043 = vst.msk [vmem:[#allocation3 + $0x228] sm:$0xff] %vm5973, %v5738
      %6044 = vst.msk [vmem:[#allocation3 + $0x230] sm:$0xff] %vm5973, %v5743
      %6045 = vst.msk [vmem:[#allocation3 + $0x238] sm:$0xff] %vm5973, %v5746
      %6046 = vst.msk [vmem:[#allocation3 + $0x240] sm:$0xff] %vm5973, %v5751
      %6047 = vst.msk [vmem:[#allocation3 + $0x248] sm:$0xff] %vm5973, %v5754
      %6048 = vst.msk [vmem:[#allocation3 + $0x250] sm:$0xff] %vm5973, %v5759
      %6049 = vst.msk [vmem:[#allocation3 + $0x258] sm:$0xff] %vm5973, %v5762
      %6050 = vst.msk [vmem:[#allocation3 + $0x260] sm:$0xff] %vm5973, %v5767
      %6051 = vst.msk [vmem:[#allocation3 + $0x268] sm:$0xff] %vm5973, %v5770
      %6052 = vst.msk [vmem:[#allocation3 + $0x270] sm:$0xff] %vm5973, %v5775
      %6053 = vst.msk [vmem:[#allocation3 + $0x278] sm:$0xff] %vm5973, %v5778
      %6054 = vst.msk [vmem:[#allocation3 + $0x280] sm:$0xff] %vm5973, %v5783
      %6055 = vst.msk [vmem:[#allocation3 + $0x288] sm:$0xff] %vm5973, %v5786
      %6056 = vst.msk [vmem:[#allocation3 + $0x290] sm:$0xff] %vm5973, %v5791
      %6057 = vst.msk [vmem:[#allocation3 + $0x298] sm:$0xff] %vm5973, %v5794
      %6058 = vst.msk [vmem:[#allocation3 + $0x2a0] sm:$0xff] %vm5973, %v5799
      %6059 = vst.msk [vmem:[#allocation3 + $0x2a8] sm:$0xff] %vm5973, %v5802
      %6060 = vst.msk [vmem:[#allocation3 + $0x2b0] sm:$0xff] %vm5973, %v5807
      %6061 = vst.msk [vmem:[#allocation3 + $0x2b8] sm:$0xff] %vm5973, %v5810
      %6062 = vst.msk [vmem:[#allocation3 + $0x2c0] sm:$0xff] %vm5973, %v5815
      %6063 = vst.msk [vmem:[#allocation3 + $0x2c8] sm:$0xff] %vm5973, %v5818
      %6064 = vst.msk [vmem:[#allocation3 + $0x2d0] sm:$0xff] %vm5973, %v5823
      %6065 = vst.msk [vmem:[#allocation3 + $0x2d8] sm:$0xff] %vm5973, %v5826
      %6066 = vst.msk [vmem:[#allocation3 + $0x2e0] sm:$0xff] %vm5973, %v5831
      %6067 = vst.msk [vmem:[#allocation3 + $0x2e8] sm:$0xff] %vm5973, %v5834
      %6068 = vst.msk [vmem:[#allocation3 + $0x2f0] sm:$0xff] %vm5973, %v5839
      %6069 = vst.msk [vmem:[#allocation3 + $0x2f8] sm:$0xff] %vm5973, %v5842
      %6070 = vst.msk [vmem:[#allocation3 + $0x300] sm:$0xff] %vm5973, %v5847
      %6071 = vst.msk [vmem:[#allocation3 + $0x308] sm:$0xff] %vm5973, %v5850
      %6072 = vst.msk [vmem:[#allocation3 + $0x310] sm:$0xff] %vm5973, %v5855
      %6073 = vst.msk [vmem:[#allocation3 + $0x318] sm:$0xff] %vm5973, %v5858
      %6074 = vst.msk [vmem:[#allocation3 + $0x320] sm:$0xff] %vm5973, %v5863
      %6075 = vst.msk [vmem:[#allocation3 + $0x328] sm:$0xff] %vm5973, %v5866
      %6076 = vst.msk [vmem:[#allocation3 + $0x330] sm:$0xff] %vm5973, %v5871
      %6077 = vst.msk [vmem:[#allocation3 + $0x338] sm:$0xff] %vm5973, %v5874
      %6078 = vst.msk [vmem:[#allocation3 + $0x340] sm:$0xff] %vm5973, %v5879
      %6079 = vst.msk [vmem:[#allocation3 + $0x348] sm:$0xff] %vm5973, %v5882
      %6080 = vst.msk [vmem:[#allocation3 + $0x350] sm:$0xff] %vm5973, %v5887
      %6081 = vst.msk [vmem:[#allocation3 + $0x358] sm:$0xff] %vm5973, %v5890
      %6082 = vst.msk [vmem:[#allocation3 + $0x360] sm:$0xff] %vm5973, %v5895
      %6083 = vst.msk [vmem:[#allocation3 + $0x368] sm:$0xff] %vm5973, %v5898
      %6084 = vst.msk [vmem:[#allocation3 + $0x370] sm:$0xff] %vm5973, %v5903
      %6085 = vst.msk [vmem:[#allocation3 + $0x378] sm:$0xff] %vm5973, %v5906
      %6086 = vst.msk [vmem:[#allocation3 + $0x380] sm:$0xff] %vm5973, %v5911
      %6087 = vst.msk [vmem:[#allocation3 + $0x388] sm:$0xff] %vm5973, %v5914
      %6088 = vst.msk [vmem:[#allocation3 + $0x390] sm:$0xff] %vm5973, %v5919
      %6089 = vst.msk [vmem:[#allocation3 + $0x398] sm:$0xff] %vm5973, %v5922
      %6090 = vst.msk [vmem:[#allocation3 + $0x3a0] sm:$0xff] %vm5973, %v5927
      %6091 = vst.msk [vmem:[#allocation3 + $0x3a8] sm:$0xff] %vm5973, %v5930
      %6092 = vst.msk [vmem:[#allocation3 + $0x3b0] sm:$0xff] %vm5973, %v5935
      %6093 = vst.msk [vmem:[#allocation3 + $0x3b8] sm:$0xff] %vm5973, %v5938
      %6094 = vst.msk [vmem:[#allocation3 + $0x3c0] sm:$0xff] %vm5973, %v5943
      %6095 = vst.msk [vmem:[#allocation3 + $0x3c8] sm:$0xff] %vm5973, %v5946
      %6096 = vst.msk [vmem:[#allocation3 + $0x3d0] sm:$0xff] %vm5973, %v5951
      %6097 = vst.msk [vmem:[#allocation3 + $0x3d8] sm:$0xff] %vm5973, %v5954
      %6098 = vst.msk [vmem:[#allocation3 + $0x3e0] sm:$0xff] %vm5973, %v5959
      %6099 = vst.msk [vmem:[#allocation3 + $0x3e8] sm:$0xff] %vm5973, %v5962
      %6100 = vst.msk [vmem:[#allocation3 + $0x3f0] sm:$0xff] %vm5973, %v5967
      %6101 = vst.msk [vmem:[#allocation3 + $0x3f8] sm:$0xff] %vm5973, %v5970
      %v6102 = vld [vmem:[#allocation3] sm:$0xff]
      %v6103 = vld [vmem:[#allocation3 + $0x8] sm:$0xff]
      %v6104 = vld [vmem:[#allocation3 + $0x10] sm:$0xff]
      %v6105 = vld [vmem:[#allocation3 + $0x18] sm:$0xff]
      %v6106 = vld [vmem:[#allocation3 + $0x20] sm:$0xff]
      %v6107 = vld [vmem:[#allocation3 + $0x28] sm:$0xff]
      %v6108 = vld [vmem:[#allocation3 + $0x30] sm:$0xff]
      %v6109 = vld [vmem:[#allocation3 + $0x38] sm:$0xff]
      %v6110 = vld [vmem:[#allocation3 + $0x40] sm:$0xff]
      %v6111 = vld [vmem:[#allocation3 + $0x48] sm:$0xff]
      %v6112 = vld [vmem:[#allocation3 + $0x50] sm:$0xff]
      %v6113 = vld [vmem:[#allocation3 + $0x58] sm:$0xff]
      %v6114 = vld [vmem:[#allocation3 + $0x60] sm:$0xff]
      %v6115 = vld [vmem:[#allocation3 + $0x68] sm:$0xff]
      %v6116 = vld [vmem:[#allocation3 + $0x70] sm:$0xff]
      %v6117 = vld [vmem:[#allocation3 + $0x78] sm:$0xff]
      %v6118 = vld [vmem:[#allocation3 + $0x80] sm:$0xff]
      %v6119 = vld [vmem:[#allocation3 + $0x88] sm:$0xff]
      %v6120 = vld [vmem:[#allocation3 + $0x90] sm:$0xff]
      %v6121 = vld [vmem:[#allocation3 + $0x98] sm:$0xff]
      %v6122 = vld [vmem:[#allocation3 + $0xa0] sm:$0xff]
      %v6123 = vld [vmem:[#allocation3 + $0xa8] sm:$0xff]
      %v6124 = vld [vmem:[#allocation3 + $0xb0] sm:$0xff]
      %v6125 = vld [vmem:[#allocation3 + $0xb8] sm:$0xff]
      %v6126 = vld [vmem:[#allocation3 + $0xc0] sm:$0xff]
      %v6127 = vld [vmem:[#allocation3 + $0xc8] sm:$0xff]
      %v6128 = vld [vmem:[#allocation3 + $0xd0] sm:$0xff]
      %v6129 = vld [vmem:[#allocation3 + $0xd8] sm:$0xff]
      %v6130 = vld [vmem:[#allocation3 + $0xe0] sm:$0xff]
      %v6131 = vld [vmem:[#allocation3 + $0xe8] sm:$0xff]
      %v6132 = vld [vmem:[#allocation3 + $0xf0] sm:$0xff]
      %v6133 = vld [vmem:[#allocation3 + $0xf8] sm:$0xff]
      %v6134 = vmax.f32 %v6102, %v6118
      %v6135 = vmax.f32 %v6103, %v6119
      %v6136 = vmax.f32 %v6104, %v6120
      %v6137 = vmax.f32 %v6105, %v6121
      %v6138 = vmax.f32 %v6106, %v6122
      %v6139 = vmax.f32 %v6107, %v6123
      %v6140 = vmax.f32 %v6108, %v6124
      %v6141 = vmax.f32 %v6109, %v6125
      %v6142 = vmax.f32 %v6110, %v6126
      %v6143 = vmax.f32 %v6111, %v6127
      %v6144 = vmax.f32 %v6112, %v6128
      %v6145 = vmax.f32 %v6113, %v6129
      %v6146 = vmax.f32 %v6114, %v6130
      %v6147 = vmax.f32 %v6115, %v6131
      %v6148 = vmax.f32 %v6116, %v6132
      %v6149 = vmax.f32 %v6117, %v6133
      %v6150 = vld [vmem:[#allocation3 + $0x100] sm:$0xff]
      %v6151 = vld [vmem:[#allocation3 + $0x108] sm:$0xff]
      %v6152 = vld [vmem:[#allocation3 + $0x110] sm:$0xff]
      %v6153 = vld [vmem:[#allocation3 + $0x118] sm:$0xff]
      %v6154 = vld [vmem:[#allocation3 + $0x120] sm:$0xff]
      %v6155 = vld [vmem:[#allocation3 + $0x128] sm:$0xff]
      %v6156 = vld [vmem:[#allocation3 + $0x130] sm:$0xff]
      %v6157 = vld [vmem:[#allocation3 + $0x138] sm:$0xff]
      %v6158 = vld [vmem:[#allocation3 + $0x140] sm:$0xff]
      %v6159 = vld [vmem:[#allocation3 + $0x148] sm:$0xff]
      %v6160 = vld [vmem:[#allocation3 + $0x150] sm:$0xff]
      %v6161 = vld [vmem:[#allocation3 + $0x158] sm:$0xff]
      %v6162 = vld [vmem:[#allocation3 + $0x160] sm:$0xff]
      %v6163 = vld [vmem:[#allocation3 + $0x168] sm:$0xff]
      %v6164 = vld [vmem:[#allocation3 + $0x170] sm:$0xff]
      %v6165 = vld [vmem:[#allocation3 + $0x178] sm:$0xff]
      %v6166 = vmax.f32 %v6134, %v6150
      %v6167 = vmax.f32 %v6135, %v6151
      %v6168 = vmax.f32 %v6136, %v6152
      %v6169 = vmax.f32 %v6137, %v6153
      %v6170 = vmax.f32 %v6138, %v6154
      %v6171 = vmax.f32 %v6139, %v6155
      %v6172 = vmax.f32 %v6140, %v6156
      %v6173 = vmax.f32 %v6141, %v6157
      %v6174 = vmax.f32 %v6142, %v6158
      %v6175 = vmax.f32 %v6143, %v6159
      %v6176 = vmax.f32 %v6144, %v6160
      %v6177 = vmax.f32 %v6145, %v6161
      %v6178 = vmax.f32 %v6146, %v6162
      %v6179 = vmax.f32 %v6147, %v6163
      %v6180 = vmax.f32 %v6148, %v6164
      %v6181 = vmax.f32 %v6149, %v6165
      %v6182 = vld [vmem:[#allocation3 + $0x180] sm:$0xff]
      %v6183 = vld [vmem:[#allocation3 + $0x188] sm:$0xff]
      %v6184 = vld [vmem:[#allocation3 + $0x190] sm:$0xff]
      %v6185 = vld [vmem:[#allocation3 + $0x198] sm:$0xff]
      %v6186 = vld [vmem:[#allocation3 + $0x1a0] sm:$0xff]
      %v6187 = vld [vmem:[#allocation3 + $0x1a8] sm:$0xff]
      %v6188 = vld [vmem:[#allocation3 + $0x1b0] sm:$0xff]
      %v6189 = vld [vmem:[#allocation3 + $0x1b8] sm:$0xff]
      %v6190 = vld [vmem:[#allocation3 + $0x1c0] sm:$0xff]
      %v6191 = vld [vmem:[#allocation3 + $0x1c8] sm:$0xff]
      %v6192 = vld [vmem:[#allocation3 + $0x1d0] sm:$0xff]
      %v6193 = vld [vmem:[#allocation3 + $0x1d8] sm:$0xff]
      %v6194 = vld [vmem:[#allocation3 + $0x1e0] sm:$0xff]
      %v6195 = vld [vmem:[#allocation3 + $0x1e8] sm:$0xff]
      %v6196 = vld [vmem:[#allocation3 + $0x1f0] sm:$0xff]
      %v6197 = vld [vmem:[#allocation3 + $0x1f8] sm:$0xff]
      %v6198 = vmax.f32 %v6166, %v6182
      %v6199 = vmax.f32 %v6167, %v6183
      %v6200 = vmax.f32 %v6168, %v6184
      %v6201 = vmax.f32 %v6169, %v6185
      %v6202 = vmax.f32 %v6170, %v6186
      %v6203 = vmax.f32 %v6171, %v6187
      %v6204 = vmax.f32 %v6172, %v6188
      %v6205 = vmax.f32 %v6173, %v6189
      %v6206 = vmax.f32 %v6174, %v6190
      %v6207 = vmax.f32 %v6175, %v6191
      %v6208 = vmax.f32 %v6176, %v6192
      %v6209 = vmax.f32 %v6177, %v6193
      %v6210 = vmax.f32 %v6178, %v6194
      %v6211 = vmax.f32 %v6179, %v6195
      %v6212 = vmax.f32 %v6180, %v6196
      %v6213 = vmax.f32 %v6181, %v6197
      %v6214 = vld [vmem:[#allocation3 + $0x200] sm:$0xff]
      %v6215 = vld [vmem:[#allocation3 + $0x208] sm:$0xff]
      %v6216 = vld [vmem:[#allocation3 + $0x210] sm:$0xff]
      %v6217 = vld [vmem:[#allocation3 + $0x218] sm:$0xff]
      %v6218 = vld [vmem:[#allocation3 + $0x220] sm:$0xff]
      %v6219 = vld [vmem:[#allocation3 + $0x228] sm:$0xff]
      %v6220 = vld [vmem:[#allocation3 + $0x230] sm:$0xff]
      %v6221 = vld [vmem:[#allocation3 + $0x238] sm:$0xff]
      %v6222 = vld [vmem:[#allocation3 + $0x240] sm:$0xff]
      %v6223 = vld [vmem:[#allocation3 + $0x248] sm:$0xff]
      %v6224 = vld [vmem:[#allocation3 + $0x250] sm:$0xff]
      %v6225 = vld [vmem:[#allocation3 + $0x258] sm:$0xff]
      %v6226 = vld [vmem:[#allocation3 + $0x260] sm:$0xff]
      %v6227 = vld [vmem:[#allocation3 + $0x268] sm:$0xff]
      %v6228 = vld [vmem:[#allocation3 + $0x270] sm:$0xff]
      %v6229 = vld [vmem:[#allocation3 + $0x278] sm:$0xff]
      %v6230 = vmax.f32 %v6198, %v6214
      %v6231 = vmax.f32 %v6199, %v6215
      %v6232 = vmax.f32 %v6200, %v6216
      %v6233 = vmax.f32 %v6201, %v6217
      %v6234 = vmax.f32 %v6202, %v6218
      %v6235 = vmax.f32 %v6203, %v6219
      %v6236 = vmax.f32 %v6204, %v6220
      %v6237 = vmax.f32 %v6205, %v6221
      %v6238 = vmax.f32 %v6206, %v6222
      %v6239 = vmax.f32 %v6207, %v6223
      %v6240 = vmax.f32 %v6208, %v6224
      %v6241 = vmax.f32 %v6209, %v6225
      %v6242 = vmax.f32 %v6210, %v6226
      %v6243 = vmax.f32 %v6211, %v6227
      %v6244 = vmax.f32 %v6212, %v6228
      %v6245 = vmax.f32 %v6213, %v6229
      %v6246 = vld [vmem:[#allocation3 + $0x280] sm:$0xff]
      %v6247 = vld [vmem:[#allocation3 + $0x288] sm:$0xff]
      %v6248 = vld [vmem:[#allocation3 + $0x290] sm:$0xff]
      %v6249 = vld [vmem:[#allocation3 + $0x298] sm:$0xff]
      %v6250 = vld [vmem:[#allocation3 + $0x2a0] sm:$0xff]
      %v6251 = vld [vmem:[#allocation3 + $0x2a8] sm:$0xff]
      %v6252 = vld [vmem:[#allocation3 + $0x2b0] sm:$0xff]
      %v6253 = vld [vmem:[#allocation3 + $0x2b8] sm:$0xff]
      %v6254 = vld [vmem:[#allocation3 + $0x2c0] sm:$0xff]
      %v6255 = vld [vmem:[#allocation3 + $0x2c8] sm:$0xff]
      %v6256 = vld [vmem:[#allocation3 + $0x2d0] sm:$0xff]
      %v6257 = vld [vmem:[#allocation3 + $0x2d8] sm:$0xff]
      %v6258 = vld [vmem:[#allocation3 + $0x2e0] sm:$0xff]
      %v6259 = vld [vmem:[#allocation3 + $0x2e8] sm:$0xff]
      %v6260 = vld [vmem:[#allocation3 + $0x2f0] sm:$0xff]
      %v6261 = vld [vmem:[#allocation3 + $0x2f8] sm:$0xff]
      %v6262 = vmax.f32 %v6230, %v6246
      %v6263 = vmax.f32 %v6231, %v6247
      %v6264 = vmax.f32 %v6232, %v6248
      %v6265 = vmax.f32 %v6233, %v6249
      %v6266 = vmax.f32 %v6234, %v6250
      %v6267 = vmax.f32 %v6235, %v6251
      %v6268 = vmax.f32 %v6236, %v6252
      %v6269 = vmax.f32 %v6237, %v6253
      %v6270 = vmax.f32 %v6238, %v6254
      %v6271 = vmax.f32 %v6239, %v6255
      %v6272 = vmax.f32 %v6240, %v6256
      %v6273 = vmax.f32 %v6241, %v6257
      %v6274 = vmax.f32 %v6242, %v6258
      %v6275 = vmax.f32 %v6243, %v6259
      %v6276 = vmax.f32 %v6244, %v6260
      %v6277 = vmax.f32 %v6245, %v6261
      %v6278 = vld [vmem:[#allocation3 + $0x300] sm:$0xff]
      %v6279 = vld [vmem:[#allocation3 + $0x308] sm:$0xff]
      %v6280 = vld [vmem:[#allocation3 + $0x310] sm:$0xff]
      %v6281 = vld [vmem:[#allocation3 + $0x318] sm:$0xff]
      %v6282 = vld [vmem:[#allocation3 + $0x320] sm:$0xff]
      %v6283 = vld [vmem:[#allocation3 + $0x328] sm:$0xff]
      %v6284 = vld [vmem:[#allocation3 + $0x330] sm:$0xff]
      %v6285 = vld [vmem:[#allocation3 + $0x338] sm:$0xff]
      %v6286 = vld [vmem:[#allocation3 + $0x340] sm:$0xff]
      %v6287 = vld [vmem:[#allocation3 + $0x348] sm:$0xff]
      %v6288 = vld [vmem:[#allocation3 + $0x350] sm:$0xff]
      %v6289 = vld [vmem:[#allocation3 + $0x358] sm:$0xff]
      %v6290 = vld [vmem:[#allocation3 + $0x360] sm:$0xff]
      %v6291 = vld [vmem:[#allocation3 + $0x368] sm:$0xff]
      %v6292 = vld [vmem:[#allocation3 + $0x370] sm:$0xff]
      %v6293 = vld [vmem:[#allocation3 + $0x378] sm:$0xff]
      %v6294 = vmax.f32 %v6262, %v6278
      %v6295 = vmax.f32 %v6263, %v6279
      %v6296 = vmax.f32 %v6264, %v6280
      %v6297 = vmax.f32 %v6265, %v6281
      %v6298 = vmax.f32 %v6266, %v6282
      %v6299 = vmax.f32 %v6267, %v6283
      %v6300 = vmax.f32 %v6268, %v6284
      %v6301 = vmax.f32 %v6269, %v6285
      %v6302 = vmax.f32 %v6270, %v6286
      %v6303 = vmax.f32 %v6271, %v6287
      %v6304 = vmax.f32 %v6272, %v6288
      %v6305 = vmax.f32 %v6273, %v6289
      %v6306 = vmax.f32 %v6274, %v6290
      %v6307 = vmax.f32 %v6275, %v6291
      %v6308 = vmax.f32 %v6276, %v6292
      %v6309 = vmax.f32 %v6277, %v6293
      %v6310 = vld [vmem:[#allocation3 + $0x380] sm:$0xff]
      %v6311 = vld [vmem:[#allocation3 + $0x388] sm:$0xff]
      %v6312 = vld [vmem:[#allocation3 + $0x390] sm:$0xff]
      %v6313 = vld [vmem:[#allocation3 + $0x398] sm:$0xff]
      %v6314 = vld [vmem:[#allocation3 + $0x3a0] sm:$0xff]
      %v6315 = vld [vmem:[#allocation3 + $0x3a8] sm:$0xff]
      %v6316 = vld [vmem:[#allocation3 + $0x3b0] sm:$0xff]
      %v6317 = vld [vmem:[#allocation3 + $0x3b8] sm:$0xff]
      %v6318 = vld [vmem:[#allocation3 + $0x3c0] sm:$0xff]
      %v6319 = vld [vmem:[#allocation3 + $0x3c8] sm:$0xff]
      %v6320 = vld [vmem:[#allocation3 + $0x3d0] sm:$0xff]
      %v6321 = vld [vmem:[#allocation3 + $0x3d8] sm:$0xff]
      %v6322 = vld [vmem:[#allocation3 + $0x3e0] sm:$0xff]
      %v6323 = vld [vmem:[#allocation3 + $0x3e8] sm:$0xff]
      %v6324 = vld [vmem:[#allocation3 + $0x3f0] sm:$0xff]
      %v6325 = vld [vmem:[#allocation3 + $0x3f8] sm:$0xff]
      %v6326 = vmax.f32 %v6294, %v6310
      %v6327 = vmax.f32 %v6295, %v6311
      %v6328 = vmax.f32 %v6296, %v6312
      %v6329 = vmax.f32 %v6297, %v6313
      %v6330 = vmax.f32 %v6298, %v6314
      %v6331 = vmax.f32 %v6299, %v6315
      %v6332 = vmax.f32 %v6300, %v6316
      %v6333 = vmax.f32 %v6301, %v6317
      %v6334 = vmax.f32 %v6302, %v6318
      %v6335 = vmax.f32 %v6303, %v6319
      %v6336 = vmax.f32 %v6304, %v6320
      %v6337 = vmax.f32 %v6305, %v6321
      %v6338 = vmax.f32 %v6306, %v6322
      %v6339 = vmax.f32 %v6307, %v6323
      %v6340 = vmax.f32 %v6308, %v6324
      %v6341 = vmax.f32 %v6309, %v6325
      %v6342 = vlaneseq
      %v6343 = vshrl.u32 %v6342, 7
      %v6344 = vsub.s32 3, %v6343
      %v6345 = vrot.slane %v320, %v6344
      %v6346 = vadd.f32 %v6326, %v6345
      %v6347 = vadd.f32 %v6327, %v6345
      %v6348 = vadd.f32 %v6328, %v6345
      %v6349 = vadd.f32 %v6329, %v6345
      %v6350 = vadd.f32 %v6330, %v6345
      %v6351 = vadd.f32 %v6331, %v6345
      %v6352 = vadd.f32 %v6332, %v6345
      %v6353 = vadd.f32 %v6333, %v6345
      %v6354 = vadd.f32 %v6334, %v6345
      %v6355 = vadd.f32 %v6335, %v6345
      %v6356 = vadd.f32 %v6336, %v6345
      %v6357 = vadd.f32 %v6337, %v6345
      %v6358 = vadd.f32 %v6338, %v6345
      %v6359 = vadd.f32 %v6339, %v6345
      %v6360 = vadd.f32 %v6340, %v6345
      %v6361 = vadd.f32 %v6341, %v6345
      %v6362 = vmax.f32 %v6346, 0.0
      %v6363 = vmax.f32 %v6347, 0.0
      %v6364 = vmax.f32 %v6348, 0.0
      %v6365 = vmax.f32 %v6349, 0.0
      %v6366 = vmax.f32 %v6350, 0.0
      %v6367 = vmax.f32 %v6351, 0.0
      %v6368 = vmax.f32 %v6352, 0.0
      %v6369 = vmax.f32 %v6353, 0.0
      %v6370 = vmax.f32 %v6354, 0.0
      %v6371 = vmax.f32 %v6355, 0.0
      %v6372 = vmax.f32 %v6356, 0.0
      %v6373 = vmax.f32 %v6357, 0.0
      %v6374 = vmax.f32 %v6358, 0.0
      %v6375 = vmax.f32 %v6359, 0.0
      %v6376 = vmax.f32 %v6360, 0.0
      %v6377 = vmax.f32 %v6361, 0.0
      %v6378 = vlaneseq
      %v6379 = vshrl.u32 %v6378, 7
      %v6380 = vsub.s32 4, %v6379
      %v6381 = vrot.slane %v320, %v6380
      %v6383 = vand.u32 %v321, %v350
      %6385 = vmatprep.subr.bf16.mxu0 0
      %6386 = vmatpush1.bf16.msra.mxu0 %v6383
      %6387 = vmatprep.subr.bf16.mxu0 0
      %6388 = vmatpush1.bf16.msra.mxu0 0
      %6389 = vmatprep.subr.bf16.mxu0 0
      %6390 = vmatpush1.bf16.msra.mxu0 0
      %6391 = vmatprep.subr.bf16.mxu0 0
      %6392 = vmatpush1.bf16.msra.mxu0 0
      %6393 = vmatprep.subr.bf16.mxu0 0
      %6394 = vmatpush1.bf16.msra.mxu0 0
      %6395 = vmatprep.subr.bf16.mxu0 0
      %6396 = vmatpush1.bf16.msra.mxu0 0
      %6397 = vmatprep.subr.bf16.mxu0 0
      %6398 = vmatpush1.bf16.msra.mxu0 0
      %6399 = vmatprep.subr.bf16.mxu0 0
      %6400 = vmatpush1.bf16.msra.mxu0 0
      %6401 = vmatprep.subr.bf16.mxu0 0
      %6402 = vmatpush1.bf16.msra.mxu0 0
      %6403 = vmatprep.subr.bf16.mxu0 0
      %6404 = vmatpush1.bf16.msra.mxu0 0
      %6405 = vmatprep.subr.bf16.mxu0 0
      %6406 = vmatpush1.bf16.msra.mxu0 0
      %6407 = vmatprep.subr.bf16.mxu0 0
      %6408 = vmatpush1.bf16.msra.mxu0 0
      %6409 = vmatprep.subr.bf16.mxu0 0
      %6410 = vmatpush1.bf16.msra.mxu0 0
      %6411 = vmatprep.subr.bf16.mxu0 0
      %6412 = vmatpush1.bf16.msra.mxu0 0
      %6413 = vmatprep.subr.bf16.mxu0 0
      %6414 = vmatpush1.bf16.msra.mxu0 0
      %6415 = vmatprep.subr.bf16.mxu0 0
      %6416 = vmatpush1.bf16.msra.mxu0 0
      %6417 = vmatprep.mubr.bf16.mxu0 0
      %6418 = vmatmul.mubr.bf16.gmra.mrb[0].mxu0 %v324
      %v6419 = vpop.f32.mrb[0].mxu0
      %v6420 = vadd.f32 %v6381, %v6419
      %v6421 = vpop.f32.mrb[0].mxu0
      %v6422 = vpop.f32.mrb[0].mxu0
      %v6423 = vadd.f32 %v6381, %v6422
      %v6424 = vpop.f32.mrb[0].mxu0
      %6425 = vmatprep.mubr.bf16.mxu0 0
      %6426 = vmatmul.mubr.bf16.gmra.mrb[0].mxu0 %v327
      %v6427 = vpop.f32.mrb[0].mxu0
      %v6428 = vadd.f32 %v6381, %v6427
      %v6429 = vpop.f32.mrb[0].mxu0
      %v6430 = vpop.f32.mrb[0].mxu0
      %v6431 = vadd.f32 %v6381, %v6430
      %v6432 = vpop.f32.mrb[0].mxu0
      %6433 = vmatprep.mubr.bf16.mxu0 0
      %6434 = vmatmul.mubr.bf16.gmra.mrb[0].mxu0 %v330
      %v6435 = vpop.f32.mrb[0].mxu0
      %v6436 = vadd.f32 %v6381, %v6435
      %v6437 = vpop.f32.mrb[0].mxu0
      %v6438 = vpop.f32.mrb[0].mxu0
      %v6439 = vadd.f32 %v6381, %v6438
      %v6440 = vpop.f32.mrb[0].mxu0
      %6441 = vmatprep.mubr.bf16.mxu0 0
      %6442 = vmatmul.mubr.bf16.gmra.mrb[0].mxu0 %v333
      %v6443 = vpop.f32.mrb[0].mxu0
      %v6444 = vadd.f32 %v6381, %v6443
      %v6445 = vpop.f32.mrb[0].mxu0
      %v6446 = vpop.f32.mrb[0].mxu0
      %v6447 = vadd.f32 %v6381, %v6446
      %v6448 = vpop.f32.mrb[0].mxu0
      %6449 = vmatprep.mubr.bf16.mxu0 0
      %6450 = vmatmul.mubr.bf16.gmra.mrb[0].mxu0 %v336
      %v6451 = vpop.f32.mrb[0].mxu0
      %v6452 = vadd.f32 %v6381, %v6451
      %v6453 = vpop.f32.mrb[0].mxu0
      %v6454 = vpop.f32.mrb[0].mxu0
      %v6455 = vadd.f32 %v6381, %v6454
      %v6456 = vpop.f32.mrb[0].mxu0
      %6457 = vmatprep.mubr.bf16.mxu0 0
      %6458 = vmatmul.mubr.bf16.gmra.mrb[0].mxu0 %v339
      %v6459 = vpop.f32.mrb[0].mxu0
      %v6460 = vadd.f32 %v6381, %v6459
      %v6461 = vpop.f32.mrb[0].mxu0
      %v6462 = vpop.f32.mrb[0].mxu0
      %v6463 = vadd.f32 %v6381, %v6462
      %v6464 = vpop.f32.mrb[0].mxu0
      %6465 = vmatprep.mubr.bf16.mxu0 0
      %6466 = vmatmul.mubr.bf16.gmra.mrb[0].mxu0 %v342
      %v6467 = vpop.f32.mrb[0].mxu0
      %v6468 = vadd.f32 %v6381, %v6467
      %v6469 = vpop.f32.mrb[0].mxu0
      %v6470 = vpop.f32.mrb[0].mxu0
      %v6471 = vadd.f32 %v6381, %v6470
      %v6472 = vpop.f32.mrb[0].mxu0
      %6473 = vmatprep.mubr.bf16.mxu0 0
      %6474 = vmatmul.mubr.bf16.gmra.mrb[0].mxu0 %v345
      %v6475 = vpop.f32.mrb[0].mxu0
      %v6476 = vadd.f32 %v6381, %v6475
      %v6477 = vpop.f32.mrb[0].mxu0
      %v6478 = vpop.f32.mrb[0].mxu0
      %v6479 = vadd.f32 %v6381, %v6478
      %v6480 = vpop.f32.mrb[0].mxu0
      %6481 = vdwg.mxu0
      %v6482 = vmax.f32 %v6420, 0.0
      %v6483 = vmax.f32 %v6423, 0.0
      %v6484 = vmax.f32 %v6428, 0.0
      %v6485 = vmax.f32 %v6431, 0.0
      %v6486 = vmax.f32 %v6436, 0.0
      %v6487 = vmax.f32 %v6439, 0.0
      %v6488 = vmax.f32 %v6444, 0.0
      %v6489 = vmax.f32 %v6447, 0.0
      %v6490 = vmax.f32 %v6452, 0.0
      %v6491 = vmax.f32 %v6455, 0.0
      %v6492 = vmax.f32 %v6460, 0.0
      %v6493 = vmax.f32 %v6463, 0.0
      %v6494 = vmax.f32 %v6468, 0.0
      %v6495 = vmax.f32 %v6471, 0.0
      %v6496 = vmax.f32 %v6476, 0.0
      %v6497 = vmax.f32 %v6479, 0.0
      %v6498 = vpack.c.bf16 %v6483, %v6482
      %v6499 = vpack.c.bf16 %v6485, %v6484
      %v6500 = vpack.c.bf16 %v6487, %v6486
      %v6501 = vpack.c.bf16 %v6489, %v6488
      %v6502 = vpack.c.bf16 %v6491, %v6490
      %v6503 = vpack.c.bf16 %v6493, %v6492
      %v6504 = vpack.c.bf16 %v6495, %v6494
      %v6505 = vpack.c.bf16 %v6497, %v6496
      %v6506 = vld [vmem:[%s4] sm:$0xf]
      %v6507 = vld [vmem:[%s4 + $0x4] sm:$0xf]
      %v6508 = vld [vmem:[%s4 + $0x8] sm:$0xf]
      %v6509 = vld [vmem:[%s4 + $0xc] sm:$0xf]
      %v6510 = vpack.c.bf16 %v6363, %v6362
      %v6511 = vpack.c.bf16 %v6365, %v6364
      %v6512 = vpack.c.bf16 %v6367, %v6366
      %v6513 = vpack.c.bf16 %v6369, %v6368
      %v6514 = vpack.c.bf16 %v6371, %v6370
      %v6515 = vpack.c.bf16 %v6373, %v6372
      %v6516 = vpack.c.bf16 %v6375, %v6374
      %v6517 = vpack.c.bf16 %v6377, %v6376
      %v6518 = vld [vmem:[%s5] sm:$0xf]
      %v6519 = vld [vmem:[%s5 + $0x4] sm:$0xf]
      %v6520 = vld [vmem:[%s5 + $0x8] sm:$0xf]
      %v6521 = vld [vmem:[%s5 + $0xc] sm:$0xf]
      %v6526 = vunpack.c.l.b16 %v6518
      %v6527 = vunpack.c.l.b16 %v6519
      %v6528 = vunpack.c.l.b16 %v6520
      %v6529 = vunpack.c.l.b16 %v6521
      %v6530 = vpack.c.b16 %v6527, %v6526
      %v6531 = vpack.c.b16 %v6529, %v6528
      %v6535 = vsel %vm5973, %v6510, 0
      %v6538 = vsel %vm5973, %v6511, 0
      %v6541 = vsel %vm5973, %v6512, 0
      %v6544 = vsel %vm5973, %v6513, 0
      %v6547 = vsel %vm5973, %v6514, 0
      %v6550 = vsel %vm5973, %v6515, 0
      %v6553 = vsel %vm5973, %v6516, 0
      %v6556 = vsel %vm5973, %v6517, 0
      %6558 = vmatprep.subr.bf16.mxu0 0
      %6559 = vmatpush1.bf16.msra.mxu0 %v6530
      %6560 = vmatprep.subr.bf16.mxu0 0
      %6561 = vmatpush1.bf16.msra.mxu0 %v6531
      %6562 = vmatprep.subr.bf16.mxu0 0
      %6563 = vmatpush1.bf16.msra.mxu0 0
      %6564 = vmatprep.subr.bf16.mxu0 0
      %6565 = vmatpush1.bf16.msra.mxu0 0
      %6566 = vmatprep.subr.bf16.mxu0 0
      %6567 = vmatpush1.bf16.msra.mxu0 0
      %6568 = vmatprep.subr.bf16.mxu0 0
      %6569 = vmatpush1.bf16.msra.mxu0 0
      %6570 = vmatprep.subr.bf16.mxu0 0
      %6571 = vmatpush1.bf16.msra.mxu0 0
      %6572 = vmatprep.subr.bf16.mxu0 0
      %6573 = vmatpush1.bf16.msra.mxu0 0
      %6574 = vmatprep.subr.bf16.mxu0 0
      %6575 = vmatpush1.bf16.msra.mxu0 0
      %6576 = vmatprep.subr.bf16.mxu0 0
      %6577 = vmatpush1.bf16.msra.mxu0 0
      %6578 = vmatprep.subr.bf16.mxu0 0
      %6579 = vmatpush1.bf16.msra.mxu0 0
      %6580 = vmatprep.subr.bf16.mxu0 0
      %6581 = vmatpush1.bf16.msra.mxu0 0
      %6582 = vmatprep.subr.bf16.mxu0 0
      %6583 = vmatpush1.bf16.msra.mxu0 0
      %6584 = vmatprep.subr.bf16.mxu0 0
      %6585 = vmatpush1.bf16.msra.mxu0 0
      %6586 = vmatprep.subr.bf16.mxu0 0
      %6587 = vmatpush1.bf16.msra.mxu0 0
      %6588 = vmatprep.subr.bf16.mxu0 0
      %6589 = vmatpush1.bf16.msra.mxu0 0
      %6590 = vmatprep.mubr.bf16.mxu0 0
      %6591 = vmatmul.mubr.bf16.gmra.mrb[0].mxu0 %v6535
      %v6592 = vpop.f32.mrb[0].mxu0
      %v6593 = vadd.f32 0.0, %v6592
      %v6594 = vpop.f32.mrb[0].mxu0
      %v6595 = vpop.f32.mrb[0].mxu0
      %v6596 = vadd.f32 0.0, %v6595
      %v6597 = vpop.f32.mrb[0].mxu0
      %6598 = vmatprep.mubr.bf16.mxu0 0
      %6599 = vmatmul.mubr.bf16.gmra.mrb[0].mxu0 %v6538
      %v6600 = vpop.f32.mrb[0].mxu0
      %v6601 = vadd.f32 0.0, %v6600
      %v6602 = vpop.f32.mrb[0].mxu0
      %v6603 = vpop.f32.mrb[0].mxu0
      %v6604 = vadd.f32 0.0, %v6603
      %v6605 = vpop.f32.mrb[0].mxu0
      %6606 = vmatprep.mubr.bf16.mxu0 0
      %6607 = vmatmul.mubr.bf16.gmra.mrb[0].mxu0 %v6541
      %v6608 = vpop.f32.mrb[0].mxu0
      %v6609 = vadd.f32 0.0, %v6608
      %v6610 = vpop.f32.mrb[0].mxu0
      %v6611 = vpop.f32.mrb[0].mxu0
      %v6612 = vadd.f32 0.0, %v6611
      %v6613 = vpop.f32.mrb[0].mxu0
      %6614 = vmatprep.mubr.bf16.mxu0 0
      %6615 = vmatmul.mubr.bf16.gmra.mrb[0].mxu0 %v6544
      %v6616 = vpop.f32.mrb[0].mxu0
      %v6617 = vadd.f32 0.0, %v6616
      %v6618 = vpop.f32.mrb[0].mxu0
      %v6619 = vpop.f32.mrb[0].mxu0
      %v6620 = vadd.f32 0.0, %v6619
      %v6621 = vpop.f32.mrb[0].mxu0
      %6622 = vmatprep.mubr.bf16.mxu0 0
      %6623 = vmatmul.mubr.bf16.gmra.mrb[0].mxu0 %v6547
      %v6624 = vpop.f32.mrb[0].mxu0
      %v6625 = vadd.f32 0.0, %v6624
      %v6626 = vpop.f32.mrb[0].mxu0
      %v6627 = vpop.f32.mrb[0].mxu0
      %v6628 = vadd.f32 0.0, %v6627
      %v6629 = vpop.f32.mrb[0].mxu0
      %6630 = vmatprep.mubr.bf16.mxu0 0
      %6631 = vmatmul.mubr.bf16.gmra.mrb[0].mxu0 %v6550
      %v6632 = vpop.f32.mrb[0].mxu0
      %v6633 = vadd.f32 0.0, %v6632
      %v6634 = vpop.f32.mrb[0].mxu0
      %v6635 = vpop.f32.mrb[0].mxu0
      %v6636 = vadd.f32 0.0, %v6635
      %v6637 = vpop.f32.mrb[0].mxu0
      %6638 = vmatprep.mubr.bf16.mxu0 0
      %6639 = vmatmul.mubr.bf16.gmra.mrb[0].mxu0 %v6553
      %v6640 = vpop.f32.mrb[0].mxu0
      %v6641 = vadd.f32 0.0, %v6640
      %v6642 = vpop.f32.mrb[0].mxu0
      %v6643 = vpop.f32.mrb[0].mxu0
      %v6644 = vadd.f32 0.0, %v6643
      %v6645 = vpop.f32.mrb[0].mxu0
      %6646 = vmatprep.mubr.bf16.mxu0 0
      %6647 = vmatmul.mubr.bf16.gmra.mrb[0].mxu0 %v6556
      %v6648 = vpop.f32.mrb[0].mxu0
      %v6649 = vadd.f32 0.0, %v6648
      %v6650 = vpop.f32.mrb[0].mxu0
      %v6651 = vpop.f32.mrb[0].mxu0
      %v6652 = vadd.f32 0.0, %v6651
      %v6653 = vpop.f32.mrb[0].mxu0
      %6654 = vdwg.mxu0
      %v6659 = vunpack.c.l.b16 %v6506
      %v6660 = vunpack.c.l.b16 %v6507
      %v6661 = vunpack.c.l.b16 %v6508
      %v6662 = vunpack.c.l.b16 %v6509
      %v6663 = vpack.c.b16 %v6660, %v6659
      %v6664 = vpack.c.b16 %v6662, %v6661
      %v6668 = vsel %vm5973, %v6498, 0
      %v6671 = vsel %vm5973, %v6499, 0
      %v6674 = vsel %vm5973, %v6500, 0
      %v6677 = vsel %vm5973, %v6501, 0
      %v6680 = vsel %vm5973, %v6502, 0
      %v6683 = vsel %vm5973, %v6503, 0
      %v6686 = vsel %vm5973, %v6504, 0
      %v6689 = vsel %vm5973, %v6505, 0
      %6691 = vmatprep.subr.bf16.mxu0 0
      %6692 = vmatpush1.bf16.msra.mxu0 %v6663
      %6693 = vmatprep.subr.bf16.mxu0 0
      %6694 = vmatpush1.bf16.msra.mxu0 %v6664
      %6695 = vmatprep.subr.bf16.mxu0 0
      %6696 = vmatpush1.bf16.msra.mxu0 0
      %6697 = vmatprep.subr.bf16.mxu0 0
      %6698 = vmatpush1.bf16.msra.mxu0 0
      %6699 = vmatprep.subr.bf16.mxu0 0
      %6700 = vmatpush1.bf16.msra.mxu0 0
      %6701 = vmatprep.subr.bf16.mxu0 0
      %6702 = vmatpush1.bf16.msra.mxu0 0
      %6703 = vmatprep.subr.bf16.mxu0 0
      %6704 = vmatpush1.bf16.msra.mxu0 0
      %6705 = vmatprep.subr.bf16.mxu0 0
      %6706 = vmatpush1.bf16.msra.mxu0 0
      %6707 = vmatprep.subr.bf16.mxu0 0
      %6708 = vmatpush1.bf16.msra.mxu0 0
      %6709 = vmatprep.subr.bf16.mxu0 0
      %6710 = vmatpush1.bf16.msra.mxu0 0
      %6711 = vmatprep.subr.bf16.mxu0 0
      %6712 = vmatpush1.bf16.msra.mxu0 0
      %6713 = vmatprep.subr.bf16.mxu0 0
      %6714 = vmatpush1.bf16.msra.mxu0 0
      %6715 = vmatprep.subr.bf16.mxu0 0
      %6716 = vmatpush1.bf16.msra.mxu0 0
      %6717 = vmatprep.subr.bf16.mxu0 0
      %6718 = vmatpush1.bf16.msra.mxu0 0
      %6719 = vmatprep.subr.bf16.mxu0 0
      %6720 = vmatpush1.bf16.msra.mxu0 0
      %6721 = vmatprep.subr.bf16.mxu0 0
      %6722 = vmatpush1.bf16.msra.mxu0 0
      %6723 = vmatprep.mubr.bf16.mxu0 0
      %6724 = vmatmul.mubr.bf16.gmra.mrb[0].mxu0 %v6668
      %v6725 = vpop.f32.mrb[0].mxu0
      %v6726 = vadd.f32 %v6593, %v6725
      %v6727 = vpop.f32.mrb[0].mxu0
      %v6728 = vpop.f32.mrb[0].mxu0
      %v6729 = vadd.f32 %v6596, %v6728
      %v6730 = vpop.f32.mrb[0].mxu0
      %6731 = vmatprep.mubr.bf16.mxu0 0
      %6732 = vmatmul.mubr.bf16.gmra.mrb[0].mxu0 %v6671
      %v6733 = vpop.f32.mrb[0].mxu0
      %v6734 = vadd.f32 %v6601, %v6733
      %v6735 = vpop.f32.mrb[0].mxu0
      %v6736 = vpop.f32.mrb[0].mxu0
      %v6737 = vadd.f32 %v6604, %v6736
      %v6738 = vpop.f32.mrb[0].mxu0
      %6739 = vmatprep.mubr.bf16.mxu0 0
      %6740 = vmatmul.mubr.bf16.gmra.mrb[0].mxu0 %v6674
      %v6741 = vpop.f32.mrb[0].mxu0
      %v6742 = vadd.f32 %v6609, %v6741
      %v6743 = vpop.f32.mrb[0].mxu0
      %v6744 = vpop.f32.mrb[0].mxu0
      %v6745 = vadd.f32 %v6612, %v6744
      %v6746 = vpop.f32.mrb[0].mxu0
      %6747 = vmatprep.mubr.bf16.mxu0 0
      %6748 = vmatmul.mubr.bf16.gmra.mrb[0].mxu0 %v6677
      %v6749 = vpop.f32.mrb[0].mxu0
      %v6750 = vadd.f32 %v6617, %v6749
      %v6751 = vpop.f32.mrb[0].mxu0
      %v6752 = vpop.f32.mrb[0].mxu0
      %v6753 = vadd.f32 %v6620, %v6752
      %v6754 = vpop.f32.mrb[0].mxu0
      %6755 = vmatprep.mubr.bf16.mxu0 0
      %6756 = vmatmul.mubr.bf16.gmra.mrb[0].mxu0 %v6680
      %v6757 = vpop.f32.mrb[0].mxu0
      %v6758 = vadd.f32 %v6625, %v6757
      %v6759 = vpop.f32.mrb[0].mxu0
      %v6760 = vpop.f32.mrb[0].mxu0
      %v6761 = vadd.f32 %v6628, %v6760
      %v6762 = vpop.f32.mrb[0].mxu0
      %6763 = vmatprep.mubr.bf16.mxu0 0
      %6764 = vmatmul.mubr.bf16.gmra.mrb[0].mxu0 %v6683
      %v6765 = vpop.f32.mrb[0].mxu0
      %v6766 = vadd.f32 %v6633, %v6765
      %v6767 = vpop.f32.mrb[0].mxu0
      %v6768 = vpop.f32.mrb[0].mxu0
      %v6769 = vadd.f32 %v6636, %v6768
      %v6770 = vpop.f32.mrb[0].mxu0
      %6771 = vmatprep.mubr.bf16.mxu0 0
      %6772 = vmatmul.mubr.bf16.gmra.mrb[0].mxu0 %v6686
      %v6773 = vpop.f32.mrb[0].mxu0
      %v6774 = vadd.f32 %v6641, %v6773
      %v6775 = vpop.f32.mrb[0].mxu0
      %v6776 = vpop.f32.mrb[0].mxu0
      %v6777 = vadd.f32 %v6644, %v6776
      %v6778 = vpop.f32.mrb[0].mxu0
      %6779 = vmatprep.mubr.bf16.mxu0 0
      %6780 = vmatmul.mubr.bf16.gmra.mrb[0].mxu0 %v6689
      %v6781 = vpop.f32.mrb[0].mxu0
      %v6782 = vadd.f32 %v6649, %v6781
      %v6783 = vpop.f32.mrb[0].mxu0
      %v6784 = vpop.f32.mrb[0].mxu0
      %v6785 = vadd.f32 %v6652, %v6784
      %v6786 = vpop.f32.mrb[0].mxu0
      %6787 = vdwg.mxu0
      %v6788 = vlaneseq
      %v6789 = vshrl.u32 %v6788, 7
      %v6790 = vsub.s32 5, %v6789
      %v6791 = vrot.slane %v320, %v6790
      %v6792 = vadd.f32 %v6726, %v6791
      %v6793 = vadd.f32 %v6729, %v6791
      %v6794 = vadd.f32 %v6734, %v6791
      %v6795 = vadd.f32 %v6737, %v6791
      %v6796 = vadd.f32 %v6742, %v6791
      %v6797 = vadd.f32 %v6745, %v6791
      %v6798 = vadd.f32 %v6750, %v6791
      %v6799 = vadd.f32 %v6753, %v6791
      %v6800 = vadd.f32 %v6758, %v6791
      %v6801 = vadd.f32 %v6761, %v6791
      %v6802 = vadd.f32 %v6766, %v6791
      %v6803 = vadd.f32 %v6769, %v6791
      %v6804 = vadd.f32 %v6774, %v6791
      %v6805 = vadd.f32 %v6777, %v6791
      %v6806 = vadd.f32 %v6782, %v6791
      %v6807 = vadd.f32 %v6785, %v6791
      %v6808 = vmax.f32 %v6792, 0.0
      %v6809 = vmax.f32 %v6793, 0.0
      %v6810 = vmax.f32 %v6794, 0.0
      %v6811 = vmax.f32 %v6795, 0.0
      %v6812 = vmax.f32 %v6796, 0.0
      %v6813 = vmax.f32 %v6797, 0.0
      %v6814 = vmax.f32 %v6798, 0.0
      %v6815 = vmax.f32 %v6799, 0.0
      %v6816 = vmax.f32 %v6800, 0.0
      %v6817 = vmax.f32 %v6801, 0.0
      %v6818 = vmax.f32 %v6802, 0.0
      %v6819 = vmax.f32 %v6803, 0.0
      %v6820 = vmax.f32 %v6804, 0.0
      %v6821 = vmax.f32 %v6805, 0.0
      %v6822 = vmax.f32 %v6806, 0.0
      %v6823 = vmax.f32 %v6807, 0.0
      %6824 = vst.msk [vmem:[%s289] sm:$0xff] %vm5973, %v6808
      %6825 = vst.msk [vmem:[%s289 + $0x8] sm:$0xff] %vm5973, %v6809
      %6826 = vst.msk [vmem:[%s289 + $0x10] sm:$0xff] %vm5973, %v6810
      %6827 = vst.msk [vmem:[%s289 + $0x18] sm:$0xff] %vm5973, %v6811
      %6828 = vst.msk [vmem:[%s289 + $0x20] sm:$0xff] %vm5973, %v6812
      %6829 = vst.msk [vmem:[%s289 + $0x28] sm:$0xff] %vm5973, %v6813
      %6830 = vst.msk [vmem:[%s289 + $0x30] sm:$0xff] %vm5973, %v6814
      %6831 = vst.msk [vmem:[%s289 + $0x38] sm:$0xff] %vm5973, %v6815
      %6832 = vst.msk [vmem:[%s289 + $0x40] sm:$0xff] %vm5973, %v6816
      %6833 = vst.msk [vmem:[%s289 + $0x48] sm:$0xff] %vm5973, %v6817
      %6834 = vst.msk [vmem:[%s289 + $0x50] sm:$0xff] %vm5973, %v6818
      %6835 = vst.msk [vmem:[%s289 + $0x58] sm:$0xff] %vm5973, %v6819
      %6836 = vst.msk [vmem:[%s289 + $0x60] sm:$0xff] %vm5973, %v6820
      %6837 = vst.msk [vmem:[%s289 + $0x68] sm:$0xff] %vm5973, %v6821
      %6838 = vst.msk [vmem:[%s289 + $0x70] sm:$0xff] %vm5973, %v6822
      %6839 = vst.msk [vmem:[%s289 + $0x78] sm:$0xff] %vm5973, %v6823
      %s6840 = smul.u32 16, %s22
      %p6841 = scmp.lt.s32.totalorder %s21, 1
      %s6842 = scalar_select %p6841, %s21, 1
      %p6843 = scmp.lt.s32.totalorder %s6840, 15
      %s6844 = scalar_select %p6843, %s6840, 15
      %s6845 = smul.addr %s6842, 16
      %s6846 = sadd.s32 %s6844, %s6845
      %s6847 = smul.addr %s6846, 8
      %s6848 = scalar_lea.vmem %s6, %s6847
      // Predicated region
      $region45: #{nbr_agg_forward.3} parent=43 // pred_check
        %p6849 = pneg %p182
      $region46: #{nbr_agg_forward.3} parent=43 // pred_check_branch
        %6851 = sbr.rel (%p6849) target = $region48
      $region47: #{nbr_agg_forward.3} parent=43 // pred_region
        %s6852 = smul.u32 16, %s22
      $region48: #{nbr_agg_forward.3} parent=43 // pred_fallthru
        _
    $region44: #{nbr_agg_forward.3} parent=5 // pred_fallthru
      _
    %p6853 = scmp.le.s32.totalorder 2, %s12
    // Predicated region
    $region49: #{nbr_agg_forward.3} parent=5 // pred_check
      %p6854 = pneg %p6853
    $region50: #{nbr_agg_forward.3} parent=5 // pred_check_branch
      %6856 = sbr.rel (%p6854) target = $region52
    $region51: #{nbr_agg_forward.3} parent=5 // pred_region
      %s6857 = ssub.s32 %s12, 2
      // Predicated region
      $region53: #{nbr_agg_forward.3} parent=51 // pred_check
        %p6858 = pneg %p188
      $region54: #{nbr_agg_forward.3} parent=51 // pred_check_branch
        %6860 = sbr.rel (%p6858) target = $region56
      $region55: #{nbr_agg_forward.3} parent=51 // pred_region
        %s6861 = smul.u32 16, %s24
        %p6862 = scmp.lt.s32.totalorder %s23, 1
        %s6863 = scalar_select %p6862, %s23, 1
        %p6864 = scmp.lt.s32.totalorder %s6861, 15
        %s6865 = scalar_select %p6864, %s6861, 15
        %s6866 = smul.addr %s6863, 16
        %s6867 = sadd.s32 %s6865, %s6866
        %s6868 = smul.addr %s6867, 8
        %s6869 = scalar_lea.vmem %s6, %s6868
      $region56: #{nbr_agg_forward.3} parent=51 // pred_fallthru
        _
    $region52: #{nbr_agg_forward.3} parent=5 // pred_fallthru
      _
  $region6: #{nbr_agg_forward.3} parent=0 // loop_footer
    %s16 = sadd.s32 1, %s12
  $region7: #{nbr_agg_forward.3} parent=0 // loop_footer_branch
    %11 = sbr.rel target = $region3
  $region8: #{nbr_agg_forward.3} parent=0 // loop_exit
    _

</llo_original>
